<compile_context>
chip_gen: v7x
topology: tpu7x:2x2x1
jax: 0.10.0
libtpu: 0.0.40
codegen_flags: <defaults>
</compile_context>

<pallas_src>
import functools

import jax
import jax.numpy as jnp
from jax.experimental import pallas as pl
from jax.experimental.pallas import tpu as pltpu


_LN_EPS = 1e-5
_INV_SQRT2 = 0.7071067811865476


# ----------------------------- in-kernel math -------------------------------

def _erf_f32(x):
    # torch.nn.GELU() uses exact erf; Mosaic has no erf primitive, so use the
    # Numerical Recipes erfc rational approximation (|err| < 1.2e-7) built from
    # exp/mul/add.  The exp rides the EUP slot; the polynomial is VALU work.
    a = jnp.abs(x)
    t = 1.0 / (1.0 + 0.5 * a)
    poly = (-1.26551223 + t * (1.00002368 + t * (0.37409196 + t * (0.09678418 +
            t * (-0.18628806 + t * (0.27886807 + t * (-1.13520398 + t * (1.48851587 +
            t * (-0.82215223 + t * 0.17087277)))))))))
    erfc = t * jnp.exp(-a * a + poly)
    return jnp.where(x >= 0.0, 1.0 - erfc, erfc - 1.0)


def _gelu_exact(x):
    # TODO(synk): switch to tanh-approx GELU if profiling shows the erf
    # polynomial is the binding VALU slot once the MXU is properly fed.
    return 0.5 * x * (1.0 + _erf_f32(x * _INV_SQRT2))


def _layernorm(x, gamma, beta):
    mu = jnp.mean(x, axis=-1, keepdims=True)
    var = jnp.mean(jnp.square(x - mu), axis=-1, keepdims=True)
    return (x - mu) * jax.lax.rsqrt(var + _LN_EPS) * gamma + beta


def _mm(a_f32, w_bf16):
    # bf16 MXU operands, f32 accumulation.
    return jnp.dot(a_f32.astype(jnp.bfloat16), w_bf16,
                   preferred_element_type=jnp.float32)


# --------------------------------- kernel -----------------------------------

def fuse_kernel(idx_ref, flat_ref, id_ref,
                ln1gp_ref, ln1gi_ref, ln1bp_ref, ln1bi_ref,
                w1p_ref, w1i_ref, b1_ref, w2_ref, b2_ref,
                ln2g_ref, ln2b_ref, w3_ref, b3_ref, w4_ref, b4_ref,
                lnfg_ref, lnfb_ref,
                out_ref,
                pbuf, obuf, in_sems, out_sems):
    tile = pl.program_id(0)
    tn, d = pbuf.shape
    base = tile * tn

    # ---- gather: masked prompt (class-token) rows, HBM -> VMEM -------------
    rows = [idx_ref[base + r] for r in range(tn)]
    gathers = [
        pltpu.make_async_copy(
            # padded slots (-1) clamp to row 0; their result is never written
            flat_ref.at[pl.ds(jnp.maximum(rows[r], 0), 1), :],
            pbuf.at[pl.ds(r, 1), :],
            in_sems.at[r])
        for r in range(tn)
    ]
    for cp in gathers:
        cp.start()
    for cp in gathers:
        cp.wait()

    pe = pbuf[...].astype(jnp.float32)     # (tn, d) gathered prompt rows
    ide = id_ref[...].astype(jnp.float32)  # (tn, d) id embeddings

    # ---- MLP1: LayerNorm over cat([pe, ide], -1) without the concat --------
    two_d = jnp.float32(2 * d)
    mu = (jnp.sum(pe, -1, keepdims=True) + jnp.sum(ide, -1, keepdims=True)) / two_d
    var = (jnp.sum(jnp.square(pe - mu), -1, keepdims=True)
           + jnp.sum(jnp.square(ide - mu), -1, keepdims=True)) / two_d
    inv = jax.lax.rsqrt(var + _LN_EPS)
    xp = (pe - mu) * inv * ln1gp_ref[...] + ln1bp_ref[...]
    xi = (ide - mu) * inv * ln1gi_ref[...] + ln1bi_ref[...]

    h = _mm(xp, w1p_ref[...]) + _mm(xi, w1i_ref[...]) + b1_ref[...]
    h = _gelu_exact(h)
    y = _mm(h, w2_ref[...]) + b2_ref[...]
    y = y + pe                                   # fuse_fn: mlp1(cat) + prompt

    # ---- MLP2 (use_residual=True) -------------------------------------------
    z = _layernorm(y, ln2g_ref[...], ln2b_ref[...])
    z = _mm(z, w3_ref[...]) + b3_ref[...]
    z = _gelu_exact(z)
    z = _mm(z, w4_ref[...]) + b4_ref[...]
    z = z + y

    # ---- final LayerNorm, stage result for writeback ------------------------
    obuf[...] = _layernorm(z, lnfg_ref[...], lnfb_ref[...]).astype(obuf.dtype)

    # ---- scatter: fused rows back to their masked slots, VMEM -> HBM --------
    scatters = [
        (pltpu.make_async_copy(
            obuf.at[pl.ds(r, 1), :],
            out_ref.at[pl.ds(jnp.maximum(rows[r], 0), 1), :],
            out_sems.at[r]),
         rows[r] >= 0)                           # skip padded (-1) slots
        for r in range(tn)
    ]
    for cp, valid in scatters:
        @pl.when(valid)
        def _(cp=cp):
            cp.start()
    for cp, valid in scatters:
        @pl.when(valid)
        def _(cp=cp):
            cp.wait()


# ------------------------------ pallas_call ----------------------------------

def _fuse_pallas_call(n_rows_flat, n_pad, d, dtype, kparams, row_tile,
                      single_buffer_params):
    num_tiles = n_pad // row_tile

    if single_buffer_params:
        # Params never change across the grid; one VMEM buffer halves their
        # footprint vs. the default double-buffering.
        def param_spec(p):
            return pl.BlockSpec(p.shape, lambda i: (0, 0),
                                pipeline_mode=pl.Buffered(1))
    else:
        def param_spec(p):
            return pl.BlockSpec(p.shape, lambda i: (0, 0))
    param_specs = [param_spec(p) for p in kparams]

    # Explicit VMEM budget: single/double-buffered params + activation tiles.
    param_bytes = sum(int(p.size) * p.dtype.itemsize for p in kparams)
    bufs = 1 if single_buffer_params else 2
    needed = (param_bytes * bufs
              + row_tile * d * 4 * 8                 # scratch + f32 temporaries
              + row_tile * d * dtype.itemsize * 4)   # id block (double buffered)
    vmem_limit = int(min(64 << 20, max(32 << 20, needed + (4 << 20))))

    return pl.pallas_call(
        fuse_kernel,
        out_shape=jax.ShapeDtypeStruct((n_rows_flat, d), dtype),
        grid=(num_tiles,),
        in_specs=(
            [pl.BlockSpec(memory_space=pltpu.MemorySpace.SMEM),   # row indices
             pl.BlockSpec(memory_space=pl.ANY),                    # flat prompt (HBM, aliased)
             pl.BlockSpec((row_tile, d), lambda i: (i, 0))]        # id rows
            + param_specs),
        out_specs=pl.BlockSpec(memory_space=pl.ANY),
        scratch_shapes=[
            pltpu.VMEM((row_tile, d), dtype),        # gathered prompt rows
            pltpu.VMEM((row_tile, d), dtype),        # fused rows staged for writeback
            pltpu.SemaphoreType.DMA((row_tile,)),
            pltpu.SemaphoreType.DMA((row_tile,)),
        ],
        input_output_aliases={1: 0},                 # output == flat prompt (in place)
        compiler_params=pltpu.CompilerParams(
            dimension_semantics=("parallel",),       # row tiles are independent
            vmem_limit_bytes=vmem_limit,
            has_side_effects=True),
    )


@functools.partial(jax.jit, static_argnames=("row_tile", "single_buffer_params"))
def _fuse_module_forward_impl(prompt_embeds, id_embeds, class_tokens_mask,
                              kparams, row_tile, single_buffer_params):
    b, s, d = prompt_embeds.shape
    flat = prompt_embeds.reshape(-1, d)
    mask = class_tokens_mask.reshape(-1)
    id_flat = id_embeds.reshape(-1, id_embeds.shape[-1]).astype(prompt_embeds.dtype)
    n_tok = id_flat.shape[0]

    n_pad = row_tile * ((n_tok + row_tile - 1) // row_tile)
    # Ascending masked-row indices (same ordering as torch boolean indexing /
    # masked_scatter_).  Padded / missing slots are -1: the kernel skips their
    # writeback instead of corrupting row 0.
    idx = jnp.nonzero(mask, size=n_pad, fill_value=-1)[0].astype(jnp.int32)
    id_pad = jnp.pad(id_flat, ((0, n_pad - n_tok), (0, 0)))

    call = _fuse_pallas_call(flat.shape[0], n_pad, d, flat.dtype, kparams,
                             row_tile, single_buffer_params)
    out_flat = call(idx, flat, id_pad, *kparams)
    return out_flat.reshape(b, s, d)


def fuse_module_forward(prompt_embeds, id_embeds, class_tokens_mask, kparams,
                        row_tile=8):
    """Mirrors FuseModule.forward: gather masked rows, fuse, scatter back in place.

    row_tile: rows of class tokens per grid step (multiple of 8).  Use 128-256
    at real PhotoMaker sizes so the matmul M dimension fills the MXU.
    """
    assert row_tile % 8 == 0, "row_tile must be a multiple of 8 (sublane tile)"
    try:
        out = _fuse_module_forward_impl(prompt_embeds, id_embeds,
                                        class_tokens_mask, tuple(kparams),
                                        row_tile=row_tile,
                                        single_buffer_params=True)
        return jax.block_until_ready(out)
    except Exception:
        # Fallback if this JAX build rejects single-buffered top-level
        # BlockSpecs (pl.Buffered(1)): identical kernel, default buffering.
        out = _fuse_module_forward_impl(prompt_embeds, id_embeds,
                                        class_tokens_mask, tuple(kparams),
                                        row_tile=row_tile,
                                        single_buffer_params=False)
        return jax.block_until_ready(out)


# ----------------------------- parameters ------------------------------------

def init_params(key, embed_dim, dtype=jnp.float32):
    """Raw f32 FuseModule parameters (Linear stored as (in, out) + (1, out) bias)."""
    d = embed_dim
    ks = jax.random.split(key, 12)

    def linear(kw, kb, din, dout):
        w = jax.random.normal(kw, (din, dout), dtype) / jnp.sqrt(jnp.float32(din))
        b = 0.01 * jax.random.normal(kb, (1, dout), dtype)
        return w, b

    ln1_g = 1.0 + 0.1 * jax.random.normal(ks[0], (1, 2 * d), dtype)
    ln1_b = 0.05 * jax.random.normal(ks[1], (1, 2 * d), dtype)
    w1, b1 = linear(ks[2], ks[3], 2 * d, d)
    w2, b2 = linear(ks[4], ks[5], d, d)
    ln2_g = 1.0 + 0.1 * jax.random.normal(ks[6], (1, d), dtype)
    ln2_b = 0.05 * jax.random.normal(ks[7], (1, d), dtype)
    w3, b3 = linear(ks[8], ks[9], d, d)
    w4, b4 = linear(ks[10], ks[11], d, d)
    lnf_g = jnp.ones((1, d), dtype)
    lnf_b = jnp.zeros((1, d), dtype)
    return (ln1_g, ln1_b, w1, b1, w2, b2, ln2_g, ln2_b, w3, b3, w4, b4,
            lnf_g, lnf_b)


def prepare_kernel_params(params, embed_dim):
    """Pre-split the cat-dim params and cast matmul weights to bf16 (MXU feed)."""
    d = embed_dim
    (ln1_g, ln1_b, w1, b1, w2, b2, ln2_g, ln2_b, w3, b3, w4, b4,
     lnf_g, lnf_b) = params
    bf = jnp.bfloat16
    return (ln1_g[:, :d], ln1_g[:, d:], ln1_b[:, :d], ln1_b[:, d:],
            w1[:d].astype(bf), w1[d:].astype(bf), b1,
            w2.astype(bf), b2,
            ln2_g, ln2_b,
            w3.astype(bf), b3,
            w4.astype(bf), b4,
            lnf_g, lnf_b)


# ------------------------------- references ----------------------------------

def _gelu_ref(x):
    return jax.nn.gelu(x, approximate=False)


def fuse_fn_ref_f32(pe, ide, params):
    """Faithful full-f32 FuseModule.fuse_fn (matches the torch module)."""
    (ln1_g, ln1_b, w1, b1, w2, b2, ln2_g, ln2_b, w3, b3, w4, b4,
     lnf_g, lnf_b) = params
    x = jnp.concatenate([pe, ide], axis=-1).astype(jnp.float32)
    x = _layernorm(x, ln1_g, ln1_b)
    h = _gelu_ref(x @ w1 + b1)
    y = h @ w2 + b2 + pe
    z = _layernorm(y, ln2_g, ln2_b)
    z = _gelu_ref(z @ w3 + b3)
    z = z @ w4 + b4 + y
    return _layernorm(z, lnf_g, lnf_b)


def fuse_fn_ref_mixed(pe, ide, kparams):
    """Same precision recipe as the kernel (bf16 matmul operands, f32 rest)."""
    (ln1gp, ln1gi, ln1bp, ln1bi, w1p, w1i, b1, w2, b2,
     ln2g, ln2b, w3, b3, w4, b4, lnfg, lnfb) = kparams
    pe = pe.astype(jnp.float32)
    ide = ide.astype(jnp.float32)
    d = pe.shape[-1]
    x = jnp.concatenate([pe, ide], axis=-1)
    g = jnp.concatenate([ln1gp, ln1gi], axis=-1)
    b = jnp.concatenate([ln1bp, ln1bi], axis=-1)
    x = _layernorm(x, g, b)
    h = _gelu_ref(_mm(x[:, :d], w1p) + _mm(x[:, d:], w1i) + b1)
    y = _mm(h, w2) + b2 + pe
    z = _layernorm(y, ln2g, ln2b)
    z = _gelu_ref(_mm(z, w3) + b3)
    z = _mm(z, w4) + b4 + y
    return _layernorm(z, lnfg, lnfb)


def fuse_module_ref(prompt_embeds, id_embeds, class_tokens_mask, fuse_fn, params):
    b, s, d = prompt_embeds.shape
    id_flat = id_embeds.reshape(-1, id_embeds.shape[-1]).astype(prompt_embeds.dtype)
    flat = prompt_embeds.reshape(-1, d)
    mask = class_tokens_mask.reshape(-1)
    idx = jnp.nonzero(mask, size=id_flat.shape[0])[0]
    fused = fuse_fn(flat[idx], id_flat, params)
    flat = flat.at[idx].set(fused.astype(flat.dtype))
    return flat.reshape(b, s, d)


# ---------------------------------- main --------------------------------------

if __name__ == "__main__":
    B, S, D = 2, 16, 128          # lane-dense embed dim (multiple of 128)
    NUM_ID = 5                    # class tokens per sequence (not a multiple of
                                  # the row tile -> exercises the -1 pad path)
    ROW_TILE = 8                  # multiple of 8; use 128-256 at real sizes

    key = jax.random.PRNGKey(0)
    k_pe, k_id, k_par = jax.random.split(key, 3)

    prompt_embeds = jax.random.normal(k_pe, (B, S, D), jnp.float32)
    id_embeds = jax.random.normal(k_id, (B, NUM_ID, D), jnp.float32)
    token_pos = jnp.array([2, 5, 7, 11, 13])
    class_tokens_mask = jnp.zeros((B, S), jnp.bool_).at[:, token_pos].set(True)

    params = init_params(k_par, D)
    kparams = prepare_kernel_params(params, D)

    out = fuse_module_forward(prompt_embeds, id_embeds, class_tokens_mask,
                              kparams, row_tile=ROW_TILE)
    out = jax.block_until_ready(out)
    assert out.shape == (B, S, D)

    # 1) precision-matched reference (bf16 matmul operands, f32 everywhere else)
    ref_mixed = fuse_module_ref(prompt_embeds, id_embeds, class_tokens_mask,
                                fuse_fn_ref_mixed, kparams)
    err_mixed = float(jnp.max(jnp.abs(out - ref_mixed)))
    assert err_mixed < 2e-3, f"kernel vs precision-matched reference: {err_mixed}"

    # 2) faithful full-f32 FuseModule reference (documents the bf16-MXU drift)
    ref_f32 = fuse_module_ref(prompt_embeds, id_embeds, class_tokens_mask,
                              fuse_fn_ref_f32, params)
    err_f32 = float(jnp.max(jnp.abs(out - ref_f32)))
    assert err_f32 < 0.15, f"kernel vs f32 reference: {err_f32}"

    print("KERNEL_OK")
</pallas_src>

<mosaic_0001>
module attributes {stable_mosaic.version = 11 : i64} {
  func.func private @main(%arg0: i32) attributes {dimension_semantics = [#tpu.dimension_semantics<core_parallel>], iteration_bounds = array<i64: 2>, tpu.core_type = #tpu.core_type<sc_scalar_subcore>, window_params = []} {
    return
  }
}

module attributes {stable_mosaic.version = 11 : i64} {
  func.func private @main(%arg0: i32) attributes {dimension_semantics = [#tpu.dimension_semantics<core_parallel>], iteration_bounds = array<i64: 2>, tpu.core_type = #tpu.core_type<sc_scalar_subcore>, window_params = []} {
    return
  }
}

module attributes {stable_mosaic.version = 11 : i64} {
  func.func @fuse_kernel(%arg0: i32, %arg1: memref<16xi32, #tpu.memory_space<smem>>, %arg2: memref<32x128xf32, #tpu.memory_space<any>>, %arg3: memref<8x128xf32, #tpu.memory_space<vmem>>, %arg4: memref<1x128xf32, #tpu.memory_space<vmem>>, %arg5: memref<1x128xf32, #tpu.memory_space<vmem>>, %arg6: memref<1x128xf32, #tpu.memory_space<vmem>>, %arg7: memref<1x128xf32, #tpu.memory_space<vmem>>, %arg8: memref<128x128xbf16, #tpu.memory_space<vmem>>, %arg9: memref<128x128xbf16, #tpu.memory_space<vmem>>, %arg10: memref<1x128xf32, #tpu.memory_space<vmem>>, %arg11: memref<128x128xbf16, #tpu.memory_space<vmem>>, %arg12: memref<1x128xf32, #tpu.memory_space<vmem>>, %arg13: memref<1x128xf32, #tpu.memory_space<vmem>>, %arg14: memref<1x128xf32, #tpu.memory_space<vmem>>, %arg15: memref<128x128xbf16, #tpu.memory_space<vmem>>, %arg16: memref<1x128xf32, #tpu.memory_space<vmem>>, %arg17: memref<128x128xbf16, #tpu.memory_space<vmem>>, %arg18: memref<1x128xf32, #tpu.memory_space<vmem>>, %arg19: memref<1x128xf32, #tpu.memory_space<vmem>>, %arg20: memref<1x128xf32, #tpu.memory_space<vmem>>, %arg21: memref<32x128xf32, #tpu.memory_space<any>>, %arg22: memref<8x128xf32, #tpu.memory_space<vmem>>, %arg23: memref<8x128xf32, #tpu.memory_space<vmem>>, %arg24: memref<8x!tpu.dma_semaphore, #tpu.memory_space<semaphore_mem>>, %arg25: memref<8x!tpu.dma_semaphore, #tpu.memory_space<semaphore_mem>>) attributes {dimension_semantics = [#tpu.dimension_semantics<parallel>], iteration_bounds = array<i64: 2>, scalar_prefetch = 0 : i64, scratch_operands = 4 : i64, tpu.core_type = #tpu.core_type<tc>, window_params = [{transform_indices = @transform_0, window_bounds = array<i64: 16>}, {}, {transform_indices = @transform_2, window_bounds = array<i64: 8, 128>}, {pipeline_mode = #tpu.pipeline_mode<synchronous>, transform_indices = @transform_3, window_bounds = array<i64: 1, 128>}, {pipeline_mode = #tpu.pipeline_mode<synchronous>, transform_indices = @transform_4, window_bounds = array<i64: 1, 128>}, {pipeline_mode = #tpu.pipeline_mode<synchronous>, transform_indices = @transform_5, window_bounds = array<i64: 1, 128>}, {pipeline_mode = #tpu.pipeline_mode<synchronous>, transform_indices = @transform_6, window_bounds = array<i64: 1, 128>}, {pipeline_mode = #tpu.pipeline_mode<synchronous>, transform_indices = @transform_7, window_bounds = array<i64: 128, 128>}, {pipeline_mode = #tpu.pipeline_mode<synchronous>, transform_indices = @transform_8, window_bounds = array<i64: 128, 128>}, {pipeline_mode = #tpu.pipeline_mode<synchronous>, transform_indices = @transform_9, window_bounds = array<i64: 1, 128>}, {pipeline_mode = #tpu.pipeline_mode<synchronous>, transform_indices = @transform_10, window_bounds = array<i64: 128, 128>}, {pipeline_mode = #tpu.pipeline_mode<synchronous>, transform_indices = @transform_11, window_bounds = array<i64: 1, 128>}, {pipeline_mode = #tpu.pipeline_mode<synchronous>, transform_indices = @transform_12, window_bounds = array<i64: 1, 128>}, {pipeline_mode = #tpu.pipeline_mode<synchronous>, transform_indices = @transform_13, window_bounds = array<i64: 1, 128>}, {pipeline_mode = #tpu.pipeline_mode<synchronous>, transform_indices = @transform_14, window_bounds = array<i64: 128, 128>}, {pipeline_mode = #tpu.pipeline_mode<synchronous>, transform_indices = @transform_15, window_bounds = array<i64: 1, 128>}, {pipeline_mode = #tpu.pipeline_mode<synchronous>, transform_indices = @transform_16, window_bounds = array<i64: 128, 128>}, {pipeline_mode = #tpu.pipeline_mode<synchronous>, transform_indices = @transform_17, window_bounds = array<i64: 1, 128>}, {pipeline_mode = #tpu.pipeline_mode<synchronous>, transform_indices = @transform_18, window_bounds = array<i64: 1, 128>}, {pipeline_mode = #tpu.pipeline_mode<synchronous>, transform_indices = @transform_19, window_bounds = array<i64: 1, 128>}, {}]} {
    %c8_i32 = arith.constant 8 : i32
    %0 = arith.muli %arg0, %c8_i32 : i32
    %c0_i32 = arith.constant 0 : i32
    %1 = arith.addi %0, %c0_i32 : i32
    %2 = arith.index_cast %1 : i32 to index
    %3 = memref.load %arg1[%2] : memref<16xi32, #tpu.memory_space<smem>>
    %c1_i32 = arith.constant 1 : i32
    %4 = arith.addi %0, %c1_i32 : i32
    %5 = arith.index_cast %4 : i32 to index
    %6 = memref.load %arg1[%5] : memref<16xi32, #tpu.memory_space<smem>>
    %c2_i32 = arith.constant 2 : i32
    %7 = arith.addi %0, %c2_i32 : i32
    %8 = arith.index_cast %7 : i32 to index
    %9 = memref.load %arg1[%8] : memref<16xi32, #tpu.memory_space<smem>>
    %c3_i32 = arith.constant 3 : i32
    %10 = arith.addi %0, %c3_i32 : i32
    %11 = arith.index_cast %10 : i32 to index
    %12 = memref.load %arg1[%11] : memref<16xi32, #tpu.memory_space<smem>>
    %c4_i32 = arith.constant 4 : i32
    %13 = arith.addi %0, %c4_i32 : i32
    %14 = arith.index_cast %13 : i32 to index
    %15 = memref.load %arg1[%14] : memref<16xi32, #tpu.memory_space<smem>>
    %c5_i32 = arith.constant 5 : i32
    %16 = arith.addi %0, %c5_i32 : i32
    %17 = arith.index_cast %16 : i32 to index
    %18 = memref.load %arg1[%17] : memref<16xi32, #tpu.memory_space<smem>>
    %c6_i32 = arith.constant 6 : i32
    %19 = arith.addi %0, %c6_i32 : i32
    %20 = arith.index_cast %19 : i32 to index
    %21 = memref.load %arg1[%20] : memref<16xi32, #tpu.memory_space<smem>>
    %c7_i32 = arith.constant 7 : i32
    %22 = arith.addi %0, %c7_i32 : i32
    %23 = arith.index_cast %22 : i32 to index
    %24 = memref.load %arg1[%23] : memref<16xi32, #tpu.memory_space<smem>>
    %c0_i32_0 = arith.constant 0 : i32
    %25 = arith.maxsi %3, %c0_i32_0 : i32
    %c0_i32_1 = arith.constant 0 : i32
    %26 = arith.maxsi %6, %c0_i32_1 : i32
    %c0_i32_2 = arith.constant 0 : i32
    %27 = arith.maxsi %9, %c0_i32_2 : i32
    %c0_i32_3 = arith.constant 0 : i32
    %28 = arith.maxsi %12, %c0_i32_3 : i32
    %c0_i32_4 = arith.constant 0 : i32
    %29 = arith.maxsi %15, %c0_i32_4 : i32
    %c0_i32_5 = arith.constant 0 : i32
    %30 = arith.maxsi %18, %c0_i32_5 : i32
    %c0_i32_6 = arith.constant 0 : i32
    %31 = arith.maxsi %21, %c0_i32_6 : i32
    %c0_i32_7 = arith.constant 0 : i32
    %32 = arith.maxsi %24, %c0_i32_7 : i32
    %c0_i32_8 = arith.constant 0 : i32
    %c0_i32_9 = arith.constant 0 : i32
    %33 = tpu.memref_slice %arg2[%25, %c0_i32_9] : memref<32x128xf32, #tpu.memory_space<any>> -> memref<1x128xf32, #tpu.memory_space<any>>
    %c0_i32_10 = arith.constant 0 : i32
    %c0_i32_11 = arith.constant 0 : i32
    %34 = tpu.memref_slice %arg22[%c0_i32_10, %c0_i32_11] : memref<8x128xf32, #tpu.memory_space<vmem>> -> memref<1x128xf32, #tpu.memory_space<vmem>>
    %35 = tpu.memref_slice %arg24[%c0_i32_8] : memref<8x!tpu.dma_semaphore, #tpu.memory_space<semaphore_mem>> -> memref<1x!tpu.dma_semaphore, #tpu.memory_space<semaphore_mem>>
    %36 = tpu.memref_squeeze %35 : memref<1x!tpu.dma_semaphore, #tpu.memory_space<semaphore_mem>> -> memref<!tpu.dma_semaphore, #tpu.memory_space<semaphore_mem>>
    tpu.enqueue_dma source(%33 : memref<1x128xf32, #tpu.memory_space<any>>) target(%34 : memref<1x128xf32, #tpu.memory_space<vmem>>) target_semaphore(%36 : memref<!tpu.dma_semaphore, #tpu.memory_space<semaphore_mem>>)
    %c1_i32_12 = arith.constant 1 : i32
    %c0_i32_13 = arith.constant 0 : i32
    %37 = tpu.memref_slice %arg2[%26, %c0_i32_13] : memref<32x128xf32, #tpu.memory_space<any>> -> memref<1x128xf32, #tpu.memory_space<any>>
    %c1_i32_14 = arith.constant 1 : i32
    %c0_i32_15 = arith.constant 0 : i32
    %38 = tpu.memref_slice %arg22[%c1_i32_14, %c0_i32_15] : memref<8x128xf32, #tpu.memory_space<vmem>> -> memref<1x128xf32, #tpu.memory_space<vmem>>
    %39 = tpu.memref_slice %arg24[%c1_i32_12] : memref<8x!tpu.dma_semaphore, #tpu.memory_space<semaphore_mem>> -> memref<1x!tpu.dma_semaphore, #tpu.memory_space<semaphore_mem>>
    %40 = tpu.memref_squeeze %39 : memref<1x!tpu.dma_semaphore, #tpu.memory_space<semaphore_mem>> -> memref<!tpu.dma_semaphore, #tpu.memory_space<semaphore_mem>>
    tpu.enqueue_dma source(%37 : memref<1x128xf32, #tpu.memory_space<any>>) target(%38 : memref<1x128xf32, #tpu.memory_space<vmem>>) target_semaphore(%40 : memref<!tpu.dma_semaphore, #tpu.memory_space<semaphore_mem>>)
    %c2_i32_16 = arith.constant 2 : i32
    %c0_i32_17 = arith.constant 0 : i32
    %41 = tpu.memref_slice %arg2[%27, %c0_i32_17] : memref<32x128xf32, #tpu.memory_space<any>> -> memref<1x128xf32, #tpu.memory_space<any>>
    %c2_i32_18 = arith.constant 2 : i32
    %c0_i32_19 = arith.constant 0 : i32
    %42 = tpu.memref_slice %arg22[%c2_i32_18, %c0_i32_19] : memref<8x128xf32, #tpu.memory_space<vmem>> -> memref<1x128xf32, #tpu.memory_space<vmem>>
    %43 = tpu.memref_slice %arg24[%c2_i32_16] : memref<8x!tpu.dma_semaphore, #tpu.memory_space<semaphore_mem>> -> memref<1x!tpu.dma_semaphore, #tpu.memory_space<semaphore_mem>>
    %44 = tpu.memref_squeeze %43 : memref<1x!tpu.dma_semaphore, #tpu.memory_space<semaphore_mem>> -> memref<!tpu.dma_semaphore, #tpu.memory_space<semaphore_mem>>
    tpu.enqueue_dma source(%41 : memref<1x128xf32, #tpu.memory_space<any>>) target(%42 : memref<1x128xf32, #tpu.memory_space<vmem>>) target_semaphore(%44 : memref<!tpu.dma_semaphore, #tpu.memory_space<semaphore_mem>>)
    %c3_i32_20 = arith.constant 3 : i32
    %c0_i32_21 = arith.constant 0 : i32
    %45 = tpu.memref_slice %arg2[%28, %c0_i32_21] : memref<32x128xf32, #tpu.memory_space<any>> -> memref<1x128xf32, #tpu.memory_space<any>>
    %c3_i32_22 = arith.constant 3 : i32
    %c0_i32_23 = arith.constant 0 : i32
    %46 = tpu.memref_slice %arg22[%c3_i32_22, %c0_i32_23] : memref<8x128xf32, #tpu.memory_space<vmem>> -> memref<1x128xf32, #tpu.memory_space<vmem>>
    %47 = tpu.memref_slice %arg24[%c3_i32_20] : memref<8x!tpu.dma_semaphore, #tpu.memory_space<semaphore_mem>> -> memref<1x!tpu.dma_semaphore, #tpu.memory_space<semaphore_mem>>
    %48 = tpu.memref_squeeze %47 : memref<1x!tpu.dma_semaphore, #tpu.memory_space<semaphore_mem>> -> memref<!tpu.dma_semaphore, #tpu.memory_space<semaphore_mem>>
    tpu.enqueue_dma source(%45 : memref<1x128xf32, #tpu.memory_space<any>>) target(%46 : memref<1x128xf32, #tpu.memory_space<vmem>>) target_semaphore(%48 : memref<!tpu.dma_semaphore, #tpu.memory_space<semaphore_mem>>)
    %c4_i32_24 = arith.constant 4 : i32
    %c0_i32_25 = arith.constant 0 : i32
    %49 = tpu.memref_slice %arg2[%29, %c0_i32_25] : memref<32x128xf32, #tpu.memory_space<any>> -> memref<1x128xf32, #tpu.memory_space<any>>
    %c4_i32_26 = arith.constant 4 : i32
    %c0_i32_27 = arith.constant 0 : i32
    %50 = tpu.memref_slice %arg22[%c4_i32_26, %c0_i32_27] : memref<8x128xf32, #tpu.memory_space<vmem>> -> memref<1x128xf32, #tpu.memory_space<vmem>>
    %51 = tpu.memref_slice %arg24[%c4_i32_24] : memref<8x!tpu.dma_semaphore, #tpu.memory_space<semaphore_mem>> -> memref<1x!tpu.dma_semaphore, #tpu.memory_space<semaphore_mem>>
    %52 = tpu.memref_squeeze %51 : memref<1x!tpu.dma_semaphore, #tpu.memory_space<semaphore_mem>> -> memref<!tpu.dma_semaphore, #tpu.memory_space<semaphore_mem>>
    tpu.enqueue_dma source(%49 : memref<1x128xf32, #tpu.memory_space<any>>) target(%50 : memref<1x128xf32, #tpu.memory_space<vmem>>) target_semaphore(%52 : memref<!tpu.dma_semaphore, #tpu.memory_space<semaphore_mem>>)
    %c5_i32_28 = arith.constant 5 : i32
    %c0_i32_29 = arith.constant 0 : i32
    %53 = tpu.memref_slice %arg2[%30, %c0_i32_29] : memref<32x128xf32, #tpu.memory_space<any>> -> memref<1x128xf32, #tpu.memory_space<any>>
    %c5_i32_30 = arith.constant 5 : i32
    %c0_i32_31 = arith.constant 0 : i32
    %54 = tpu.memref_slice %arg22[%c5_i32_30, %c0_i32_31] : memref<8x128xf32, #tpu.memory_space<vmem>> -> memref<1x128xf32, #tpu.memory_space<vmem>>
    %55 = tpu.memref_slice %arg24[%c5_i32_28] : memref<8x!tpu.dma_semaphore, #tpu.memory_space<semaphore_mem>> -> memref<1x!tpu.dma_semaphore, #tpu.memory_space<semaphore_mem>>
    %56 = tpu.memref_squeeze %55 : memref<1x!tpu.dma_semaphore, #tpu.memory_space<semaphore_mem>> -> memref<!tpu.dma_semaphore, #tpu.memory_space<semaphore_mem>>
    tpu.enqueue_dma source(%53 : memref<1x128xf32, #tpu.memory_space<any>>) target(%54 : memref<1x128xf32, #tpu.memory_space<vmem>>) target_semaphore(%56 : memref<!tpu.dma_semaphore, #tpu.memory_space<semaphore_mem>>)
    %c6_i32_32 = arith.constant 6 : i32
    %c0_i32_33 = arith.constant 0 : i32
    %57 = tpu.memref_slice %arg2[%31, %c0_i32_33] : memref<32x128xf32, #tpu.memory_space<any>> -> memref<1x128xf32, #tpu.memory_space<any>>
    %c6_i32_34 = arith.constant 6 : i32
    %c0_i32_35 = arith.constant 0 : i32
    %58 = tpu.memref_slice %arg22[%c6_i32_34, %c0_i32_35] : memref<8x128xf32, #tpu.memory_space<vmem>> -> memref<1x128xf32, #tpu.memory_space<vmem>>
    %59 = tpu.memref_slice %arg24[%c6_i32_32] : memref<8x!tpu.dma_semaphore, #tpu.memory_space<semaphore_mem>> -> memref<1x!tpu.dma_semaphore, #tpu.memory_space<semaphore_mem>>
    %60 = tpu.memref_squeeze %59 : memref<1x!tpu.dma_semaphore, #tpu.memory_space<semaphore_mem>> -> memref<!tpu.dma_semaphore, #tpu.memory_space<semaphore_mem>>
    tpu.enqueue_dma source(%57 : memref<1x128xf32, #tpu.memory_space<any>>) target(%58 : memref<1x128xf32, #tpu.memory_space<vmem>>) target_semaphore(%60 : memref<!tpu.dma_semaphore, #tpu.memory_space<semaphore_mem>>)
    %c7_i32_36 = arith.constant 7 : i32
    %c0_i32_37 = arith.constant 0 : i32
    %61 = tpu.memref_slice %arg2[%32, %c0_i32_37] : memref<32x128xf32, #tpu.memory_space<any>> -> memref<1x128xf32, #tpu.memory_space<any>>
    %c7_i32_38 = arith.constant 7 : i32
    %c0_i32_39 = arith.constant 0 : i32
    %62 = tpu.memref_slice %arg22[%c7_i32_38, %c0_i32_39] : memref<8x128xf32, #tpu.memory_space<vmem>> -> memref<1x128xf32, #tpu.memory_space<vmem>>
    %63 = tpu.memref_slice %arg24[%c7_i32_36] : memref<8x!tpu.dma_semaphore, #tpu.memory_space<semaphore_mem>> -> memref<1x!tpu.dma_semaphore, #tpu.memory_space<semaphore_mem>>
    %64 = tpu.memref_squeeze %63 : memref<1x!tpu.dma_semaphore, #tpu.memory_space<semaphore_mem>> -> memref<!tpu.dma_semaphore, #tpu.memory_space<semaphore_mem>>
    tpu.enqueue_dma source(%61 : memref<1x128xf32, #tpu.memory_space<any>>) target(%62 : memref<1x128xf32, #tpu.memory_space<vmem>>) target_semaphore(%64 : memref<!tpu.dma_semaphore, #tpu.memory_space<semaphore_mem>>)
    %c0_i32_40 = arith.constant 0 : i32
    %c0_i32_41 = arith.constant 0 : i32
    %65 = tpu.memref_slice %arg2[%25, %c0_i32_41] : memref<32x128xf32, #tpu.memory_space<any>> -> memref<1x128xf32, #tpu.memory_space<any>>
    %c0_i32_42 = arith.constant 0 : i32
    %c0_i32_43 = arith.constant 0 : i32
    %66 = tpu.memref_slice %arg22[%c0_i32_42, %c0_i32_43] : memref<8x128xf32, #tpu.memory_space<vmem>> -> memref<1x128xf32, #tpu.memory_space<vmem>>
    %67 = tpu.memref_slice %arg24[%c0_i32_40] : memref<8x!tpu.dma_semaphore, #tpu.memory_space<semaphore_mem>> -> memref<1x!tpu.dma_semaphore, #tpu.memory_space<semaphore_mem>>
    %68 = tpu.memref_squeeze %67 : memref<1x!tpu.dma_semaphore, #tpu.memory_space<semaphore_mem>> -> memref<!tpu.dma_semaphore, #tpu.memory_space<semaphore_mem>>
    tpu.wait_dma2 semaphore(%68 : memref<!tpu.dma_semaphore, #tpu.memory_space<semaphore_mem>>) src(%65 : memref<1x128xf32, #tpu.memory_space<any>>) dst(%66 : memref<1x128xf32, #tpu.memory_space<vmem>>)
    %c1_i32_44 = arith.constant 1 : i32
    %c0_i32_45 = arith.constant 0 : i32
    %69 = tpu.memref_slice %arg2[%26, %c0_i32_45] : memref<32x128xf32, #tpu.memory_space<any>> -> memref<1x128xf32, #tpu.memory_space<any>>
    %c1_i32_46 = arith.constant 1 : i32
    %c0_i32_47 = arith.constant 0 : i32
    %70 = tpu.memref_slice %arg22[%c1_i32_46, %c0_i32_47] : memref<8x128xf32, #tpu.memory_space<vmem>> -> memref<1x128xf32, #tpu.memory_space<vmem>>
    %71 = tpu.memref_slice %arg24[%c1_i32_44] : memref<8x!tpu.dma_semaphore, #tpu.memory_space<semaphore_mem>> -> memref<1x!tpu.dma_semaphore, #tpu.memory_space<semaphore_mem>>
    %72 = tpu.memref_squeeze %71 : memref<1x!tpu.dma_semaphore, #tpu.memory_space<semaphore_mem>> -> memref<!tpu.dma_semaphore, #tpu.memory_space<semaphore_mem>>
    tpu.wait_dma2 semaphore(%72 : memref<!tpu.dma_semaphore, #tpu.memory_space<semaphore_mem>>) src(%69 : memref<1x128xf32, #tpu.memory_space<any>>) dst(%70 : memref<1x128xf32, #tpu.memory_space<vmem>>)
    %c2_i32_48 = arith.constant 2 : i32
    %c0_i32_49 = arith.constant 0 : i32
    %73 = tpu.memref_slice %arg2[%27, %c0_i32_49] : memref<32x128xf32, #tpu.memory_space<any>> -> memref<1x128xf32, #tpu.memory_space<any>>
    %c2_i32_50 = arith.constant 2 : i32
    %c0_i32_51 = arith.constant 0 : i32
    %74 = tpu.memref_slice %arg22[%c2_i32_50, %c0_i32_51] : memref<8x128xf32, #tpu.memory_space<vmem>> -> memref<1x128xf32, #tpu.memory_space<vmem>>
    %75 = tpu.memref_slice %arg24[%c2_i32_48] : memref<8x!tpu.dma_semaphore, #tpu.memory_space<semaphore_mem>> -> memref<1x!tpu.dma_semaphore, #tpu.memory_space<semaphore_mem>>
    %76 = tpu.memref_squeeze %75 : memref<1x!tpu.dma_semaphore, #tpu.memory_space<semaphore_mem>> -> memref<!tpu.dma_semaphore, #tpu.memory_space<semaphore_mem>>
    tpu.wait_dma2 semaphore(%76 : memref<!tpu.dma_semaphore, #tpu.memory_space<semaphore_mem>>) src(%73 : memref<1x128xf32, #tpu.memory_space<any>>) dst(%74 : memref<1x128xf32, #tpu.memory_space<vmem>>)
    %c3_i32_52 = arith.constant 3 : i32
    %c0_i32_53 = arith.constant 0 : i32
    %77 = tpu.memref_slice %arg2[%28, %c0_i32_53] : memref<32x128xf32, #tpu.memory_space<any>> -> memref<1x128xf32, #tpu.memory_space<any>>
    %c3_i32_54 = arith.constant 3 : i32
    %c0_i32_55 = arith.constant 0 : i32
    %78 = tpu.memref_slice %arg22[%c3_i32_54, %c0_i32_55] : memref<8x128xf32, #tpu.memory_space<vmem>> -> memref<1x128xf32, #tpu.memory_space<vmem>>
    %79 = tpu.memref_slice %arg24[%c3_i32_52] : memref<8x!tpu.dma_semaphore, #tpu.memory_space<semaphore_mem>> -> memref<1x!tpu.dma_semaphore, #tpu.memory_space<semaphore_mem>>
    %80 = tpu.memref_squeeze %79 : memref<1x!tpu.dma_semaphore, #tpu.memory_space<semaphore_mem>> -> memref<!tpu.dma_semaphore, #tpu.memory_space<semaphore_mem>>
    tpu.wait_dma2 semaphore(%80 : memref<!tpu.dma_semaphore, #tpu.memory_space<semaphore_mem>>) src(%77 : memref<1x128xf32, #tpu.memory_space<any>>) dst(%78 : memref<1x128xf32, #tpu.memory_space<vmem>>)
    %c4_i32_56 = arith.constant 4 : i32
    %c0_i32_57 = arith.constant 0 : i32
    %81 = tpu.memref_slice %arg2[%29, %c0_i32_57] : memref<32x128xf32, #tpu.memory_space<any>> -> memref<1x128xf32, #tpu.memory_space<any>>
    %c4_i32_58 = arith.constant 4 : i32
    %c0_i32_59 = arith.constant 0 : i32
    %82 = tpu.memref_slice %arg22[%c4_i32_58, %c0_i32_59] : memref<8x128xf32, #tpu.memory_space<vmem>> -> memref<1x128xf32, #tpu.memory_space<vmem>>
    %83 = tpu.memref_slice %arg24[%c4_i32_56] : memref<8x!tpu.dma_semaphore, #tpu.memory_space<semaphore_mem>> -> memref<1x!tpu.dma_semaphore, #tpu.memory_space<semaphore_mem>>
    %84 = tpu.memref_squeeze %83 : memref<1x!tpu.dma_semaphore, #tpu.memory_space<semaphore_mem>> -> memref<!tpu.dma_semaphore, #tpu.memory_space<semaphore_mem>>
    tpu.wait_dma2 semaphore(%84 : memref<!tpu.dma_semaphore, #tpu.memory_space<semaphore_mem>>) src(%81 : memref<1x128xf32, #tpu.memory_space<any>>) dst(%82 : memref<1x128xf32, #tpu.memory_space<vmem>>)
    %c5_i32_60 = arith.constant 5 : i32
    %c0_i32_61 = arith.constant 0 : i32
    %85 = tpu.memref_slice %arg2[%30, %c0_i32_61] : memref<32x128xf32, #tpu.memory_space<any>> -> memref<1x128xf32, #tpu.memory_space<any>>
    %c5_i32_62 = arith.constant 5 : i32
    %c0_i32_63 = arith.constant 0 : i32
    %86 = tpu.memref_slice %arg22[%c5_i32_62, %c0_i32_63] : memref<8x128xf32, #tpu.memory_space<vmem>> -> memref<1x128xf32, #tpu.memory_space<vmem>>
    %87 = tpu.memref_slice %arg24[%c5_i32_60] : memref<8x!tpu.dma_semaphore, #tpu.memory_space<semaphore_mem>> -> memref<1x!tpu.dma_semaphore, #tpu.memory_space<semaphore_mem>>
    %88 = tpu.memref_squeeze %87 : memref<1x!tpu.dma_semaphore, #tpu.memory_space<semaphore_mem>> -> memref<!tpu.dma_semaphore, #tpu.memory_space<semaphore_mem>>
    tpu.wait_dma2 semaphore(%88 : memref<!tpu.dma_semaphore, #tpu.memory_space<semaphore_mem>>) src(%85 : memref<1x128xf32, #tpu.memory_space<any>>) dst(%86 : memref<1x128xf32, #tpu.memory_space<vmem>>)
    %c6_i32_64 = arith.constant 6 : i32
    %c0_i32_65 = arith.constant 0 : i32
    %89 = tpu.memref_slice %arg2[%31, %c0_i32_65] : memref<32x128xf32, #tpu.memory_space<any>> -> memref<1x128xf32, #tpu.memory_space<any>>
    %c6_i32_66 = arith.constant 6 : i32
    %c0_i32_67 = arith.constant 0 : i32
    %90 = tpu.memref_slice %arg22[%c6_i32_66, %c0_i32_67] : memref<8x128xf32, #tpu.memory_space<vmem>> -> memref<1x128xf32, #tpu.memory_space<vmem>>
    %91 = tpu.memref_slice %arg24[%c6_i32_64] : memref<8x!tpu.dma_semaphore, #tpu.memory_space<semaphore_mem>> -> memref<1x!tpu.dma_semaphore, #tpu.memory_space<semaphore_mem>>
    %92 = tpu.memref_squeeze %91 : memref<1x!tpu.dma_semaphore, #tpu.memory_space<semaphore_mem>> -> memref<!tpu.dma_semaphore, #tpu.memory_space<semaphore_mem>>
    tpu.wait_dma2 semaphore(%92 : memref<!tpu.dma_semaphore, #tpu.memory_space<semaphore_mem>>) src(%89 : memref<1x128xf32, #tpu.memory_space<any>>) dst(%90 : memref<1x128xf32, #tpu.memory_space<vmem>>)
    %c7_i32_68 = arith.constant 7 : i32
    %c0_i32_69 = arith.constant 0 : i32
    %93 = tpu.memref_slice %arg2[%32, %c0_i32_69] : memref<32x128xf32, #tpu.memory_space<any>> -> memref<1x128xf32, #tpu.memory_space<any>>
    %c7_i32_70 = arith.constant 7 : i32
    %c0_i32_71 = arith.constant 0 : i32
    %94 = tpu.memref_slice %arg22[%c7_i32_70, %c0_i32_71] : memref<8x128xf32, #tpu.memory_space<vmem>> -> memref<1x128xf32, #tpu.memory_space<vmem>>
    %95 = tpu.memref_slice %arg24[%c7_i32_68] : memref<8x!tpu.dma_semaphore, #tpu.memory_space<semaphore_mem>> -> memref<1x!tpu.dma_semaphore, #tpu.memory_space<semaphore_mem>>
    %96 = tpu.memref_squeeze %95 : memref<1x!tpu.dma_semaphore, #tpu.memory_space<semaphore_mem>> -> memref<!tpu.dma_semaphore, #tpu.memory_space<semaphore_mem>>
    tpu.wait_dma2 semaphore(%96 : memref<!tpu.dma_semaphore, #tpu.memory_space<semaphore_mem>>) src(%93 : memref<1x128xf32, #tpu.memory_space<any>>) dst(%94 : memref<1x128xf32, #tpu.memory_space<vmem>>)
    %c0 = arith.constant 0 : index
    %c0_72 = arith.constant 0 : index
    %97 = vector.load %arg22[%c0, %c0_72] : memref<8x128xf32, #tpu.memory_space<vmem>>, vector<8x128xf32>
    %c0_73 = arith.constant 0 : index
    %c0_74 = arith.constant 0 : index
    %98 = vector.load %arg3[%c0_73, %c0_74] : memref<8x128xf32, #tpu.memory_space<vmem>>, vector<8x128xf32>
    %cst = arith.constant dense<0.000000e+00> : vector<8xf32>
    %99 = vector.multi_reduction <add>, %97, %cst [1] : vector<8x128xf32> to vector<8xf32>
    %100 = vector.shape_cast %99 : vector<8xf32> to vector<8x1xf32>
    %cst_75 = arith.constant dense<0.000000e+00> : vector<8xf32>
    %101 = vector.multi_reduction <add>, %98, %cst_75 [1] : vector<8x128xf32> to vector<8xf32>
    %102 = vector.shape_cast %101 : vector<8xf32> to vector<8x1xf32>
    %103 = arith.addf %100, %102 : vector<8x1xf32>
    %cst_76 = arith.constant 2.560000e+02 : f32
    %104 = vector.broadcast %cst_76 : f32 to vector<8x1xf32>
    %105 = arith.divf %103, %104 : vector<8x1xf32>
    %106 = vector.broadcast %105 : vector<8x1xf32> to vector<8x128xf32>
    %107 = arith.subf %97, %106 : vector<8x128xf32>
    %108 = arith.mulf %107, %107 : vector<8x128xf32>
    %cst_77 = arith.constant dense<0.000000e+00> : vector<8xf32>
    %109 = vector.multi_reduction <add>, %108, %cst_77 [1] : vector<8x128xf32> to vector<8xf32>
    %110 = vector.shape_cast %109 : vector<8xf32> to vector<8x1xf32>
    %111 = vector.broadcast %105 : vector<8x1xf32> to vector<8x128xf32>
    %112 = arith.subf %98, %111 : vector<8x128xf32>
    %113 = arith.mulf %112, %112 : vector<8x128xf32>
    %cst_78 = arith.constant dense<0.000000e+00> : vector<8xf32>
    %114 = vector.multi_reduction <add>, %113, %cst_78 [1] : vector<8x128xf32> to vector<8xf32>
    %115 = vector.shape_cast %114 : vector<8xf32> to vector<8x1xf32>
    %116 = arith.addf %110, %115 : vector<8x1xf32>
    %cst_79 = arith.constant 2.560000e+02 : f32
    %117 = vector.broadcast %cst_79 : f32 to vector<8x1xf32>
    %118 = arith.divf %116, %117 : vector<8x1xf32>
    %cst_80 = arith.constant 9.99999974E-6 : f32
    %119 = vector.broadcast %cst_80 : f32 to vector<8x1xf32>
    %120 = arith.addf %118, %119 : vector<8x1xf32>
    %121 = math.rsqrt %120 : vector<8x1xf32>
    %122 = vector.broadcast %105 : vector<8x1xf32> to vector<8x128xf32>
    %123 = arith.subf %97, %122 : vector<8x128xf32>
    %124 = vector.broadcast %121 : vector<8x1xf32> to vector<8x128xf32>
    %125 = arith.mulf %123, %124 : vector<8x128xf32>
    %c0_81 = arith.constant 0 : index
    %c0_82 = arith.constant 0 : index
    %126 = vector.load %arg4[%c0_81, %c0_82] : memref<1x128xf32, #tpu.memory_space<vmem>>, vector<1x128xf32>
    %127 = vector.broadcast %126 : vector<1x128xf32> to vector<8x128xf32>
    %128 = arith.mulf %125, %127 : vector<8x128xf32>
    %c0_83 = arith.constant 0 : index
    %c0_84 = arith.constant 0 : index
    %129 = vector.load %arg6[%c0_83, %c0_84] : memref<1x128xf32, #tpu.memory_space<vmem>>, vector<1x128xf32>
    %130 = vector.broadcast %129 : vector<1x128xf32> to vector<8x128xf32>
    %131 = arith.addf %128, %130 : vector<8x128xf32>
    %132 = vector.broadcast %105 : vector<8x1xf32> to vector<8x128xf32>
    %133 = arith.subf %98, %132 : vector<8x128xf32>
    %134 = vector.broadcast %121 : vector<8x1xf32> to vector<8x128xf32>
    %135 = arith.mulf %133, %134 : vector<8x128xf32>
    %c0_85 = arith.constant 0 : index
    %c0_86 = arith.constant 0 : index
    %136 = vector.load %arg5[%c0_85, %c0_86] : memref<1x128xf32, #tpu.memory_space<vmem>>, vector<1x128xf32>
    %137 = vector.broadcast %136 : vector<1x128xf32> to vector<8x128xf32>
    %138 = arith.mulf %135, %137 : vector<8x128xf32>
    %c0_87 = arith.constant 0 : index
    %c0_88 = arith.constant 0 : index
    %139 = vector.load %arg7[%c0_87, %c0_88] : memref<1x128xf32, #tpu.memory_space<vmem>>, vector<1x128xf32>
    %140 = vector.broadcast %139 : vector<1x128xf32> to vector<8x128xf32>
    %141 = arith.addf %138, %140 : vector<8x128xf32>
    %c0_89 = arith.constant 0 : index
    %c0_90 = arith.constant 0 : index
    %142 = vector.load %arg8[%c0_89, %c0_90] : memref<128x128xbf16, #tpu.memory_space<vmem>>, vector<128x128xbf16>
    %143 = arith.truncf %131 : vector<8x128xf32> to vector<8x128xbf16>
    %cst_91 = arith.constant dense<0.000000e+00> : vector<8x128xf32>
    %144 = tpu.matmul %143, %142, %cst_91 {dimension_numbers = #tpu.dot_dimension_numbers<[1], [0], [0], [1], [0, 0, 1, 1], [], []>} : vector<8x128xbf16>, vector<128x128xbf16>, vector<8x128xf32> -> vector<8x128xf32>
    %c0_92 = arith.constant 0 : index
    %c0_93 = arith.constant 0 : index
    %145 = vector.load %arg9[%c0_92, %c0_93] : memref<128x128xbf16, #tpu.memory_space<vmem>>, vector<128x128xbf16>
    %146 = arith.truncf %141 : vector<8x128xf32> to vector<8x128xbf16>
    %cst_94 = arith.constant dense<0.000000e+00> : vector<8x128xf32>
    %147 = tpu.matmul %146, %145, %cst_94 {dimension_numbers = #tpu.dot_dimension_numbers<[1], [0], [0], [1], [0, 0, 1, 1], [], []>} : vector<8x128xbf16>, vector<128x128xbf16>, vector<8x128xf32> -> vector<8x128xf32>
    %148 = arith.addf %144, %147 : vector<8x128xf32>
    %c0_95 = arith.constant 0 : index
    %c0_96 = arith.constant 0 : index
    %149 = vector.load %arg10[%c0_95, %c0_96] : memref<1x128xf32, #tpu.memory_space<vmem>>, vector<1x128xf32>
    %150 = vector.broadcast %149 : vector<1x128xf32> to vector<8x128xf32>
    %151 = arith.addf %148, %150 : vector<8x128xf32>
    %cst_97 = arith.constant 5.000000e-01 : f32
    %152 = vector.broadcast %cst_97 : f32 to vector<8x128xf32>
    %153 = arith.mulf %152, %151 : vector<8x128xf32>
    %cst_98 = arith.constant 0.707106769 : f32
    %154 = vector.broadcast %cst_98 : f32 to vector<8x128xf32>
    %155 = arith.mulf %151, %154 : vector<8x128xf32>
    %156 = math.absf %155 : vector<8x128xf32>
    %cst_99 = arith.constant 5.000000e-01 : f32
    %157 = vector.broadcast %cst_99 : f32 to vector<8x128xf32>
    %158 = arith.mulf %157, %156 : vector<8x128xf32>
    %cst_100 = arith.constant 1.000000e+00 : f32
    %159 = vector.broadcast %cst_100 : f32 to vector<8x128xf32>
    %160 = arith.addf %159, %158 : vector<8x128xf32>
    %cst_101 = arith.constant 1.000000e+00 : f32
    %161 = vector.broadcast %cst_101 : f32 to vector<8x128xf32>
    %162 = arith.divf %161, %160 : vector<8x128xf32>
    %cst_102 = arith.constant 0.170872763 : f32
    %163 = vector.broadcast %cst_102 : f32 to vector<8x128xf32>
    %164 = arith.mulf %162, %163 : vector<8x128xf32>
    %cst_103 = arith.constant -0.822152256 : f32
    %165 = vector.broadcast %cst_103 : f32 to vector<8x128xf32>
    %166 = arith.addf %165, %164 : vector<8x128xf32>
    %167 = arith.mulf %162, %166 : vector<8x128xf32>
    %cst_104 = arith.constant 1.48851585 : f32
    %168 = vector.broadcast %cst_104 : f32 to vector<8x128xf32>
    %169 = arith.addf %168, %167 : vector<8x128xf32>
    %170 = arith.mulf %162, %169 : vector<8x128xf32>
    %cst_105 = arith.constant -1.13520396 : f32
    %171 = vector.broadcast %cst_105 : f32 to vector<8x128xf32>
    %172 = arith.addf %171, %170 : vector<8x128xf32>
    %173 = arith.mulf %162, %172 : vector<8x128xf32>
    %cst_106 = arith.constant 0.278868079 : f32
    %174 = vector.broadcast %cst_106 : f32 to vector<8x128xf32>
    %175 = arith.addf %174, %173 : vector<8x128xf32>
    %176 = arith.mulf %162, %175 : vector<8x128xf32>
    %cst_107 = arith.constant -0.186288059 : f32
    %177 = vector.broadcast %cst_107 : f32 to vector<8x128xf32>
    %178 = arith.addf %177, %176 : vector<8x128xf32>
    %179 = arith.mulf %162, %178 : vector<8x128xf32>
    %cst_108 = arith.constant 0.0967841818 : f32
    %180 = vector.broadcast %cst_108 : f32 to vector<8x128xf32>
    %181 = arith.addf %180, %179 : vector<8x128xf32>
    %182 = arith.mulf %162, %181 : vector<8x128xf32>
    %cst_109 = arith.constant 0.374091953 : f32
    %183 = vector.broadcast %cst_109 : f32 to vector<8x128xf32>
    %184 = arith.addf %183, %182 : vector<8x128xf32>
    %185 = arith.mulf %162, %184 : vector<8x128xf32>
    %cst_110 = arith.constant 1.00002372 : f32
    %186 = vector.broadcast %cst_110 : f32 to vector<8x128xf32>
    %187 = arith.addf %186, %185 : vector<8x128xf32>
    %188 = arith.mulf %162, %187 : vector<8x128xf32>
    %cst_111 = arith.constant -1.26551223 : f32
    %189 = vector.broadcast %cst_111 : f32 to vector<8x128xf32>
    %190 = arith.addf %189, %188 : vector<8x128xf32>
    %cst_112 = arith.constant 0.000000e+00 : f32
    %191 = vector.broadcast %cst_112 : f32 to vector<8x128xf32>
    %192 = arith.subf %191, %156 : vector<8x128xf32>
    %193 = arith.mulf %192, %156 : vector<8x128xf32>
    %194 = arith.addf %193, %190 : vector<8x128xf32>
    %195 = math.exp %194 : vector<8x128xf32>
    %196 = arith.mulf %162, %195 : vector<8x128xf32>
    %cst_113 = arith.constant 0.000000e+00 : f32
    %197 = vector.broadcast %cst_113 : f32 to vector<8x128xf32>
    %198 = arith.cmpf oge, %155, %197 : vector<8x128xf32>
    %cst_114 = arith.constant 1.000000e+00 : f32
    %199 = vector.broadcast %cst_114 : f32 to vector<8x128xf32>
    %200 = arith.subf %199, %196 : vector<8x128xf32>
    %cst_115 = arith.constant 1.000000e+00 : f32
    %201 = vector.broadcast %cst_115 : f32 to vector<8x128xf32>
    %202 = arith.subf %196, %201 : vector<8x128xf32>
    %203 = arith.select %198, %200, %202 : vector<8x128xi1>, vector<8x128xf32>
    %cst_116 = arith.constant 1.000000e+00 : f32
    %204 = vector.broadcast %cst_116 : f32 to vector<8x128xf32>
    %205 = arith.addf %204, %203 : vector<8x128xf32>
    %206 = arith.mulf %153, %205 : vector<8x128xf32>
    %c0_117 = arith.constant 0 : index
    %c0_118 = arith.constant 0 : index
    %207 = vector.load %arg11[%c0_117, %c0_118] : memref<128x128xbf16, #tpu.memory_space<vmem>>, vector<128x128xbf16>
    %208 = arith.truncf %206 : vector<8x128xf32> to vector<8x128xbf16>
    %cst_119 = arith.constant dense<0.000000e+00> : vector<8x128xf32>
    %209 = tpu.matmul %208, %207, %cst_119 {dimension_numbers = #tpu.dot_dimension_numbers<[1], [0], [0], [1], [0, 0, 1, 1], [], []>} : vector<8x128xbf16>, vector<128x128xbf16>, vector<8x128xf32> -> vector<8x128xf32>
    %c0_120 = arith.constant 0 : index
    %c0_121 = arith.constant 0 : index
    %210 = vector.load %arg12[%c0_120, %c0_121] : memref<1x128xf32, #tpu.memory_space<vmem>>, vector<1x128xf32>
    %211 = vector.broadcast %210 : vector<1x128xf32> to vector<8x128xf32>
    %212 = arith.addf %209, %211 : vector<8x128xf32>
    %213 = arith.addf %212, %97 : vector<8x128xf32>
    %c0_122 = arith.constant 0 : index
    %c0_123 = arith.constant 0 : index
    %214 = vector.load %arg13[%c0_122, %c0_123] : memref<1x128xf32, #tpu.memory_space<vmem>>, vector<1x128xf32>
    %c0_124 = arith.constant 0 : index
    %c0_125 = arith.constant 0 : index
    %215 = vector.load %arg14[%c0_124, %c0_125] : memref<1x128xf32, #tpu.memory_space<vmem>>, vector<1x128xf32>
    %cst_126 = arith.constant dense<0.000000e+00> : vector<8xf32>
    %216 = vector.multi_reduction <add>, %213, %cst_126 [1] : vector<8x128xf32> to vector<8xf32>
    %217 = vector.shape_cast %216 : vector<8xf32> to vector<8x1xf32>
    %cst_127 = arith.constant 1.280000e+02 : f32
    %218 = vector.broadcast %cst_127 : f32 to vector<8x1xf32>
    %219 = arith.divf %217, %218 : vector<8x1xf32>
    %220 = vector.broadcast %219 : vector<8x1xf32> to vector<8x128xf32>
    %221 = arith.subf %213, %220 : vector<8x128xf32>
    %222 = arith.mulf %221, %221 : vector<8x128xf32>
    %cst_128 = arith.constant dense<0.000000e+00> : vector<8xf32>
    %223 = vector.multi_reduction <add>, %222, %cst_128 [1] : vector<8x128xf32> to vector<8xf32>
    %224 = vector.shape_cast %223 : vector<8xf32> to vector<8x1xf32>
    %cst_129 = arith.constant 1.280000e+02 : f32
    %225 = vector.broadcast %cst_129 : f32 to vector<8x1xf32>
    %226 = arith.divf %224, %225 : vector<8x1xf32>
    %227 = vector.broadcast %219 : vector<8x1xf32> to vector<8x128xf32>
    %228 = arith.subf %213, %227 : vector<8x128xf32>
    %cst_130 = arith.constant 9.99999974E-6 : f32
    %229 = vector.broadcast %cst_130 : f32 to vector<8x1xf32>
    %230 = arith.addf %226, %229 : vector<8x1xf32>
    %231 = math.rsqrt %230 : vector<8x1xf32>
    %232 = vector.broadcast %231 : vector<8x1xf32> to vector<8x128xf32>
    %233 = arith.mulf %228, %232 : vector<8x128xf32>
    %234 = vector.broadcast %214 : vector<1x128xf32> to vector<8x128xf32>
    %235 = arith.mulf %233, %234 : vector<8x128xf32>
    %236 = vector.broadcast %215 : vector<1x128xf32> to vector<8x128xf32>
    %237 = arith.addf %235, %236 : vector<8x128xf32>
    %c0_131 = arith.constant 0 : index
    %c0_132 = arith.constant 0 : index
    %238 = vector.load %arg15[%c0_131, %c0_132] : memref<128x128xbf16, #tpu.memory_space<vmem>>, vector<128x128xbf16>
    %239 = arith.truncf %237 : vector<8x128xf32> to vector<8x128xbf16>
    %cst_133 = arith.constant dense<0.000000e+00> : vector<8x128xf32>
    %240 = tpu.matmul %239, %238, %cst_133 {dimension_numbers = #tpu.dot_dimension_numbers<[1], [0], [0], [1], [0, 0, 1, 1], [], []>} : vector<8x128xbf16>, vector<128x128xbf16>, vector<8x128xf32> -> vector<8x128xf32>
    %c0_134 = arith.constant 0 : index
    %c0_135 = arith.constant 0 : index
    %241 = vector.load %arg16[%c0_134, %c0_135] : memref<1x128xf32, #tpu.memory_space<vmem>>, vector<1x128xf32>
    %242 = vector.broadcast %241 : vector<1x128xf32> to vector<8x128xf32>
    %243 = arith.addf %240, %242 : vector<8x128xf32>
    %cst_136 = arith.constant 5.000000e-01 : f32
    %244 = vector.broadcast %cst_136 : f32 to vector<8x128xf32>
    %245 = arith.mulf %244, %243 : vector<8x128xf32>
    %cst_137 = arith.constant 0.707106769 : f32
    %246 = vector.broadcast %cst_137 : f32 to vector<8x128xf32>
    %247 = arith.mulf %243, %246 : vector<8x128xf32>
    %248 = math.absf %247 : vector<8x128xf32>
    %cst_138 = arith.constant 5.000000e-01 : f32
    %249 = vector.broadcast %cst_138 : f32 to vector<8x128xf32>
    %250 = arith.mulf %249, %248 : vector<8x128xf32>
    %cst_139 = arith.constant 1.000000e+00 : f32
    %251 = vector.broadcast %cst_139 : f32 to vector<8x128xf32>
    %252 = arith.addf %251, %250 : vector<8x128xf32>
    %cst_140 = arith.constant 1.000000e+00 : f32
    %253 = vector.broadcast %cst_140 : f32 to vector<8x128xf32>
    %254 = arith.divf %253, %252 : vector<8x128xf32>
    %cst_141 = arith.constant 0.170872763 : f32
    %255 = vector.broadcast %cst_141 : f32 to vector<8x128xf32>
    %256 = arith.mulf %254, %255 : vector<8x128xf32>
    %cst_142 = arith.constant -0.822152256 : f32
    %257 = vector.broadcast %cst_142 : f32 to vector<8x128xf32>
    %258 = arith.addf %257, %256 : vector<8x128xf32>
    %259 = arith.mulf %254, %258 : vector<8x128xf32>
    %cst_143 = arith.constant 1.48851585 : f32
    %260 = vector.broadcast %cst_143 : f32 to vector<8x128xf32>
    %261 = arith.addf %260, %259 : vector<8x128xf32>
    %262 = arith.mulf %254, %261 : vector<8x128xf32>
    %cst_144 = arith.constant -1.13520396 : f32
    %263 = vector.broadcast %cst_144 : f32 to vector<8x128xf32>
    %264 = arith.addf %263, %262 : vector<8x128xf32>
    %265 = arith.mulf %254, %264 : vector<8x128xf32>
    %cst_145 = arith.constant 0.278868079 : f32
    %266 = vector.broadcast %cst_145 : f32 to vector<8x128xf32>
    %267 = arith.addf %266, %265 : vector<8x128xf32>
    %268 = arith.mulf %254, %267 : vector<8x128xf32>
    %cst_146 = arith.constant -0.186288059 : f32
    %269 = vector.broadcast %cst_146 : f32 to vector<8x128xf32>
    %270 = arith.addf %269, %268 : vector<8x128xf32>
    %271 = arith.mulf %254, %270 : vector<8x128xf32>
    %cst_147 = arith.constant 0.0967841818 : f32
    %272 = vector.broadcast %cst_147 : f32 to vector<8x128xf32>
    %273 = arith.addf %272, %271 : vector<8x128xf32>
    %274 = arith.mulf %254, %273 : vector<8x128xf32>
    %cst_148 = arith.constant 0.374091953 : f32
    %275 = vector.broadcast %cst_148 : f32 to vector<8x128xf32>
    %276 = arith.addf %275, %274 : vector<8x128xf32>
    %277 = arith.mulf %254, %276 : vector<8x128xf32>
    %cst_149 = arith.constant 1.00002372 : f32
    %278 = vector.broadcast %cst_149 : f32 to vector<8x128xf32>
    %279 = arith.addf %278, %277 : vector<8x128xf32>
    %280 = arith.mulf %254, %279 : vector<8x128xf32>
    %cst_150 = arith.constant -1.26551223 : f32
    %281 = vector.broadcast %cst_150 : f32 to vector<8x128xf32>
    %282 = arith.addf %281, %280 : vector<8x128xf32>
    %cst_151 = arith.constant 0.000000e+00 : f32
    %283 = vector.broadcast %cst_151 : f32 to vector<8x128xf32>
    %284 = arith.subf %283, %248 : vector<8x128xf32>
    %285 = arith.mulf %284, %248 : vector<8x128xf32>
    %286 = arith.addf %285, %282 : vector<8x128xf32>
    %287 = math.exp %286 : vector<8x128xf32>
    %288 = arith.mulf %254, %287 : vector<8x128xf32>
    %cst_152 = arith.constant 0.000000e+00 : f32
    %289 = vector.broadcast %cst_152 : f32 to vector<8x128xf32>
    %290 = arith.cmpf oge, %247, %289 : vector<8x128xf32>
    %cst_153 = arith.constant 1.000000e+00 : f32
    %291 = vector.broadcast %cst_153 : f32 to vector<8x128xf32>
    %292 = arith.subf %291, %288 : vector<8x128xf32>
    %cst_154 = arith.constant 1.000000e+00 : f32
    %293 = vector.broadcast %cst_154 : f32 to vector<8x128xf32>
    %294 = arith.subf %288, %293 : vector<8x128xf32>
    %295 = arith.select %290, %292, %294 : vector<8x128xi1>, vector<8x128xf32>
    %cst_155 = arith.constant 1.000000e+00 : f32
    %296 = vector.broadcast %cst_155 : f32 to vector<8x128xf32>
    %297 = arith.addf %296, %295 : vector<8x128xf32>
    %298 = arith.mulf %245, %297 : vector<8x128xf32>
    %c0_156 = arith.constant 0 : index
    %c0_157 = arith.constant 0 : index
    %299 = vector.load %arg17[%c0_156, %c0_157] : memref<128x128xbf16, #tpu.memory_space<vmem>>, vector<128x128xbf16>
    %300 = arith.truncf %298 : vector<8x128xf32> to vector<8x128xbf16>
    %cst_158 = arith.constant dense<0.000000e+00> : vector<8x128xf32>
    %301 = tpu.matmul %300, %299, %cst_158 {dimension_numbers = #tpu.dot_dimension_numbers<[1], [0], [0], [1], [0, 0, 1, 1], [], []>} : vector<8x128xbf16>, vector<128x128xbf16>, vector<8x128xf32> -> vector<8x128xf32>
    %c0_159 = arith.constant 0 : index
    %c0_160 = arith.constant 0 : index
    %302 = vector.load %arg18[%c0_159, %c0_160] : memref<1x128xf32, #tpu.memory_space<vmem>>, vector<1x128xf32>
    %303 = vector.broadcast %302 : vector<1x128xf32> to vector<8x128xf32>
    %304 = arith.addf %301, %303 : vector<8x128xf32>
    %305 = arith.addf %304, %213 : vector<8x128xf32>
    %c0_161 = arith.constant 0 : index
    %c0_162 = arith.constant 0 : index
    %306 = vector.load %arg19[%c0_161, %c0_162] : memref<1x128xf32, #tpu.memory_space<vmem>>, vector<1x128xf32>
    %c0_163 = arith.constant 0 : index
    %c0_164 = arith.constant 0 : index
    %307 = vector.load %arg20[%c0_163, %c0_164] : memref<1x128xf32, #tpu.memory_space<vmem>>, vector<1x128xf32>
    %cst_165 = arith.constant dense<0.000000e+00> : vector<8xf32>
    %308 = vector.multi_reduction <add>, %305, %cst_165 [1] : vector<8x128xf32> to vector<8xf32>
    %309 = vector.shape_cast %308 : vector<8xf32> to vector<8x1xf32>
    %cst_166 = arith.constant 1.280000e+02 : f32
    %310 = vector.broadcast %cst_166 : f32 to vector<8x1xf32>
    %311 = arith.divf %309, %310 : vector<8x1xf32>
    %312 = vector.broadcast %311 : vector<8x1xf32> to vector<8x128xf32>
    %313 = arith.subf %305, %312 : vector<8x128xf32>
    %314 = arith.mulf %313, %313 : vector<8x128xf32>
    %cst_167 = arith.constant dense<0.000000e+00> : vector<8xf32>
    %315 = vector.multi_reduction <add>, %314, %cst_167 [1] : vector<8x128xf32> to vector<8xf32>
    %316 = vector.shape_cast %315 : vector<8xf32> to vector<8x1xf32>
    %cst_168 = arith.constant 1.280000e+02 : f32
    %317 = vector.broadcast %cst_168 : f32 to vector<8x1xf32>
    %318 = arith.divf %316, %317 : vector<8x1xf32>
    %319 = vector.broadcast %311 : vector<8x1xf32> to vector<8x128xf32>
    %320 = arith.subf %305, %319 : vector<8x128xf32>
    %cst_169 = arith.constant 9.99999974E-6 : f32
    %321 = vector.broadcast %cst_169 : f32 to vector<8x1xf32>
    %322 = arith.addf %318, %321 : vector<8x1xf32>
    %323 = math.rsqrt %322 : vector<8x1xf32>
    %324 = vector.broadcast %323 : vector<8x1xf32> to vector<8x128xf32>
    %325 = arith.mulf %320, %324 : vector<8x128xf32>
    %326 = vector.broadcast %306 : vector<1x128xf32> to vector<8x128xf32>
    %327 = arith.mulf %325, %326 : vector<8x128xf32>
    %328 = vector.broadcast %307 : vector<1x128xf32> to vector<8x128xf32>
    %329 = arith.addf %327, %328 : vector<8x128xf32>
    %c0_170 = arith.constant 0 : index
    %c0_171 = arith.constant 0 : index
    %330 = vector.load %arg23[%c0_170, %c0_171] : memref<8x128xf32, #tpu.memory_space<vmem>>, vector<8x128xf32>
    tpu.vector_store %arg23[%c0_170, %c0_171], %329 {strides = array<i32>} : memref<8x128xf32, #tpu.memory_space<vmem>>, vector<8x128xf32>,
    %c0_i32_172 = arith.constant 0 : i32
    %331 = arith.maxsi %3, %c0_i32_172 : i32
    %c0_i32_173 = arith.constant 0 : i32
    %332 = arith.cmpi sge, %3, %c0_i32_173 : i32
    %c0_i32_174 = arith.constant 0 : i32
    %333 = arith.maxsi %6, %c0_i32_174 : i32
    %c0_i32_175 = arith.constant 0 : i32
    %334 = arith.cmpi sge, %6, %c0_i32_175 : i32
    %c0_i32_176 = arith.constant 0 : i32
    %335 = arith.maxsi %9, %c0_i32_176 : i32
    %c0_i32_177 = arith.constant 0 : i32
    %336 = arith.cmpi sge, %9, %c0_i32_177 : i32
    %c0_i32_178 = arith.constant 0 : i32
    %337 = arith.maxsi %12, %c0_i32_178 : i32
    %c0_i32_179 = arith.constant 0 : i32
    %338 = arith.cmpi sge, %12, %c0_i32_179 : i32
    %c0_i32_180 = arith.constant 0 : i32
    %339 = arith.maxsi %15, %c0_i32_180 : i32
    %c0_i32_181 = arith.constant 0 : i32
    %340 = arith.cmpi sge, %15, %c0_i32_181 : i32
    %c0_i32_182 = arith.constant 0 : i32
    %341 = arith.maxsi %18, %c0_i32_182 : i32
    %c0_i32_183 = arith.constant 0 : i32
    %342 = arith.cmpi sge, %18, %c0_i32_183 : i32
    %c0_i32_184 = arith.constant 0 : i32
    %343 = arith.maxsi %21, %c0_i32_184 : i32
    %c0_i32_185 = arith.constant 0 : i32
    %344 = arith.cmpi sge, %21, %c0_i32_185 : i32
    %c0_i32_186 = arith.constant 0 : i32
    %345 = arith.maxsi %24, %c0_i32_186 : i32
    %c0_i32_187 = arith.constant 0 : i32
    %346 = arith.cmpi sge, %24, %c0_i32_187 : i32
    %347 = arith.extui %332 : i1 to i32
    %c0_i32_188 = arith.constant 0 : i32
    %c0_i32_189 = arith.constant 0 : i32
    %348 = arith.cmpi ne, %347, %c0_i32_189 : i32
    scf.if %348 {
      %c0_i32_220 = arith.constant 0 : i32
      %c0_i32_221 = arith.constant 0 : i32
      %379 = tpu.memref_slice %arg23[%c0_i32_220, %c0_i32_221] : memref<8x128xf32, #tpu.memory_space<vmem>> -> memref<1x128xf32, #tpu.memory_space<vmem>>
      %c0_i32_222 = arith.constant 0 : i32
      %380 = tpu.memref_slice %arg21[%331, %c0_i32_222] : memref<32x128xf32, #tpu.memory_space<any>> -> memref<1x128xf32, #tpu.memory_space<any>>
      %381 = tpu.memref_slice %arg25[%c0_i32_188] : memref<8x!tpu.dma_semaphore, #tpu.memory_space<semaphore_mem>> -> memref<1x!tpu.dma_semaphore, #tpu.memory_space<semaphore_mem>>
      %382 = tpu.memref_squeeze %381 : memref<1x!tpu.dma_semaphore, #tpu.memory_space<semaphore_mem>> -> memref<!tpu.dma_semaphore, #tpu.memory_space<semaphore_mem>>
      tpu.enqueue_dma source(%379 : memref<1x128xf32, #tpu.memory_space<vmem>>) target(%380 : memref<1x128xf32, #tpu.memory_space<any>>) target_semaphore(%382 : memref<!tpu.dma_semaphore, #tpu.memory_space<semaphore_mem>>)
    } else {
    }
    %349 = arith.extui %334 : i1 to i32
    %c1_i32_190 = arith.constant 1 : i32
    %c0_i32_191 = arith.constant 0 : i32
    %350 = arith.cmpi ne, %349, %c0_i32_191 : i32
    scf.if %350 {
      %c1_i32_220 = arith.constant 1 : i32
      %c0_i32_221 = arith.constant 0 : i32
      %379 = tpu.memref_slice %arg23[%c1_i32_220, %c0_i32_221] : memref<8x128xf32, #tpu.memory_space<vmem>> -> memref<1x128xf32, #tpu.memory_space<vmem>>
      %c0_i32_222 = arith.constant 0 : i32
      %380 = tpu.memref_slice %arg21[%333, %c0_i32_222] : memref<32x128xf32, #tpu.memory_space<any>> -> memref<1x128xf32, #tpu.memory_space<any>>
      %381 = tpu.memref_slice %arg25[%c1_i32_190] : memref<8x!tpu.dma_semaphore, #tpu.memory_space<semaphore_mem>> -> memref<1x!tpu.dma_semaphore, #tpu.memory_space<semaphore_mem>>
      %382 = tpu.memref_squeeze %381 : memref<1x!tpu.dma_semaphore, #tpu.memory_space<semaphore_mem>> -> memref<!tpu.dma_semaphore, #tpu.memory_space<semaphore_mem>>
      tpu.enqueue_dma source(%379 : memref<1x128xf32, #tpu.memory_space<vmem>>) target(%380 : memref<1x128xf32, #tpu.memory_space<any>>) target_semaphore(%382 : memref<!tpu.dma_semaphore, #tpu.memory_space<semaphore_mem>>)
    } else {
    }
    %351 = arith.extui %336 : i1 to i32
    %c2_i32_192 = arith.constant 2 : i32
    %c0_i32_193 = arith.constant 0 : i32
    %352 = arith.cmpi ne, %351, %c0_i32_193 : i32
    scf.if %352 {
      %c2_i32_220 = arith.constant 2 : i32
      %c0_i32_221 = arith.constant 0 : i32
      %379 = tpu.memref_slice %arg23[%c2_i32_220, %c0_i32_221] : memref<8x128xf32, #tpu.memory_space<vmem>> -> memref<1x128xf32, #tpu.memory_space<vmem>>
      %c0_i32_222 = arith.constant 0 : i32
      %380 = tpu.memref_slice %arg21[%335, %c0_i32_222] : memref<32x128xf32, #tpu.memory_space<any>> -> memref<1x128xf32, #tpu.memory_space<any>>
      %381 = tpu.memref_slice %arg25[%c2_i32_192] : memref<8x!tpu.dma_semaphore, #tpu.memory_space<semaphore_mem>> -> memref<1x!tpu.dma_semaphore, #tpu.memory_space<semaphore_mem>>
      %382 = tpu.memref_squeeze %381 : memref<1x!tpu.dma_semaphore, #tpu.memory_space<semaphore_mem>> -> memref<!tpu.dma_semaphore, #tpu.memory_space<semaphore_mem>>
      tpu.enqueue_dma source(%379 : memref<1x128xf32, #tpu.memory_space<vmem>>) target(%380 : memref<1x128xf32, #tpu.memory_space<any>>) target_semaphore(%382 : memref<!tpu.dma_semaphore, #tpu.memory_space<semaphore_mem>>)
    } else {
    }
    %353 = arith.extui %338 : i1 to i32
    %c3_i32_194 = arith.constant 3 : i32
    %c0_i32_195 = arith.constant 0 : i32
    %354 = arith.cmpi ne, %353, %c0_i32_195 : i32
    scf.if %354 {
      %c3_i32_220 = arith.constant 3 : i32
      %c0_i32_221 = arith.constant 0 : i32
      %379 = tpu.memref_slice %arg23[%c3_i32_220, %c0_i32_221] : memref<8x128xf32, #tpu.memory_space<vmem>> -> memref<1x128xf32, #tpu.memory_space<vmem>>
      %c0_i32_222 = arith.constant 0 : i32
      %380 = tpu.memref_slice %arg21[%337, %c0_i32_222] : memref<32x128xf32, #tpu.memory_space<any>> -> memref<1x128xf32, #tpu.memory_space<any>>
      %381 = tpu.memref_slice %arg25[%c3_i32_194] : memref<8x!tpu.dma_semaphore, #tpu.memory_space<semaphore_mem>> -> memref<1x!tpu.dma_semaphore, #tpu.memory_space<semaphore_mem>>
      %382 = tpu.memref_squeeze %381 : memref<1x!tpu.dma_semaphore, #tpu.memory_space<semaphore_mem>> -> memref<!tpu.dma_semaphore, #tpu.memory_space<semaphore_mem>>
      tpu.enqueue_dma source(%379 : memref<1x128xf32, #tpu.memory_space<vmem>>) target(%380 : memref<1x128xf32, #tpu.memory_space<any>>) target_semaphore(%382 : memref<!tpu.dma_semaphore, #tpu.memory_space<semaphore_mem>>)
    } else {
    }
    %355 = arith.extui %340 : i1 to i32
    %c4_i32_196 = arith.constant 4 : i32
    %c0_i32_197 = arith.constant 0 : i32
    %356 = arith.cmpi ne, %355, %c0_i32_197 : i32
    scf.if %356 {
      %c4_i32_220 = arith.constant 4 : i32
      %c0_i32_221 = arith.constant 0 : i32
      %379 = tpu.memref_slice %arg23[%c4_i32_220, %c0_i32_221] : memref<8x128xf32, #tpu.memory_space<vmem>> -> memref<1x128xf32, #tpu.memory_space<vmem>>
      %c0_i32_222 = arith.constant 0 : i32
      %380 = tpu.memref_slice %arg21[%339, %c0_i32_222] : memref<32x128xf32, #tpu.memory_space<any>> -> memref<1x128xf32, #tpu.memory_space<any>>
      %381 = tpu.memref_slice %arg25[%c4_i32_196] : memref<8x!tpu.dma_semaphore, #tpu.memory_space<semaphore_mem>> -> memref<1x!tpu.dma_semaphore, #tpu.memory_space<semaphore_mem>>
      %382 = tpu.memref_squeeze %381 : memref<1x!tpu.dma_semaphore, #tpu.memory_space<semaphore_mem>> -> memref<!tpu.dma_semaphore, #tpu.memory_space<semaphore_mem>>
      tpu.enqueue_dma source(%379 : memref<1x128xf32, #tpu.memory_space<vmem>>) target(%380 : memref<1x128xf32, #tpu.memory_space<any>>) target_semaphore(%382 : memref<!tpu.dma_semaphore, #tpu.memory_space<semaphore_mem>>)
    } else {
    }
    %357 = arith.extui %342 : i1 to i32
    %c5_i32_198 = arith.constant 5 : i32
    %c0_i32_199 = arith.constant 0 : i32
    %358 = arith.cmpi ne, %357, %c0_i32_199 : i32
    scf.if %358 {
      %c5_i32_220 = arith.constant 5 : i32
      %c0_i32_221 = arith.constant 0 : i32
      %379 = tpu.memref_slice %arg23[%c5_i32_220, %c0_i32_221] : memref<8x128xf32, #tpu.memory_space<vmem>> -> memref<1x128xf32, #tpu.memory_space<vmem>>
      %c0_i32_222 = arith.constant 0 : i32
      %380 = tpu.memref_slice %arg21[%341, %c0_i32_222] : memref<32x128xf32, #tpu.memory_space<any>> -> memref<1x128xf32, #tpu.memory_space<any>>
      %381 = tpu.memref_slice %arg25[%c5_i32_198] : memref<8x!tpu.dma_semaphore, #tpu.memory_space<semaphore_mem>> -> memref<1x!tpu.dma_semaphore, #tpu.memory_space<semaphore_mem>>
      %382 = tpu.memref_squeeze %381 : memref<1x!tpu.dma_semaphore, #tpu.memory_space<semaphore_mem>> -> memref<!tpu.dma_semaphore, #tpu.memory_space<semaphore_mem>>
      tpu.enqueue_dma source(%379 : memref<1x128xf32, #tpu.memory_space<vmem>>) target(%380 : memref<1x128xf32, #tpu.memory_space<any>>) target_semaphore(%382 : memref<!tpu.dma_semaphore, #tpu.memory_space<semaphore_mem>>)
    } else {
    }
    %359 = arith.extui %344 : i1 to i32
    %c6_i32_200 = arith.constant 6 : i32
    %c0_i32_201 = arith.constant 0 : i32
    %360 = arith.cmpi ne, %359, %c0_i32_201 : i32
    scf.if %360 {
      %c6_i32_220 = arith.constant 6 : i32
      %c0_i32_221 = arith.constant 0 : i32
      %379 = tpu.memref_slice %arg23[%c6_i32_220, %c0_i32_221] : memref<8x128xf32, #tpu.memory_space<vmem>> -> memref<1x128xf32, #tpu.memory_space<vmem>>
      %c0_i32_222 = arith.constant 0 : i32
      %380 = tpu.memref_slice %arg21[%343, %c0_i32_222] : memref<32x128xf32, #tpu.memory_space<any>> -> memref<1x128xf32, #tpu.memory_space<any>>
      %381 = tpu.memref_slice %arg25[%c6_i32_200] : memref<8x!tpu.dma_semaphore, #tpu.memory_space<semaphore_mem>> -> memref<1x!tpu.dma_semaphore, #tpu.memory_space<semaphore_mem>>
      %382 = tpu.memref_squeeze %381 : memref<1x!tpu.dma_semaphore, #tpu.memory_space<semaphore_mem>> -> memref<!tpu.dma_semaphore, #tpu.memory_space<semaphore_mem>>
      tpu.enqueue_dma source(%379 : memref<1x128xf32, #tpu.memory_space<vmem>>) target(%380 : memref<1x128xf32, #tpu.memory_space<any>>) target_semaphore(%382 : memref<!tpu.dma_semaphore, #tpu.memory_space<semaphore_mem>>)
    } else {
    }
    %361 = arith.extui %346 : i1 to i32
    %c7_i32_202 = arith.constant 7 : i32
    %c0_i32_203 = arith.constant 0 : i32
    %362 = arith.cmpi ne, %361, %c0_i32_203 : i32
    scf.if %362 {
      %c7_i32_220 = arith.constant 7 : i32
      %c0_i32_221 = arith.constant 0 : i32
      %379 = tpu.memref_slice %arg23[%c7_i32_220, %c0_i32_221] : memref<8x128xf32, #tpu.memory_space<vmem>> -> memref<1x128xf32, #tpu.memory_space<vmem>>
      %c0_i32_222 = arith.constant 0 : i32
      %380 = tpu.memref_slice %arg21[%345, %c0_i32_222] : memref<32x128xf32, #tpu.memory_space<any>> -> memref<1x128xf32, #tpu.memory_space<any>>
      %381 = tpu.memref_slice %arg25[%c7_i32_202] : memref<8x!tpu.dma_semaphore, #tpu.memory_space<semaphore_mem>> -> memref<1x!tpu.dma_semaphore, #tpu.memory_space<semaphore_mem>>
      %382 = tpu.memref_squeeze %381 : memref<1x!tpu.dma_semaphore, #tpu.memory_space<semaphore_mem>> -> memref<!tpu.dma_semaphore, #tpu.memory_space<semaphore_mem>>
      tpu.enqueue_dma source(%379 : memref<1x128xf32, #tpu.memory_space<vmem>>) target(%380 : memref<1x128xf32, #tpu.memory_space<any>>) target_semaphore(%382 : memref<!tpu.dma_semaphore, #tpu.memory_space<semaphore_mem>>)
    } else {
    }
    %363 = arith.extui %332 : i1 to i32
    %c0_i32_204 = arith.constant 0 : i32
    %c0_i32_205 = arith.constant 0 : i32
    %364 = arith.cmpi ne, %363, %c0_i32_205 : i32
    scf.if %364 {
      %c0_i32_220 = arith.constant 0 : i32
      %c0_i32_221 = arith.constant 0 : i32
      %379 = tpu.memref_slice %arg23[%c0_i32_220, %c0_i32_221] : memref<8x128xf32, #tpu.memory_space<vmem>> -> memref<1x128xf32, #tpu.memory_space<vmem>>
      %c0_i32_222 = arith.constant 0 : i32
      %380 = tpu.memref_slice %arg21[%331, %c0_i32_222] : memref<32x128xf32, #tpu.memory_space<any>> -> memref<1x128xf32, #tpu.memory_space<any>>
      %381 = tpu.memref_slice %arg25[%c0_i32_204] : memref<8x!tpu.dma_semaphore, #tpu.memory_space<semaphore_mem>> -> memref<1x!tpu.dma_semaphore, #tpu.memory_space<semaphore_mem>>
      %382 = tpu.memref_squeeze %381 : memref<1x!tpu.dma_semaphore, #tpu.memory_space<semaphore_mem>> -> memref<!tpu.dma_semaphore, #tpu.memory_space<semaphore_mem>>
      tpu.wait_dma2 semaphore(%382 : memref<!tpu.dma_semaphore, #tpu.memory_space<semaphore_mem>>) src(%379 : memref<1x128xf32, #tpu.memory_space<vmem>>) dst(%380 : memref<1x128xf32, #tpu.memory_space<any>>)
    } else {
    }
    %365 = arith.extui %334 : i1 to i32
    %c1_i32_206 = arith.constant 1 : i32
    %c0_i32_207 = arith.constant 0 : i32
    %366 = arith.cmpi ne, %365, %c0_i32_207 : i32
    scf.if %366 {
      %c1_i32_220 = arith.constant 1 : i32
      %c0_i32_221 = arith.constant 0 : i32
      %379 = tpu.memref_slice %arg23[%c1_i32_220, %c0_i32_221] : memref<8x128xf32, #tpu.memory_space<vmem>> -> memref<1x128xf32, #tpu.memory_space<vmem>>
      %c0_i32_222 = arith.constant 0 : i32
      %380 = tpu.memref_slice %arg21[%333, %c0_i32_222] : memref<32x128xf32, #tpu.memory_space<any>> -> memref<1x128xf32, #tpu.memory_space<any>>
      %381 = tpu.memref_slice %arg25[%c1_i32_206] : memref<8x!tpu.dma_semaphore, #tpu.memory_space<semaphore_mem>> -> memref<1x!tpu.dma_semaphore, #tpu.memory_space<semaphore_mem>>
      %382 = tpu.memref_squeeze %381 : memref<1x!tpu.dma_semaphore, #tpu.memory_space<semaphore_mem>> -> memref<!tpu.dma_semaphore, #tpu.memory_space<semaphore_mem>>
      tpu.wait_dma2 semaphore(%382 : memref<!tpu.dma_semaphore, #tpu.memory_space<semaphore_mem>>) src(%379 : memref<1x128xf32, #tpu.memory_space<vmem>>) dst(%380 : memref<1x128xf32, #tpu.memory_space<any>>)
    } else {
    }
    %367 = arith.extui %336 : i1 to i32
    %c2_i32_208 = arith.constant 2 : i32
    %c0_i32_209 = arith.constant 0 : i32
    %368 = arith.cmpi ne, %367, %c0_i32_209 : i32
    scf.if %368 {
      %c2_i32_220 = arith.constant 2 : i32
      %c0_i32_221 = arith.constant 0 : i32
      %379 = tpu.memref_slice %arg23[%c2_i32_220, %c0_i32_221] : memref<8x128xf32, #tpu.memory_space<vmem>> -> memref<1x128xf32, #tpu.memory_space<vmem>>
      %c0_i32_222 = arith.constant 0 : i32
      %380 = tpu.memref_slice %arg21[%335, %c0_i32_222] : memref<32x128xf32, #tpu.memory_space<any>> -> memref<1x128xf32, #tpu.memory_space<any>>
      %381 = tpu.memref_slice %arg25[%c2_i32_208] : memref<8x!tpu.dma_semaphore, #tpu.memory_space<semaphore_mem>> -> memref<1x!tpu.dma_semaphore, #tpu.memory_space<semaphore_mem>>
      %382 = tpu.memref_squeeze %381 : memref<1x!tpu.dma_semaphore, #tpu.memory_space<semaphore_mem>> -> memref<!tpu.dma_semaphore, #tpu.memory_space<semaphore_mem>>
      tpu.wait_dma2 semaphore(%382 : memref<!tpu.dma_semaphore, #tpu.memory_space<semaphore_mem>>) src(%379 : memref<1x128xf32, #tpu.memory_space<vmem>>) dst(%380 : memref<1x128xf32, #tpu.memory_space<any>>)
    } else {
    }
    %369 = arith.extui %338 : i1 to i32
    %c3_i32_210 = arith.constant 3 : i32
    %c0_i32_211 = arith.constant 0 : i32
    %370 = arith.cmpi ne, %369, %c0_i32_211 : i32
    scf.if %370 {
      %c3_i32_220 = arith.constant 3 : i32
      %c0_i32_221 = arith.constant 0 : i32
      %379 = tpu.memref_slice %arg23[%c3_i32_220, %c0_i32_221] : memref<8x128xf32, #tpu.memory_space<vmem>> -> memref<1x128xf32, #tpu.memory_space<vmem>>
      %c0_i32_222 = arith.constant 0 : i32
      %380 = tpu.memref_slice %arg21[%337, %c0_i32_222] : memref<32x128xf32, #tpu.memory_space<any>> -> memref<1x128xf32, #tpu.memory_space<any>>
      %381 = tpu.memref_slice %arg25[%c3_i32_210] : memref<8x!tpu.dma_semaphore, #tpu.memory_space<semaphore_mem>> -> memref<1x!tpu.dma_semaphore, #tpu.memory_space<semaphore_mem>>
      %382 = tpu.memref_squeeze %381 : memref<1x!tpu.dma_semaphore, #tpu.memory_space<semaphore_mem>> -> memref<!tpu.dma_semaphore, #tpu.memory_space<semaphore_mem>>
      tpu.wait_dma2 semaphore(%382 : memref<!tpu.dma_semaphore, #tpu.memory_space<semaphore_mem>>) src(%379 : memref<1x128xf32, #tpu.memory_space<vmem>>) dst(%380 : memref<1x128xf32, #tpu.memory_space<any>>)
    } else {
    }
    %371 = arith.extui %340 : i1 to i32
    %c4_i32_212 = arith.constant 4 : i32
    %c0_i32_213 = arith.constant 0 : i32
    %372 = arith.cmpi ne, %371, %c0_i32_213 : i32
    scf.if %372 {
      %c4_i32_220 = arith.constant 4 : i32
      %c0_i32_221 = arith.constant 0 : i32
      %379 = tpu.memref_slice %arg23[%c4_i32_220, %c0_i32_221] : memref<8x128xf32, #tpu.memory_space<vmem>> -> memref<1x128xf32, #tpu.memory_space<vmem>>
      %c0_i32_222 = arith.constant 0 : i32
      %380 = tpu.memref_slice %arg21[%339, %c0_i32_222] : memref<32x128xf32, #tpu.memory_space<any>> -> memref<1x128xf32, #tpu.memory_space<any>>
      %381 = tpu.memref_slice %arg25[%c4_i32_212] : memref<8x!tpu.dma_semaphore, #tpu.memory_space<semaphore_mem>> -> memref<1x!tpu.dma_semaphore, #tpu.memory_space<semaphore_mem>>
      %382 = tpu.memref_squeeze %381 : memref<1x!tpu.dma_semaphore, #tpu.memory_space<semaphore_mem>> -> memref<!tpu.dma_semaphore, #tpu.memory_space<semaphore_mem>>
      tpu.wait_dma2 semaphore(%382 : memref<!tpu.dma_semaphore, #tpu.memory_space<semaphore_mem>>) src(%379 : memref<1x128xf32, #tpu.memory_space<vmem>>) dst(%380 : memref<1x128xf32, #tpu.memory_space<any>>)
    } else {
    }
    %373 = arith.extui %342 : i1 to i32
    %c5_i32_214 = arith.constant 5 : i32
    %c0_i32_215 = arith.constant 0 : i32
    %374 = arith.cmpi ne, %373, %c0_i32_215 : i32
    scf.if %374 {
      %c5_i32_220 = arith.constant 5 : i32
      %c0_i32_221 = arith.constant 0 : i32
      %379 = tpu.memref_slice %arg23[%c5_i32_220, %c0_i32_221] : memref<8x128xf32, #tpu.memory_space<vmem>> -> memref<1x128xf32, #tpu.memory_space<vmem>>
      %c0_i32_222 = arith.constant 0 : i32
      %380 = tpu.memref_slice %arg21[%341, %c0_i32_222] : memref<32x128xf32, #tpu.memory_space<any>> -> memref<1x128xf32, #tpu.memory_space<any>>
      %381 = tpu.memref_slice %arg25[%c5_i32_214] : memref<8x!tpu.dma_semaphore, #tpu.memory_space<semaphore_mem>> -> memref<1x!tpu.dma_semaphore, #tpu.memory_space<semaphore_mem>>
      %382 = tpu.memref_squeeze %381 : memref<1x!tpu.dma_semaphore, #tpu.memory_space<semaphore_mem>> -> memref<!tpu.dma_semaphore, #tpu.memory_space<semaphore_mem>>
      tpu.wait_dma2 semaphore(%382 : memref<!tpu.dma_semaphore, #tpu.memory_space<semaphore_mem>>) src(%379 : memref<1x128xf32, #tpu.memory_space<vmem>>) dst(%380 : memref<1x128xf32, #tpu.memory_space<any>>)
    } else {
    }
    %375 = arith.extui %344 : i1 to i32
    %c6_i32_216 = arith.constant 6 : i32
    %c0_i32_217 = arith.constant 0 : i32
    %376 = arith.cmpi ne, %375, %c0_i32_217 : i32
    scf.if %376 {
      %c6_i32_220 = arith.constant 6 : i32
      %c0_i32_221 = arith.constant 0 : i32
      %379 = tpu.memref_slice %arg23[%c6_i32_220, %c0_i32_221] : memref<8x128xf32, #tpu.memory_space<vmem>> -> memref<1x128xf32, #tpu.memory_space<vmem>>
      %c0_i32_222 = arith.constant 0 : i32
      %380 = tpu.memref_slice %arg21[%343, %c0_i32_222] : memref<32x128xf32, #tpu.memory_space<any>> -> memref<1x128xf32, #tpu.memory_space<any>>
      %381 = tpu.memref_slice %arg25[%c6_i32_216] : memref<8x!tpu.dma_semaphore, #tpu.memory_space<semaphore_mem>> -> memref<1x!tpu.dma_semaphore, #tpu.memory_space<semaphore_mem>>
      %382 = tpu.memref_squeeze %381 : memref<1x!tpu.dma_semaphore, #tpu.memory_space<semaphore_mem>> -> memref<!tpu.dma_semaphore, #tpu.memory_space<semaphore_mem>>
      tpu.wait_dma2 semaphore(%382 : memref<!tpu.dma_semaphore, #tpu.memory_space<semaphore_mem>>) src(%379 : memref<1x128xf32, #tpu.memory_space<vmem>>) dst(%380 : memref<1x128xf32, #tpu.memory_space<any>>)
    } else {
    }
    %377 = arith.extui %346 : i1 to i32
    %c7_i32_218 = arith.constant 7 : i32
    %c0_i32_219 = arith.constant 0 : i32
    %378 = arith.cmpi ne, %377, %c0_i32_219 : i32
    scf.if %378 {
      %c7_i32_220 = arith.constant 7 : i32
      %c0_i32_221 = arith.constant 0 : i32
      %379 = tpu.memref_slice %arg23[%c7_i32_220, %c0_i32_221] : memref<8x128xf32, #tpu.memory_space<vmem>> -> memref<1x128xf32, #tpu.memory_space<vmem>>
      %c0_i32_222 = arith.constant 0 : i32
      %380 = tpu.memref_slice %arg21[%345, %c0_i32_222] : memref<32x128xf32, #tpu.memory_space<any>> -> memref<1x128xf32, #tpu.memory_space<any>>
      %381 = tpu.memref_slice %arg25[%c7_i32_218] : memref<8x!tpu.dma_semaphore, #tpu.memory_space<semaphore_mem>> -> memref<1x!tpu.dma_semaphore, #tpu.memory_space<semaphore_mem>>
      %382 = tpu.memref_squeeze %381 : memref<1x!tpu.dma_semaphore, #tpu.memory_space<semaphore_mem>> -> memref<!tpu.dma_semaphore, #tpu.memory_space<semaphore_mem>>
      tpu.wait_dma2 semaphore(%382 : memref<!tpu.dma_semaphore, #tpu.memory_space<semaphore_mem>>) src(%379 : memref<1x128xf32, #tpu.memory_space<vmem>>) dst(%380 : memref<1x128xf32, #tpu.memory_space<any>>)
    } else {
    }
    return
  }
  func.func @transform_0(%arg0: i32) -> i32 {
    %c0_i32 = arith.constant 0 : i32
    %c0_i32_0 = arith.constant 0 : i32
    return %c0_i32 : i32
  }
  func.func @transform_2(%arg0: i32) -> (i32, i32) {
    %c0_i32 = arith.constant 0 : i32
    %c0_i32_0 = arith.constant 0 : i32
    return %arg0, %c0_i32 : i32, i32
  }
  func.func @transform_3(%arg0: i32) -> (i32, i32) {
    %c0_i32 = arith.constant 0 : i32
    %c0_i32_0 = arith.constant 0 : i32
    %c0_i32_1 = arith.constant 0 : i32
    return %c0_i32, %c0_i32_0 : i32, i32
  }
  func.func @transform_4(%arg0: i32) -> (i32, i32) {
    %c0_i32 = arith.constant 0 : i32
    %c0_i32_0 = arith.constant 0 : i32
    %c0_i32_1 = arith.constant 0 : i32
    return %c0_i32, %c0_i32_0 : i32, i32
  }
  func.func @transform_5(%arg0: i32) -> (i32, i32) {
    %c0_i32 = arith.constant 0 : i32
    %c0_i32_0 = arith.constant 0 : i32
    %c0_i32_1 = arith.constant 0 : i32
    return %c0_i32, %c0_i32_0 : i32, i32
  }
  func.func @transform_6(%arg0: i32) -> (i32, i32) {
    %c0_i32 = arith.constant 0 : i32
    %c0_i32_0 = arith.constant 0 : i32
    %c0_i32_1 = arith.constant 0 : i32
    return %c0_i32, %c0_i32_0 : i32, i32
  }
  func.func @transform_7(%arg0: i32) -> (i32, i32) {
    %c0_i32 = arith.constant 0 : i32
    %c0_i32_0 = arith.constant 0 : i32
    %c0_i32_1 = arith.constant 0 : i32
    return %c0_i32, %c0_i32_0 : i32, i32
  }
  func.func @transform_8(%arg0: i32) -> (i32, i32) {
    %c0_i32 = arith.constant 0 : i32
    %c0_i32_0 = arith.constant 0 : i32
    %c0_i32_1 = arith.constant 0 : i32
    return %c0_i32, %c0_i32_0 : i32, i32
  }
  func.func @transform_9(%arg0: i32) -> (i32, i32) {
    %c0_i32 = arith.constant 0 : i32
    %c0_i32_0 = arith.constant 0 : i32
    %c0_i32_1 = arith.constant 0 : i32
    return %c0_i32, %c0_i32_0 : i32, i32
  }
  func.func @transform_10(%arg0: i32) -> (i32, i32) {
    %c0_i32 = arith.constant 0 : i32
    %c0_i32_0 = arith.constant 0 : i32
    %c0_i32_1 = arith.constant 0 : i32
    return %c0_i32, %c0_i32_0 : i32, i32
  }
  func.func @transform_11(%arg0: i32) -> (i32, i32) {
    %c0_i32 = arith.constant 0 : i32
    %c0_i32_0 = arith.constant 0 : i32
    %c0_i32_1 = arith.constant 0 : i32
    return %c0_i32, %c0_i32_0 : i32, i32
  }
  func.func @transform_12(%arg0: i32) -> (i32, i32) {
    %c0_i32 = arith.constant 0 : i32
    %c0_i32_0 = arith.constant 0 : i32
    %c0_i32_1 = arith.constant 0 : i32
    return %c0_i32, %c0_i32_0 : i32, i32
  }
  func.func @transform_13(%arg0: i32) -> (i32, i32) {
    %c0_i32 = arith.constant 0 : i32
    %c0_i32_0 = arith.constant 0 : i32
    %c0_i32_1 = arith.constant 0 : i32
    return %c0_i32, %c0_i32_0 : i32, i32
  }
  func.func @transform_14(%arg0: i32) -> (i32, i32) {
    %c0_i32 = arith.constant 0 : i32
    %c0_i32_0 = arith.constant 0 : i32
    %c0_i32_1 = arith.constant 0 : i32
    return %c0_i32, %c0_i32_0 : i32, i32
  }
  func.func @transform_15(%arg0: i32) -> (i32, i32) {
    %c0_i32 = arith.constant 0 : i32
    %c0_i32_0 = arith.constant 0 : i32
    %c0_i32_1 = arith.constant 0 : i32
    return %c0_i32, %c0_i32_0 : i32, i32
  }
  func.func @transform_16(%arg0: i32) -> (i32, i32) {
    %c0_i32 = arith.constant 0 : i32
    %c0_i32_0 = arith.constant 0 : i32
    %c0_i32_1 = arith.constant 0 : i32
    return %c0_i32, %c0_i32_0 : i32, i32
  }
  func.func @transform_17(%arg0: i32) -> (i32, i32) {
    %c0_i32 = arith.constant 0 : i32
    %c0_i32_0 = arith.constant 0 : i32
    %c0_i32_1 = arith.constant 0 : i32
    return %c0_i32, %c0_i32_0 : i32, i32
  }
  func.func @transform_18(%arg0: i32) -> (i32, i32) {
    %c0_i32 = arith.constant 0 : i32
    %c0_i32_0 = arith.constant 0 : i32
    %c0_i32_1 = arith.constant 0 : i32
    return %c0_i32, %c0_i32_0 : i32, i32
  }
  func.func @transform_19(%arg0: i32) -> (i32, i32) {
    %c0_i32 = arith.constant 0 : i32
    %c0_i32_0 = arith.constant 0 : i32
    %c0_i32_1 = arith.constant 0 : i32
    return %c0_i32, %c0_i32_0 : i32, i32
  }
}

module attributes {stable_mosaic.version = 11 : i64} {
  func.func private @main(%arg0: i32) attributes {dimension_semantics = [#tpu.dimension_semantics<core_parallel>], iteration_bounds = array<i64: 2>, tpu.core_type = #tpu.core_type<sc_scalar_subcore>, window_params = []} {
    return
  }
}

module attributes {stable_mosaic.version = 11 : i64} {
  func.func private @main(%arg0: i32) attributes {dimension_semantics = [#tpu.dimension_semantics<core_parallel>], iteration_bounds = array<i64: 2>, tpu.core_type = #tpu.core_type<sc_scalar_subcore>, window_params = []} {
    return
  }
}

module attributes {stable_mosaic.version = 11 : i64} {
  func.func @fuse_kernel(%arg0: i32, %arg1: memref<16xi32, #tpu.memory_space<smem>>, %arg2: memref<32x128xf32, #tpu.memory_space<any>>, %arg3: memref<8x128xf32, #tpu.memory_space<vmem>>, %arg4: memref<1x128xf32, #tpu.memory_space<vmem>>, %arg5: memref<1x128xf32, #tpu.memory_space<vmem>>, %arg6: memref<1x128xf32, #tpu.memory_space<vmem>>, %arg7: memref<1x128xf32, #tpu.memory_space<vmem>>, %arg8: memref<128x128xbf16, #tpu.memory_space<vmem>>, %arg9: memref<128x128xbf16, #tpu.memory_space<vmem>>, %arg10: memref<1x128xf32, #tpu.memory_space<vmem>>, %arg11: memref<128x128xbf16, #tpu.memory_space<vmem>>, %arg12: memref<1x128xf32, #tpu.memory_space<vmem>>, %arg13: memref<1x128xf32, #tpu.memory_space<vmem>>, %arg14: memref<1x128xf32, #tpu.memory_space<vmem>>, %arg15: memref<128x128xbf16, #tpu.memory_space<vmem>>, %arg16: memref<1x128xf32, #tpu.memory_space<vmem>>, %arg17: memref<128x128xbf16, #tpu.memory_space<vmem>>, %arg18: memref<1x128xf32, #tpu.memory_space<vmem>>, %arg19: memref<1x128xf32, #tpu.memory_space<vmem>>, %arg20: memref<1x128xf32, #tpu.memory_space<vmem>>, %arg21: memref<32x128xf32, #tpu.memory_space<any>>, %arg22: memref<8x128xf32, #tpu.memory_space<vmem>>, %arg23: memref<8x128xf32, #tpu.memory_space<vmem>>, %arg24: memref<8x!tpu.dma_semaphore, #tpu.memory_space<semaphore_mem>>, %arg25: memref<8x!tpu.dma_semaphore, #tpu.memory_space<semaphore_mem>>) attributes {dimension_semantics = [#tpu.dimension_semantics<parallel>], iteration_bounds = array<i64: 2>, scalar_prefetch = 0 : i64, scratch_operands = 4 : i64, tpu.core_type = #tpu.core_type<tc>, window_params = [{transform_indices = @transform_0, window_bounds = array<i64: 16>}, {}, {transform_indices = @transform_2, window_bounds = array<i64: 8, 128>}, {pipeline_mode = #tpu.pipeline_mode<synchronous>, transform_indices = @transform_3, window_bounds = array<i64: 1, 128>}, {pipeline_mode = #tpu.pipeline_mode<synchronous>, transform_indices = @transform_4, window_bounds = array<i64: 1, 128>}, {pipeline_mode = #tpu.pipeline_mode<synchronous>, transform_indices = @transform_5, window_bounds = array<i64: 1, 128>}, {pipeline_mode = #tpu.pipeline_mode<synchronous>, transform_indices = @transform_6, window_bounds = array<i64: 1, 128>}, {pipeline_mode = #tpu.pipeline_mode<synchronous>, transform_indices = @transform_7, window_bounds = array<i64: 128, 128>}, {pipeline_mode = #tpu.pipeline_mode<synchronous>, transform_indices = @transform_8, window_bounds = array<i64: 128, 128>}, {pipeline_mode = #tpu.pipeline_mode<synchronous>, transform_indices = @transform_9, window_bounds = array<i64: 1, 128>}, {pipeline_mode = #tpu.pipeline_mode<synchronous>, transform_indices = @transform_10, window_bounds = array<i64: 128, 128>}, {pipeline_mode = #tpu.pipeline_mode<synchronous>, transform_indices = @transform_11, window_bounds = array<i64: 1, 128>}, {pipeline_mode = #tpu.pipeline_mode<synchronous>, transform_indices = @transform_12, window_bounds = array<i64: 1, 128>}, {pipeline_mode = #tpu.pipeline_mode<synchronous>, transform_indices = @transform_13, window_bounds = array<i64: 1, 128>}, {pipeline_mode = #tpu.pipeline_mode<synchronous>, transform_indices = @transform_14, window_bounds = array<i64: 128, 128>}, {pipeline_mode = #tpu.pipeline_mode<synchronous>, transform_indices = @transform_15, window_bounds = array<i64: 1, 128>}, {pipeline_mode = #tpu.pipeline_mode<synchronous>, transform_indices = @transform_16, window_bounds = array<i64: 128, 128>}, {pipeline_mode = #tpu.pipeline_mode<synchronous>, transform_indices = @transform_17, window_bounds = array<i64: 1, 128>}, {pipeline_mode = #tpu.pipeline_mode<synchronous>, transform_indices = @transform_18, window_bounds = array<i64: 1, 128>}, {pipeline_mode = #tpu.pipeline_mode<synchronous>, transform_indices = @transform_19, window_bounds = array<i64: 1, 128>}, {}]} {
    %c8_i32 = arith.constant 8 : i32
    %0 = arith.muli %arg0, %c8_i32 : i32
    %c0_i32 = arith.constant 0 : i32
    %1 = arith.addi %0, %c0_i32 : i32
    %2 = arith.index_cast %1 : i32 to index
    %3 = memref.load %arg1[%2] : memref<16xi32, #tpu.memory_space<smem>>
    %c1_i32 = arith.constant 1 : i32
    %4 = arith.addi %0, %c1_i32 : i32
    %5 = arith.index_cast %4 : i32 to index
    %6 = memref.load %arg1[%5] : memref<16xi32, #tpu.memory_space<smem>>
    %c2_i32 = arith.constant 2 : i32
    %7 = arith.addi %0, %c2_i32 : i32
    %8 = arith.index_cast %7 : i32 to index
    %9 = memref.load %arg1[%8] : memref<16xi32, #tpu.memory_space<smem>>
    %c3_i32 = arith.constant 3 : i32
    %10 = arith.addi %0, %c3_i32 : i32
    %11 = arith.index_cast %10 : i32 to index
    %12 = memref.load %arg1[%11] : memref<16xi32, #tpu.memory_space<smem>>
    %c4_i32 = arith.constant 4 : i32
    %13 = arith.addi %0, %c4_i32 : i32
    %14 = arith.index_cast %13 : i32 to index
    %15 = memref.load %arg1[%14] : memref<16xi32, #tpu.memory_space<smem>>
    %c5_i32 = arith.constant 5 : i32
    %16 = arith.addi %0, %c5_i32 : i32
    %17 = arith.index_cast %16 : i32 to index
    %18 = memref.load %arg1[%17] : memref<16xi32, #tpu.memory_space<smem>>
    %c6_i32 = arith.constant 6 : i32
    %19 = arith.addi %0, %c6_i32 : i32
    %20 = arith.index_cast %19 : i32 to index
    %21 = memref.load %arg1[%20] : memref<16xi32, #tpu.memory_space<smem>>
    %c7_i32 = arith.constant 7 : i32
    %22 = arith.addi %0, %c7_i32 : i32
    %23 = arith.index_cast %22 : i32 to index
    %24 = memref.load %arg1[%23] : memref<16xi32, #tpu.memory_space<smem>>
    %c0_i32_0 = arith.constant 0 : i32
    %25 = arith.maxsi %3, %c0_i32_0 : i32
    %c0_i32_1 = arith.constant 0 : i32
    %26 = arith.maxsi %6, %c0_i32_1 : i32
    %c0_i32_2 = arith.constant 0 : i32
    %27 = arith.maxsi %9, %c0_i32_2 : i32
    %c0_i32_3 = arith.constant 0 : i32
    %28 = arith.maxsi %12, %c0_i32_3 : i32
    %c0_i32_4 = arith.constant 0 : i32
    %29 = arith.maxsi %15, %c0_i32_4 : i32
    %c0_i32_5 = arith.constant 0 : i32
    %30 = arith.maxsi %18, %c0_i32_5 : i32
    %c0_i32_6 = arith.constant 0 : i32
    %31 = arith.maxsi %21, %c0_i32_6 : i32
    %c0_i32_7 = arith.constant 0 : i32
    %32 = arith.maxsi %24, %c0_i32_7 : i32
    %c0_i32_8 = arith.constant 0 : i32
    %c0_i32_9 = arith.constant 0 : i32
    %33 = tpu.memref_slice %arg2[%25, %c0_i32_9] : memref<32x128xf32, #tpu.memory_space<any>> -> memref<1x128xf32, #tpu.memory_space<any>>
    %c0_i32_10 = arith.constant 0 : i32
    %c0_i32_11 = arith.constant 0 : i32
    %34 = tpu.memref_slice %arg22[%c0_i32_10, %c0_i32_11] : memref<8x128xf32, #tpu.memory_space<vmem>> -> memref<1x128xf32, #tpu.memory_space<vmem>>
    %35 = tpu.memref_slice %arg24[%c0_i32_8] : memref<8x!tpu.dma_semaphore, #tpu.memory_space<semaphore_mem>> -> memref<1x!tpu.dma_semaphore, #tpu.memory_space<semaphore_mem>>
    %36 = tpu.memref_squeeze %35 : memref<1x!tpu.dma_semaphore, #tpu.memory_space<semaphore_mem>> -> memref<!tpu.dma_semaphore, #tpu.memory_space<semaphore_mem>>
    tpu.enqueue_dma source(%33 : memref<1x128xf32, #tpu.memory_space<any>>) target(%34 : memref<1x128xf32, #tpu.memory_space<vmem>>) target_semaphore(%36 : memref<!tpu.dma_semaphore, #tpu.memory_space<semaphore_mem>>)
    %c1_i32_12 = arith.constant 1 : i32
    %c0_i32_13 = arith.constant 0 : i32
    %37 = tpu.memref_slice %arg2[%26, %c0_i32_13] : memref<32x128xf32, #tpu.memory_space<any>> -> memref<1x128xf32, #tpu.memory_space<any>>
    %c1_i32_14 = arith.constant 1 : i32
    %c0_i32_15 = arith.constant 0 : i32
    %38 = tpu.memref_slice %arg22[%c1_i32_14, %c0_i32_15] : memref<8x128xf32, #tpu.memory_space<vmem>> -> memref<1x128xf32, #tpu.memory_space<vmem>>
    %39 = tpu.memref_slice %arg24[%c1_i32_12] : memref<8x!tpu.dma_semaphore, #tpu.memory_space<semaphore_mem>> -> memref<1x!tpu.dma_semaphore, #tpu.memory_space<semaphore_mem>>
    %40 = tpu.memref_squeeze %39 : memref<1x!tpu.dma_semaphore, #tpu.memory_space<semaphore_mem>> -> memref<!tpu.dma_semaphore, #tpu.memory_space<semaphore_mem>>
    tpu.enqueue_dma source(%37 : memref<1x128xf32, #tpu.memory_space<any>>) target(%38 : memref<1x128xf32, #tpu.memory_space<vmem>>) target_semaphore(%40 : memref<!tpu.dma_semaphore, #tpu.memory_space<semaphore_mem>>)
    %c2_i32_16 = arith.constant 2 : i32
    %c0_i32_17 = arith.constant 0 : i32
    %41 = tpu.memref_slice %arg2[%27, %c0_i32_17] : memref<32x128xf32, #tpu.memory_space<any>> -> memref<1x128xf32, #tpu.memory_space<any>>
    %c2_i32_18 = arith.constant 2 : i32
    %c0_i32_19 = arith.constant 0 : i32
    %42 = tpu.memref_slice %arg22[%c2_i32_18, %c0_i32_19] : memref<8x128xf32, #tpu.memory_space<vmem>> -> memref<1x128xf32, #tpu.memory_space<vmem>>
    %43 = tpu.memref_slice %arg24[%c2_i32_16] : memref<8x!tpu.dma_semaphore, #tpu.memory_space<semaphore_mem>> -> memref<1x!tpu.dma_semaphore, #tpu.memory_space<semaphore_mem>>
    %44 = tpu.memref_squeeze %43 : memref<1x!tpu.dma_semaphore, #tpu.memory_space<semaphore_mem>> -> memref<!tpu.dma_semaphore, #tpu.memory_space<semaphore_mem>>
    tpu.enqueue_dma source(%41 : memref<1x128xf32, #tpu.memory_space<any>>) target(%42 : memref<1x128xf32, #tpu.memory_space<vmem>>) target_semaphore(%44 : memref<!tpu.dma_semaphore, #tpu.memory_space<semaphore_mem>>)
    %c3_i32_20 = arith.constant 3 : i32
    %c0_i32_21 = arith.constant 0 : i32
    %45 = tpu.memref_slice %arg2[%28, %c0_i32_21] : memref<32x128xf32, #tpu.memory_space<any>> -> memref<1x128xf32, #tpu.memory_space<any>>
    %c3_i32_22 = arith.constant 3 : i32
    %c0_i32_23 = arith.constant 0 : i32
    %46 = tpu.memref_slice %arg22[%c3_i32_22, %c0_i32_23] : memref<8x128xf32, #tpu.memory_space<vmem>> -> memref<1x128xf32, #tpu.memory_space<vmem>>
    %47 = tpu.memref_slice %arg24[%c3_i32_20] : memref<8x!tpu.dma_semaphore, #tpu.memory_space<semaphore_mem>> -> memref<1x!tpu.dma_semaphore, #tpu.memory_space<semaphore_mem>>
    %48 = tpu.memref_squeeze %47 : memref<1x!tpu.dma_semaphore, #tpu.memory_space<semaphore_mem>> -> memref<!tpu.dma_semaphore, #tpu.memory_space<semaphore_mem>>
    tpu.enqueue_dma source(%45 : memref<1x128xf32, #tpu.memory_space<any>>) target(%46 : memref<1x128xf32, #tpu.memory_space<vmem>>) target_semaphore(%48 : memref<!tpu.dma_semaphore, #tpu.memory_space<semaphore_mem>>)
    %c4_i32_24 = arith.constant 4 : i32
    %c0_i32_25 = arith.constant 0 : i32
    %49 = tpu.memref_slice %arg2[%29, %c0_i32_25] : memref<32x128xf32, #tpu.memory_space<any>> -> memref<1x128xf32, #tpu.memory_space<any>>
    %c4_i32_26 = arith.constant 4 : i32
    %c0_i32_27 = arith.constant 0 : i32
    %50 = tpu.memref_slice %arg22[%c4_i32_26, %c0_i32_27] : memref<8x128xf32, #tpu.memory_space<vmem>> -> memref<1x128xf32, #tpu.memory_space<vmem>>
    %51 = tpu.memref_slice %arg24[%c4_i32_24] : memref<8x!tpu.dma_semaphore, #tpu.memory_space<semaphore_mem>> -> memref<1x!tpu.dma_semaphore, #tpu.memory_space<semaphore_mem>>
    %52 = tpu.memref_squeeze %51 : memref<1x!tpu.dma_semaphore, #tpu.memory_space<semaphore_mem>> -> memref<!tpu.dma_semaphore, #tpu.memory_space<semaphore_mem>>
    tpu.enqueue_dma source(%49 : memref<1x128xf32, #tpu.memory_space<any>>) target(%50 : memref<1x128xf32, #tpu.memory_space<vmem>>) target_semaphore(%52 : memref<!tpu.dma_semaphore, #tpu.memory_space<semaphore_mem>>)
    %c5_i32_28 = arith.constant 5 : i32
    %c0_i32_29 = arith.constant 0 : i32
    %53 = tpu.memref_slice %arg2[%30, %c0_i32_29] : memref<32x128xf32, #tpu.memory_space<any>> -> memref<1x128xf32, #tpu.memory_space<any>>
    %c5_i32_30 = arith.constant 5 : i32
    %c0_i32_31 = arith.constant 0 : i32
    %54 = tpu.memref_slice %arg22[%c5_i32_30, %c0_i32_31] : memref<8x128xf32, #tpu.memory_space<vmem>> -> memref<1x128xf32, #tpu.memory_space<vmem>>
    %55 = tpu.memref_slice %arg24[%c5_i32_28] : memref<8x!tpu.dma_semaphore, #tpu.memory_space<semaphore_mem>> -> memref<1x!tpu.dma_semaphore, #tpu.memory_space<semaphore_mem>>
    %56 = tpu.memref_squeeze %55 : memref<1x!tpu.dma_semaphore, #tpu.memory_space<semaphore_mem>> -> memref<!tpu.dma_semaphore, #tpu.memory_space<semaphore_mem>>
    tpu.enqueue_dma source(%53 : memref<1x128xf32, #tpu.memory_space<any>>) target(%54 : memref<1x128xf32, #tpu.memory_space<vmem>>) target_semaphore(%56 : memref<!tpu.dma_semaphore, #tpu.memory_space<semaphore_mem>>)
    %c6_i32_32 = arith.constant 6 : i32
    %c0_i32_33 = arith.constant 0 : i32
    %57 = tpu.memref_slice %arg2[%31, %c0_i32_33] : memref<32x128xf32, #tpu.memory_space<any>> -> memref<1x128xf32, #tpu.memory_space<any>>
    %c6_i32_34 = arith.constant 6 : i32
    %c0_i32_35 = arith.constant 0 : i32
    %58 = tpu.memref_slice %arg22[%c6_i32_34, %c0_i32_35] : memref<8x128xf32, #tpu.memory_space<vmem>> -> memref<1x128xf32, #tpu.memory_space<vmem>>
    %59 = tpu.memref_slice %arg24[%c6_i32_32] : memref<8x!tpu.dma_semaphore, #tpu.memory_space<semaphore_mem>> -> memref<1x!tpu.dma_semaphore, #tpu.memory_space<semaphore_mem>>
    %60 = tpu.memref_squeeze %59 : memref<1x!tpu.dma_semaphore, #tpu.memory_space<semaphore_mem>> -> memref<!tpu.dma_semaphore, #tpu.memory_space<semaphore_mem>>
    tpu.enqueue_dma source(%57 : memref<1x128xf32, #tpu.memory_space<any>>) target(%58 : memref<1x128xf32, #tpu.memory_space<vmem>>) target_semaphore(%60 : memref<!tpu.dma_semaphore, #tpu.memory_space<semaphore_mem>>)
    %c7_i32_36 = arith.constant 7 : i32
    %c0_i32_37 = arith.constant 0 : i32
    %61 = tpu.memref_slice %arg2[%32, %c0_i32_37] : memref<32x128xf32, #tpu.memory_space<any>> -> memref<1x128xf32, #tpu.memory_space<any>>
    %c7_i32_38 = arith.constant 7 : i32
    %c0_i32_39 = arith.constant 0 : i32
    %62 = tpu.memref_slice %arg22[%c7_i32_38, %c0_i32_39] : memref<8x128xf32, #tpu.memory_space<vmem>> -> memref<1x128xf32, #tpu.memory_space<vmem>>
    %63 = tpu.memref_slice %arg24[%c7_i32_36] : memref<8x!tpu.dma_semaphore, #tpu.memory_space<semaphore_mem>> -> memref<1x!tpu.dma_semaphore, #tpu.memory_space<semaphore_mem>>
    %64 = tpu.memref_squeeze %63 : memref<1x!tpu.dma_semaphore, #tpu.memory_space<semaphore_mem>> -> memref<!tpu.dma_semaphore, #tpu.memory_space<semaphore_mem>>
    tpu.enqueue_dma source(%61 : memref<1x128xf32, #tpu.memory_space<any>>) target(%62 : memref<1x128xf32, #tpu.memory_space<vmem>>) target_semaphore(%64 : memref<!tpu.dma_semaphore, #tpu.memory_space<semaphore_mem>>)
    %c0_i32_40 = arith.constant 0 : i32
    %c0_i32_41 = arith.constant 0 : i32
    %65 = tpu.memref_slice %arg2[%25, %c0_i32_41] : memref<32x128xf32, #tpu.memory_space<any>> -> memref<1x128xf32, #tpu.memory_space<any>>
    %c0_i32_42 = arith.constant 0 : i32
    %c0_i32_43 = arith.constant 0 : i32
    %66 = tpu.memref_slice %arg22[%c0_i32_42, %c0_i32_43] : memref<8x128xf32, #tpu.memory_space<vmem>> -> memref<1x128xf32, #tpu.memory_space<vmem>>
    %67 = tpu.memref_slice %arg24[%c0_i32_40] : memref<8x!tpu.dma_semaphore, #tpu.memory_space<semaphore_mem>> -> memref<1x!tpu.dma_semaphore, #tpu.memory_space<semaphore_mem>>
    %68 = tpu.memref_squeeze %67 : memref<1x!tpu.dma_semaphore, #tpu.memory_space<semaphore_mem>> -> memref<!tpu.dma_semaphore, #tpu.memory_space<semaphore_mem>>
    tpu.wait_dma2 semaphore(%68 : memref<!tpu.dma_semaphore, #tpu.memory_space<semaphore_mem>>) src(%65 : memref<1x128xf32, #tpu.memory_space<any>>) dst(%66 : memref<1x128xf32, #tpu.memory_space<vmem>>)
    %c1_i32_44 = arith.constant 1 : i32
    %c0_i32_45 = arith.constant 0 : i32
    %69 = tpu.memref_slice %arg2[%26, %c0_i32_45] : memref<32x128xf32, #tpu.memory_space<any>> -> memref<1x128xf32, #tpu.memory_space<any>>
    %c1_i32_46 = arith.constant 1 : i32
    %c0_i32_47 = arith.constant 0 : i32
    %70 = tpu.memref_slice %arg22[%c1_i32_46, %c0_i32_47] : memref<8x128xf32, #tpu.memory_space<vmem>> -> memref<1x128xf32, #tpu.memory_space<vmem>>
    %71 = tpu.memref_slice %arg24[%c1_i32_44] : memref<8x!tpu.dma_semaphore, #tpu.memory_space<semaphore_mem>> -> memref<1x!tpu.dma_semaphore, #tpu.memory_space<semaphore_mem>>
    %72 = tpu.memref_squeeze %71 : memref<1x!tpu.dma_semaphore, #tpu.memory_space<semaphore_mem>> -> memref<!tpu.dma_semaphore, #tpu.memory_space<semaphore_mem>>
    tpu.wait_dma2 semaphore(%72 : memref<!tpu.dma_semaphore, #tpu.memory_space<semaphore_mem>>) src(%69 : memref<1x128xf32, #tpu.memory_space<any>>) dst(%70 : memref<1x128xf32, #tpu.memory_space<vmem>>)
    %c2_i32_48 = arith.constant 2 : i32
    %c0_i32_49 = arith.constant 0 : i32
    %73 = tpu.memref_slice %arg2[%27, %c0_i32_49] : memref<32x128xf32, #tpu.memory_space<any>> -> memref<1x128xf32, #tpu.memory_space<any>>
    %c2_i32_50 = arith.constant 2 : i32
    %c0_i32_51 = arith.constant 0 : i32
    %74 = tpu.memref_slice %arg22[%c2_i32_50, %c0_i32_51] : memref<8x128xf32, #tpu.memory_space<vmem>> -> memref<1x128xf32, #tpu.memory_space<vmem>>
    %75 = tpu.memref_slice %arg24[%c2_i32_48] : memref<8x!tpu.dma_semaphore, #tpu.memory_space<semaphore_mem>> -> memref<1x!tpu.dma_semaphore, #tpu.memory_space<semaphore_mem>>
    %76 = tpu.memref_squeeze %75 : memref<1x!tpu.dma_semaphore, #tpu.memory_space<semaphore_mem>> -> memref<!tpu.dma_semaphore, #tpu.memory_space<semaphore_mem>>
    tpu.wait_dma2 semaphore(%76 : memref<!tpu.dma_semaphore, #tpu.memory_space<semaphore_mem>>) src(%73 : memref<1x128xf32, #tpu.memory_space<any>>) dst(%74 : memref<1x128xf32, #tpu.memory_space<vmem>>)
    %c3_i32_52 = arith.constant 3 : i32
    %c0_i32_53 = arith.constant 0 : i32
    %77 = tpu.memref_slice %arg2[%28, %c0_i32_53] : memref<32x128xf32, #tpu.memory_space<any>> -> memref<1x128xf32, #tpu.memory_space<any>>
    %c3_i32_54 = arith.constant 3 : i32
    %c0_i32_55 = arith.constant 0 : i32
    %78 = tpu.memref_slice %arg22[%c3_i32_54, %c0_i32_55] : memref<8x128xf32, #tpu.memory_space<vmem>> -> memref<1x128xf32, #tpu.memory_space<vmem>>
    %79 = tpu.memref_slice %arg24[%c3_i32_52] : memref<8x!tpu.dma_semaphore, #tpu.memory_space<semaphore_mem>> -> memref<1x!tpu.dma_semaphore, #tpu.memory_space<semaphore_mem>>
    %80 = tpu.memref_squeeze %79 : memref<1x!tpu.dma_semaphore, #tpu.memory_space<semaphore_mem>> -> memref<!tpu.dma_semaphore, #tpu.memory_space<semaphore_mem>>
    tpu.wait_dma2 semaphore(%80 : memref<!tpu.dma_semaphore, #tpu.memory_space<semaphore_mem>>) src(%77 : memref<1x128xf32, #tpu.memory_space<any>>) dst(%78 : memref<1x128xf32, #tpu.memory_space<vmem>>)
    %c4_i32_56 = arith.constant 4 : i32
    %c0_i32_57 = arith.constant 0 : i32
    %81 = tpu.memref_slice %arg2[%29, %c0_i32_57] : memref<32x128xf32, #tpu.memory_space<any>> -> memref<1x128xf32, #tpu.memory_space<any>>
    %c4_i32_58 = arith.constant 4 : i32
    %c0_i32_59 = arith.constant 0 : i32
    %82 = tpu.memref_slice %arg22[%c4_i32_58, %c0_i32_59] : memref<8x128xf32, #tpu.memory_space<vmem>> -> memref<1x128xf32, #tpu.memory_space<vmem>>
    %83 = tpu.memref_slice %arg24[%c4_i32_56] : memref<8x!tpu.dma_semaphore, #tpu.memory_space<semaphore_mem>> -> memref<1x!tpu.dma_semaphore, #tpu.memory_space<semaphore_mem>>
    %84 = tpu.memref_squeeze %83 : memref<1x!tpu.dma_semaphore, #tpu.memory_space<semaphore_mem>> -> memref<!tpu.dma_semaphore, #tpu.memory_space<semaphore_mem>>
    tpu.wait_dma2 semaphore(%84 : memref<!tpu.dma_semaphore, #tpu.memory_space<semaphore_mem>>) src(%81 : memref<1x128xf32, #tpu.memory_space<any>>) dst(%82 : memref<1x128xf32, #tpu.memory_space<vmem>>)
    %c5_i32_60 = arith.constant 5 : i32
    %c0_i32_61 = arith.constant 0 : i32
    %85 = tpu.memref_slice %arg2[%30, %c0_i32_61] : memref<32x128xf32, #tpu.memory_space<any>> -> memref<1x128xf32, #tpu.memory_space<any>>
    %c5_i32_62 = arith.constant 5 : i32
    %c0_i32_63 = arith.constant 0 : i32
    %86 = tpu.memref_slice %arg22[%c5_i32_62, %c0_i32_63] : memref<8x128xf32, #tpu.memory_space<vmem>> -> memref<1x128xf32, #tpu.memory_space<vmem>>
    %87 = tpu.memref_slice %arg24[%c5_i32_60] : memref<8x!tpu.dma_semaphore, #tpu.memory_space<semaphore_mem>> -> memref<1x!tpu.dma_semaphore, #tpu.memory_space<semaphore_mem>>
    %88 = tpu.memref_squeeze %87 : memref<1x!tpu.dma_semaphore, #tpu.memory_space<semaphore_mem>> -> memref<!tpu.dma_semaphore, #tpu.memory_space<semaphore_mem>>
    tpu.wait_dma2 semaphore(%88 : memref<!tpu.dma_semaphore, #tpu.memory_space<semaphore_mem>>) src(%85 : memref<1x128xf32, #tpu.memory_space<any>>) dst(%86 : memref<1x128xf32, #tpu.memory_space<vmem>>)
    %c6_i32_64 = arith.constant 6 : i32
    %c0_i32_65 = arith.constant 0 : i32
    %89 = tpu.memref_slice %arg2[%31, %c0_i32_65] : memref<32x128xf32, #tpu.memory_space<any>> -> memref<1x128xf32, #tpu.memory_space<any>>
    %c6_i32_66 = arith.constant 6 : i32
    %c0_i32_67 = arith.constant 0 : i32
    %90 = tpu.memref_slice %arg22[%c6_i32_66, %c0_i32_67] : memref<8x128xf32, #tpu.memory_space<vmem>> -> memref<1x128xf32, #tpu.memory_space<vmem>>
    %91 = tpu.memref_slice %arg24[%c6_i32_64] : memref<8x!tpu.dma_semaphore, #tpu.memory_space<semaphore_mem>> -> memref<1x!tpu.dma_semaphore, #tpu.memory_space<semaphore_mem>>
    %92 = tpu.memref_squeeze %91 : memref<1x!tpu.dma_semaphore, #tpu.memory_space<semaphore_mem>> -> memref<!tpu.dma_semaphore, #tpu.memory_space<semaphore_mem>>
    tpu.wait_dma2 semaphore(%92 : memref<!tpu.dma_semaphore, #tpu.memory_space<semaphore_mem>>) src(%89 : memref<1x128xf32, #tpu.memory_space<any>>) dst(%90 : memref<1x128xf32, #tpu.memory_space<vmem>>)
    %c7_i32_68 = arith.constant 7 : i32
    %c0_i32_69 = arith.constant 0 : i32
    %93 = tpu.memref_slice %arg2[%32, %c0_i32_69] : memref<32x128xf32, #tpu.memory_space<any>> -> memref<1x128xf32, #tpu.memory_space<any>>
    %c7_i32_70 = arith.constant 7 : i32
    %c0_i32_71 = arith.constant 0 : i32
    %94 = tpu.memref_slice %arg22[%c7_i32_70, %c0_i32_71] : memref<8x128xf32, #tpu.memory_space<vmem>> -> memref<1x128xf32, #tpu.memory_space<vmem>>
    %95 = tpu.memref_slice %arg24[%c7_i32_68] : memref<8x!tpu.dma_semaphore, #tpu.memory_space<semaphore_mem>> -> memref<1x!tpu.dma_semaphore, #tpu.memory_space<semaphore_mem>>
    %96 = tpu.memref_squeeze %95 : memref<1x!tpu.dma_semaphore, #tpu.memory_space<semaphore_mem>> -> memref<!tpu.dma_semaphore, #tpu.memory_space<semaphore_mem>>
    tpu.wait_dma2 semaphore(%96 : memref<!tpu.dma_semaphore, #tpu.memory_space<semaphore_mem>>) src(%93 : memref<1x128xf32, #tpu.memory_space<any>>) dst(%94 : memref<1x128xf32, #tpu.memory_space<vmem>>)
    %c0 = arith.constant 0 : index
    %c0_72 = arith.constant 0 : index
    %97 = vector.load %arg22[%c0, %c0_72] : memref<8x128xf32, #tpu.memory_space<vmem>>, vector<8x128xf32>
    %c0_73 = arith.constant 0 : index
    %c0_74 = arith.constant 0 : index
    %98 = vector.load %arg3[%c0_73, %c0_74] : memref<8x128xf32, #tpu.memory_space<vmem>>, vector<8x128xf32>
    %cst = arith.constant dense<0.000000e+00> : vector<8xf32>
    %99 = vector.multi_reduction <add>, %97, %cst [1] : vector<8x128xf32> to vector<8xf32>
    %100 = vector.shape_cast %99 : vector<8xf32> to vector<8x1xf32>
    %cst_75 = arith.constant dense<0.000000e+00> : vector<8xf32>
    %101 = vector.multi_reduction <add>, %98, %cst_75 [1] : vector<8x128xf32> to vector<8xf32>
    %102 = vector.shape_cast %101 : vector<8xf32> to vector<8x1xf32>
    %103 = arith.addf %100, %102 : vector<8x1xf32>
    %cst_76 = arith.constant 2.560000e+02 : f32
    %104 = vector.broadcast %cst_76 : f32 to vector<8x1xf32>
    %105 = arith.divf %103, %104 : vector<8x1xf32>
    %106 = vector.broadcast %105 : vector<8x1xf32> to vector<8x128xf32>
    %107 = arith.subf %97, %106 : vector<8x128xf32>
    %108 = arith.mulf %107, %107 : vector<8x128xf32>
    %cst_77 = arith.constant dense<0.000000e+00> : vector<8xf32>
    %109 = vector.multi_reduction <add>, %108, %cst_77 [1] : vector<8x128xf32> to vector<8xf32>
    %110 = vector.shape_cast %109 : vector<8xf32> to vector<8x1xf32>
    %111 = vector.broadcast %105 : vector<8x1xf32> to vector<8x128xf32>
    %112 = arith.subf %98, %111 : vector<8x128xf32>
    %113 = arith.mulf %112, %112 : vector<8x128xf32>
    %cst_78 = arith.constant dense<0.000000e+00> : vector<8xf32>
    %114 = vector.multi_reduction <add>, %113, %cst_78 [1] : vector<8x128xf32> to vector<8xf32>
    %115 = vector.shape_cast %114 : vector<8xf32> to vector<8x1xf32>
    %116 = arith.addf %110, %115 : vector<8x1xf32>
    %cst_79 = arith.constant 2.560000e+02 : f32
    %117 = vector.broadcast %cst_79 : f32 to vector<8x1xf32>
    %118 = arith.divf %116, %117 : vector<8x1xf32>
    %cst_80 = arith.constant 9.99999974E-6 : f32
    %119 = vector.broadcast %cst_80 : f32 to vector<8x1xf32>
    %120 = arith.addf %118, %119 : vector<8x1xf32>
    %121 = math.rsqrt %120 : vector<8x1xf32>
    %122 = vector.broadcast %105 : vector<8x1xf32> to vector<8x128xf32>
    %123 = arith.subf %97, %122 : vector<8x128xf32>
    %124 = vector.broadcast %121 : vector<8x1xf32> to vector<8x128xf32>
    %125 = arith.mulf %123, %124 : vector<8x128xf32>
    %c0_81 = arith.constant 0 : index
    %c0_82 = arith.constant 0 : index
    %126 = vector.load %arg4[%c0_81, %c0_82] : memref<1x128xf32, #tpu.memory_space<vmem>>, vector<1x128xf32>
    %127 = vector.broadcast %126 : vector<1x128xf32> to vector<8x128xf32>
    %128 = arith.mulf %125, %127 : vector<8x128xf32>
    %c0_83 = arith.constant 0 : index
    %c0_84 = arith.constant 0 : index
    %129 = vector.load %arg6[%c0_83, %c0_84] : memref<1x128xf32, #tpu.memory_space<vmem>>, vector<1x128xf32>
    %130 = vector.broadcast %129 : vector<1x128xf32> to vector<8x128xf32>
    %131 = arith.addf %128, %130 : vector<8x128xf32>
    %132 = vector.broadcast %105 : vector<8x1xf32> to vector<8x128xf32>
    %133 = arith.subf %98, %132 : vector<8x128xf32>
    %134 = vector.broadcast %121 : vector<8x1xf32> to vector<8x128xf32>
    %135 = arith.mulf %133, %134 : vector<8x128xf32>
    %c0_85 = arith.constant 0 : index
    %c0_86 = arith.constant 0 : index
    %136 = vector.load %arg5[%c0_85, %c0_86] : memref<1x128xf32, #tpu.memory_space<vmem>>, vector<1x128xf32>
    %137 = vector.broadcast %136 : vector<1x128xf32> to vector<8x128xf32>
    %138 = arith.mulf %135, %137 : vector<8x128xf32>
    %c0_87 = arith.constant 0 : index
    %c0_88 = arith.constant 0 : index
    %139 = vector.load %arg7[%c0_87, %c0_88] : memref<1x128xf32, #tpu.memory_space<vmem>>, vector<1x128xf32>
    %140 = vector.broadcast %139 : vector<1x128xf32> to vector<8x128xf32>
    %141 = arith.addf %138, %140 : vector<8x128xf32>
    %c0_89 = arith.constant 0 : index
    %c0_90 = arith.constant 0 : index
    %142 = vector.load %arg8[%c0_89, %c0_90] : memref<128x128xbf16, #tpu.memory_space<vmem>>, vector<128x128xbf16>
    %143 = arith.truncf %131 : vector<8x128xf32> to vector<8x128xbf16>
    %cst_91 = arith.constant dense<0.000000e+00> : vector<8x128xf32>
    %144 = tpu.matmul %143, %142, %cst_91 {dimension_numbers = #tpu.dot_dimension_numbers<[1], [0], [0], [1], [0, 0, 1, 1], [], []>} : vector<8x128xbf16>, vector<128x128xbf16>, vector<8x128xf32> -> vector<8x128xf32>
    %c0_92 = arith.constant 0 : index
    %c0_93 = arith.constant 0 : index
    %145 = vector.load %arg9[%c0_92, %c0_93] : memref<128x128xbf16, #tpu.memory_space<vmem>>, vector<128x128xbf16>
    %146 = arith.truncf %141 : vector<8x128xf32> to vector<8x128xbf16>
    %cst_94 = arith.constant dense<0.000000e+00> : vector<8x128xf32>
    %147 = tpu.matmul %146, %145, %cst_94 {dimension_numbers = #tpu.dot_dimension_numbers<[1], [0], [0], [1], [0, 0, 1, 1], [], []>} : vector<8x128xbf16>, vector<128x128xbf16>, vector<8x128xf32> -> vector<8x128xf32>
    %148 = arith.addf %144, %147 : vector<8x128xf32>
    %c0_95 = arith.constant 0 : index
    %c0_96 = arith.constant 0 : index
    %149 = vector.load %arg10[%c0_95, %c0_96] : memref<1x128xf32, #tpu.memory_space<vmem>>, vector<1x128xf32>
    %150 = vector.broadcast %149 : vector<1x128xf32> to vector<8x128xf32>
    %151 = arith.addf %148, %150 : vector<8x128xf32>
    %cst_97 = arith.constant 5.000000e-01 : f32
    %152 = vector.broadcast %cst_97 : f32 to vector<8x128xf32>
    %153 = arith.mulf %152, %151 : vector<8x128xf32>
    %cst_98 = arith.constant 0.707106769 : f32
    %154 = vector.broadcast %cst_98 : f32 to vector<8x128xf32>
    %155 = arith.mulf %151, %154 : vector<8x128xf32>
    %156 = math.absf %155 : vector<8x128xf32>
    %cst_99 = arith.constant 5.000000e-01 : f32
    %157 = vector.broadcast %cst_99 : f32 to vector<8x128xf32>
    %158 = arith.mulf %157, %156 : vector<8x128xf32>
    %cst_100 = arith.constant 1.000000e+00 : f32
    %159 = vector.broadcast %cst_100 : f32 to vector<8x128xf32>
    %160 = arith.addf %159, %158 : vector<8x128xf32>
    %cst_101 = arith.constant 1.000000e+00 : f32
    %161 = vector.broadcast %cst_101 : f32 to vector<8x128xf32>
    %162 = arith.divf %161, %160 : vector<8x128xf32>
    %cst_102 = arith.constant 0.170872763 : f32
    %163 = vector.broadcast %cst_102 : f32 to vector<8x128xf32>
    %164 = arith.mulf %162, %163 : vector<8x128xf32>
    %cst_103 = arith.constant -0.822152256 : f32
    %165 = vector.broadcast %cst_103 : f32 to vector<8x128xf32>
    %166 = arith.addf %165, %164 : vector<8x128xf32>
    %167 = arith.mulf %162, %166 : vector<8x128xf32>
    %cst_104 = arith.constant 1.48851585 : f32
    %168 = vector.broadcast %cst_104 : f32 to vector<8x128xf32>
    %169 = arith.addf %168, %167 : vector<8x128xf32>
    %170 = arith.mulf %162, %169 : vector<8x128xf32>
    %cst_105 = arith.constant -1.13520396 : f32
    %171 = vector.broadcast %cst_105 : f32 to vector<8x128xf32>
    %172 = arith.addf %171, %170 : vector<8x128xf32>
    %173 = arith.mulf %162, %172 : vector<8x128xf32>
    %cst_106 = arith.constant 0.278868079 : f32
    %174 = vector.broadcast %cst_106 : f32 to vector<8x128xf32>
    %175 = arith.addf %174, %173 : vector<8x128xf32>
    %176 = arith.mulf %162, %175 : vector<8x128xf32>
    %cst_107 = arith.constant -0.186288059 : f32
    %177 = vector.broadcast %cst_107 : f32 to vector<8x128xf32>
    %178 = arith.addf %177, %176 : vector<8x128xf32>
    %179 = arith.mulf %162, %178 : vector<8x128xf32>
    %cst_108 = arith.constant 0.0967841818 : f32
    %180 = vector.broadcast %cst_108 : f32 to vector<8x128xf32>
    %181 = arith.addf %180, %179 : vector<8x128xf32>
    %182 = arith.mulf %162, %181 : vector<8x128xf32>
    %cst_109 = arith.constant 0.374091953 : f32
    %183 = vector.broadcast %cst_109 : f32 to vector<8x128xf32>
    %184 = arith.addf %183, %182 : vector<8x128xf32>
    %185 = arith.mulf %162, %184 : vector<8x128xf32>
    %cst_110 = arith.constant 1.00002372 : f32
    %186 = vector.broadcast %cst_110 : f32 to vector<8x128xf32>
    %187 = arith.addf %186, %185 : vector<8x128xf32>
    %188 = arith.mulf %162, %187 : vector<8x128xf32>
    %cst_111 = arith.constant -1.26551223 : f32
    %189 = vector.broadcast %cst_111 : f32 to vector<8x128xf32>
    %190 = arith.addf %189, %188 : vector<8x128xf32>
    %cst_112 = arith.constant 0.000000e+00 : f32
    %191 = vector.broadcast %cst_112 : f32 to vector<8x128xf32>
    %192 = arith.subf %191, %156 : vector<8x128xf32>
    %193 = arith.mulf %192, %156 : vector<8x128xf32>
    %194 = arith.addf %193, %190 : vector<8x128xf32>
    %195 = math.exp %194 : vector<8x128xf32>
    %196 = arith.mulf %162, %195 : vector<8x128xf32>
    %cst_113 = arith.constant 0.000000e+00 : f32
    %197 = vector.broadcast %cst_113 : f32 to vector<8x128xf32>
    %198 = arith.cmpf oge, %155, %197 : vector<8x128xf32>
    %cst_114 = arith.constant 1.000000e+00 : f32
    %199 = vector.broadcast %cst_114 : f32 to vector<8x128xf32>
    %200 = arith.subf %199, %196 : vector<8x128xf32>
    %cst_115 = arith.constant 1.000000e+00 : f32
    %201 = vector.broadcast %cst_115 : f32 to vector<8x128xf32>
    %202 = arith.subf %196, %201 : vector<8x128xf32>
    %203 = arith.select %198, %200, %202 : vector<8x128xi1>, vector<8x128xf32>
    %cst_116 = arith.constant 1.000000e+00 : f32
    %204 = vector.broadcast %cst_116 : f32 to vector<8x128xf32>
    %205 = arith.addf %204, %203 : vector<8x128xf32>
    %206 = arith.mulf %153, %205 : vector<8x128xf32>
    %c0_117 = arith.constant 0 : index
    %c0_118 = arith.constant 0 : index
    %207 = vector.load %arg11[%c0_117, %c0_118] : memref<128x128xbf16, #tpu.memory_space<vmem>>, vector<128x128xbf16>
    %208 = arith.truncf %206 : vector<8x128xf32> to vector<8x128xbf16>
    %cst_119 = arith.constant dense<0.000000e+00> : vector<8x128xf32>
    %209 = tpu.matmul %208, %207, %cst_119 {dimension_numbers = #tpu.dot_dimension_numbers<[1], [0], [0], [1], [0, 0, 1, 1], [], []>} : vector<8x128xbf16>, vector<128x128xbf16>, vector<8x128xf32> -> vector<8x128xf32>
    %c0_120 = arith.constant 0 : index
    %c0_121 = arith.constant 0 : index
    %210 = vector.load %arg12[%c0_120, %c0_121] : memref<1x128xf32, #tpu.memory_space<vmem>>, vector<1x128xf32>
    %211 = vector.broadcast %210 : vector<1x128xf32> to vector<8x128xf32>
    %212 = arith.addf %209, %211 : vector<8x128xf32>
    %213 = arith.addf %212, %97 : vector<8x128xf32>
    %c0_122 = arith.constant 0 : index
    %c0_123 = arith.constant 0 : index
    %214 = vector.load %arg13[%c0_122, %c0_123] : memref<1x128xf32, #tpu.memory_space<vmem>>, vector<1x128xf32>
    %c0_124 = arith.constant 0 : index
    %c0_125 = arith.constant 0 : index
    %215 = vector.load %arg14[%c0_124, %c0_125] : memref<1x128xf32, #tpu.memory_space<vmem>>, vector<1x128xf32>
    %cst_126 = arith.constant dense<0.000000e+00> : vector<8xf32>
    %216 = vector.multi_reduction <add>, %213, %cst_126 [1] : vector<8x128xf32> to vector<8xf32>
    %217 = vector.shape_cast %216 : vector<8xf32> to vector<8x1xf32>
    %cst_127 = arith.constant 1.280000e+02 : f32
    %218 = vector.broadcast %cst_127 : f32 to vector<8x1xf32>
    %219 = arith.divf %217, %218 : vector<8x1xf32>
    %220 = vector.broadcast %219 : vector<8x1xf32> to vector<8x128xf32>
    %221 = arith.subf %213, %220 : vector<8x128xf32>
    %222 = arith.mulf %221, %221 : vector<8x128xf32>
    %cst_128 = arith.constant dense<0.000000e+00> : vector<8xf32>
    %223 = vector.multi_reduction <add>, %222, %cst_128 [1] : vector<8x128xf32> to vector<8xf32>
    %224 = vector.shape_cast %223 : vector<8xf32> to vector<8x1xf32>
    %cst_129 = arith.constant 1.280000e+02 : f32
    %225 = vector.broadcast %cst_129 : f32 to vector<8x1xf32>
    %226 = arith.divf %224, %225 : vector<8x1xf32>
    %227 = vector.broadcast %219 : vector<8x1xf32> to vector<8x128xf32>
    %228 = arith.subf %213, %227 : vector<8x128xf32>
    %cst_130 = arith.constant 9.99999974E-6 : f32
    %229 = vector.broadcast %cst_130 : f32 to vector<8x1xf32>
    %230 = arith.addf %226, %229 : vector<8x1xf32>
    %231 = math.rsqrt %230 : vector<8x1xf32>
    %232 = vector.broadcast %231 : vector<8x1xf32> to vector<8x128xf32>
    %233 = arith.mulf %228, %232 : vector<8x128xf32>
    %234 = vector.broadcast %214 : vector<1x128xf32> to vector<8x128xf32>
    %235 = arith.mulf %233, %234 : vector<8x128xf32>
    %236 = vector.broadcast %215 : vector<1x128xf32> to vector<8x128xf32>
    %237 = arith.addf %235, %236 : vector<8x128xf32>
    %c0_131 = arith.constant 0 : index
    %c0_132 = arith.constant 0 : index
    %238 = vector.load %arg15[%c0_131, %c0_132] : memref<128x128xbf16, #tpu.memory_space<vmem>>, vector<128x128xbf16>
    %239 = arith.truncf %237 : vector<8x128xf32> to vector<8x128xbf16>
    %cst_133 = arith.constant dense<0.000000e+00> : vector<8x128xf32>
    %240 = tpu.matmul %239, %238, %cst_133 {dimension_numbers = #tpu.dot_dimension_numbers<[1], [0], [0], [1], [0, 0, 1, 1], [], []>} : vector<8x128xbf16>, vector<128x128xbf16>, vector<8x128xf32> -> vector<8x128xf32>
    %c0_134 = arith.constant 0 : index
    %c0_135 = arith.constant 0 : index
    %241 = vector.load %arg16[%c0_134, %c0_135] : memref<1x128xf32, #tpu.memory_space<vmem>>, vector<1x128xf32>
    %242 = vector.broadcast %241 : vector<1x128xf32> to vector<8x128xf32>
    %243 = arith.addf %240, %242 : vector<8x128xf32>
    %cst_136 = arith.constant 5.000000e-01 : f32
    %244 = vector.broadcast %cst_136 : f32 to vector<8x128xf32>
    %245 = arith.mulf %244, %243 : vector<8x128xf32>
    %cst_137 = arith.constant 0.707106769 : f32
    %246 = vector.broadcast %cst_137 : f32 to vector<8x128xf32>
    %247 = arith.mulf %243, %246 : vector<8x128xf32>
    %248 = math.absf %247 : vector<8x128xf32>
    %cst_138 = arith.constant 5.000000e-01 : f32
    %249 = vector.broadcast %cst_138 : f32 to vector<8x128xf32>
    %250 = arith.mulf %249, %248 : vector<8x128xf32>
    %cst_139 = arith.constant 1.000000e+00 : f32
    %251 = vector.broadcast %cst_139 : f32 to vector<8x128xf32>
    %252 = arith.addf %251, %250 : vector<8x128xf32>
    %cst_140 = arith.constant 1.000000e+00 : f32
    %253 = vector.broadcast %cst_140 : f32 to vector<8x128xf32>
    %254 = arith.divf %253, %252 : vector<8x128xf32>
    %cst_141 = arith.constant 0.170872763 : f32
    %255 = vector.broadcast %cst_141 : f32 to vector<8x128xf32>
    %256 = arith.mulf %254, %255 : vector<8x128xf32>
    %cst_142 = arith.constant -0.822152256 : f32
    %257 = vector.broadcast %cst_142 : f32 to vector<8x128xf32>
    %258 = arith.addf %257, %256 : vector<8x128xf32>
    %259 = arith.mulf %254, %258 : vector<8x128xf32>
    %cst_143 = arith.constant 1.48851585 : f32
    %260 = vector.broadcast %cst_143 : f32 to vector<8x128xf32>
    %261 = arith.addf %260, %259 : vector<8x128xf32>
    %262 = arith.mulf %254, %261 : vector<8x128xf32>
    %cst_144 = arith.constant -1.13520396 : f32
    %263 = vector.broadcast %cst_144 : f32 to vector<8x128xf32>
    %264 = arith.addf %263, %262 : vector<8x128xf32>
    %265 = arith.mulf %254, %264 : vector<8x128xf32>
    %cst_145 = arith.constant 0.278868079 : f32
    %266 = vector.broadcast %cst_145 : f32 to vector<8x128xf32>
    %267 = arith.addf %266, %265 : vector<8x128xf32>
    %268 = arith.mulf %254, %267 : vector<8x128xf32>
    %cst_146 = arith.constant -0.186288059 : f32
    %269 = vector.broadcast %cst_146 : f32 to vector<8x128xf32>
    %270 = arith.addf %269, %268 : vector<8x128xf32>
    %271 = arith.mulf %254, %270 : vector<8x128xf32>
    %cst_147 = arith.constant 0.0967841818 : f32
    %272 = vector.broadcast %cst_147 : f32 to vector<8x128xf32>
    %273 = arith.addf %272, %271 : vector<8x128xf32>
    %274 = arith.mulf %254, %273 : vector<8x128xf32>
    %cst_148 = arith.constant 0.374091953 : f32
    %275 = vector.broadcast %cst_148 : f32 to vector<8x128xf32>
    %276 = arith.addf %275, %274 : vector<8x128xf32>
    %277 = arith.mulf %254, %276 : vector<8x128xf32>
    %cst_149 = arith.constant 1.00002372 : f32
    %278 = vector.broadcast %cst_149 : f32 to vector<8x128xf32>
    %279 = arith.addf %278, %277 : vector<8x128xf32>
    %280 = arith.mulf %254, %279 : vector<8x128xf32>
    %cst_150 = arith.constant -1.26551223 : f32
    %281 = vector.broadcast %cst_150 : f32 to vector<8x128xf32>
    %282 = arith.addf %281, %280 : vector<8x128xf32>
    %cst_151 = arith.constant 0.000000e+00 : f32
    %283 = vector.broadcast %cst_151 : f32 to vector<8x128xf32>
    %284 = arith.subf %283, %248 : vector<8x128xf32>
    %285 = arith.mulf %284, %248 : vector<8x128xf32>
    %286 = arith.addf %285, %282 : vector<8x128xf32>
    %287 = math.exp %286 : vector<8x128xf32>
    %288 = arith.mulf %254, %287 : vector<8x128xf32>
    %cst_152 = arith.constant 0.000000e+00 : f32
    %289 = vector.broadcast %cst_152 : f32 to vector<8x128xf32>
    %290 = arith.cmpf oge, %247, %289 : vector<8x128xf32>
    %cst_153 = arith.constant 1.000000e+00 : f32
    %291 = vector.broadcast %cst_153 : f32 to vector<8x128xf32>
    %292 = arith.subf %291, %288 : vector<8x128xf32>
    %cst_154 = arith.constant 1.000000e+00 : f32
    %293 = vector.broadcast %cst_154 : f32 to vector<8x128xf32>
    %294 = arith.subf %288, %293 : vector<8x128xf32>
    %295 = arith.select %290, %292, %294 : vector<8x128xi1>, vector<8x128xf32>
    %cst_155 = arith.constant 1.000000e+00 : f32
    %296 = vector.broadcast %cst_155 : f32 to vector<8x128xf32>
    %297 = arith.addf %296, %295 : vector<8x128xf32>
    %298 = arith.mulf %245, %297 : vector<8x128xf32>
    %c0_156 = arith.constant 0 : index
    %c0_157 = arith.constant 0 : index
    %299 = vector.load %arg17[%c0_156, %c0_157] : memref<128x128xbf16, #tpu.memory_space<vmem>>, vector<128x128xbf16>
    %300 = arith.truncf %298 : vector<8x128xf32> to vector<8x128xbf16>
    %cst_158 = arith.constant dense<0.000000e+00> : vector<8x128xf32>
    %301 = tpu.matmul %300, %299, %cst_158 {dimension_numbers = #tpu.dot_dimension_numbers<[1], [0], [0], [1], [0, 0, 1, 1], [], []>} : vector<8x128xbf16>, vector<128x128xbf16>, vector<8x128xf32> -> vector<8x128xf32>
    %c0_159 = arith.constant 0 : index
    %c0_160 = arith.constant 0 : index
    %302 = vector.load %arg18[%c0_159, %c0_160] : memref<1x128xf32, #tpu.memory_space<vmem>>, vector<1x128xf32>
    %303 = vector.broadcast %302 : vector<1x128xf32> to vector<8x128xf32>
    %304 = arith.addf %301, %303 : vector<8x128xf32>
    %305 = arith.addf %304, %213 : vector<8x128xf32>
    %c0_161 = arith.constant 0 : index
    %c0_162 = arith.constant 0 : index
    %306 = vector.load %arg19[%c0_161, %c0_162] : memref<1x128xf32, #tpu.memory_space<vmem>>, vector<1x128xf32>
    %c0_163 = arith.constant 0 : index
    %c0_164 = arith.constant 0 : index
    %307 = vector.load %arg20[%c0_163, %c0_164] : memref<1x128xf32, #tpu.memory_space<vmem>>, vector<1x128xf32>
    %cst_165 = arith.constant dense<0.000000e+00> : vector<8xf32>
    %308 = vector.multi_reduction <add>, %305, %cst_165 [1] : vector<8x128xf32> to vector<8xf32>
    %309 = vector.shape_cast %308 : vector<8xf32> to vector<8x1xf32>
    %cst_166 = arith.constant 1.280000e+02 : f32
    %310 = vector.broadcast %cst_166 : f32 to vector<8x1xf32>
    %311 = arith.divf %309, %310 : vector<8x1xf32>
    %312 = vector.broadcast %311 : vector<8x1xf32> to vector<8x128xf32>
    %313 = arith.subf %305, %312 : vector<8x128xf32>
    %314 = arith.mulf %313, %313 : vector<8x128xf32>
    %cst_167 = arith.constant dense<0.000000e+00> : vector<8xf32>
    %315 = vector.multi_reduction <add>, %314, %cst_167 [1] : vector<8x128xf32> to vector<8xf32>
    %316 = vector.shape_cast %315 : vector<8xf32> to vector<8x1xf32>
    %cst_168 = arith.constant 1.280000e+02 : f32
    %317 = vector.broadcast %cst_168 : f32 to vector<8x1xf32>
    %318 = arith.divf %316, %317 : vector<8x1xf32>
    %319 = vector.broadcast %311 : vector<8x1xf32> to vector<8x128xf32>
    %320 = arith.subf %305, %319 : vector<8x128xf32>
    %cst_169 = arith.constant 9.99999974E-6 : f32
    %321 = vector.broadcast %cst_169 : f32 to vector<8x1xf32>
    %322 = arith.addf %318, %321 : vector<8x1xf32>
    %323 = math.rsqrt %322 : vector<8x1xf32>
    %324 = vector.broadcast %323 : vector<8x1xf32> to vector<8x128xf32>
    %325 = arith.mulf %320, %324 : vector<8x128xf32>
    %326 = vector.broadcast %306 : vector<1x128xf32> to vector<8x128xf32>
    %327 = arith.mulf %325, %326 : vector<8x128xf32>
    %328 = vector.broadcast %307 : vector<1x128xf32> to vector<8x128xf32>
    %329 = arith.addf %327, %328 : vector<8x128xf32>
    %c0_170 = arith.constant 0 : index
    %c0_171 = arith.constant 0 : index
    %330 = vector.load %arg23[%c0_170, %c0_171] : memref<8x128xf32, #tpu.memory_space<vmem>>, vector<8x128xf32>
    tpu.vector_store %arg23[%c0_170, %c0_171], %329 {strides = array<i32>} : memref<8x128xf32, #tpu.memory_space<vmem>>, vector<8x128xf32>,
    %c0_i32_172 = arith.constant 0 : i32
    %331 = arith.maxsi %3, %c0_i32_172 : i32
    %c0_i32_173 = arith.constant 0 : i32
    %332 = arith.cmpi sge, %3, %c0_i32_173 : i32
    %c0_i32_174 = arith.constant 0 : i32
    %333 = arith.maxsi %6, %c0_i32_174 : i32
    %c0_i32_175 = arith.constant 0 : i32
    %334 = arith.cmpi sge, %6, %c0_i32_175 : i32
    %c0_i32_176 = arith.constant 0 : i32
    %335 = arith.maxsi %9, %c0_i32_176 : i32
    %c0_i32_177 = arith.constant 0 : i32
    %336 = arith.cmpi sge, %9, %c0_i32_177 : i32
    %c0_i32_178 = arith.constant 0 : i32
    %337 = arith.maxsi %12, %c0_i32_178 : i32
    %c0_i32_179 = arith.constant 0 : i32
    %338 = arith.cmpi sge, %12, %c0_i32_179 : i32
    %c0_i32_180 = arith.constant 0 : i32
    %339 = arith.maxsi %15, %c0_i32_180 : i32
    %c0_i32_181 = arith.constant 0 : i32
    %340 = arith.cmpi sge, %15, %c0_i32_181 : i32
    %c0_i32_182 = arith.constant 0 : i32
    %341 = arith.maxsi %18, %c0_i32_182 : i32
    %c0_i32_183 = arith.constant 0 : i32
    %342 = arith.cmpi sge, %18, %c0_i32_183 : i32
    %c0_i32_184 = arith.constant 0 : i32
    %343 = arith.maxsi %21, %c0_i32_184 : i32
    %c0_i32_185 = arith.constant 0 : i32
    %344 = arith.cmpi sge, %21, %c0_i32_185 : i32
    %c0_i32_186 = arith.constant 0 : i32
    %345 = arith.maxsi %24, %c0_i32_186 : i32
    %c0_i32_187 = arith.constant 0 : i32
    %346 = arith.cmpi sge, %24, %c0_i32_187 : i32
    %347 = arith.extui %332 : i1 to i32
    %c0_i32_188 = arith.constant 0 : i32
    %c0_i32_189 = arith.constant 0 : i32
    %348 = arith.cmpi ne, %347, %c0_i32_189 : i32
    scf.if %348 {
      %c0_i32_220 = arith.constant 0 : i32
      %c0_i32_221 = arith.constant 0 : i32
      %379 = tpu.memref_slice %arg23[%c0_i32_220, %c0_i32_221] : memref<8x128xf32, #tpu.memory_space<vmem>> -> memref<1x128xf32, #tpu.memory_space<vmem>>
      %c0_i32_222 = arith.constant 0 : i32
      %380 = tpu.memref_slice %arg21[%331, %c0_i32_222] : memref<32x128xf32, #tpu.memory_space<any>> -> memref<1x128xf32, #tpu.memory_space<any>>
      %381 = tpu.memref_slice %arg25[%c0_i32_188] : memref<8x!tpu.dma_semaphore, #tpu.memory_space<semaphore_mem>> -> memref<1x!tpu.dma_semaphore, #tpu.memory_space<semaphore_mem>>
      %382 = tpu.memref_squeeze %381 : memref<1x!tpu.dma_semaphore, #tpu.memory_space<semaphore_mem>> -> memref<!tpu.dma_semaphore, #tpu.memory_space<semaphore_mem>>
      tpu.enqueue_dma source(%379 : memref<1x128xf32, #tpu.memory_space<vmem>>) target(%380 : memref<1x128xf32, #tpu.memory_space<any>>) target_semaphore(%382 : memref<!tpu.dma_semaphore, #tpu.memory_space<semaphore_mem>>)
    } else {
    }
    %349 = arith.extui %334 : i1 to i32
    %c1_i32_190 = arith.constant 1 : i32
    %c0_i32_191 = arith.constant 0 : i32
    %350 = arith.cmpi ne, %349, %c0_i32_191 : i32
    scf.if %350 {
      %c1_i32_220 = arith.constant 1 : i32
      %c0_i32_221 = arith.constant 0 : i32
      %379 = tpu.memref_slice %arg23[%c1_i32_220, %c0_i32_221] : memref<8x128xf32, #tpu.memory_space<vmem>> -> memref<1x128xf32, #tpu.memory_space<vmem>>
      %c0_i32_222 = arith.constant 0 : i32
      %380 = tpu.memref_slice %arg21[%333, %c0_i32_222] : memref<32x128xf32, #tpu.memory_space<any>> -> memref<1x128xf32, #tpu.memory_space<any>>
      %381 = tpu.memref_slice %arg25[%c1_i32_190] : memref<8x!tpu.dma_semaphore, #tpu.memory_space<semaphore_mem>> -> memref<1x!tpu.dma_semaphore, #tpu.memory_space<semaphore_mem>>
      %382 = tpu.memref_squeeze %381 : memref<1x!tpu.dma_semaphore, #tpu.memory_space<semaphore_mem>> -> memref<!tpu.dma_semaphore, #tpu.memory_space<semaphore_mem>>
      tpu.enqueue_dma source(%379 : memref<1x128xf32, #tpu.memory_space<vmem>>) target(%380 : memref<1x128xf32, #tpu.memory_space<any>>) target_semaphore(%382 : memref<!tpu.dma_semaphore, #tpu.memory_space<semaphore_mem>>)
    } else {
    }
    %351 = arith.extui %336 : i1 to i32
    %c2_i32_192 = arith.constant 2 : i32
    %c0_i32_193 = arith.constant 0 : i32
    %352 = arith.cmpi ne, %351, %c0_i32_193 : i32
    scf.if %352 {
      %c2_i32_220 = arith.constant 2 : i32
      %c0_i32_221 = arith.constant 0 : i32
      %379 = tpu.memref_slice %arg23[%c2_i32_220, %c0_i32_221] : memref<8x128xf32, #tpu.memory_space<vmem>> -> memref<1x128xf32, #tpu.memory_space<vmem>>
      %c0_i32_222 = arith.constant 0 : i32
      %380 = tpu.memref_slice %arg21[%335, %c0_i32_222] : memref<32x128xf32, #tpu.memory_space<any>> -> memref<1x128xf32, #tpu.memory_space<any>>
      %381 = tpu.memref_slice %arg25[%c2_i32_192] : memref<8x!tpu.dma_semaphore, #tpu.memory_space<semaphore_mem>> -> memref<1x!tpu.dma_semaphore, #tpu.memory_space<semaphore_mem>>
      %382 = tpu.memref_squeeze %381 : memref<1x!tpu.dma_semaphore, #tpu.memory_space<semaphore_mem>> -> memref<!tpu.dma_semaphore, #tpu.memory_space<semaphore_mem>>
      tpu.enqueue_dma source(%379 : memref<1x128xf32, #tpu.memory_space<vmem>>) target(%380 : memref<1x128xf32, #tpu.memory_space<any>>) target_semaphore(%382 : memref<!tpu.dma_semaphore, #tpu.memory_space<semaphore_mem>>)
    } else {
    }
    %353 = arith.extui %338 : i1 to i32
    %c3_i32_194 = arith.constant 3 : i32
    %c0_i32_195 = arith.constant 0 : i32
    %354 = arith.cmpi ne, %353, %c0_i32_195 : i32
    scf.if %354 {
      %c3_i32_220 = arith.constant 3 : i32
      %c0_i32_221 = arith.constant 0 : i32
      %379 = tpu.memref_slice %arg23[%c3_i32_220, %c0_i32_221] : memref<8x128xf32, #tpu.memory_space<vmem>> -> memref<1x128xf32, #tpu.memory_space<vmem>>
      %c0_i32_222 = arith.constant 0 : i32
      %380 = tpu.memref_slice %arg21[%337, %c0_i32_222] : memref<32x128xf32, #tpu.memory_space<any>> -> memref<1x128xf32, #tpu.memory_space<any>>
      %381 = tpu.memref_slice %arg25[%c3_i32_194] : memref<8x!tpu.dma_semaphore, #tpu.memory_space<semaphore_mem>> -> memref<1x!tpu.dma_semaphore, #tpu.memory_space<semaphore_mem>>
      %382 = tpu.memref_squeeze %381 : memref<1x!tpu.dma_semaphore, #tpu.memory_space<semaphore_mem>> -> memref<!tpu.dma_semaphore, #tpu.memory_space<semaphore_mem>>
      tpu.enqueue_dma source(%379 : memref<1x128xf32, #tpu.memory_space<vmem>>) target(%380 : memref<1x128xf32, #tpu.memory_space<any>>) target_semaphore(%382 : memref<!tpu.dma_semaphore, #tpu.memory_space<semaphore_mem>>)
    } else {
    }
    %355 = arith.extui %340 : i1 to i32
    %c4_i32_196 = arith.constant 4 : i32
    %c0_i32_197 = arith.constant 0 : i32
    %356 = arith.cmpi ne, %355, %c0_i32_197 : i32
    scf.if %356 {
      %c4_i32_220 = arith.constant 4 : i32
      %c0_i32_221 = arith.constant 0 : i32
      %379 = tpu.memref_slice %arg23[%c4_i32_220, %c0_i32_221] : memref<8x128xf32, #tpu.memory_space<vmem>> -> memref<1x128xf32, #tpu.memory_space<vmem>>
      %c0_i32_222 = arith.constant 0 : i32
      %380 = tpu.memref_slice %arg21[%339, %c0_i32_222] : memref<32x128xf32, #tpu.memory_space<any>> -> memref<1x128xf32, #tpu.memory_space<any>>
      %381 = tpu.memref_slice %arg25[%c4_i32_196] : memref<8x!tpu.dma_semaphore, #tpu.memory_space<semaphore_mem>> -> memref<1x!tpu.dma_semaphore, #tpu.memory_space<semaphore_mem>>
      %382 = tpu.memref_squeeze %381 : memref<1x!tpu.dma_semaphore, #tpu.memory_space<semaphore_mem>> -> memref<!tpu.dma_semaphore, #tpu.memory_space<semaphore_mem>>
      tpu.enqueue_dma source(%379 : memref<1x128xf32, #tpu.memory_space<vmem>>) target(%380 : memref<1x128xf32, #tpu.memory_space<any>>) target_semaphore(%382 : memref<!tpu.dma_semaphore, #tpu.memory_space<semaphore_mem>>)
    } else {
    }
    %357 = arith.extui %342 : i1 to i32
    %c5_i32_198 = arith.constant 5 : i32
    %c0_i32_199 = arith.constant 0 : i32
    %358 = arith.cmpi ne, %357, %c0_i32_199 : i32
    scf.if %358 {
      %c5_i32_220 = arith.constant 5 : i32
      %c0_i32_221 = arith.constant 0 : i32
      %379 = tpu.memref_slice %arg23[%c5_i32_220, %c0_i32_221] : memref<8x128xf32, #tpu.memory_space<vmem>> -> memref<1x128xf32, #tpu.memory_space<vmem>>
      %c0_i32_222 = arith.constant 0 : i32
      %380 = tpu.memref_slice %arg21[%341, %c0_i32_222] : memref<32x128xf32, #tpu.memory_space<any>> -> memref<1x128xf32, #tpu.memory_space<any>>
      %381 = tpu.memref_slice %arg25[%c5_i32_198] : memref<8x!tpu.dma_semaphore, #tpu.memory_space<semaphore_mem>> -> memref<1x!tpu.dma_semaphore, #tpu.memory_space<semaphore_mem>>
      %382 = tpu.memref_squeeze %381 : memref<1x!tpu.dma_semaphore, #tpu.memory_space<semaphore_mem>> -> memref<!tpu.dma_semaphore, #tpu.memory_space<semaphore_mem>>
      tpu.enqueue_dma source(%379 : memref<1x128xf32, #tpu.memory_space<vmem>>) target(%380 : memref<1x128xf32, #tpu.memory_space<any>>) target_semaphore(%382 : memref<!tpu.dma_semaphore, #tpu.memory_space<semaphore_mem>>)
    } else {
    }
    %359 = arith.extui %344 : i1 to i32
    %c6_i32_200 = arith.constant 6 : i32
    %c0_i32_201 = arith.constant 0 : i32
    %360 = arith.cmpi ne, %359, %c0_i32_201 : i32
    scf.if %360 {
      %c6_i32_220 = arith.constant 6 : i32
      %c0_i32_221 = arith.constant 0 : i32
      %379 = tpu.memref_slice %arg23[%c6_i32_220, %c0_i32_221] : memref<8x128xf32, #tpu.memory_space<vmem>> -> memref<1x128xf32, #tpu.memory_space<vmem>>
      %c0_i32_222 = arith.constant 0 : i32
      %380 = tpu.memref_slice %arg21[%343, %c0_i32_222] : memref<32x128xf32, #tpu.memory_space<any>> -> memref<1x128xf32, #tpu.memory_space<any>>
      %381 = tpu.memref_slice %arg25[%c6_i32_200] : memref<8x!tpu.dma_semaphore, #tpu.memory_space<semaphore_mem>> -> memref<1x!tpu.dma_semaphore, #tpu.memory_space<semaphore_mem>>
      %382 = tpu.memref_squeeze %381 : memref<1x!tpu.dma_semaphore, #tpu.memory_space<semaphore_mem>> -> memref<!tpu.dma_semaphore, #tpu.memory_space<semaphore_mem>>
      tpu.enqueue_dma source(%379 : memref<1x128xf32, #tpu.memory_space<vmem>>) target(%380 : memref<1x128xf32, #tpu.memory_space<any>>) target_semaphore(%382 : memref<!tpu.dma_semaphore, #tpu.memory_space<semaphore_mem>>)
    } else {
    }
    %361 = arith.extui %346 : i1 to i32
    %c7_i32_202 = arith.constant 7 : i32
    %c0_i32_203 = arith.constant 0 : i32
    %362 = arith.cmpi ne, %361, %c0_i32_203 : i32
    scf.if %362 {
      %c7_i32_220 = arith.constant 7 : i32
      %c0_i32_221 = arith.constant 0 : i32
      %379 = tpu.memref_slice %arg23[%c7_i32_220, %c0_i32_221] : memref<8x128xf32, #tpu.memory_space<vmem>> -> memref<1x128xf32, #tpu.memory_space<vmem>>
      %c0_i32_222 = arith.constant 0 : i32
      %380 = tpu.memref_slice %arg21[%345, %c0_i32_222] : memref<32x128xf32, #tpu.memory_space<any>> -> memref<1x128xf32, #tpu.memory_space<any>>
      %381 = tpu.memref_slice %arg25[%c7_i32_202] : memref<8x!tpu.dma_semaphore, #tpu.memory_space<semaphore_mem>> -> memref<1x!tpu.dma_semaphore, #tpu.memory_space<semaphore_mem>>
      %382 = tpu.memref_squeeze %381 : memref<1x!tpu.dma_semaphore, #tpu.memory_space<semaphore_mem>> -> memref<!tpu.dma_semaphore, #tpu.memory_space<semaphore_mem>>
      tpu.enqueue_dma source(%379 : memref<1x128xf32, #tpu.memory_space<vmem>>) target(%380 : memref<1x128xf32, #tpu.memory_space<any>>) target_semaphore(%382 : memref<!tpu.dma_semaphore, #tpu.memory_space<semaphore_mem>>)
    } else {
    }
    %363 = arith.extui %332 : i1 to i32
    %c0_i32_204 = arith.constant 0 : i32
    %c0_i32_205 = arith.constant 0 : i32
    %364 = arith.cmpi ne, %363, %c0_i32_205 : i32
    scf.if %364 {
      %c0_i32_220 = arith.constant 0 : i32
      %c0_i32_221 = arith.constant 0 : i32
      %379 = tpu.memref_slice %arg23[%c0_i32_220, %c0_i32_221] : memref<8x128xf32, #tpu.memory_space<vmem>> -> memref<1x128xf32, #tpu.memory_space<vmem>>
      %c0_i32_222 = arith.constant 0 : i32
      %380 = tpu.memref_slice %arg21[%331, %c0_i32_222] : memref<32x128xf32, #tpu.memory_space<any>> -> memref<1x128xf32, #tpu.memory_space<any>>
      %381 = tpu.memref_slice %arg25[%c0_i32_204] : memref<8x!tpu.dma_semaphore, #tpu.memory_space<semaphore_mem>> -> memref<1x!tpu.dma_semaphore, #tpu.memory_space<semaphore_mem>>
      %382 = tpu.memref_squeeze %381 : memref<1x!tpu.dma_semaphore, #tpu.memory_space<semaphore_mem>> -> memref<!tpu.dma_semaphore, #tpu.memory_space<semaphore_mem>>
      tpu.wait_dma2 semaphore(%382 : memref<!tpu.dma_semaphore, #tpu.memory_space<semaphore_mem>>) src(%379 : memref<1x128xf32, #tpu.memory_space<vmem>>) dst(%380 : memref<1x128xf32, #tpu.memory_space<any>>)
    } else {
    }
    %365 = arith.extui %334 : i1 to i32
    %c1_i32_206 = arith.constant 1 : i32
    %c0_i32_207 = arith.constant 0 : i32
    %366 = arith.cmpi ne, %365, %c0_i32_207 : i32
    scf.if %366 {
      %c1_i32_220 = arith.constant 1 : i32
      %c0_i32_221 = arith.constant 0 : i32
      %379 = tpu.memref_slice %arg23[%c1_i32_220, %c0_i32_221] : memref<8x128xf32, #tpu.memory_space<vmem>> -> memref<1x128xf32, #tpu.memory_space<vmem>>
      %c0_i32_222 = arith.constant 0 : i32
      %380 = tpu.memref_slice %arg21[%333, %c0_i32_222] : memref<32x128xf32, #tpu.memory_space<any>> -> memref<1x128xf32, #tpu.memory_space<any>>
      %381 = tpu.memref_slice %arg25[%c1_i32_206] : memref<8x!tpu.dma_semaphore, #tpu.memory_space<semaphore_mem>> -> memref<1x!tpu.dma_semaphore, #tpu.memory_space<semaphore_mem>>
      %382 = tpu.memref_squeeze %381 : memref<1x!tpu.dma_semaphore, #tpu.memory_space<semaphore_mem>> -> memref<!tpu.dma_semaphore, #tpu.memory_space<semaphore_mem>>
      tpu.wait_dma2 semaphore(%382 : memref<!tpu.dma_semaphore, #tpu.memory_space<semaphore_mem>>) src(%379 : memref<1x128xf32, #tpu.memory_space<vmem>>) dst(%380 : memref<1x128xf32, #tpu.memory_space<any>>)
    } else {
    }
    %367 = arith.extui %336 : i1 to i32
    %c2_i32_208 = arith.constant 2 : i32
    %c0_i32_209 = arith.constant 0 : i32
    %368 = arith.cmpi ne, %367, %c0_i32_209 : i32
    scf.if %368 {
      %c2_i32_220 = arith.constant 2 : i32
      %c0_i32_221 = arith.constant 0 : i32
      %379 = tpu.memref_slice %arg23[%c2_i32_220, %c0_i32_221] : memref<8x128xf32, #tpu.memory_space<vmem>> -> memref<1x128xf32, #tpu.memory_space<vmem>>
      %c0_i32_222 = arith.constant 0 : i32
      %380 = tpu.memref_slice %arg21[%335, %c0_i32_222] : memref<32x128xf32, #tpu.memory_space<any>> -> memref<1x128xf32, #tpu.memory_space<any>>
      %381 = tpu.memref_slice %arg25[%c2_i32_208] : memref<8x!tpu.dma_semaphore, #tpu.memory_space<semaphore_mem>> -> memref<1x!tpu.dma_semaphore, #tpu.memory_space<semaphore_mem>>
      %382 = tpu.memref_squeeze %381 : memref<1x!tpu.dma_semaphore, #tpu.memory_space<semaphore_mem>> -> memref<!tpu.dma_semaphore, #tpu.memory_space<semaphore_mem>>
      tpu.wait_dma2 semaphore(%382 : memref<!tpu.dma_semaphore, #tpu.memory_space<semaphore_mem>>) src(%379 : memref<1x128xf32, #tpu.memory_space<vmem>>) dst(%380 : memref<1x128xf32, #tpu.memory_space<any>>)
    } else {
    }
    %369 = arith.extui %338 : i1 to i32
    %c3_i32_210 = arith.constant 3 : i32
    %c0_i32_211 = arith.constant 0 : i32
    %370 = arith.cmpi ne, %369, %c0_i32_211 : i32
    scf.if %370 {
      %c3_i32_220 = arith.constant 3 : i32
      %c0_i32_221 = arith.constant 0 : i32
      %379 = tpu.memref_slice %arg23[%c3_i32_220, %c0_i32_221] : memref<8x128xf32, #tpu.memory_space<vmem>> -> memref<1x128xf32, #tpu.memory_space<vmem>>
      %c0_i32_222 = arith.constant 0 : i32
      %380 = tpu.memref_slice %arg21[%337, %c0_i32_222] : memref<32x128xf32, #tpu.memory_space<any>> -> memref<1x128xf32, #tpu.memory_space<any>>
      %381 = tpu.memref_slice %arg25[%c3_i32_210] : memref<8x!tpu.dma_semaphore, #tpu.memory_space<semaphore_mem>> -> memref<1x!tpu.dma_semaphore, #tpu.memory_space<semaphore_mem>>
      %382 = tpu.memref_squeeze %381 : memref<1x!tpu.dma_semaphore, #tpu.memory_space<semaphore_mem>> -> memref<!tpu.dma_semaphore, #tpu.memory_space<semaphore_mem>>
      tpu.wait_dma2 semaphore(%382 : memref<!tpu.dma_semaphore, #tpu.memory_space<semaphore_mem>>) src(%379 : memref<1x128xf32, #tpu.memory_space<vmem>>) dst(%380 : memref<1x128xf32, #tpu.memory_space<any>>)
    } else {
    }
    %371 = arith.extui %340 : i1 to i32
    %c4_i32_212 = arith.constant 4 : i32
    %c0_i32_213 = arith.constant 0 : i32
    %372 = arith.cmpi ne, %371, %c0_i32_213 : i32
    scf.if %372 {
      %c4_i32_220 = arith.constant 4 : i32
      %c0_i32_221 = arith.constant 0 : i32
      %379 = tpu.memref_slice %arg23[%c4_i32_220, %c0_i32_221] : memref<8x128xf32, #tpu.memory_space<vmem>> -> memref<1x128xf32, #tpu.memory_space<vmem>>
      %c0_i32_222 = arith.constant 0 : i32
      %380 = tpu.memref_slice %arg21[%339, %c0_i32_222] : memref<32x128xf32, #tpu.memory_space<any>> -> memref<1x128xf32, #tpu.memory_space<any>>
      %381 = tpu.memref_slice %arg25[%c4_i32_212] : memref<8x!tpu.dma_semaphore, #tpu.memory_space<semaphore_mem>> -> memref<1x!tpu.dma_semaphore, #tpu.memory_space<semaphore_mem>>
      %382 = tpu.memref_squeeze %381 : memref<1x!tpu.dma_semaphore, #tpu.memory_space<semaphore_mem>> -> memref<!tpu.dma_semaphore, #tpu.memory_space<semaphore_mem>>
      tpu.wait_dma2 semaphore(%382 : memref<!tpu.dma_semaphore, #tpu.memory_space<semaphore_mem>>) src(%379 : memref<1x128xf32, #tpu.memory_space<vmem>>) dst(%380 : memref<1x128xf32, #tpu.memory_space<any>>)
    } else {
    }
    %373 = arith.extui %342 : i1 to i32
    %c5_i32_214 = arith.constant 5 : i32
    %c0_i32_215 = arith.constant 0 : i32
    %374 = arith.cmpi ne, %373, %c0_i32_215 : i32
    scf.if %374 {
      %c5_i32_220 = arith.constant 5 : i32
      %c0_i32_221 = arith.constant 0 : i32
      %379 = tpu.memref_slice %arg23[%c5_i32_220, %c0_i32_221] : memref<8x128xf32, #tpu.memory_space<vmem>> -> memref<1x128xf32, #tpu.memory_space<vmem>>
      %c0_i32_222 = arith.constant 0 : i32
      %380 = tpu.memref_slice %arg21[%341, %c0_i32_222] : memref<32x128xf32, #tpu.memory_space<any>> -> memref<1x128xf32, #tpu.memory_space<any>>
      %381 = tpu.memref_slice %arg25[%c5_i32_214] : memref<8x!tpu.dma_semaphore, #tpu.memory_space<semaphore_mem>> -> memref<1x!tpu.dma_semaphore, #tpu.memory_space<semaphore_mem>>
      %382 = tpu.memref_squeeze %381 : memref<1x!tpu.dma_semaphore, #tpu.memory_space<semaphore_mem>> -> memref<!tpu.dma_semaphore, #tpu.memory_space<semaphore_mem>>
      tpu.wait_dma2 semaphore(%382 : memref<!tpu.dma_semaphore, #tpu.memory_space<semaphore_mem>>) src(%379 : memref<1x128xf32, #tpu.memory_space<vmem>>) dst(%380 : memref<1x128xf32, #tpu.memory_space<any>>)
    } else {
    }
    %375 = arith.extui %344 : i1 to i32
    %c6_i32_216 = arith.constant 6 : i32
    %c0_i32_217 = arith.constant 0 : i32
    %376 = arith.cmpi ne, %375, %c0_i32_217 : i32
    scf.if %376 {
      %c6_i32_220 = arith.constant 6 : i32
      %c0_i32_221 = arith.constant 0 : i32
      %379 = tpu.memref_slice %arg23[%c6_i32_220, %c0_i32_221] : memref<8x128xf32, #tpu.memory_space<vmem>> -> memref<1x128xf32, #tpu.memory_space<vmem>>
      %c0_i32_222 = arith.constant 0 : i32
      %380 = tpu.memref_slice %arg21[%343, %c0_i32_222] : memref<32x128xf32, #tpu.memory_space<any>> -> memref<1x128xf32, #tpu.memory_space<any>>
      %381 = tpu.memref_slice %arg25[%c6_i32_216] : memref<8x!tpu.dma_semaphore, #tpu.memory_space<semaphore_mem>> -> memref<1x!tpu.dma_semaphore, #tpu.memory_space<semaphore_mem>>
      %382 = tpu.memref_squeeze %381 : memref<1x!tpu.dma_semaphore, #tpu.memory_space<semaphore_mem>> -> memref<!tpu.dma_semaphore, #tpu.memory_space<semaphore_mem>>
      tpu.wait_dma2 semaphore(%382 : memref<!tpu.dma_semaphore, #tpu.memory_space<semaphore_mem>>) src(%379 : memref<1x128xf32, #tpu.memory_space<vmem>>) dst(%380 : memref<1x128xf32, #tpu.memory_space<any>>)
    } else {
    }
    %377 = arith.extui %346 : i1 to i32
    %c7_i32_218 = arith.constant 7 : i32
    %c0_i32_219 = arith.constant 0 : i32
    %378 = arith.cmpi ne, %377, %c0_i32_219 : i32
    scf.if %378 {
      %c7_i32_220 = arith.constant 7 : i32
      %c0_i32_221 = arith.constant 0 : i32
      %379 = tpu.memref_slice %arg23[%c7_i32_220, %c0_i32_221] : memref<8x128xf32, #tpu.memory_space<vmem>> -> memref<1x128xf32, #tpu.memory_space<vmem>>
      %c0_i32_222 = arith.constant 0 : i32
      %380 = tpu.memref_slice %arg21[%345, %c0_i32_222] : memref<32x128xf32, #tpu.memory_space<any>> -> memref<1x128xf32, #tpu.memory_space<any>>
      %381 = tpu.memref_slice %arg25[%c7_i32_218] : memref<8x!tpu.dma_semaphore, #tpu.memory_space<semaphore_mem>> -> memref<1x!tpu.dma_semaphore, #tpu.memory_space<semaphore_mem>>
      %382 = tpu.memref_squeeze %381 : memref<1x!tpu.dma_semaphore, #tpu.memory_space<semaphore_mem>> -> memref<!tpu.dma_semaphore, #tpu.memory_space<semaphore_mem>>
      tpu.wait_dma2 semaphore(%382 : memref<!tpu.dma_semaphore, #tpu.memory_space<semaphore_mem>>) src(%379 : memref<1x128xf32, #tpu.memory_space<vmem>>) dst(%380 : memref<1x128xf32, #tpu.memory_space<any>>)
    } else {
    }
    return
  }
  func.func @transform_0(%arg0: i32) -> i32 {
    %c0_i32 = arith.constant 0 : i32
    %c0_i32_0 = arith.constant 0 : i32
    return %c0_i32 : i32
  }
  func.func @transform_2(%arg0: i32) -> (i32, i32) {
    %c0_i32 = arith.constant 0 : i32
    %c0_i32_0 = arith.constant 0 : i32
    return %arg0, %c0_i32 : i32, i32
  }
  func.func @transform_3(%arg0: i32) -> (i32, i32) {
    %c0_i32 = arith.constant 0 : i32
    %c0_i32_0 = arith.constant 0 : i32
    %c0_i32_1 = arith.constant 0 : i32
    return %c0_i32, %c0_i32_0 : i32, i32
  }
  func.func @transform_4(%arg0: i32) -> (i32, i32) {
    %c0_i32 = arith.constant 0 : i32
    %c0_i32_0 = arith.constant 0 : i32
    %c0_i32_1 = arith.constant 0 : i32
    return %c0_i32, %c0_i32_0 : i32, i32
  }
  func.func @transform_5(%arg0: i32) -> (i32, i32) {
    %c0_i32 = arith.constant 0 : i32
    %c0_i32_0 = arith.constant 0 : i32
    %c0_i32_1 = arith.constant 0 : i32
    return %c0_i32, %c0_i32_0 : i32, i32
  }
  func.func @transform_6(%arg0: i32) -> (i32, i32) {
    %c0_i32 = arith.constant 0 : i32
    %c0_i32_0 = arith.constant 0 : i32
    %c0_i32_1 = arith.constant 0 : i32
    return %c0_i32, %c0_i32_0 : i32, i32
  }
  func.func @transform_7(%arg0: i32) -> (i32, i32) {
    %c0_i32 = arith.constant 0 : i32
    %c0_i32_0 = arith.constant 0 : i32
    %c0_i32_1 = arith.constant 0 : i32
    return %c0_i32, %c0_i32_0 : i32, i32
  }
  func.func @transform_8(%arg0: i32) -> (i32, i32) {
    %c0_i32 = arith.constant 0 : i32
    %c0_i32_0 = arith.constant 0 : i32
    %c0_i32_1 = arith.constant 0 : i32
    return %c0_i32, %c0_i32_0 : i32, i32
  }
  func.func @transform_9(%arg0: i32) -> (i32, i32) {
    %c0_i32 = arith.constant 0 : i32
    %c0_i32_0 = arith.constant 0 : i32
    %c0_i32_1 = arith.constant 0 : i32
    return %c0_i32, %c0_i32_0 : i32, i32
  }
  func.func @transform_10(%arg0: i32) -> (i32, i32) {
    %c0_i32 = arith.constant 0 : i32
    %c0_i32_0 = arith.constant 0 : i32
    %c0_i32_1 = arith.constant 0 : i32
    return %c0_i32, %c0_i32_0 : i32, i32
  }
  func.func @transform_11(%arg0: i32) -> (i32, i32) {
    %c0_i32 = arith.constant 0 : i32
    %c0_i32_0 = arith.constant 0 : i32
    %c0_i32_1 = arith.constant 0 : i32
    return %c0_i32, %c0_i32_0 : i32, i32
  }
  func.func @transform_12(%arg0: i32) -> (i32, i32) {
    %c0_i32 = arith.constant 0 : i32
    %c0_i32_0 = arith.constant 0 : i32
    %c0_i32_1 = arith.constant 0 : i32
    return %c0_i32, %c0_i32_0 : i32, i32
  }
  func.func @transform_13(%arg0: i32) -> (i32, i32) {
    %c0_i32 = arith.constant 0 : i32
    %c0_i32_0 = arith.constant 0 : i32
    %c0_i32_1 = arith.constant 0 : i32
    return %c0_i32, %c0_i32_0 : i32, i32
  }
  func.func @transform_14(%arg0: i32) -> (i32, i32) {
    %c0_i32 = arith.constant 0 : i32
    %c0_i32_0 = arith.constant 0 : i32
    %c0_i32_1 = arith.constant 0 : i32
    return %c0_i32, %c0_i32_0 : i32, i32
  }
  func.func @transform_15(%arg0: i32) -> (i32, i32) {
    %c0_i32 = arith.constant 0 : i32
    %c0_i32_0 = arith.constant 0 : i32
    %c0_i32_1 = arith.constant 0 : i32
    return %c0_i32, %c0_i32_0 : i32, i32
  }
  func.func @transform_16(%arg0: i32) -> (i32, i32) {
    %c0_i32 = arith.constant 0 : i32
    %c0_i32_0 = arith.constant 0 : i32
    %c0_i32_1 = arith.constant 0 : i32
    return %c0_i32, %c0_i32_0 : i32, i32
  }
  func.func @transform_17(%arg0: i32) -> (i32, i32) {
    %c0_i32 = arith.constant 0 : i32
    %c0_i32_0 = arith.constant 0 : i32
    %c0_i32_1 = arith.constant 0 : i32
    return %c0_i32, %c0_i32_0 : i32, i32
  }
  func.func @transform_18(%arg0: i32) -> (i32, i32) {
    %c0_i32 = arith.constant 0 : i32
    %c0_i32_0 = arith.constant 0 : i32
    %c0_i32_1 = arith.constant 0 : i32
    return %c0_i32, %c0_i32_0 : i32, i32
  }
  func.func @transform_19(%arg0: i32) -> (i32, i32) {
    %c0_i32 = arith.constant 0 : i32
    %c0_i32_0 = arith.constant 0 : i32
    %c0_i32_1 = arith.constant 0 : i32
    return %c0_i32, %c0_i32_0 : i32, i32
  }
}

</mosaic_0001>

<llo_original>
// kernel: _fuse_module_forward_impl.1
$region0: #{_fuse_module_forward_impl.1}
  #allocation0 [shape = 'u32[]', space=smem, size = 0x4, offset = 0x4, fixed_abs, tag = 'smem constant byte address 0x4 - core index']
  #allocation1 [shape = 'u32[144,128]{1,0:T(1,128)}', space=vmem, size = 0x12000, scoped, tag = 'internal scratch']
  #allocation2 [shape = 'f32[8,128]{1,0:T(8,128)}', space=vmem, size = 0x1000, scoped, tag = 'scratch operand']
  #allocation3 [shape = 'f32[8,128]{1,0:T(8,128)}', space=vmem, size = 0x1000, scoped, tag = 'scratch operand']
  #allocation4 [shape = 's32[8]{0}', space=sflag, size = 0x20, scoped, tag = 'scratch operand']
  #allocation5 [shape = 's32[8]{0}', space=sflag, size = 0x20, scoped, tag = 'scratch operand']
  #allocation8 [shape = 's32[]', space=sflag, size = 0x4, offset = 0, fixed_abs, tag = 'sflag constant byte address 0x0 - dummy sync flag']
  #allocation9 [shape = 's32[]', space=sflag, size = 0x4, offset = 0, fixed_abs, tag = 'sflag constant byte address 0x0 - dummy sync flag']
  #allocation10 [shape = 's32[]', space=sflag, size = 0x4, offset = 0, fixed_abs, tag = 'sflag constant byte address 0x0 - dummy sync flag']
  #allocation11 [shape = 's32[]', space=sflag, size = 0x4, offset = 0, fixed_abs, tag = 'sflag constant byte address 0x0 - dummy sync flag']
  #allocation12 [shape = 's32[]', space=sflag, size = 0x4, offset = 0, fixed_abs, tag = 'sflag constant byte address 0x0 - dummy sync flag']
  #allocation13 [shape = 's32[]', space=sflag, size = 0x4, offset = 0, fixed_abs, tag = 'sflag constant byte address 0x0 - dummy sync flag']
  #allocation14 [shape = 's32[]', space=sflag, size = 0x4, offset = 0, fixed_abs, tag = 'sflag constant byte address 0x0 - dummy sync flag']
  #allocation15 [shape = 's32[]', space=sflag, size = 0x4, offset = 0, fixed_abs, tag = 'sflag constant byte address 0x0 - dummy sync flag']
  #allocation16 [shape = 's32[]', space=sflag, size = 0x4, offset = 0, fixed_abs, tag = 'sflag constant byte address 0x0 - dummy sync flag']
  #allocation17 [shape = 's32[]', space=sflag, size = 0x4, offset = 0, fixed_abs, tag = 'sflag constant byte address 0x0 - dummy sync flag']
  #allocation18 [shape = 's32[]', space=sflag, size = 0x4, offset = 0, fixed_abs, tag = 'sflag constant byte address 0x0 - dummy sync flag']
  #allocation19 [shape = 's32[]', space=sflag, size = 0x4, offset = 0, fixed_abs, tag = 'sflag constant byte address 0x0 - dummy sync flag']
  #allocation20 [shape = 's32[]', space=sflag, size = 0x4, offset = 0, fixed_abs, tag = 'sflag constant byte address 0x0 - dummy sync flag']
  #allocation21 [shape = 's32[]', space=sflag, size = 0x4, offset = 0, fixed_abs, tag = 'sflag constant byte address 0x0 - dummy sync flag']
  #allocation22 [shape = 's32[]', space=sflag, size = 0x4, offset = 0, fixed_abs, tag = 'sflag constant byte address 0x0 - dummy sync flag']
  #allocation23 [shape = 's32[]', space=sflag, size = 0x4, offset = 0, fixed_abs, tag = 'sflag constant byte address 0x0 - dummy sync flag']
  %s0 = inlined_call_operand.vmem [shape: s32[16], index: 0, kind: input, shape index: {}]
  %s1 = inlined_call_operand.vmem [shape: f32[32,128], index: 1, kind: input, shape index: {}, may-alias: {1,20}]
  %s2 = inlined_call_operand.vmem [shape: f32[16,128], index: 2, kind: input, shape index: {}]
  %s3 = inlined_call_operand.vmem [shape: f32[1,128], index: 3, kind: input, shape index: {}]
  %s4 = inlined_call_operand.vmem [shape: f32[1,128], index: 4, kind: input, shape index: {}]
  %s5 = inlined_call_operand.vmem [shape: f32[1,128], index: 5, kind: input, shape index: {}]
  %s6 = inlined_call_operand.vmem [shape: f32[1,128], index: 6, kind: input, shape index: {}]
  %s7 = inlined_call_operand.vmem [shape: bf16[128,128], index: 7, kind: input, shape index: {}]
  %s8 = inlined_call_operand.vmem [shape: bf16[128,128], index: 8, kind: input, shape index: {}]
  %s9 = inlined_call_operand.vmem [shape: f32[1,128], index: 9, kind: input, shape index: {}]
  %s10 = inlined_call_operand.vmem [shape: bf16[128,128], index: 10, kind: input, shape index: {}]
  %s11 = inlined_call_operand.vmem [shape: f32[1,128], index: 11, kind: input, shape index: {}]
  %s12 = inlined_call_operand.vmem [shape: f32[1,128], index: 12, kind: input, shape index: {}]
  %s13 = inlined_call_operand.vmem [shape: f32[1,128], index: 13, kind: input, shape index: {}]
  %s14 = inlined_call_operand.vmem [shape: bf16[128,128], index: 14, kind: input, shape index: {}]
  %s15 = inlined_call_operand.vmem [shape: f32[1,128], index: 15, kind: input, shape index: {}]
  %s16 = inlined_call_operand.vmem [shape: bf16[128,128], index: 16, kind: input, shape index: {}]
  %s17 = inlined_call_operand.vmem [shape: f32[1,128], index: 17, kind: input, shape index: {}]
  %s18 = inlined_call_operand.vmem [shape: f32[1,128], index: 18, kind: input, shape index: {}]
  %s19 = inlined_call_operand.vmem [shape: f32[1,128], index: 19, kind: input, shape index: {}]
  %s20 = inlined_call_operand.vmem [shape: f32[32,128], index: 20, kind: output, shape index: {}, may-alias: {1,20}]
  %s21 = sld [smem:[#allocation0]]
  $region645: #{_fuse_module_forward_impl.1} parent=0
    _
  %s23 = ssub.s32 1, %s21
  %s24 = scalar_select 0, %s23, %s21
  $region1: #{_fuse_module_forward_impl.1} parent=0
    #allocation6 [shape = 'u8[512]{0}', space=smem, size = 0x200, scoped, tag = 'input window, operand 0, single buffered']
    #allocation7 [shape = 's32[2]{0}', space=sflag, size = 0x8, scoped, tag = 'scoped memory for _fuse_module_forward_impl.1']
    %25 = vsyncpa [#allocation7], 0
    loop: start=0, step=1, limit=3
    $region2: #{_fuse_module_forward_impl.1} parent=1 // loop_pre_header
      _
    $region3: #{_fuse_module_forward_impl.1} parent=1 // loop_header
      %s27 = sphi 0, %s31
      %p28 = scmp.ge.s32.totalorder %s27, 3
      %s34 = sphi 0, %s34
      %s36 = sphi 0, %s34
      %s44 = sphi 0, %s36
      %s50 = sphi 0, %s52
      %s53 = sphi 0, %s50
      %s63 = sphi 0, %s53
      %s67 = sphi 0, %s67
      %s69 = sphi 0, %s67
      %s77 = sphi 0, %s69
      %s81 = sphi 0, %s81
      %s83 = sphi 0, %s81
      %s91 = sphi 0, %s83
      %s95 = sphi 0, %s95
      %s97 = sphi 0, %s95
      %s105 = sphi 0, %s97
      %s109 = sphi 0, %s109
      %s111 = sphi 0, %s109
      %s119 = sphi 0, %s111
      %s123 = sphi 0, %s123
      %s125 = sphi 0, %s123
      %s133 = sphi 0, %s125
      %s137 = sphi 0, %s137
      %s139 = sphi 0, %s137
      %s147 = sphi 0, %s139
      %s151 = sphi 0, %s151
      %s153 = sphi 0, %s151
      %s161 = sphi 0, %s153
      %s165 = sphi 0, %s165
      %s167 = sphi 0, %s165
      %s175 = sphi 0, %s167
      %s179 = sphi 0, %s179
      %s181 = sphi 0, %s179
      %s189 = sphi 0, %s181
      %s193 = sphi 0, %s193
      %s195 = sphi 0, %s193
      %s203 = sphi 0, %s195
      %s207 = sphi 0, %s207
      %s209 = sphi 0, %s207
      %s217 = sphi 0, %s209
      %s221 = sphi 0, %s221
      %s223 = sphi 0, %s221
      %s231 = sphi 0, %s223
      %s235 = sphi 0, %s235
      %s237 = sphi 0, %s235
      %s245 = sphi 0, %s237
      %s249 = sphi 0, %s249
      %s251 = sphi 0, %s249
      %s259 = sphi 0, %s251
      %s263 = sphi 0, %s263
      %s265 = sphi 0, %s263
      %s273 = sphi 0, %s265
      %s277 = sphi 0, %s277
      %s279 = sphi 0, %s277
      %s287 = sphi 0, %s279
      %s291 = sphi 0, %s291
      %s293 = sphi 0, %s291
      %s301 = sphi 0, %s293
    $region4: #{_fuse_module_forward_impl.1} parent=1 // loop_header_branch
      %30 = sbr.rel (%p28) target = $region8
    $region5: #{_fuse_module_forward_impl.1} parent=1 // loop_body
      %s32 = ssub.s32 %s27, 1
      %s33 = sadd.s32 %s27, 1
      %s35 = sadd.s32 %s34, 1
      %p37 = scmp.eq.s32.totalorder %s27, 1
      %p38 = scmp.ne.s32.totalorder %s34, %s36
      %p39 = scmp.eq.s32.totalorder %s27, 0
      %p40 = por %p38, %p39
      %p41 = scmp.ne.s32.totalorder %s34, %s36
      %p42 = scmp.eq.s32.totalorder %s32, 1
      %p43 = por %p41, %p42
      %p45 = scmp.ne.s32.totalorder %s36, %s44
      %p46 = scmp.eq.s32.totalorder %s32, 0
      %p47 = por %p45, %p46
      %s48 = ssub.s32 %s27, %s33
      %p49 = scmp.eq.s32.totalorder %s48, 0
      %s51 = sadd.s32 %s50, 1
      %s52 = scalar_select %p49, %s50, %s51
      %p54 = pneg %p49
      %p55 = scmp.eq.s32.totalorder %s27, 1
      %p56 = por %p54, %p55
      %p57 = scmp.ne.s32.totalorder %s50, %s53
      %p58 = scmp.eq.s32.totalorder %s27, 0
      %p59 = por %p57, %p58
      %p60 = scmp.ne.s32.totalorder %s50, %s53
      %p61 = scmp.eq.s32.totalorder %s32, 1
      %p62 = por %p60, %p61
      %p64 = scmp.ne.s32.totalorder %s53, %s63
      %p65 = scmp.eq.s32.totalorder %s32, 0
      %p66 = por %p64, %p65
      %s68 = sadd.s32 %s67, 1
      %p70 = scmp.eq.s32.totalorder %s27, 1
      %p71 = scmp.ne.s32.totalorder %s67, %s69
      %p72 = scmp.eq.s32.totalorder %s27, 0
      %p73 = por %p71, %p72
      %p74 = scmp.ne.s32.totalorder %s67, %s69
      %p75 = scmp.eq.s32.totalorder %s32, 1
      %p76 = por %p74, %p75
      %p78 = scmp.ne.s32.totalorder %s69, %s77
      %p79 = scmp.eq.s32.totalorder %s32, 0
      %p80 = por %p78, %p79
      %s82 = sadd.s32 %s81, 1
      %p84 = scmp.eq.s32.totalorder %s27, 1
      %p85 = scmp.ne.s32.totalorder %s81, %s83
      %p86 = scmp.eq.s32.totalorder %s27, 0
      %p87 = por %p85, %p86
      %p88 = scmp.ne.s32.totalorder %s81, %s83
      %p89 = scmp.eq.s32.totalorder %s32, 1
      %p90 = por %p88, %p89
      %p92 = scmp.ne.s32.totalorder %s83, %s91
      %p93 = scmp.eq.s32.totalorder %s32, 0
      %p94 = por %p92, %p93
      %s96 = sadd.s32 %s95, 1
      %p98 = scmp.eq.s32.totalorder %s27, 1
      %p99 = scmp.ne.s32.totalorder %s95, %s97
      %p100 = scmp.eq.s32.totalorder %s27, 0
      %p101 = por %p99, %p100
      %p102 = scmp.ne.s32.totalorder %s95, %s97
      %p103 = scmp.eq.s32.totalorder %s32, 1
      %p104 = por %p102, %p103
      %p106 = scmp.ne.s32.totalorder %s97, %s105
      %p107 = scmp.eq.s32.totalorder %s32, 0
      %p108 = por %p106, %p107
      %s110 = sadd.s32 %s109, 1
      %p112 = scmp.eq.s32.totalorder %s27, 1
      %p113 = scmp.ne.s32.totalorder %s109, %s111
      %p114 = scmp.eq.s32.totalorder %s27, 0
      %p115 = por %p113, %p114
      %p116 = scmp.ne.s32.totalorder %s109, %s111
      %p117 = scmp.eq.s32.totalorder %s32, 1
      %p118 = por %p116, %p117
      %p120 = scmp.ne.s32.totalorder %s111, %s119
      %p121 = scmp.eq.s32.totalorder %s32, 0
      %p122 = por %p120, %p121
      %s124 = sadd.s32 %s123, 1
      %p126 = scmp.eq.s32.totalorder %s27, 1
      %p127 = scmp.ne.s32.totalorder %s123, %s125
      %p128 = scmp.eq.s32.totalorder %s27, 0
      %p129 = por %p127, %p128
      %p130 = scmp.ne.s32.totalorder %s123, %s125
      %p131 = scmp.eq.s32.totalorder %s32, 1
      %p132 = por %p130, %p131
      %p134 = scmp.ne.s32.totalorder %s125, %s133
      %p135 = scmp.eq.s32.totalorder %s32, 0
      %p136 = por %p134, %p135
      %s138 = sadd.s32 %s137, 1
      %p140 = scmp.eq.s32.totalorder %s27, 1
      %p141 = scmp.ne.s32.totalorder %s137, %s139
      %p142 = scmp.eq.s32.totalorder %s27, 0
      %p143 = por %p141, %p142
      %p144 = scmp.ne.s32.totalorder %s137, %s139
      %p145 = scmp.eq.s32.totalorder %s32, 1
      %p146 = por %p144, %p145
      %p148 = scmp.ne.s32.totalorder %s139, %s147
      %p149 = scmp.eq.s32.totalorder %s32, 0
      %p150 = por %p148, %p149
      %s152 = sadd.s32 %s151, 1
      %p154 = scmp.eq.s32.totalorder %s27, 1
      %p155 = scmp.ne.s32.totalorder %s151, %s153
      %p156 = scmp.eq.s32.totalorder %s27, 0
      %p157 = por %p155, %p156
      %p158 = scmp.ne.s32.totalorder %s151, %s153
      %p159 = scmp.eq.s32.totalorder %s32, 1
      %p160 = por %p158, %p159
      %p162 = scmp.ne.s32.totalorder %s153, %s161
      %p163 = scmp.eq.s32.totalorder %s32, 0
      %p164 = por %p162, %p163
      %s166 = sadd.s32 %s165, 1
      %p168 = scmp.eq.s32.totalorder %s27, 1
      %p169 = scmp.ne.s32.totalorder %s165, %s167
      %p170 = scmp.eq.s32.totalorder %s27, 0
      %p171 = por %p169, %p170
      %p172 = scmp.ne.s32.totalorder %s165, %s167
      %p173 = scmp.eq.s32.totalorder %s32, 1
      %p174 = por %p172, %p173
      %p176 = scmp.ne.s32.totalorder %s167, %s175
      %p177 = scmp.eq.s32.totalorder %s32, 0
      %p178 = por %p176, %p177
      %s180 = sadd.s32 %s179, 1
      %p182 = scmp.eq.s32.totalorder %s27, 1
      %p183 = scmp.ne.s32.totalorder %s179, %s181
      %p184 = scmp.eq.s32.totalorder %s27, 0
      %p185 = por %p183, %p184
      %p186 = scmp.ne.s32.totalorder %s179, %s181
      %p187 = scmp.eq.s32.totalorder %s32, 1
      %p188 = por %p186, %p187
      %p190 = scmp.ne.s32.totalorder %s181, %s189
      %p191 = scmp.eq.s32.totalorder %s32, 0
      %p192 = por %p190, %p191
      %s194 = sadd.s32 %s193, 1
      %p196 = scmp.eq.s32.totalorder %s27, 1
      %p197 = scmp.ne.s32.totalorder %s193, %s195
      %p198 = scmp.eq.s32.totalorder %s27, 0
      %p199 = por %p197, %p198
      %p200 = scmp.ne.s32.totalorder %s193, %s195
      %p201 = scmp.eq.s32.totalorder %s32, 1
      %p202 = por %p200, %p201
      %p204 = scmp.ne.s32.totalorder %s195, %s203
      %p205 = scmp.eq.s32.totalorder %s32, 0
      %p206 = por %p204, %p205
      %s208 = sadd.s32 %s207, 1
      %p210 = scmp.eq.s32.totalorder %s27, 1
      %p211 = scmp.ne.s32.totalorder %s207, %s209
      %p212 = scmp.eq.s32.totalorder %s27, 0
      %p213 = por %p211, %p212
      %p214 = scmp.ne.s32.totalorder %s207, %s209
      %p215 = scmp.eq.s32.totalorder %s32, 1
      %p216 = por %p214, %p215
      %p218 = scmp.ne.s32.totalorder %s209, %s217
      %p219 = scmp.eq.s32.totalorder %s32, 0
      %p220 = por %p218, %p219
      %s222 = sadd.s32 %s221, 1
      %p224 = scmp.eq.s32.totalorder %s27, 1
      %p225 = scmp.ne.s32.totalorder %s221, %s223
      %p226 = scmp.eq.s32.totalorder %s27, 0
      %p227 = por %p225, %p226
      %p228 = scmp.ne.s32.totalorder %s221, %s223
      %p229 = scmp.eq.s32.totalorder %s32, 1
      %p230 = por %p228, %p229
      %p232 = scmp.ne.s32.totalorder %s223, %s231
      %p233 = scmp.eq.s32.totalorder %s32, 0
      %p234 = por %p232, %p233
      %s236 = sadd.s32 %s235, 1
      %p238 = scmp.eq.s32.totalorder %s27, 1
      %p239 = scmp.ne.s32.totalorder %s235, %s237
      %p240 = scmp.eq.s32.totalorder %s27, 0
      %p241 = por %p239, %p240
      %p242 = scmp.ne.s32.totalorder %s235, %s237
      %p243 = scmp.eq.s32.totalorder %s32, 1
      %p244 = por %p242, %p243
      %p246 = scmp.ne.s32.totalorder %s237, %s245
      %p247 = scmp.eq.s32.totalorder %s32, 0
      %p248 = por %p246, %p247
      %s250 = sadd.s32 %s249, 1
      %p252 = scmp.eq.s32.totalorder %s27, 1
      %p253 = scmp.ne.s32.totalorder %s249, %s251
      %p254 = scmp.eq.s32.totalorder %s27, 0
      %p255 = por %p253, %p254
      %p256 = scmp.ne.s32.totalorder %s249, %s251
      %p257 = scmp.eq.s32.totalorder %s32, 1
      %p258 = por %p256, %p257
      %p260 = scmp.ne.s32.totalorder %s251, %s259
      %p261 = scmp.eq.s32.totalorder %s32, 0
      %p262 = por %p260, %p261
      %s264 = sadd.s32 %s263, 1
      %p266 = scmp.eq.s32.totalorder %s27, 1
      %p267 = scmp.ne.s32.totalorder %s263, %s265
      %p268 = scmp.eq.s32.totalorder %s27, 0
      %p269 = por %p267, %p268
      %p270 = scmp.ne.s32.totalorder %s263, %s265
      %p271 = scmp.eq.s32.totalorder %s32, 1
      %p272 = por %p270, %p271
      %p274 = scmp.ne.s32.totalorder %s265, %s273
      %p275 = scmp.eq.s32.totalorder %s32, 0
      %p276 = por %p274, %p275
      %s278 = sadd.s32 %s277, 1
      %p280 = scmp.eq.s32.totalorder %s27, 1
      %p281 = scmp.ne.s32.totalorder %s277, %s279
      %p282 = scmp.eq.s32.totalorder %s27, 0
      %p283 = por %p281, %p282
      %p284 = scmp.ne.s32.totalorder %s277, %s279
      %p285 = scmp.eq.s32.totalorder %s32, 1
      %p286 = por %p284, %p285
      %p288 = scmp.ne.s32.totalorder %s279, %s287
      %p289 = scmp.eq.s32.totalorder %s32, 0
      %p290 = por %p288, %p289
      %s292 = sadd.s32 %s291, 1
      %p294 = scmp.eq.s32.totalorder %s27, 1
      %p295 = scmp.ne.s32.totalorder %s291, %s293
      %p296 = scmp.eq.s32.totalorder %s27, 0
      %p297 = por %p295, %p296
      %p298 = scmp.ne.s32.totalorder %s291, %s293
      %p299 = scmp.eq.s32.totalorder %s32, 1
      %p300 = por %p298, %p299
      %p302 = scmp.ne.s32.totalorder %s293, %s301
      %p303 = scmp.eq.s32.totalorder %s32, 0
      %p304 = por %p302, %p303
      %p305 = scmp.le.s32.totalorder 1, %s27
      // Predicated region
      $region9: #{_fuse_module_forward_impl.1} parent=5 // pred_check
        %p306 = pneg %p305
      $region10: #{_fuse_module_forward_impl.1} parent=5 // pred_check_branch
        %308 = sbr.rel (%p306) target = $region12
      $region11: #{_fuse_module_forward_impl.1} parent=5 // pred_region
        %s309 = ssub.s32 %s27, 1
        // Predicated region
        $region13: #{_fuse_module_forward_impl.1} parent=11 // pred_check
          %p310 = pneg %p47
        $region14: #{_fuse_module_forward_impl.1} parent=11 // pred_check_branch
          %312 = sbr.rel (%p310) target = $region16
        $region15: #{_fuse_module_forward_impl.1} parent=11 // pred_region
          %s314 = ssub.s32 16, 16
          %315 = vsyncadd [#allocation7], %s314
          %s317 = sshll.u32 %s0, 4
          %s318 = int_to_ptr.vmem [resolvable:$true] %s317
          %320 = dma.vmem_to_smem %s318, 16, [#allocation6], [#allocation7]
        $region16: #{_fuse_module_forward_impl.1} parent=11 // pred_fallthru
          _
        // Predicated region
        $region17: #{_fuse_module_forward_impl.1} parent=11 // pred_check
          %p321 = pneg %p80
        $region18: #{_fuse_module_forward_impl.1} parent=11 // pred_check_branch
          %323 = sbr.rel (%p321) target = $region20
        $region19: #{_fuse_module_forward_impl.1} parent=11 // pred_region
          _
        $region20: #{_fuse_module_forward_impl.1} parent=11 // pred_fallthru
          _
        // Predicated region
        $region21: #{_fuse_module_forward_impl.1} parent=11 // pred_check
          %p324 = pneg %p94
        $region22: #{_fuse_module_forward_impl.1} parent=11 // pred_check_branch
          %326 = sbr.rel (%p324) target = $region24
        $region23: #{_fuse_module_forward_impl.1} parent=11 // pred_region
          _
        $region24: #{_fuse_module_forward_impl.1} parent=11 // pred_fallthru
          _
        // Predicated region
        $region25: #{_fuse_module_forward_impl.1} parent=11 // pred_check
          %p327 = pneg %p108
        $region26: #{_fuse_module_forward_impl.1} parent=11 // pred_check_branch
          %329 = sbr.rel (%p327) target = $region28
        $region27: #{_fuse_module_forward_impl.1} parent=11 // pred_region
          _
        $region28: #{_fuse_module_forward_impl.1} parent=11 // pred_fallthru
          _
        // Predicated region
        $region29: #{_fuse_module_forward_impl.1} parent=11 // pred_check
          %p330 = pneg %p122
        $region30: #{_fuse_module_forward_impl.1} parent=11 // pred_check_branch
          %332 = sbr.rel (%p330) target = $region32
        $region31: #{_fuse_module_forward_impl.1} parent=11 // pred_region
          _
        $region32: #{_fuse_module_forward_impl.1} parent=11 // pred_fallthru
          _
        // Predicated region
        $region33: #{_fuse_module_forward_impl.1} parent=11 // pred_check
          %p333 = pneg %p136
        $region34: #{_fuse_module_forward_impl.1} parent=11 // pred_check_branch
          %335 = sbr.rel (%p333) target = $region36
        $region35: #{_fuse_module_forward_impl.1} parent=11 // pred_region
          _
        $region36: #{_fuse_module_forward_impl.1} parent=11 // pred_fallthru
          _
        // Predicated region
        $region37: #{_fuse_module_forward_impl.1} parent=11 // pred_check
          %p336 = pneg %p150
        $region38: #{_fuse_module_forward_impl.1} parent=11 // pred_check_branch
          %338 = sbr.rel (%p336) target = $region40
        $region39: #{_fuse_module_forward_impl.1} parent=11 // pred_region
          _
        $region40: #{_fuse_module_forward_impl.1} parent=11 // pred_fallthru
          _
        // Predicated region
        $region41: #{_fuse_module_forward_impl.1} parent=11 // pred_check
          %p339 = pneg %p164
        $region42: #{_fuse_module_forward_impl.1} parent=11 // pred_check_branch
          %341 = sbr.rel (%p339) target = $region44
        $region43: #{_fuse_module_forward_impl.1} parent=11 // pred_region
          _
        $region44: #{_fuse_module_forward_impl.1} parent=11 // pred_fallthru
          _
        // Predicated region
        $region45: #{_fuse_module_forward_impl.1} parent=11 // pred_check
          %p342 = pneg %p178
        $region46: #{_fuse_module_forward_impl.1} parent=11 // pred_check_branch
          %344 = sbr.rel (%p342) target = $region48
        $region47: #{_fuse_module_forward_impl.1} parent=11 // pred_region
          _
        $region48: #{_fuse_module_forward_impl.1} parent=11 // pred_fallthru
          _
        // Predicated region
        $region49: #{_fuse_module_forward_impl.1} parent=11 // pred_check
          %p345 = pneg %p192
        $region50: #{_fuse_module_forward_impl.1} parent=11 // pred_check_branch
          %347 = sbr.rel (%p345) target = $region52
        $region51: #{_fuse_module_forward_impl.1} parent=11 // pred_region
          _
        $region52: #{_fuse_module_forward_impl.1} parent=11 // pred_fallthru
          _
        // Predicated region
        $region53: #{_fuse_module_forward_impl.1} parent=11 // pred_check
          %p348 = pneg %p206
        $region54: #{_fuse_module_forward_impl.1} parent=11 // pred_check_branch
          %350 = sbr.rel (%p348) target = $region56
        $region55: #{_fuse_module_forward_impl.1} parent=11 // pred_region
          _
        $region56: #{_fuse_module_forward_impl.1} parent=11 // pred_fallthru
          _
        // Predicated region
        $region57: #{_fuse_module_forward_impl.1} parent=11 // pred_check
          %p351 = pneg %p220
        $region58: #{_fuse_module_forward_impl.1} parent=11 // pred_check_branch
          %353 = sbr.rel (%p351) target = $region60
        $region59: #{_fuse_module_forward_impl.1} parent=11 // pred_region
          _
        $region60: #{_fuse_module_forward_impl.1} parent=11 // pred_fallthru
          _
        // Predicated region
        $region61: #{_fuse_module_forward_impl.1} parent=11 // pred_check
          %p354 = pneg %p234
        $region62: #{_fuse_module_forward_impl.1} parent=11 // pred_check_branch
          %356 = sbr.rel (%p354) target = $region64
        $region63: #{_fuse_module_forward_impl.1} parent=11 // pred_region
          _
        $region64: #{_fuse_module_forward_impl.1} parent=11 // pred_fallthru
          _
        // Predicated region
        $region65: #{_fuse_module_forward_impl.1} parent=11 // pred_check
          %p357 = pneg %p248
        $region66: #{_fuse_module_forward_impl.1} parent=11 // pred_check_branch
          %359 = sbr.rel (%p357) target = $region68
        $region67: #{_fuse_module_forward_impl.1} parent=11 // pred_region
          _
        $region68: #{_fuse_module_forward_impl.1} parent=11 // pred_fallthru
          _
        // Predicated region
        $region69: #{_fuse_module_forward_impl.1} parent=11 // pred_check
          %p360 = pneg %p262
        $region70: #{_fuse_module_forward_impl.1} parent=11 // pred_check_branch
          %362 = sbr.rel (%p360) target = $region72
        $region71: #{_fuse_module_forward_impl.1} parent=11 // pred_region
          _
        $region72: #{_fuse_module_forward_impl.1} parent=11 // pred_fallthru
          _
        // Predicated region
        $region73: #{_fuse_module_forward_impl.1} parent=11 // pred_check
          %p363 = pneg %p276
        $region74: #{_fuse_module_forward_impl.1} parent=11 // pred_check_branch
          %365 = sbr.rel (%p363) target = $region76
        $region75: #{_fuse_module_forward_impl.1} parent=11 // pred_region
          _
        $region76: #{_fuse_module_forward_impl.1} parent=11 // pred_fallthru
          _
        // Predicated region
        $region77: #{_fuse_module_forward_impl.1} parent=11 // pred_check
          %p366 = pneg %p290
        $region78: #{_fuse_module_forward_impl.1} parent=11 // pred_check_branch
          %368 = sbr.rel (%p366) target = $region80
        $region79: #{_fuse_module_forward_impl.1} parent=11 // pred_region
          _
        $region80: #{_fuse_module_forward_impl.1} parent=11 // pred_fallthru
          _
        // Predicated region
        $region81: #{_fuse_module_forward_impl.1} parent=11 // pred_check
          %p369 = pneg %p304
        $region82: #{_fuse_module_forward_impl.1} parent=11 // pred_check_branch
          %371 = sbr.rel (%p369) target = $region84
        $region83: #{_fuse_module_forward_impl.1} parent=11 // pred_region
          _
        $region84: #{_fuse_module_forward_impl.1} parent=11 // pred_fallthru
          _
      $region12: #{_fuse_module_forward_impl.1} parent=5 // pred_fallthru
        _
      %p372 = scmp.lt.s32.totalorder %s27, 2
      // Predicated region
      $region85: #{_fuse_module_forward_impl.1} parent=5 // pred_check
        %p373 = pneg %p372
      $region86: #{_fuse_module_forward_impl.1} parent=5 // pred_check_branch
        %375 = sbr.rel (%p373) target = $region88
      $region87: #{_fuse_module_forward_impl.1} parent=5 // pred_region
        // Predicated region
        $region89: #{_fuse_module_forward_impl.1} parent=87 // pred_check
          %p376 = pneg %p59
        $region90: #{_fuse_module_forward_impl.1} parent=87 // pred_check_branch
          %378 = sbr.rel (%p376) target = $region92
        $region91: #{_fuse_module_forward_impl.1} parent=87 // pred_region
          %p379 = scmp.lt.s32.totalorder %s27, 1
          %s380 = scalar_select %p379, %s27, 1
          %s381 = smul.addr %s380, 8
          %s382 = scalar_lea.vmem %s2, %s381
        $region92: #{_fuse_module_forward_impl.1} parent=87 // pred_fallthru
          _
      $region88: #{_fuse_module_forward_impl.1} parent=5 // pred_fallthru
        _
      %p383 = scmp.le.s32.totalorder 1, %s27
      // Predicated region
      $region93: #{_fuse_module_forward_impl.1} parent=5 // pred_check
        %p384 = pneg %p383
      $region94: #{_fuse_module_forward_impl.1} parent=5 // pred_check_branch
        %386 = sbr.rel (%p384) target = $region96
      $region95: #{_fuse_module_forward_impl.1} parent=5 // pred_region
        %s387 = ssub.s32 %s27, 1
        // Predicated region
        $region97: #{_fuse_module_forward_impl.1} parent=95 // pred_check
          %p388 = pneg %p47
        $region98: #{_fuse_module_forward_impl.1} parent=95 // pred_check_branch
          %390 = sbr.rel (%p388) target = $region100
        $region99: #{_fuse_module_forward_impl.1} parent=95 // pred_region
          %391 = dma.done [#allocation7], 16
        $region100: #{_fuse_module_forward_impl.1} parent=95 // pred_fallthru
          _
        %392 = sfence
        %p393 = pneg %p47
        %p394 = pneg %p43
        %p395 = scmp.lt.s32.totalorder %s32, 1
        %s396 = scalar_select %p395, %s32, 1
        %s397 = smul.addr %s396, 8
        %s398 = scalar_lea.vmem %s2, %s397
        %p399 = pneg %p66
        %p400 = pneg %p62
        %p401 = pneg %p80
        %p402 = pneg %p76
        %p403 = pneg %p94
        %p404 = pneg %p90
        %p405 = pneg %p108
        %p406 = pneg %p104
        %p407 = pneg %p122
        %p408 = pneg %p118
        %p409 = pneg %p136
        %p410 = pneg %p132
        %p411 = pneg %p150
        %p412 = pneg %p146
        %p413 = pneg %p164
        %p414 = pneg %p160
        %p415 = pneg %p178
        %p416 = pneg %p174
        %p417 = pneg %p192
        %p418 = pneg %p188
        %p419 = pneg %p206
        %p420 = pneg %p202
        %p421 = pneg %p220
        %p422 = pneg %p216
        %p423 = pneg %p234
        %p424 = pneg %p230
        %p425 = pneg %p248
        %p426 = pneg %p244
        %p427 = pneg %p262
        %p428 = pneg %p258
        %p429 = pneg %p276
        %p430 = pneg %p272
        %p431 = pneg %p290
        %p432 = pneg %p286
        %p433 = pneg %p304
        %p434 = pneg %p300
        %p435 = scmp.lt.s32.totalorder %s32, 1
        %s436 = scalar_select %p435, %s32, 1
        %s437 = smul.addr %s436, 8
        %s438 = scalar_lea.vmem %s2, %s437
        %s440 = smul.u32 %s32, 8
        %s441 = sld [smem:[#allocation6 + %s440]]
        %s442 = sadd.s32 %s440, 1
        %s443 = sld [smem:[#allocation6 + %s442]]
        %s444 = sadd.s32 %s440, 2
        %s445 = sld [smem:[#allocation6 + %s444]]
        %s446 = sadd.s32 %s440, 3
        %s447 = sld [smem:[#allocation6 + %s446]]
        %s448 = sadd.s32 %s440, 4
        %s449 = sld [smem:[#allocation6 + %s448]]
        %s450 = sadd.s32 %s440, 5
        %s451 = sld [smem:[#allocation6 + %s450]]
        %s452 = sadd.s32 %s440, 6
        %s453 = sld [smem:[#allocation6 + %s452]]
        %s454 = sadd.s32 %s440, 7
        %s455 = sld [smem:[#allocation6 + %s454]]
        %p456 = scmp.gt.s32.totalorder %s441, 0
        %s457 = scalar_select %p456, %s441, 0
        %p458 = scmp.gt.s32.totalorder %s443, 0
        %s459 = scalar_select %p458, %s443, 0
        %p460 = scmp.gt.s32.totalorder %s445, 0
        %s461 = scalar_select %p460, %s445, 0
        %p462 = scmp.gt.s32.totalorder %s447, 0
        %s463 = scalar_select %p462, %s447, 0
        %p464 = scmp.gt.s32.totalorder %s449, 0
        %s465 = scalar_select %p464, %s449, 0
        %p466 = scmp.gt.s32.totalorder %s451, 0
        %s467 = scalar_select %p466, %s451, 0
        %p468 = scmp.gt.s32.totalorder %s453, 0
        %s469 = scalar_select %p468, %s453, 0
        %p470 = scmp.gt.s32.totalorder %s455, 0
        %s471 = scalar_select %p470, %s455, 0
        %s472 = scalar_lea.vmem %s1, %s457
        %p474 = scmp.lt.u32.totalorder 1, 8
        %p475 = pneg %p474
        // Predicated region
        $region101: #{_fuse_module_forward_impl.1} parent=95 // pred_check
          _
        $region102: #{_fuse_module_forward_impl.1} parent=95 // pred_check_branch
          %477 = sbr.rel (%p474) target = $region104
        $region103: #{_fuse_module_forward_impl.1} parent=95 // pred_region
          %s492 = sand.u32 1, 7
          %p493 = scmp.eq.s32.totalorder %s492, 0
          %p494 = pneg %p493
          // Predicated region
          $region116: #{_fuse_module_forward_impl.1} parent=103 // pred_check
            _
          $region117: #{_fuse_module_forward_impl.1} parent=103 // pred_check_branch
            %496 = sbr.rel (%p493) target = $region119
          $region118: #{_fuse_module_forward_impl.1} parent=103 // pred_region
            %s497 = sand.u32 1, 7
            %s498 = ssub.s32 1, %s497
            %s499 = scalar_lea.vmem %s472, %s498
            %s500 = ssub.s32 1, %s497
            %s501 = scalar_lea.vmem [#allocation2], %s500
            %s502 = sshllo.u32 0, %s497
            loop: start=0, step=1, limit=1
            $region120: #{_fuse_module_forward_impl.1} parent=118 // loop_pre_header
              _
            $region121: #{_fuse_module_forward_impl.1} parent=118 // loop_header
              %s504 = sphi 0, %s508
              %p505 = scmp.ge.s32.totalorder %s504, 1
              %s509 = sphi %s499, %s499
              %s510 = sphi %s501, %s501
            $region122: #{_fuse_module_forward_impl.1} parent=118 // loop_header_branch
              %507 = sbr.rel (%p505) target = $region126
            $region123: #{_fuse_module_forward_impl.1} parent=118 // loop_body
              %v511 = vld [vmem:[%s509] sm:%s502]
              %512 = vst [vmem:[%s510] sm:%s502] %v511
            $region124: #{_fuse_module_forward_impl.1} parent=118 // loop_footer
              %s508 = sadd.s32 1, %s504
            $region125: #{_fuse_module_forward_impl.1} parent=118 // loop_footer_branch
              %503 = sbr.rel target = $region121
            $region126: #{_fuse_module_forward_impl.1} parent=118 // loop_exit
              _
          $region119: #{_fuse_module_forward_impl.1} parent=103 // pred_fallthru
            _
        $region104: #{_fuse_module_forward_impl.1} parent=95 // pred_fallthru
          _
        // Predicated region
        $region105: #{_fuse_module_forward_impl.1} parent=95 // pred_check
          %p478 = pneg %p474
        $region106: #{_fuse_module_forward_impl.1} parent=95 // pred_check_branch
          %480 = sbr.rel (%p478) target = $region108
        $region107: #{_fuse_module_forward_impl.1} parent=95 // pred_region
          %s481 = sshllo.u32 0, 1
          loop: start=0, step=1, limit=1
          $region109: #{_fuse_module_forward_impl.1} parent=107 // loop_pre_header
            _
          $region110: #{_fuse_module_forward_impl.1} parent=107 // loop_header
            %s483 = sphi 0, %s487
            %p484 = scmp.ge.s32.totalorder %s483, 1
            %s488 = sphi %s472, %s472
            %s489 = sphi [#allocation2], [#allocation2]
          $region111: #{_fuse_module_forward_impl.1} parent=107 // loop_header_branch
            %486 = sbr.rel (%p484) target = $region115
          $region112: #{_fuse_module_forward_impl.1} parent=107 // loop_body
            %v490 = vld [vmem:[%s488] sm:%s481]
            %491 = vst [vmem:[%s489] sm:%s481] %v490
          $region113: #{_fuse_module_forward_impl.1} parent=107 // loop_footer
            %s487 = sadd.s32 1, %s483
          $region114: #{_fuse_module_forward_impl.1} parent=107 // loop_footer_branch
            %482 = sbr.rel target = $region110
          $region115: #{_fuse_module_forward_impl.1} parent=107 // loop_exit
            _
        $region108: #{_fuse_module_forward_impl.1} parent=95 // pred_fallthru
          _
        // Predicated region
        $region127: #{_fuse_module_forward_impl.1} parent=95 // pred_check
          _
        $region128: #{_fuse_module_forward_impl.1} parent=95 // pred_check_branch
          %515 = sbr.rel (0) target = $region130
        $region129: #{_fuse_module_forward_impl.1} parent=95 // pred_region
          %516 = vsyncadd [#allocation4], 16
        $region130: #{_fuse_module_forward_impl.1} parent=95 // pred_fallthru
          _
        %s517 = scalar_lea.vmem %s1, %s459
        %s518 = scalar_lea.vmem [#allocation2], 1
        %s519 = scalar_lea.sflag [#allocation4], 1
        %p521 = scmp.lt.u32.totalorder 1, 8
        %p522 = pneg %p521
        // Predicated region
        $region131: #{_fuse_module_forward_impl.1} parent=95 // pred_check
          _
        $region132: #{_fuse_module_forward_impl.1} parent=95 // pred_check_branch
          %524 = sbr.rel (%p521) target = $region134
        $region133: #{_fuse_module_forward_impl.1} parent=95 // pred_region
          %s539 = sand.u32 1, 7
          %p540 = scmp.eq.s32.totalorder %s539, 0
          %p541 = pneg %p540
          // Predicated region
          $region146: #{_fuse_module_forward_impl.1} parent=133 // pred_check
            _
          $region147: #{_fuse_module_forward_impl.1} parent=133 // pred_check_branch
            %543 = sbr.rel (%p540) target = $region149
          $region148: #{_fuse_module_forward_impl.1} parent=133 // pred_region
            %s544 = sand.u32 1, 7
            %s545 = ssub.s32 1, %s544
            %s546 = scalar_lea.vmem %s517, %s545
            %s547 = ssub.s32 1, %s544
            %s548 = scalar_lea.vmem %s518, %s547 [#allocation2]
            %s549 = sshllo.u32 0, %s544
            loop: start=0, step=1, limit=1
            $region150: #{_fuse_module_forward_impl.1} parent=148 // loop_pre_header
              _
            $region151: #{_fuse_module_forward_impl.1} parent=148 // loop_header
              %s551 = sphi 0, %s555
              %p552 = scmp.ge.s32.totalorder %s551, 1
              %s556 = sphi %s546, %s546
              %s557 = sphi %s548, %s548
            $region152: #{_fuse_module_forward_impl.1} parent=148 // loop_header_branch
              %554 = sbr.rel (%p552) target = $region156
            $region153: #{_fuse_module_forward_impl.1} parent=148 // loop_body
              %v558 = vld [vmem:[%s556] sm:%s549]
              %559 = vst [vmem:[%s557] sm:%s549] %v558
            $region154: #{_fuse_module_forward_impl.1} parent=148 // loop_footer
              %s555 = sadd.s32 1, %s551
            $region155: #{_fuse_module_forward_impl.1} parent=148 // loop_footer_branch
              %550 = sbr.rel target = $region151
            $region156: #{_fuse_module_forward_impl.1} parent=148 // loop_exit
              _
          $region149: #{_fuse_module_forward_impl.1} parent=133 // pred_fallthru
            _
        $region134: #{_fuse_module_forward_impl.1} parent=95 // pred_fallthru
          _
        // Predicated region
        $region135: #{_fuse_module_forward_impl.1} parent=95 // pred_check
          %p525 = pneg %p521
        $region136: #{_fuse_module_forward_impl.1} parent=95 // pred_check_branch
          %527 = sbr.rel (%p525) target = $region138
        $region137: #{_fuse_module_forward_impl.1} parent=95 // pred_region
          %s528 = sshllo.u32 0, 1
          loop: start=0, step=1, limit=1
          $region139: #{_fuse_module_forward_impl.1} parent=137 // loop_pre_header
            _
          $region140: #{_fuse_module_forward_impl.1} parent=137 // loop_header
            %s530 = sphi 0, %s534
            %p531 = scmp.ge.s32.totalorder %s530, 1
            %s535 = sphi %s517, %s517
            %s536 = sphi %s518, %s518
          $region141: #{_fuse_module_forward_impl.1} parent=137 // loop_header_branch
            %533 = sbr.rel (%p531) target = $region145
          $region142: #{_fuse_module_forward_impl.1} parent=137 // loop_body
            %v537 = vld [vmem:[%s535] sm:%s528]
            %538 = vst [vmem:[%s536] sm:%s528] %v537
          $region143: #{_fuse_module_forward_impl.1} parent=137 // loop_footer
            %s534 = sadd.s32 1, %s530
          $region144: #{_fuse_module_forward_impl.1} parent=137 // loop_footer_branch
            %529 = sbr.rel target = $region140
          $region145: #{_fuse_module_forward_impl.1} parent=137 // loop_exit
            _
        $region138: #{_fuse_module_forward_impl.1} parent=95 // pred_fallthru
          _
        // Predicated region
        $region157: #{_fuse_module_forward_impl.1} parent=95 // pred_check
          _
        $region158: #{_fuse_module_forward_impl.1} parent=95 // pred_check_branch
          %562 = sbr.rel (0) target = $region160
        $region159: #{_fuse_module_forward_impl.1} parent=95 // pred_region
          %563 = vsyncadd %s519, 16
        $region160: #{_fuse_module_forward_impl.1} parent=95 // pred_fallthru
          _
        %s564 = scalar_lea.vmem %s1, %s461
        %s565 = scalar_lea.vmem [#allocation2], 2
        %s566 = scalar_lea.sflag [#allocation4], 2
        %p568 = scmp.lt.u32.totalorder 1, 8
        %p569 = pneg %p568
        // Predicated region
        $region161: #{_fuse_module_forward_impl.1} parent=95 // pred_check
          _
        $region162: #{_fuse_module_forward_impl.1} parent=95 // pred_check_branch
          %571 = sbr.rel (%p568) target = $region164
        $region163: #{_fuse_module_forward_impl.1} parent=95 // pred_region
          %s586 = sand.u32 1, 7
          %p587 = scmp.eq.s32.totalorder %s586, 0
          %p588 = pneg %p587
          // Predicated region
          $region176: #{_fuse_module_forward_impl.1} parent=163 // pred_check
            _
          $region177: #{_fuse_module_forward_impl.1} parent=163 // pred_check_branch
            %590 = sbr.rel (%p587) target = $region179
          $region178: #{_fuse_module_forward_impl.1} parent=163 // pred_region
            %s591 = sand.u32 1, 7
            %s592 = ssub.s32 1, %s591
            %s593 = scalar_lea.vmem %s564, %s592
            %s594 = ssub.s32 1, %s591
            %s595 = scalar_lea.vmem %s565, %s594 [#allocation2]
            %s596 = sshllo.u32 0, %s591
            loop: start=0, step=1, limit=1
            $region180: #{_fuse_module_forward_impl.1} parent=178 // loop_pre_header
              _
            $region181: #{_fuse_module_forward_impl.1} parent=178 // loop_header
              %s598 = sphi 0, %s602
              %p599 = scmp.ge.s32.totalorder %s598, 1
              %s603 = sphi %s593, %s593
              %s604 = sphi %s595, %s595
            $region182: #{_fuse_module_forward_impl.1} parent=178 // loop_header_branch
              %601 = sbr.rel (%p599) target = $region186
            $region183: #{_fuse_module_forward_impl.1} parent=178 // loop_body
              %v605 = vld [vmem:[%s603] sm:%s596]
              %606 = vst [vmem:[%s604] sm:%s596] %v605
            $region184: #{_fuse_module_forward_impl.1} parent=178 // loop_footer
              %s602 = sadd.s32 1, %s598
            $region185: #{_fuse_module_forward_impl.1} parent=178 // loop_footer_branch
              %597 = sbr.rel target = $region181
            $region186: #{_fuse_module_forward_impl.1} parent=178 // loop_exit
              _
          $region179: #{_fuse_module_forward_impl.1} parent=163 // pred_fallthru
            _
        $region164: #{_fuse_module_forward_impl.1} parent=95 // pred_fallthru
          _
        // Predicated region
        $region165: #{_fuse_module_forward_impl.1} parent=95 // pred_check
          %p572 = pneg %p568
        $region166: #{_fuse_module_forward_impl.1} parent=95 // pred_check_branch
          %574 = sbr.rel (%p572) target = $region168
        $region167: #{_fuse_module_forward_impl.1} parent=95 // pred_region
          %s575 = sshllo.u32 0, 1
          loop: start=0, step=1, limit=1
          $region169: #{_fuse_module_forward_impl.1} parent=167 // loop_pre_header
            _
          $region170: #{_fuse_module_forward_impl.1} parent=167 // loop_header
            %s577 = sphi 0, %s581
            %p578 = scmp.ge.s32.totalorder %s577, 1
            %s582 = sphi %s564, %s564
            %s583 = sphi %s565, %s565
          $region171: #{_fuse_module_forward_impl.1} parent=167 // loop_header_branch
            %580 = sbr.rel (%p578) target = $region175
          $region172: #{_fuse_module_forward_impl.1} parent=167 // loop_body
            %v584 = vld [vmem:[%s582] sm:%s575]
            %585 = vst [vmem:[%s583] sm:%s575] %v584
          $region173: #{_fuse_module_forward_impl.1} parent=167 // loop_footer
            %s581 = sadd.s32 1, %s577
          $region174: #{_fuse_module_forward_impl.1} parent=167 // loop_footer_branch
            %576 = sbr.rel target = $region170
          $region175: #{_fuse_module_forward_impl.1} parent=167 // loop_exit
            _
        $region168: #{_fuse_module_forward_impl.1} parent=95 // pred_fallthru
          _
        // Predicated region
        $region187: #{_fuse_module_forward_impl.1} parent=95 // pred_check
          _
        $region188: #{_fuse_module_forward_impl.1} parent=95 // pred_check_branch
          %609 = sbr.rel (0) target = $region190
        $region189: #{_fuse_module_forward_impl.1} parent=95 // pred_region
          %610 = vsyncadd %s566, 16
        $region190: #{_fuse_module_forward_impl.1} parent=95 // pred_fallthru
          _
        %s611 = scalar_lea.vmem %s1, %s463
        %s612 = scalar_lea.vmem [#allocation2], 3
        %s613 = scalar_lea.sflag [#allocation4], 3
        %p615 = scmp.lt.u32.totalorder 1, 8
        %p616 = pneg %p615
        // Predicated region
        $region191: #{_fuse_module_forward_impl.1} parent=95 // pred_check
          _
        $region192: #{_fuse_module_forward_impl.1} parent=95 // pred_check_branch
          %618 = sbr.rel (%p615) target = $region194
        $region193: #{_fuse_module_forward_impl.1} parent=95 // pred_region
          %s633 = sand.u32 1, 7
          %p634 = scmp.eq.s32.totalorder %s633, 0
          %p635 = pneg %p634
          // Predicated region
          $region206: #{_fuse_module_forward_impl.1} parent=193 // pred_check
            _
          $region207: #{_fuse_module_forward_impl.1} parent=193 // pred_check_branch
            %637 = sbr.rel (%p634) target = $region209
          $region208: #{_fuse_module_forward_impl.1} parent=193 // pred_region
            %s638 = sand.u32 1, 7
            %s639 = ssub.s32 1, %s638
            %s640 = scalar_lea.vmem %s611, %s639
            %s641 = ssub.s32 1, %s638
            %s642 = scalar_lea.vmem %s612, %s641 [#allocation2]
            %s643 = sshllo.u32 0, %s638
            loop: start=0, step=1, limit=1
            $region210: #{_fuse_module_forward_impl.1} parent=208 // loop_pre_header
              _
            $region211: #{_fuse_module_forward_impl.1} parent=208 // loop_header
              %s645 = sphi 0, %s649
              %p646 = scmp.ge.s32.totalorder %s645, 1
              %s650 = sphi %s640, %s640
              %s651 = sphi %s642, %s642
            $region212: #{_fuse_module_forward_impl.1} parent=208 // loop_header_branch
              %648 = sbr.rel (%p646) target = $region216
            $region213: #{_fuse_module_forward_impl.1} parent=208 // loop_body
              %v652 = vld [vmem:[%s650] sm:%s643]
              %653 = vst [vmem:[%s651] sm:%s643] %v652
            $region214: #{_fuse_module_forward_impl.1} parent=208 // loop_footer
              %s649 = sadd.s32 1, %s645
            $region215: #{_fuse_module_forward_impl.1} parent=208 // loop_footer_branch
              %644 = sbr.rel target = $region211
            $region216: #{_fuse_module_forward_impl.1} parent=208 // loop_exit
              _
          $region209: #{_fuse_module_forward_impl.1} parent=193 // pred_fallthru
            _
        $region194: #{_fuse_module_forward_impl.1} parent=95 // pred_fallthru
          _
        // Predicated region
        $region195: #{_fuse_module_forward_impl.1} parent=95 // pred_check
          %p619 = pneg %p615
        $region196: #{_fuse_module_forward_impl.1} parent=95 // pred_check_branch
          %621 = sbr.rel (%p619) target = $region198
        $region197: #{_fuse_module_forward_impl.1} parent=95 // pred_region
          %s622 = sshllo.u32 0, 1
          loop: start=0, step=1, limit=1
          $region199: #{_fuse_module_forward_impl.1} parent=197 // loop_pre_header
            _
          $region200: #{_fuse_module_forward_impl.1} parent=197 // loop_header
            %s624 = sphi 0, %s628
            %p625 = scmp.ge.s32.totalorder %s624, 1
            %s629 = sphi %s611, %s611
            %s630 = sphi %s612, %s612
          $region201: #{_fuse_module_forward_impl.1} parent=197 // loop_header_branch
            %627 = sbr.rel (%p625) target = $region205
          $region202: #{_fuse_module_forward_impl.1} parent=197 // loop_body
            %v631 = vld [vmem:[%s629] sm:%s622]
            %632 = vst [vmem:[%s630] sm:%s622] %v631
          $region203: #{_fuse_module_forward_impl.1} parent=197 // loop_footer
            %s628 = sadd.s32 1, %s624
          $region204: #{_fuse_module_forward_impl.1} parent=197 // loop_footer_branch
            %623 = sbr.rel target = $region200
          $region205: #{_fuse_module_forward_impl.1} parent=197 // loop_exit
            _
        $region198: #{_fuse_module_forward_impl.1} parent=95 // pred_fallthru
          _
        // Predicated region
        $region217: #{_fuse_module_forward_impl.1} parent=95 // pred_check
          _
        $region218: #{_fuse_module_forward_impl.1} parent=95 // pred_check_branch
          %656 = sbr.rel (0) target = $region220
        $region219: #{_fuse_module_forward_impl.1} parent=95 // pred_region
          %657 = vsyncadd %s613, 16
        $region220: #{_fuse_module_forward_impl.1} parent=95 // pred_fallthru
          _
        %s658 = scalar_lea.vmem %s1, %s465
        %s659 = scalar_lea.vmem [#allocation2], 4
        %s660 = scalar_lea.sflag [#allocation4], 4
        %p662 = scmp.lt.u32.totalorder 1, 8
        %p663 = pneg %p662
        // Predicated region
        $region221: #{_fuse_module_forward_impl.1} parent=95 // pred_check
          _
        $region222: #{_fuse_module_forward_impl.1} parent=95 // pred_check_branch
          %665 = sbr.rel (%p662) target = $region224
        $region223: #{_fuse_module_forward_impl.1} parent=95 // pred_region
          %s680 = sand.u32 1, 7
          %p681 = scmp.eq.s32.totalorder %s680, 0
          %p682 = pneg %p681
          // Predicated region
          $region236: #{_fuse_module_forward_impl.1} parent=223 // pred_check
            _
          $region237: #{_fuse_module_forward_impl.1} parent=223 // pred_check_branch
            %684 = sbr.rel (%p681) target = $region239
          $region238: #{_fuse_module_forward_impl.1} parent=223 // pred_region
            %s685 = sand.u32 1, 7
            %s686 = ssub.s32 1, %s685
            %s687 = scalar_lea.vmem %s658, %s686
            %s688 = ssub.s32 1, %s685
            %s689 = scalar_lea.vmem %s659, %s688 [#allocation2]
            %s690 = sshllo.u32 0, %s685
            loop: start=0, step=1, limit=1
            $region240: #{_fuse_module_forward_impl.1} parent=238 // loop_pre_header
              _
            $region241: #{_fuse_module_forward_impl.1} parent=238 // loop_header
              %s692 = sphi 0, %s696
              %p693 = scmp.ge.s32.totalorder %s692, 1
              %s697 = sphi %s687, %s687
              %s698 = sphi %s689, %s689
            $region242: #{_fuse_module_forward_impl.1} parent=238 // loop_header_branch
              %695 = sbr.rel (%p693) target = $region246
            $region243: #{_fuse_module_forward_impl.1} parent=238 // loop_body
              %v699 = vld [vmem:[%s697] sm:%s690]
              %700 = vst [vmem:[%s698] sm:%s690] %v699
            $region244: #{_fuse_module_forward_impl.1} parent=238 // loop_footer
              %s696 = sadd.s32 1, %s692
            $region245: #{_fuse_module_forward_impl.1} parent=238 // loop_footer_branch
              %691 = sbr.rel target = $region241
            $region246: #{_fuse_module_forward_impl.1} parent=238 // loop_exit
              _
          $region239: #{_fuse_module_forward_impl.1} parent=223 // pred_fallthru
            _
        $region224: #{_fuse_module_forward_impl.1} parent=95 // pred_fallthru
          _
        // Predicated region
        $region225: #{_fuse_module_forward_impl.1} parent=95 // pred_check
          %p666 = pneg %p662
        $region226: #{_fuse_module_forward_impl.1} parent=95 // pred_check_branch
          %668 = sbr.rel (%p666) target = $region228
        $region227: #{_fuse_module_forward_impl.1} parent=95 // pred_region
          %s669 = sshllo.u32 0, 1
          loop: start=0, step=1, limit=1
          $region229: #{_fuse_module_forward_impl.1} parent=227 // loop_pre_header
            _
          $region230: #{_fuse_module_forward_impl.1} parent=227 // loop_header
            %s671 = sphi 0, %s675
            %p672 = scmp.ge.s32.totalorder %s671, 1
            %s676 = sphi %s658, %s658
            %s677 = sphi %s659, %s659
          $region231: #{_fuse_module_forward_impl.1} parent=227 // loop_header_branch
            %674 = sbr.rel (%p672) target = $region235
          $region232: #{_fuse_module_forward_impl.1} parent=227 // loop_body
            %v678 = vld [vmem:[%s676] sm:%s669]
            %679 = vst [vmem:[%s677] sm:%s669] %v678
          $region233: #{_fuse_module_forward_impl.1} parent=227 // loop_footer
            %s675 = sadd.s32 1, %s671
          $region234: #{_fuse_module_forward_impl.1} parent=227 // loop_footer_branch
            %670 = sbr.rel target = $region230
          $region235: #{_fuse_module_forward_impl.1} parent=227 // loop_exit
            _
        $region228: #{_fuse_module_forward_impl.1} parent=95 // pred_fallthru
          _
        // Predicated region
        $region247: #{_fuse_module_forward_impl.1} parent=95 // pred_check
          _
        $region248: #{_fuse_module_forward_impl.1} parent=95 // pred_check_branch
          %703 = sbr.rel (0) target = $region250
        $region249: #{_fuse_module_forward_impl.1} parent=95 // pred_region
          %704 = vsyncadd %s660, 16
        $region250: #{_fuse_module_forward_impl.1} parent=95 // pred_fallthru
          _
        %s705 = scalar_lea.vmem %s1, %s467
        %s706 = scalar_lea.vmem [#allocation2], 5
        %s707 = scalar_lea.sflag [#allocation4], 5
        %p709 = scmp.lt.u32.totalorder 1, 8
        %p710 = pneg %p709
        // Predicated region
        $region251: #{_fuse_module_forward_impl.1} parent=95 // pred_check
          _
        $region252: #{_fuse_module_forward_impl.1} parent=95 // pred_check_branch
          %712 = sbr.rel (%p709) target = $region254
        $region253: #{_fuse_module_forward_impl.1} parent=95 // pred_region
          %s727 = sand.u32 1, 7
          %p728 = scmp.eq.s32.totalorder %s727, 0
          %p729 = pneg %p728
          // Predicated region
          $region266: #{_fuse_module_forward_impl.1} parent=253 // pred_check
            _
          $region267: #{_fuse_module_forward_impl.1} parent=253 // pred_check_branch
            %731 = sbr.rel (%p728) target = $region269
          $region268: #{_fuse_module_forward_impl.1} parent=253 // pred_region
            %s732 = sand.u32 1, 7
            %s733 = ssub.s32 1, %s732
            %s734 = scalar_lea.vmem %s705, %s733
            %s735 = ssub.s32 1, %s732
            %s736 = scalar_lea.vmem %s706, %s735 [#allocation2]
            %s737 = sshllo.u32 0, %s732
            loop: start=0, step=1, limit=1
            $region270: #{_fuse_module_forward_impl.1} parent=268 // loop_pre_header
              _
            $region271: #{_fuse_module_forward_impl.1} parent=268 // loop_header
              %s739 = sphi 0, %s743
              %p740 = scmp.ge.s32.totalorder %s739, 1
              %s744 = sphi %s734, %s734
              %s745 = sphi %s736, %s736
            $region272: #{_fuse_module_forward_impl.1} parent=268 // loop_header_branch
              %742 = sbr.rel (%p740) target = $region276
            $region273: #{_fuse_module_forward_impl.1} parent=268 // loop_body
              %v746 = vld [vmem:[%s744] sm:%s737]
              %747 = vst [vmem:[%s745] sm:%s737] %v746
            $region274: #{_fuse_module_forward_impl.1} parent=268 // loop_footer
              %s743 = sadd.s32 1, %s739
            $region275: #{_fuse_module_forward_impl.1} parent=268 // loop_footer_branch
              %738 = sbr.rel target = $region271
            $region276: #{_fuse_module_forward_impl.1} parent=268 // loop_exit
              _
          $region269: #{_fuse_module_forward_impl.1} parent=253 // pred_fallthru
            _
        $region254: #{_fuse_module_forward_impl.1} parent=95 // pred_fallthru
          _
        // Predicated region
        $region255: #{_fuse_module_forward_impl.1} parent=95 // pred_check
          %p713 = pneg %p709
        $region256: #{_fuse_module_forward_impl.1} parent=95 // pred_check_branch
          %715 = sbr.rel (%p713) target = $region258
        $region257: #{_fuse_module_forward_impl.1} parent=95 // pred_region
          %s716 = sshllo.u32 0, 1
          loop: start=0, step=1, limit=1
          $region259: #{_fuse_module_forward_impl.1} parent=257 // loop_pre_header
            _
          $region260: #{_fuse_module_forward_impl.1} parent=257 // loop_header
            %s718 = sphi 0, %s722
            %p719 = scmp.ge.s32.totalorder %s718, 1
            %s723 = sphi %s705, %s705
            %s724 = sphi %s706, %s706
          $region261: #{_fuse_module_forward_impl.1} parent=257 // loop_header_branch
            %721 = sbr.rel (%p719) target = $region265
          $region262: #{_fuse_module_forward_impl.1} parent=257 // loop_body
            %v725 = vld [vmem:[%s723] sm:%s716]
            %726 = vst [vmem:[%s724] sm:%s716] %v725
          $region263: #{_fuse_module_forward_impl.1} parent=257 // loop_footer
            %s722 = sadd.s32 1, %s718
          $region264: #{_fuse_module_forward_impl.1} parent=257 // loop_footer_branch
            %717 = sbr.rel target = $region260
          $region265: #{_fuse_module_forward_impl.1} parent=257 // loop_exit
            _
        $region258: #{_fuse_module_forward_impl.1} parent=95 // pred_fallthru
          _
        // Predicated region
        $region277: #{_fuse_module_forward_impl.1} parent=95 // pred_check
          _
        $region278: #{_fuse_module_forward_impl.1} parent=95 // pred_check_branch
          %750 = sbr.rel (0) target = $region280
        $region279: #{_fuse_module_forward_impl.1} parent=95 // pred_region
          %751 = vsyncadd %s707, 16
        $region280: #{_fuse_module_forward_impl.1} parent=95 // pred_fallthru
          _
        %s752 = scalar_lea.vmem %s1, %s469
        %s753 = scalar_lea.vmem [#allocation2], 6
        %s754 = scalar_lea.sflag [#allocation4], 6
        %p756 = scmp.lt.u32.totalorder 1, 8
        %p757 = pneg %p756
        // Predicated region
        $region281: #{_fuse_module_forward_impl.1} parent=95 // pred_check
          _
        $region282: #{_fuse_module_forward_impl.1} parent=95 // pred_check_branch
          %759 = sbr.rel (%p756) target = $region284
        $region283: #{_fuse_module_forward_impl.1} parent=95 // pred_region
          %s774 = sand.u32 1, 7
          %p775 = scmp.eq.s32.totalorder %s774, 0
          %p776 = pneg %p775
          // Predicated region
          $region296: #{_fuse_module_forward_impl.1} parent=283 // pred_check
            _
          $region297: #{_fuse_module_forward_impl.1} parent=283 // pred_check_branch
            %778 = sbr.rel (%p775) target = $region299
          $region298: #{_fuse_module_forward_impl.1} parent=283 // pred_region
            %s779 = sand.u32 1, 7
            %s780 = ssub.s32 1, %s779
            %s781 = scalar_lea.vmem %s752, %s780
            %s782 = ssub.s32 1, %s779
            %s783 = scalar_lea.vmem %s753, %s782 [#allocation2]
            %s784 = sshllo.u32 0, %s779
            loop: start=0, step=1, limit=1
            $region300: #{_fuse_module_forward_impl.1} parent=298 // loop_pre_header
              _
            $region301: #{_fuse_module_forward_impl.1} parent=298 // loop_header
              %s786 = sphi 0, %s790
              %p787 = scmp.ge.s32.totalorder %s786, 1
              %s791 = sphi %s781, %s781
              %s792 = sphi %s783, %s783
            $region302: #{_fuse_module_forward_impl.1} parent=298 // loop_header_branch
              %789 = sbr.rel (%p787) target = $region306
            $region303: #{_fuse_module_forward_impl.1} parent=298 // loop_body
              %v793 = vld [vmem:[%s791] sm:%s784]
              %794 = vst [vmem:[%s792] sm:%s784] %v793
            $region304: #{_fuse_module_forward_impl.1} parent=298 // loop_footer
              %s790 = sadd.s32 1, %s786
            $region305: #{_fuse_module_forward_impl.1} parent=298 // loop_footer_branch
              %785 = sbr.rel target = $region301
            $region306: #{_fuse_module_forward_impl.1} parent=298 // loop_exit
              _
          $region299: #{_fuse_module_forward_impl.1} parent=283 // pred_fallthru
            _
        $region284: #{_fuse_module_forward_impl.1} parent=95 // pred_fallthru
          _
        // Predicated region
        $region285: #{_fuse_module_forward_impl.1} parent=95 // pred_check
          %p760 = pneg %p756
        $region286: #{_fuse_module_forward_impl.1} parent=95 // pred_check_branch
          %762 = sbr.rel (%p760) target = $region288
        $region287: #{_fuse_module_forward_impl.1} parent=95 // pred_region
          %s763 = sshllo.u32 0, 1
          loop: start=0, step=1, limit=1
          $region289: #{_fuse_module_forward_impl.1} parent=287 // loop_pre_header
            _
          $region290: #{_fuse_module_forward_impl.1} parent=287 // loop_header
            %s765 = sphi 0, %s769
            %p766 = scmp.ge.s32.totalorder %s765, 1
            %s770 = sphi %s752, %s752
            %s771 = sphi %s753, %s753
          $region291: #{_fuse_module_forward_impl.1} parent=287 // loop_header_branch
            %768 = sbr.rel (%p766) target = $region295
          $region292: #{_fuse_module_forward_impl.1} parent=287 // loop_body
            %v772 = vld [vmem:[%s770] sm:%s763]
            %773 = vst [vmem:[%s771] sm:%s763] %v772
          $region293: #{_fuse_module_forward_impl.1} parent=287 // loop_footer
            %s769 = sadd.s32 1, %s765
          $region294: #{_fuse_module_forward_impl.1} parent=287 // loop_footer_branch
            %764 = sbr.rel target = $region290
          $region295: #{_fuse_module_forward_impl.1} parent=287 // loop_exit
            _
        $region288: #{_fuse_module_forward_impl.1} parent=95 // pred_fallthru
          _
        // Predicated region
        $region307: #{_fuse_module_forward_impl.1} parent=95 // pred_check
          _
        $region308: #{_fuse_module_forward_impl.1} parent=95 // pred_check_branch
          %797 = sbr.rel (0) target = $region310
        $region309: #{_fuse_module_forward_impl.1} parent=95 // pred_region
          %798 = vsyncadd %s754, 16
        $region310: #{_fuse_module_forward_impl.1} parent=95 // pred_fallthru
          _
        %s799 = scalar_lea.vmem %s1, %s471
        %s800 = scalar_lea.vmem [#allocation2], 7
        %s801 = scalar_lea.sflag [#allocation4], 7
        %p803 = scmp.lt.u32.totalorder 1, 8
        %p804 = pneg %p803
        // Predicated region
        $region311: #{_fuse_module_forward_impl.1} parent=95 // pred_check
          _
        $region312: #{_fuse_module_forward_impl.1} parent=95 // pred_check_branch
          %806 = sbr.rel (%p803) target = $region314
        $region313: #{_fuse_module_forward_impl.1} parent=95 // pred_region
          %s821 = sand.u32 1, 7
          %p822 = scmp.eq.s32.totalorder %s821, 0
          %p823 = pneg %p822
          // Predicated region
          $region326: #{_fuse_module_forward_impl.1} parent=313 // pred_check
            _
          $region327: #{_fuse_module_forward_impl.1} parent=313 // pred_check_branch
            %825 = sbr.rel (%p822) target = $region329
          $region328: #{_fuse_module_forward_impl.1} parent=313 // pred_region
            %s826 = sand.u32 1, 7
            %s827 = ssub.s32 1, %s826
            %s828 = scalar_lea.vmem %s799, %s827
            %s829 = ssub.s32 1, %s826
            %s830 = scalar_lea.vmem %s800, %s829 [#allocation2]
            %s831 = sshllo.u32 0, %s826
            loop: start=0, step=1, limit=1
            $region330: #{_fuse_module_forward_impl.1} parent=328 // loop_pre_header
              _
            $region331: #{_fuse_module_forward_impl.1} parent=328 // loop_header
              %s833 = sphi 0, %s837
              %p834 = scmp.ge.s32.totalorder %s833, 1
              %s838 = sphi %s828, %s828
              %s839 = sphi %s830, %s830
            $region332: #{_fuse_module_forward_impl.1} parent=328 // loop_header_branch
              %836 = sbr.rel (%p834) target = $region336
            $region333: #{_fuse_module_forward_impl.1} parent=328 // loop_body
              %v840 = vld [vmem:[%s838] sm:%s831]
              %841 = vst [vmem:[%s839] sm:%s831] %v840
            $region334: #{_fuse_module_forward_impl.1} parent=328 // loop_footer
              %s837 = sadd.s32 1, %s833
            $region335: #{_fuse_module_forward_impl.1} parent=328 // loop_footer_branch
              %832 = sbr.rel target = $region331
            $region336: #{_fuse_module_forward_impl.1} parent=328 // loop_exit
              _
          $region329: #{_fuse_module_forward_impl.1} parent=313 // pred_fallthru
            _
        $region314: #{_fuse_module_forward_impl.1} parent=95 // pred_fallthru
          _
        // Predicated region
        $region315: #{_fuse_module_forward_impl.1} parent=95 // pred_check
          %p807 = pneg %p803
        $region316: #{_fuse_module_forward_impl.1} parent=95 // pred_check_branch
          %809 = sbr.rel (%p807) target = $region318
        $region317: #{_fuse_module_forward_impl.1} parent=95 // pred_region
          %s810 = sshllo.u32 0, 1
          loop: start=0, step=1, limit=1
          $region319: #{_fuse_module_forward_impl.1} parent=317 // loop_pre_header
            _
          $region320: #{_fuse_module_forward_impl.1} parent=317 // loop_header
            %s812 = sphi 0, %s816
            %p813 = scmp.ge.s32.totalorder %s812, 1
            %s817 = sphi %s799, %s799
            %s818 = sphi %s800, %s800
          $region321: #{_fuse_module_forward_impl.1} parent=317 // loop_header_branch
            %815 = sbr.rel (%p813) target = $region325
          $region322: #{_fuse_module_forward_impl.1} parent=317 // loop_body
            %v819 = vld [vmem:[%s817] sm:%s810]
            %820 = vst [vmem:[%s818] sm:%s810] %v819
          $region323: #{_fuse_module_forward_impl.1} parent=317 // loop_footer
            %s816 = sadd.s32 1, %s812
          $region324: #{_fuse_module_forward_impl.1} parent=317 // loop_footer_branch
            %811 = sbr.rel target = $region320
          $region325: #{_fuse_module_forward_impl.1} parent=317 // loop_exit
            _
        $region318: #{_fuse_module_forward_impl.1} parent=95 // pred_fallthru
          _
        // Predicated region
        $region337: #{_fuse_module_forward_impl.1} parent=95 // pred_check
          _
        $region338: #{_fuse_module_forward_impl.1} parent=95 // pred_check_branch
          %844 = sbr.rel (0) target = $region340
        $region339: #{_fuse_module_forward_impl.1} parent=95 // pred_region
          %845 = vsyncadd %s801, 16
        $region340: #{_fuse_module_forward_impl.1} parent=95 // pred_fallthru
          _
        %s846 = smul.u32 1, 1
        %s847 = sshll.u32 %s846, 4
        %848 = dma.done [#allocation4], %s847
        %s849 = sshll.u32 %s846, 4
        %850 = dma.done %s519, %s849
        %s851 = sshll.u32 %s846, 4
        %852 = dma.done %s566, %s851
        %s853 = sshll.u32 %s846, 4
        %854 = dma.done %s613, %s853
        %s855 = sshll.u32 %s846, 4
        %856 = dma.done %s660, %s855
        %s857 = sshll.u32 %s846, 4
        %858 = dma.done %s707, %s857
        %s859 = sshll.u32 %s846, 4
        %860 = dma.done %s754, %s859
        %s861 = sshll.u32 %s846, 4
        %862 = dma.done %s801, %s861
        %v863 = vld [vmem:[#allocation2] sm:$0xff]
        %v864 = vld [vmem:[%s438] sm:$0xff]
        %865 = vadd.xlane.f32.xlu0 %v863
        %v866 = vpop.xlane.xlu0 %865
        %867 = vadd.xlane.f32.xlu0 %v864
        %v868 = vpop.xlane.xlu0 %867
        %v869 = vadd.f32 %v866, %v868
        %v870 = vrcp.pop 256.0
        %v871 = vmul.f32 %v869, %v870
        %v872 = vsub.f32 %v863, %v871
        %v873 = vmul.f32 %v872, %v872
        %874 = vadd.xlane.f32.xlu0 %v873
        %v875 = vpop.xlane.xlu0 %874
        %v876 = vsub.f32 %v864, %v871
        %v877 = vmul.f32 %v876, %v876
        %878 = vadd.xlane.f32.xlu0 %v877
        %v879 = vpop.xlane.xlu0 %878
        %v880 = vadd.f32 %v875, %v879
        %v881 = vmul.f32 %v880, %v870
        %v882 = vadd.f32 %v881, 1e-05
        %v883 = vrsqrt.pop %v882
        %v884 = vmul.f32 %v872, %v883
        %v885 = vld [vmem:[%s3] sm:$0x1]
        %v887 = vlaneseq
        %v888 = vshrl.u32 %v887, 7
        %v889 = vsub.s32 0, %v888
        %v890 = vrot.slane %v885, %v889
        %v892 = vmul.f32 %v884, %v890
        %v893 = vld [vmem:[%s5] sm:$0x1]
        %v895 = vlaneseq
        %v896 = vshrl.u32 %v895, 7
        %v897 = vsub.s32 0, %v896
        %v898 = vrot.slane %v893, %v897
        %v900 = vadd.f32 %v892, %v898
        %v901 = vmul.f32 %v876, %v883
        %v902 = vld [vmem:[%s4] sm:$0x1]
        %v904 = vlaneseq
        %v905 = vshrl.u32 %v904, 7
        %v906 = vsub.s32 0, %v905
        %v907 = vrot.slane %v902, %v906
        %v909 = vmul.f32 %v901, %v907
        %v910 = vld [vmem:[%s6] sm:$0x1]
        %v912 = vlaneseq
        %v913 = vshrl.u32 %v912, 7
        %v914 = vsub.s32 0, %v913
        %v915 = vrot.slane %v910, %v914
        %v917 = vadd.f32 %v909, %v915
        %v918 = vld [vmem:[%s7] sm:$0xf]
        %v919 = vld [vmem:[%s7 + $0x4] sm:$0xf]
        %v920 = vld [vmem:[%s7 + $0x8] sm:$0xf]
        %v921 = vld [vmem:[%s7 + $0xc] sm:$0xf]
        %v922 = vld [vmem:[%s7 + $0x10] sm:$0xf]
        %v923 = vld [vmem:[%s7 + $0x14] sm:$0xf]
        %v924 = vld [vmem:[%s7 + $0x18] sm:$0xf]
        %v925 = vld [vmem:[%s7 + $0x1c] sm:$0xf]
        %v926 = vld [vmem:[%s7 + $0x20] sm:$0xf]
        %v927 = vld [vmem:[%s7 + $0x24] sm:$0xf]
        %v928 = vld [vmem:[%s7 + $0x28] sm:$0xf]
        %v929 = vld [vmem:[%s7 + $0x2c] sm:$0xf]
        %v930 = vld [vmem:[%s7 + $0x30] sm:$0xf]
        %v931 = vld [vmem:[%s7 + $0x34] sm:$0xf]
        %v932 = vld [vmem:[%s7 + $0x38] sm:$0xf]
        %v933 = vld [vmem:[%s7 + $0x3c] sm:$0xf]
        %v934 = vpack.c.bf16 %v900, %v900
        %v935 = vld [vmem:[%s8] sm:$0xf]
        %v936 = vld [vmem:[%s8 + $0x4] sm:$0xf]
        %v937 = vld [vmem:[%s8 + $0x8] sm:$0xf]
        %v938 = vld [vmem:[%s8 + $0xc] sm:$0xf]
        %v939 = vld [vmem:[%s8 + $0x10] sm:$0xf]
        %v940 = vld [vmem:[%s8 + $0x14] sm:$0xf]
        %v941 = vld [vmem:[%s8 + $0x18] sm:$0xf]
        %v942 = vld [vmem:[%s8 + $0x1c] sm:$0xf]
        %v943 = vld [vmem:[%s8 + $0x20] sm:$0xf]
        %v944 = vld [vmem:[%s8 + $0x24] sm:$0xf]
        %v945 = vld [vmem:[%s8 + $0x28] sm:$0xf]
        %v946 = vld [vmem:[%s8 + $0x2c] sm:$0xf]
        %v947 = vld [vmem:[%s8 + $0x30] sm:$0xf]
        %v948 = vld [vmem:[%s8 + $0x34] sm:$0xf]
        %v949 = vld [vmem:[%s8 + $0x38] sm:$0xf]
        %v950 = vld [vmem:[%s8 + $0x3c] sm:$0xf]
        %v951 = vpack.c.bf16 %v917, %v917
        %v968 = vunpack.c.l.b16 %v935
        %v969 = vunpack.c.l.b16 %v936
        %v970 = vunpack.c.l.b16 %v937
        %v971 = vunpack.c.l.b16 %v938
        %v972 = vunpack.c.l.b16 %v939
        %v973 = vunpack.c.l.b16 %v940
        %v974 = vunpack.c.l.b16 %v941
        %v975 = vunpack.c.l.b16 %v942
        %v976 = vunpack.c.l.b16 %v943
        %v977 = vunpack.c.l.b16 %v944
        %v978 = vunpack.c.l.b16 %v945
        %v979 = vunpack.c.l.b16 %v946
        %v980 = vunpack.c.l.b16 %v947
        %v981 = vunpack.c.l.b16 %v948
        %v982 = vunpack.c.l.b16 %v949
        %v983 = vunpack.c.l.b16 %v950
        %v984 = vpack.c.b16 %v969, %v968
        %v985 = vpack.c.b16 %v971, %v970
        %v986 = vpack.c.b16 %v973, %v972
        %v987 = vpack.c.b16 %v975, %v974
        %v988 = vpack.c.b16 %v977, %v976
        %v989 = vpack.c.b16 %v979, %v978
        %v990 = vpack.c.b16 %v981, %v980
        %v991 = vpack.c.b16 %v983, %v982
        %1000 = vmatprep.subr.bf16.mxu0 0
        %1001 = vmatpush1.bf16.msra.mxu0 %v984
        %1002 = vmatprep.subr.bf16.mxu0 0
        %1003 = vmatpush1.bf16.msra.mxu0 %v985
        %1004 = vmatprep.subr.bf16.mxu0 0
        %1005 = vmatpush1.bf16.msra.mxu0 %v986
        %1006 = vmatprep.subr.bf16.mxu0 0
        %1007 = vmatpush1.bf16.msra.mxu0 %v987
        %1008 = vmatprep.subr.bf16.mxu0 0
        %1009 = vmatpush1.bf16.msra.mxu0 %v988
        %1010 = vmatprep.subr.bf16.mxu0 0
        %1011 = vmatpush1.bf16.msra.mxu0 %v989
        %1012 = vmatprep.subr.bf16.mxu0 0
        %1013 = vmatpush1.bf16.msra.mxu0 %v990
        %1014 = vmatprep.subr.bf16.mxu0 0
        %1015 = vmatpush1.bf16.msra.mxu0 %v991
        %1016 = vmatprep.subr.bf16.mxu0 0
        %1017 = vmatpush1.bf16.msra.mxu0 0
        %1018 = vmatprep.subr.bf16.mxu0 0
        %1019 = vmatpush1.bf16.msra.mxu0 0
        %1020 = vmatprep.subr.bf16.mxu0 0
        %1021 = vmatpush1.bf16.msra.mxu0 0
        %1022 = vmatprep.subr.bf16.mxu0 0
        %1023 = vmatpush1.bf16.msra.mxu0 0
        %1024 = vmatprep.subr.bf16.mxu0 0
        %1025 = vmatpush1.bf16.msra.mxu0 0
        %1026 = vmatprep.subr.bf16.mxu0 0
        %1027 = vmatpush1.bf16.msra.mxu0 0
        %1028 = vmatprep.subr.bf16.mxu0 0
        %1029 = vmatpush1.bf16.msra.mxu0 0
        %1030 = vmatprep.subr.bf16.mxu0 0
        %1031 = vmatpush1.bf16.msra.mxu0 0
        %1032 = vmatprep.mubr.bf16.mxu0 0
        %1033 = vmatmul.mubr.bf16.gmra.mrb[0].mxu0 %v951
        %v1034 = vpop.f32.mrb[0].mxu0
        %v1035 = vadd.f32 0.0, %v1034
        %v1036 = vpop.f32.mrb[0].mxu0
        %v1037 = vpop.f32.mrb[0].mxu0
        %v1038 = vpop.f32.mrb[0].mxu0
        %1039 = vdwg.mxu0
        %v1056 = vunpack.c.l.b16 %v918
        %v1057 = vunpack.c.l.b16 %v919
        %v1058 = vunpack.c.l.b16 %v920
        %v1059 = vunpack.c.l.b16 %v921
        %v1060 = vunpack.c.l.b16 %v922
        %v1061 = vunpack.c.l.b16 %v923
        %v1062 = vunpack.c.l.b16 %v924
        %v1063 = vunpack.c.l.b16 %v925
        %v1064 = vunpack.c.l.b16 %v926
        %v1065 = vunpack.c.l.b16 %v927
        %v1066 = vunpack.c.l.b16 %v928
        %v1067 = vunpack.c.l.b16 %v929
        %v1068 = vunpack.c.l.b16 %v930
        %v1069 = vunpack.c.l.b16 %v931
        %v1070 = vunpack.c.l.b16 %v932
        %v1071 = vunpack.c.l.b16 %v933
        %v1072 = vpack.c.b16 %v1057, %v1056
        %v1073 = vpack.c.b16 %v1059, %v1058
        %v1074 = vpack.c.b16 %v1061, %v1060
        %v1075 = vpack.c.b16 %v1063, %v1062
        %v1076 = vpack.c.b16 %v1065, %v1064
        %v1077 = vpack.c.b16 %v1067, %v1066
        %v1078 = vpack.c.b16 %v1069, %v1068
        %v1079 = vpack.c.b16 %v1071, %v1070
        %1088 = vmatprep.subr.bf16.mxu0 0
        %1089 = vmatpush1.bf16.msra.mxu0 %v1072
        %1090 = vmatprep.subr.bf16.mxu0 0
        %1091 = vmatpush1.bf16.msra.mxu0 %v1073
        %1092 = vmatprep.subr.bf16.mxu0 0
        %1093 = vmatpush1.bf16.msra.mxu0 %v1074
        %1094 = vmatprep.subr.bf16.mxu0 0
        %1095 = vmatpush1.bf16.msra.mxu0 %v1075
        %1096 = vmatprep.subr.bf16.mxu0 0
        %1097 = vmatpush1.bf16.msra.mxu0 %v1076
        %1098 = vmatprep.subr.bf16.mxu0 0
        %1099 = vmatpush1.bf16.msra.mxu0 %v1077
        %1100 = vmatprep.subr.bf16.mxu0 0
        %1101 = vmatpush1.bf16.msra.mxu0 %v1078
        %1102 = vmatprep.subr.bf16.mxu0 0
        %1103 = vmatpush1.bf16.msra.mxu0 %v1079
        %1104 = vmatprep.subr.bf16.mxu0 0
        %1105 = vmatpush1.bf16.msra.mxu0 0
        %1106 = vmatprep.subr.bf16.mxu0 0
        %1107 = vmatpush1.bf16.msra.mxu0 0
        %1108 = vmatprep.subr.bf16.mxu0 0
        %1109 = vmatpush1.bf16.msra.mxu0 0
        %1110 = vmatprep.subr.bf16.mxu0 0
        %1111 = vmatpush1.bf16.msra.mxu0 0
        %1112 = vmatprep.subr.bf16.mxu0 0
        %1113 = vmatpush1.bf16.msra.mxu0 0
        %1114 = vmatprep.subr.bf16.mxu0 0
        %1115 = vmatpush1.bf16.msra.mxu0 0
        %1116 = vmatprep.subr.bf16.mxu0 0
        %1117 = vmatpush1.bf16.msra.mxu0 0
        %1118 = vmatprep.subr.bf16.mxu0 0
        %1119 = vmatpush1.bf16.msra.mxu0 0
        %1120 = vmatprep.mubr.bf16.mxu0 0
        %1121 = vmatmul.mubr.bf16.gmra.mrb[0].mxu0 %v934
        %v1122 = vpop.f32.mrb[0].mxu0
        %v1123 = vadd.f32 %v1035, %v1122
        %v1124 = vpop.f32.mrb[0].mxu0
        %v1125 = vpop.f32.mrb[0].mxu0
        %v1126 = vpop.f32.mrb[0].mxu0
        %1127 = vdwg.mxu0
        %v1128 = vld [vmem:[%s9] sm:$0x1]
        %v1130 = vlaneseq
        %v1131 = vshrl.u32 %v1130, 7
        %v1132 = vsub.s32 0, %v1131
        %v1133 = vrot.slane %v1128, %v1132
        %v1135 = vadd.f32 %v1123, %v1133
        %v1136 = vmul.f32 %v1135, 0.5
        %v1137 = vmul.f32 %v1135, 0.70710677
        %v1138 = vand.u32 2147483647, %v1137
        %v1139 = vmul.f32 %v1138, 0.5
        %v1140 = vadd.f32 %v1139, 1.0
        %v1141 = vrcp.pop %v1140
        %v1142 = vmul.f32 1.0, %v1141
        %v1143 = vmul.f32 %v1142, 0.17087276
        %v1144 = vadd.f32 %v1143, -0.82215226
        %v1145 = vmul.f32 %v1142, %v1144
        %v1146 = vadd.f32 %v1145, 1.4885159
        %v1147 = vmul.f32 %v1142, %v1146
        %v1148 = vadd.f32 %v1147, -1.135204
        %v1149 = vmul.f32 %v1142, %v1148
        %v1150 = vadd.f32 %v1149, 0.27886808
        %v1151 = vmul.f32 %v1142, %v1150
        %v1152 = vadd.f32 %v1151, -0.18628806
        %v1153 = vmul.f32 %v1142, %v1152
        %v1154 = vadd.f32 %v1153, 0.09678418
        %v1155 = vmul.f32 %v1142, %v1154
        %v1156 = vadd.f32 %v1155, 0.37409195
        %v1157 = vmul.f32 %v1142, %v1156
        %v1158 = vadd.f32 %v1157, 1.0000237
        %v1159 = vmul.f32 %v1142, %v1158
        %v1160 = vadd.f32 %v1159, -1.2655122
        %v1161 = vsub.f32 0.0, %v1138
        %v1162 = vmul.f32 %v1161, %v1138
        %v1163 = vadd.f32 %v1162, %v1160
        %v1164 = vmul.f32 %v1163, 1.442695
        %v1165 = vpow.pop %v1164
        %v1166 = vmul.f32 %v1142, %v1165
        %vm1167 = vcmp.ge.f32.partialorder %v1137, 0.0
        %v1168 = vsub.f32 1.0, %v1166
        %v1169 = vsub.f32 %v1166, 1.0
        %v1170 = vsel %vm1167, %v1168, %v1169
        %v1171 = vadd.f32 %v1170, 1.0
        %v1172 = vmul.f32 %v1136, %v1171
        %v1173 = vld [vmem:[%s10] sm:$0xf]
        %v1174 = vld [vmem:[%s10 + $0x4] sm:$0xf]
        %v1175 = vld [vmem:[%s10 + $0x8] sm:$0xf]
        %v1176 = vld [vmem:[%s10 + $0xc] sm:$0xf]
        %v1177 = vld [vmem:[%s10 + $0x10] sm:$0xf]
        %v1178 = vld [vmem:[%s10 + $0x14] sm:$0xf]
        %v1179 = vld [vmem:[%s10 + $0x18] sm:$0xf]
        %v1180 = vld [vmem:[%s10 + $0x1c] sm:$0xf]
        %v1181 = vld [vmem:[%s10 + $0x20] sm:$0xf]
        %v1182 = vld [vmem:[%s10 + $0x24] sm:$0xf]
        %v1183 = vld [vmem:[%s10 + $0x28] sm:$0xf]
        %v1184 = vld [vmem:[%s10 + $0x2c] sm:$0xf]
        %v1185 = vld [vmem:[%s10 + $0x30] sm:$0xf]
        %v1186 = vld [vmem:[%s10 + $0x34] sm:$0xf]
        %v1187 = vld [vmem:[%s10 + $0x38] sm:$0xf]
        %v1188 = vld [vmem:[%s10 + $0x3c] sm:$0xf]
        %v1189 = vpack.c.bf16 %v1172, %v1172
        %v1190 = vld [vmem:[%s11] sm:$0x1]
        %v1192 = vlaneseq
        %v1193 = vshrl.u32 %v1192, 7
        %v1194 = vsub.s32 0, %v1193
        %v1195 = vrot.slane %v1190, %v1194
        %v1213 = vunpack.c.l.b16 %v1173
        %v1214 = vunpack.c.l.b16 %v1174
        %v1215 = vunpack.c.l.b16 %v1175
        %v1216 = vunpack.c.l.b16 %v1176
        %v1217 = vunpack.c.l.b16 %v1177
        %v1218 = vunpack.c.l.b16 %v1178
        %v1219 = vunpack.c.l.b16 %v1179
        %v1220 = vunpack.c.l.b16 %v1180
        %v1221 = vunpack.c.l.b16 %v1181
        %v1222 = vunpack.c.l.b16 %v1182
        %v1223 = vunpack.c.l.b16 %v1183
        %v1224 = vunpack.c.l.b16 %v1184
        %v1225 = vunpack.c.l.b16 %v1185
        %v1226 = vunpack.c.l.b16 %v1186
        %v1227 = vunpack.c.l.b16 %v1187
        %v1228 = vunpack.c.l.b16 %v1188
        %v1229 = vpack.c.b16 %v1214, %v1213
        %v1230 = vpack.c.b16 %v1216, %v1215
        %v1231 = vpack.c.b16 %v1218, %v1217
        %v1232 = vpack.c.b16 %v1220, %v1219
        %v1233 = vpack.c.b16 %v1222, %v1221
        %v1234 = vpack.c.b16 %v1224, %v1223
        %v1235 = vpack.c.b16 %v1226, %v1225
        %v1236 = vpack.c.b16 %v1228, %v1227
        %1245 = vmatprep.subr.bf16.mxu0 0
        %1246 = vmatpush1.bf16.msra.mxu0 %v1229
        %1247 = vmatprep.subr.bf16.mxu0 0
        %1248 = vmatpush1.bf16.msra.mxu0 %v1230
        %1249 = vmatprep.subr.bf16.mxu0 0
        %1250 = vmatpush1.bf16.msra.mxu0 %v1231
        %1251 = vmatprep.subr.bf16.mxu0 0
        %1252 = vmatpush1.bf16.msra.mxu0 %v1232
        %1253 = vmatprep.subr.bf16.mxu0 0
        %1254 = vmatpush1.bf16.msra.mxu0 %v1233
        %1255 = vmatprep.subr.bf16.mxu0 0
        %1256 = vmatpush1.bf16.msra.mxu0 %v1234
        %1257 = vmatprep.subr.bf16.mxu0 0
        %1258 = vmatpush1.bf16.msra.mxu0 %v1235
        %1259 = vmatprep.subr.bf16.mxu0 0
        %1260 = vmatpush1.bf16.msra.mxu0 %v1236
        %1261 = vmatprep.subr.bf16.mxu0 0
        %1262 = vmatpush1.bf16.msra.mxu0 0
        %1263 = vmatprep.subr.bf16.mxu0 0
        %1264 = vmatpush1.bf16.msra.mxu0 0
        %1265 = vmatprep.subr.bf16.mxu0 0
        %1266 = vmatpush1.bf16.msra.mxu0 0
        %1267 = vmatprep.subr.bf16.mxu0 0
        %1268 = vmatpush1.bf16.msra.mxu0 0
        %1269 = vmatprep.subr.bf16.mxu0 0
        %1270 = vmatpush1.bf16.msra.mxu0 0
        %1271 = vmatprep.subr.bf16.mxu0 0
        %1272 = vmatpush1.bf16.msra.mxu0 0
        %1273 = vmatprep.subr.bf16.mxu0 0
        %1274 = vmatpush1.bf16.msra.mxu0 0
        %1275 = vmatprep.subr.bf16.mxu0 0
        %1276 = vmatpush1.bf16.msra.mxu0 0
        %1277 = vmatprep.mubr.bf16.mxu0 0
        %1278 = vmatmul.mubr.bf16.gmra.mrb[0].mxu0 %v1189
        %v1279 = vpop.f32.mrb[0].mxu0
        %v1280 = vadd.f32 %v1195, %v1279
        %v1281 = vpop.f32.mrb[0].mxu0
        %v1282 = vpop.f32.mrb[0].mxu0
        %v1283 = vpop.f32.mrb[0].mxu0
        %1284 = vdwg.mxu0
        %v1285 = vadd.f32 %v1280, %v863
        %v1286 = vld [vmem:[%s12] sm:$0x1]
        %v1287 = vld [vmem:[%s13] sm:$0x1]
        %1288 = vadd.xlane.f32.xlu0 %v1285
        %v1289 = vpop.xlane.xlu0 %1288
        %v1290 = vrcp.pop 128.0
        %v1291 = vmul.f32 %v1289, %v1290
        %v1292 = vsub.f32 %v1285, %v1291
        %v1293 = vmul.f32 %v1292, %v1292
        %1294 = vadd.xlane.f32.xlu0 %v1293
        %v1295 = vpop.xlane.xlu0 %1294
        %v1296 = vmul.f32 %v1295, %v1290
        %v1297 = vadd.f32 %v1296, 1e-05
        %v1298 = vrsqrt.pop %v1297
        %v1299 = vmul.f32 %v1292, %v1298
        %v1301 = vlaneseq
        %v1302 = vshrl.u32 %v1301, 7
        %v1303 = vsub.s32 0, %v1302
        %v1304 = vrot.slane %v1286, %v1303
        %v1306 = vmul.f32 %v1299, %v1304
        %v1308 = vlaneseq
        %v1309 = vshrl.u32 %v1308, 7
        %v1310 = vsub.s32 0, %v1309
        %v1311 = vrot.slane %v1287, %v1310
        %v1313 = vadd.f32 %v1306, %v1311
        %v1314 = vld [vmem:[%s14] sm:$0xf]
        %v1315 = vld [vmem:[%s14 + $0x4] sm:$0xf]
        %v1316 = vld [vmem:[%s14 + $0x8] sm:$0xf]
        %v1317 = vld [vmem:[%s14 + $0xc] sm:$0xf]
        %v1318 = vld [vmem:[%s14 + $0x10] sm:$0xf]
        %v1319 = vld [vmem:[%s14 + $0x14] sm:$0xf]
        %v1320 = vld [vmem:[%s14 + $0x18] sm:$0xf]
        %v1321 = vld [vmem:[%s14 + $0x1c] sm:$0xf]
        %v1322 = vld [vmem:[%s14 + $0x20] sm:$0xf]
        %v1323 = vld [vmem:[%s14 + $0x24] sm:$0xf]
        %v1324 = vld [vmem:[%s14 + $0x28] sm:$0xf]
        %v1325 = vld [vmem:[%s14 + $0x2c] sm:$0xf]
        %v1326 = vld [vmem:[%s14 + $0x30] sm:$0xf]
        %v1327 = vld [vmem:[%s14 + $0x34] sm:$0xf]
        %v1328 = vld [vmem:[%s14 + $0x38] sm:$0xf]
        %v1329 = vld [vmem:[%s14 + $0x3c] sm:$0xf]
        %v1330 = vpack.c.bf16 %v1313, %v1313
        %v1331 = vld [vmem:[%s15] sm:$0x1]
        %v1333 = vlaneseq
        %v1334 = vshrl.u32 %v1333, 7
        %v1335 = vsub.s32 0, %v1334
        %v1336 = vrot.slane %v1331, %v1335
        %v1354 = vunpack.c.l.b16 %v1314
        %v1355 = vunpack.c.l.b16 %v1315
        %v1356 = vunpack.c.l.b16 %v1316
        %v1357 = vunpack.c.l.b16 %v1317
        %v1358 = vunpack.c.l.b16 %v1318
        %v1359 = vunpack.c.l.b16 %v1319
        %v1360 = vunpack.c.l.b16 %v1320
        %v1361 = vunpack.c.l.b16 %v1321
        %v1362 = vunpack.c.l.b16 %v1322
        %v1363 = vunpack.c.l.b16 %v1323
        %v1364 = vunpack.c.l.b16 %v1324
        %v1365 = vunpack.c.l.b16 %v1325
        %v1366 = vunpack.c.l.b16 %v1326
        %v1367 = vunpack.c.l.b16 %v1327
        %v1368 = vunpack.c.l.b16 %v1328
        %v1369 = vunpack.c.l.b16 %v1329
        %v1370 = vpack.c.b16 %v1355, %v1354
        %v1371 = vpack.c.b16 %v1357, %v1356
        %v1372 = vpack.c.b16 %v1359, %v1358
        %v1373 = vpack.c.b16 %v1361, %v1360
        %v1374 = vpack.c.b16 %v1363, %v1362
        %v1375 = vpack.c.b16 %v1365, %v1364
        %v1376 = vpack.c.b16 %v1367, %v1366
        %v1377 = vpack.c.b16 %v1369, %v1368
        %1386 = vmatprep.subr.bf16.mxu0 0
        %1387 = vmatpush1.bf16.msra.mxu0 %v1370
        %1388 = vmatprep.subr.bf16.mxu0 0
        %1389 = vmatpush1.bf16.msra.mxu0 %v1371
        %1390 = vmatprep.subr.bf16.mxu0 0
        %1391 = vmatpush1.bf16.msra.mxu0 %v1372
        %1392 = vmatprep.subr.bf16.mxu0 0
        %1393 = vmatpush1.bf16.msra.mxu0 %v1373
        %1394 = vmatprep.subr.bf16.mxu0 0
        %1395 = vmatpush1.bf16.msra.mxu0 %v1374
        %1396 = vmatprep.subr.bf16.mxu0 0
        %1397 = vmatpush1.bf16.msra.mxu0 %v1375
        %1398 = vmatprep.subr.bf16.mxu0 0
        %1399 = vmatpush1.bf16.msra.mxu0 %v1376
        %1400 = vmatprep.subr.bf16.mxu0 0
        %1401 = vmatpush1.bf16.msra.mxu0 %v1377
        %1402 = vmatprep.subr.bf16.mxu0 0
        %1403 = vmatpush1.bf16.msra.mxu0 0
        %1404 = vmatprep.subr.bf16.mxu0 0
        %1405 = vmatpush1.bf16.msra.mxu0 0
        %1406 = vmatprep.subr.bf16.mxu0 0
        %1407 = vmatpush1.bf16.msra.mxu0 0
        %1408 = vmatprep.subr.bf16.mxu0 0
        %1409 = vmatpush1.bf16.msra.mxu0 0
        %1410 = vmatprep.subr.bf16.mxu0 0
        %1411 = vmatpush1.bf16.msra.mxu0 0
        %1412 = vmatprep.subr.bf16.mxu0 0
        %1413 = vmatpush1.bf16.msra.mxu0 0
        %1414 = vmatprep.subr.bf16.mxu0 0
        %1415 = vmatpush1.bf16.msra.mxu0 0
        %1416 = vmatprep.subr.bf16.mxu0 0
        %1417 = vmatpush1.bf16.msra.mxu0 0
        %1418 = vmatprep.mubr.bf16.mxu0 0
        %1419 = vmatmul.mubr.bf16.gmra.mrb[0].mxu0 %v1330
        %v1420 = vpop.f32.mrb[0].mxu0
        %v1421 = vadd.f32 %v1336, %v1420
        %v1422 = vpop.f32.mrb[0].mxu0
        %v1423 = vpop.f32.mrb[0].mxu0
        %v1424 = vpop.f32.mrb[0].mxu0
        %1425 = vdwg.mxu0
        %v1426 = vmul.f32 %v1421, 0.5
        %v1427 = vmul.f32 %v1421, 0.70710677
        %v1428 = vand.u32 2147483647, %v1427
        %v1429 = vmul.f32 %v1428, 0.5
        %v1430 = vadd.f32 %v1429, 1.0
        %v1431 = vrcp.pop %v1430
        %v1432 = vmul.f32 1.0, %v1431
        %v1433 = vmul.f32 %v1432, 0.17087276
        %v1434 = vadd.f32 %v1433, -0.82215226
        %v1435 = vmul.f32 %v1432, %v1434
        %v1436 = vadd.f32 %v1435, 1.4885159
        %v1437 = vmul.f32 %v1432, %v1436
        %v1438 = vadd.f32 %v1437, -1.135204
        %v1439 = vmul.f32 %v1432, %v1438
        %v1440 = vadd.f32 %v1439, 0.27886808
        %v1441 = vmul.f32 %v1432, %v1440
        %v1442 = vadd.f32 %v1441, -0.18628806
        %v1443 = vmul.f32 %v1432, %v1442
        %v1444 = vadd.f32 %v1443, 0.09678418
        %v1445 = vmul.f32 %v1432, %v1444
        %v1446 = vadd.f32 %v1445, 0.37409195
        %v1447 = vmul.f32 %v1432, %v1446
        %v1448 = vadd.f32 %v1447, 1.0000237
        %v1449 = vmul.f32 %v1432, %v1448
        %v1450 = vadd.f32 %v1449, -1.2655122
        %v1451 = vsub.f32 0.0, %v1428
        %v1452 = vmul.f32 %v1451, %v1428
        %v1453 = vadd.f32 %v1452, %v1450
        %v1454 = vmul.f32 %v1453, 1.442695
        %v1455 = vpow.pop %v1454
        %v1456 = vmul.f32 %v1432, %v1455
        %vm1457 = vcmp.ge.f32.partialorder %v1427, 0.0
        %v1458 = vsub.f32 1.0, %v1456
        %v1459 = vsub.f32 %v1456, 1.0
        %v1460 = vsel %vm1457, %v1458, %v1459
        %v1461 = vadd.f32 %v1460, 1.0
        %v1462 = vmul.f32 %v1426, %v1461
        %v1463 = vld [vmem:[%s16] sm:$0xf]
        %v1464 = vld [vmem:[%s16 + $0x4] sm:$0xf]
        %v1465 = vld [vmem:[%s16 + $0x8] sm:$0xf]
        %v1466 = vld [vmem:[%s16 + $0xc] sm:$0xf]
        %v1467 = vld [vmem:[%s16 + $0x10] sm:$0xf]
        %v1468 = vld [vmem:[%s16 + $0x14] sm:$0xf]
        %v1469 = vld [vmem:[%s16 + $0x18] sm:$0xf]
        %v1470 = vld [vmem:[%s16 + $0x1c] sm:$0xf]
        %v1471 = vld [vmem:[%s16 + $0x20] sm:$0xf]
        %v1472 = vld [vmem:[%s16 + $0x24] sm:$0xf]
        %v1473 = vld [vmem:[%s16 + $0x28] sm:$0xf]
        %v1474 = vld [vmem:[%s16 + $0x2c] sm:$0xf]
        %v1475 = vld [vmem:[%s16 + $0x30] sm:$0xf]
        %v1476 = vld [vmem:[%s16 + $0x34] sm:$0xf]
        %v1477 = vld [vmem:[%s16 + $0x38] sm:$0xf]
        %v1478 = vld [vmem:[%s16 + $0x3c] sm:$0xf]
        %v1479 = vpack.c.bf16 %v1462, %v1462
        %v1480 = vld [vmem:[%s17] sm:$0x1]
        %v1482 = vlaneseq
        %v1483 = vshrl.u32 %v1482, 7
        %v1484 = vsub.s32 0, %v1483
        %v1485 = vrot.slane %v1480, %v1484
        %v1503 = vunpack.c.l.b16 %v1463
        %v1504 = vunpack.c.l.b16 %v1464
        %v1505 = vunpack.c.l.b16 %v1465
        %v1506 = vunpack.c.l.b16 %v1466
        %v1507 = vunpack.c.l.b16 %v1467
        %v1508 = vunpack.c.l.b16 %v1468
        %v1509 = vunpack.c.l.b16 %v1469
        %v1510 = vunpack.c.l.b16 %v1470
        %v1511 = vunpack.c.l.b16 %v1471
        %v1512 = vunpack.c.l.b16 %v1472
        %v1513 = vunpack.c.l.b16 %v1473
        %v1514 = vunpack.c.l.b16 %v1474
        %v1515 = vunpack.c.l.b16 %v1475
        %v1516 = vunpack.c.l.b16 %v1476
        %v1517 = vunpack.c.l.b16 %v1477
        %v1518 = vunpack.c.l.b16 %v1478
        %v1519 = vpack.c.b16 %v1504, %v1503
        %v1520 = vpack.c.b16 %v1506, %v1505
        %v1521 = vpack.c.b16 %v1508, %v1507
        %v1522 = vpack.c.b16 %v1510, %v1509
        %v1523 = vpack.c.b16 %v1512, %v1511
        %v1524 = vpack.c.b16 %v1514, %v1513
        %v1525 = vpack.c.b16 %v1516, %v1515
        %v1526 = vpack.c.b16 %v1518, %v1517
        %1535 = vmatprep.subr.bf16.mxu0 0
        %1536 = vmatpush1.bf16.msra.mxu0 %v1519
        %1537 = vmatprep.subr.bf16.mxu0 0
        %1538 = vmatpush1.bf16.msra.mxu0 %v1520
        %1539 = vmatprep.subr.bf16.mxu0 0
        %1540 = vmatpush1.bf16.msra.mxu0 %v1521
        %1541 = vmatprep.subr.bf16.mxu0 0
        %1542 = vmatpush1.bf16.msra.mxu0 %v1522
        %1543 = vmatprep.subr.bf16.mxu0 0
        %1544 = vmatpush1.bf16.msra.mxu0 %v1523
        %1545 = vmatprep.subr.bf16.mxu0 0
        %1546 = vmatpush1.bf16.msra.mxu0 %v1524
        %1547 = vmatprep.subr.bf16.mxu0 0
        %1548 = vmatpush1.bf16.msra.mxu0 %v1525
        %1549 = vmatprep.subr.bf16.mxu0 0
        %1550 = vmatpush1.bf16.msra.mxu0 %v1526
        %1551 = vmatprep.subr.bf16.mxu0 0
        %1552 = vmatpush1.bf16.msra.mxu0 0
        %1553 = vmatprep.subr.bf16.mxu0 0
        %1554 = vmatpush1.bf16.msra.mxu0 0
        %1555 = vmatprep.subr.bf16.mxu0 0
        %1556 = vmatpush1.bf16.msra.mxu0 0
        %1557 = vmatprep.subr.bf16.mxu0 0
        %1558 = vmatpush1.bf16.msra.mxu0 0
        %1559 = vmatprep.subr.bf16.mxu0 0
        %1560 = vmatpush1.bf16.msra.mxu0 0
        %1561 = vmatprep.subr.bf16.mxu0 0
        %1562 = vmatpush1.bf16.msra.mxu0 0
        %1563 = vmatprep.subr.bf16.mxu0 0
        %1564 = vmatpush1.bf16.msra.mxu0 0
        %1565 = vmatprep.subr.bf16.mxu0 0
        %1566 = vmatpush1.bf16.msra.mxu0 0
        %1567 = vmatprep.mubr.bf16.mxu0 0
        %1568 = vmatmul.mubr.bf16.gmra.mrb[0].mxu0 %v1479
        %v1569 = vpop.f32.mrb[0].mxu0
        %v1570 = vadd.f32 %v1485, %v1569
        %v1571 = vpop.f32.mrb[0].mxu0
        %v1572 = vpop.f32.mrb[0].mxu0
        %v1573 = vpop.f32.mrb[0].mxu0
        %1574 = vdwg.mxu0
        %v1575 = vadd.f32 %v1570, %v1285
        %v1576 = vld [vmem:[%s18] sm:$0x1]
        %v1577 = vld [vmem:[%s19] sm:$0x1]
        %1578 = vadd.xlane.f32.xlu0 %v1575
        %v1579 = vpop.xlane.xlu0 %1578
        %v1580 = vmul.f32 %v1579, %v1290
        %v1581 = vsub.f32 %v1575, %v1580
        %v1582 = vmul.f32 %v1581, %v1581
        %1583 = vadd.xlane.f32.xlu0 %v1582
        %v1584 = vpop.xlane.xlu0 %1583
        %v1585 = vmul.f32 %v1584, %v1290
        %v1586 = vadd.f32 %v1585, 1e-05
        %v1587 = vrsqrt.pop %v1586
        %v1588 = vmul.f32 %v1581, %v1587
        %v1590 = vlaneseq
        %v1591 = vshrl.u32 %v1590, 7
        %v1592 = vsub.s32 0, %v1591
        %v1593 = vrot.slane %v1576, %v1592
        %v1595 = vmul.f32 %v1588, %v1593
        %v1597 = vlaneseq
        %v1598 = vshrl.u32 %v1597, 7
        %v1599 = vsub.s32 0, %v1598
        %v1600 = vrot.slane %v1577, %v1599
        %v1602 = vadd.f32 %v1595, %v1600
        %1603 = vst [vmem:[#allocation3] sm:$0xff] %v1602
        %p1604 = scmp.ge.s32.totalorder %s441, 0
        %p1605 = scmp.ge.s32.totalorder %s443, 0
        %p1606 = scmp.ge.s32.totalorder %s445, 0
        %p1607 = scmp.ge.s32.totalorder %s447, 0
        %p1608 = scmp.ge.s32.totalorder %s449, 0
        %p1609 = scmp.ge.s32.totalorder %s451, 0
        %p1610 = scmp.ge.s32.totalorder %s453, 0
        %p1611 = scmp.ge.s32.totalorder %s455, 0
        // Predicated region
        $region341: #{_fuse_module_forward_impl.1} parent=95 // pred_check
          %p1612 = pneg %p1604
        $region342: #{_fuse_module_forward_impl.1} parent=95 // pred_check_branch
          %1614 = sbr.rel (%p1612) target = $region344
        $region343: #{_fuse_module_forward_impl.1} parent=95 // pred_region
          %s1615 = scalar_lea.vmem %s20, %s457
          %p1617 = scmp.lt.u32.totalorder 1, 8
          %p1618 = pneg %p1617
          // Predicated region
          $region345: #{_fuse_module_forward_impl.1} parent=343 // pred_check
            _
          $region346: #{_fuse_module_forward_impl.1} parent=343 // pred_check_branch
            %1620 = sbr.rel (%p1617) target = $region348
          $region347: #{_fuse_module_forward_impl.1} parent=343 // pred_region
            %s1635 = sand.u32 1, 7
            %p1636 = scmp.eq.s32.totalorder %s1635, 0
            %p1637 = pneg %p1636
            // Predicated region
            $region360: #{_fuse_module_forward_impl.1} parent=347 // pred_check
              _
            $region361: #{_fuse_module_forward_impl.1} parent=347 // pred_check_branch
              %1639 = sbr.rel (%p1636) target = $region363
            $region362: #{_fuse_module_forward_impl.1} parent=347 // pred_region
              %s1640 = sand.u32 1, 7
              %s1641 = ssub.s32 1, %s1640
              %s1642 = scalar_lea.vmem [#allocation3], %s1641
              %s1643 = ssub.s32 1, %s1640
              %s1644 = scalar_lea.vmem %s1615, %s1643
              %s1645 = sshllo.u32 0, %s1640
              loop: start=0, step=1, limit=1
              $region364: #{_fuse_module_forward_impl.1} parent=362 // loop_pre_header
                _
              $region365: #{_fuse_module_forward_impl.1} parent=362 // loop_header
                %s1647 = sphi 0, %s1651
                %p1648 = scmp.ge.s32.totalorder %s1647, 1
                %s1652 = sphi %s1642, %s1642
                %s1653 = sphi %s1644, %s1644
              $region366: #{_fuse_module_forward_impl.1} parent=362 // loop_header_branch
                %1650 = sbr.rel (%p1648) target = $region370
              $region367: #{_fuse_module_forward_impl.1} parent=362 // loop_body
                %v1654 = vld [vmem:[%s1652] sm:%s1645]
                %1655 = vst [vmem:[%s1653] sm:%s1645] %v1654
              $region368: #{_fuse_module_forward_impl.1} parent=362 // loop_footer
                %s1651 = sadd.s32 1, %s1647
              $region369: #{_fuse_module_forward_impl.1} parent=362 // loop_footer_branch
                %1646 = sbr.rel target = $region365
              $region370: #{_fuse_module_forward_impl.1} parent=362 // loop_exit
                _
            $region363: #{_fuse_module_forward_impl.1} parent=347 // pred_fallthru
              _
          $region348: #{_fuse_module_forward_impl.1} parent=343 // pred_fallthru
            _
          // Predicated region
          $region349: #{_fuse_module_forward_impl.1} parent=343 // pred_check
            %p1621 = pneg %p1617
          $region350: #{_fuse_module_forward_impl.1} parent=343 // pred_check_branch
            %1623 = sbr.rel (%p1621) target = $region352
          $region351: #{_fuse_module_forward_impl.1} parent=343 // pred_region
            %s1624 = sshllo.u32 0, 1
            loop: start=0, step=1, limit=1
            $region353: #{_fuse_module_forward_impl.1} parent=351 // loop_pre_header
              _
            $region354: #{_fuse_module_forward_impl.1} parent=351 // loop_header
              %s1626 = sphi 0, %s1630
              %p1627 = scmp.ge.s32.totalorder %s1626, 1
              %s1631 = sphi [#allocation3], [#allocation3]
              %s1632 = sphi %s1615, %s1615
            $region355: #{_fuse_module_forward_impl.1} parent=351 // loop_header_branch
              %1629 = sbr.rel (%p1627) target = $region359
            $region356: #{_fuse_module_forward_impl.1} parent=351 // loop_body
              %v1633 = vld [vmem:[%s1631] sm:%s1624]
              %1634 = vst [vmem:[%s1632] sm:%s1624] %v1633
            $region357: #{_fuse_module_forward_impl.1} parent=351 // loop_footer
              %s1630 = sadd.s32 1, %s1626
            $region358: #{_fuse_module_forward_impl.1} parent=351 // loop_footer_branch
              %1625 = sbr.rel target = $region354
            $region359: #{_fuse_module_forward_impl.1} parent=351 // loop_exit
              _
          $region352: #{_fuse_module_forward_impl.1} parent=343 // pred_fallthru
            _
          // Predicated region
          $region371: #{_fuse_module_forward_impl.1} parent=343 // pred_check
            _
          $region372: #{_fuse_module_forward_impl.1} parent=343 // pred_check_branch
            %1658 = sbr.rel (0) target = $region374
          $region373: #{_fuse_module_forward_impl.1} parent=343 // pred_region
            %1659 = vsyncadd [#allocation5], 16
          $region374: #{_fuse_module_forward_impl.1} parent=343 // pred_fallthru
            _
        $region344: #{_fuse_module_forward_impl.1} parent=95 // pred_fallthru
          _
        // Predicated region
        $region375: #{_fuse_module_forward_impl.1} parent=95 // pred_check
          %p1660 = pneg %p1605
        $region376: #{_fuse_module_forward_impl.1} parent=95 // pred_check_branch
          %1662 = sbr.rel (%p1660) target = $region378
        $region377: #{_fuse_module_forward_impl.1} parent=95 // pred_region
          %s1663 = scalar_lea.vmem [#allocation3], 1
          %s1664 = scalar_lea.vmem %s20, %s459
          %s1665 = scalar_lea.sflag [#allocation5], 1
          %p1667 = scmp.lt.u32.totalorder 1, 8
          %p1668 = pneg %p1667
          // Predicated region
          $region379: #{_fuse_module_forward_impl.1} parent=377 // pred_check
            _
          $region380: #{_fuse_module_forward_impl.1} parent=377 // pred_check_branch
            %1670 = sbr.rel (%p1667) target = $region382
          $region381: #{_fuse_module_forward_impl.1} parent=377 // pred_region
            %s1685 = sand.u32 1, 7
            %p1686 = scmp.eq.s32.totalorder %s1685, 0
            %p1687 = pneg %p1686
            // Predicated region
            $region394: #{_fuse_module_forward_impl.1} parent=381 // pred_check
              _
            $region395: #{_fuse_module_forward_impl.1} parent=381 // pred_check_branch
              %1689 = sbr.rel (%p1686) target = $region397
            $region396: #{_fuse_module_forward_impl.1} parent=381 // pred_region
              %s1690 = sand.u32 1, 7
              %s1691 = ssub.s32 1, %s1690
              %s1692 = scalar_lea.vmem %s1663, %s1691 [#allocation3]
              %s1693 = ssub.s32 1, %s1690
              %s1694 = scalar_lea.vmem %s1664, %s1693
              %s1695 = sshllo.u32 0, %s1690
              loop: start=0, step=1, limit=1
              $region398: #{_fuse_module_forward_impl.1} parent=396 // loop_pre_header
                _
              $region399: #{_fuse_module_forward_impl.1} parent=396 // loop_header
                %s1697 = sphi 0, %s1701
                %p1698 = scmp.ge.s32.totalorder %s1697, 1
                %s1702 = sphi %s1692, %s1692
                %s1703 = sphi %s1694, %s1694
              $region400: #{_fuse_module_forward_impl.1} parent=396 // loop_header_branch
                %1700 = sbr.rel (%p1698) target = $region404
              $region401: #{_fuse_module_forward_impl.1} parent=396 // loop_body
                %v1704 = vld [vmem:[%s1702] sm:%s1695]
                %1705 = vst [vmem:[%s1703] sm:%s1695] %v1704
              $region402: #{_fuse_module_forward_impl.1} parent=396 // loop_footer
                %s1701 = sadd.s32 1, %s1697
              $region403: #{_fuse_module_forward_impl.1} parent=396 // loop_footer_branch
                %1696 = sbr.rel target = $region399
              $region404: #{_fuse_module_forward_impl.1} parent=396 // loop_exit
                _
            $region397: #{_fuse_module_forward_impl.1} parent=381 // pred_fallthru
              _
          $region382: #{_fuse_module_forward_impl.1} parent=377 // pred_fallthru
            _
          // Predicated region
          $region383: #{_fuse_module_forward_impl.1} parent=377 // pred_check
            %p1671 = pneg %p1667
          $region384: #{_fuse_module_forward_impl.1} parent=377 // pred_check_branch
            %1673 = sbr.rel (%p1671) target = $region386
          $region385: #{_fuse_module_forward_impl.1} parent=377 // pred_region
            %s1674 = sshllo.u32 0, 1
            loop: start=0, step=1, limit=1
            $region387: #{_fuse_module_forward_impl.1} parent=385 // loop_pre_header
              _
            $region388: #{_fuse_module_forward_impl.1} parent=385 // loop_header
              %s1676 = sphi 0, %s1680
              %p1677 = scmp.ge.s32.totalorder %s1676, 1
              %s1681 = sphi %s1663, %s1663
              %s1682 = sphi %s1664, %s1664
            $region389: #{_fuse_module_forward_impl.1} parent=385 // loop_header_branch
              %1679 = sbr.rel (%p1677) target = $region393
            $region390: #{_fuse_module_forward_impl.1} parent=385 // loop_body
              %v1683 = vld [vmem:[%s1681] sm:%s1674]
              %1684 = vst [vmem:[%s1682] sm:%s1674] %v1683
            $region391: #{_fuse_module_forward_impl.1} parent=385 // loop_footer
              %s1680 = sadd.s32 1, %s1676
            $region392: #{_fuse_module_forward_impl.1} parent=385 // loop_footer_branch
              %1675 = sbr.rel target = $region388
            $region393: #{_fuse_module_forward_impl.1} parent=385 // loop_exit
              _
          $region386: #{_fuse_module_forward_impl.1} parent=377 // pred_fallthru
            _
          // Predicated region
          $region405: #{_fuse_module_forward_impl.1} parent=377 // pred_check
            _
          $region406: #{_fuse_module_forward_impl.1} parent=377 // pred_check_branch
            %1708 = sbr.rel (0) target = $region408
          $region407: #{_fuse_module_forward_impl.1} parent=377 // pred_region
            %1709 = vsyncadd %s1665, 16
          $region408: #{_fuse_module_forward_impl.1} parent=377 // pred_fallthru
            _
        $region378: #{_fuse_module_forward_impl.1} parent=95 // pred_fallthru
          _
        // Predicated region
        $region409: #{_fuse_module_forward_impl.1} parent=95 // pred_check
          %p1710 = pneg %p1606
        $region410: #{_fuse_module_forward_impl.1} parent=95 // pred_check_branch
          %1712 = sbr.rel (%p1710) target = $region412
        $region411: #{_fuse_module_forward_impl.1} parent=95 // pred_region
          %s1713 = scalar_lea.vmem [#allocation3], 2
          %s1714 = scalar_lea.vmem %s20, %s461
          %s1715 = scalar_lea.sflag [#allocation5], 2
          %p1717 = scmp.lt.u32.totalorder 1, 8
          %p1718 = pneg %p1717
          // Predicated region
          $region413: #{_fuse_module_forward_impl.1} parent=411 // pred_check
            _
          $region414: #{_fuse_module_forward_impl.1} parent=411 // pred_check_branch
            %1720 = sbr.rel (%p1717) target = $region416
          $region415: #{_fuse_module_forward_impl.1} parent=411 // pred_region
            %s1735 = sand.u32 1, 7
            %p1736 = scmp.eq.s32.totalorder %s1735, 0
            %p1737 = pneg %p1736
            // Predicated region
            $region428: #{_fuse_module_forward_impl.1} parent=415 // pred_check
              _
            $region429: #{_fuse_module_forward_impl.1} parent=415 // pred_check_branch
              %1739 = sbr.rel (%p1736) target = $region431
            $region430: #{_fuse_module_forward_impl.1} parent=415 // pred_region
              %s1740 = sand.u32 1, 7
              %s1741 = ssub.s32 1, %s1740
              %s1742 = scalar_lea.vmem %s1713, %s1741 [#allocation3]
              %s1743 = ssub.s32 1, %s1740
              %s1744 = scalar_lea.vmem %s1714, %s1743
              %s1745 = sshllo.u32 0, %s1740
              loop: start=0, step=1, limit=1
              $region432: #{_fuse_module_forward_impl.1} parent=430 // loop_pre_header
                _
              $region433: #{_fuse_module_forward_impl.1} parent=430 // loop_header
                %s1747 = sphi 0, %s1751
                %p1748 = scmp.ge.s32.totalorder %s1747, 1
                %s1752 = sphi %s1742, %s1742
                %s1753 = sphi %s1744, %s1744
              $region434: #{_fuse_module_forward_impl.1} parent=430 // loop_header_branch
                %1750 = sbr.rel (%p1748) target = $region438
              $region435: #{_fuse_module_forward_impl.1} parent=430 // loop_body
                %v1754 = vld [vmem:[%s1752] sm:%s1745]
                %1755 = vst [vmem:[%s1753] sm:%s1745] %v1754
              $region436: #{_fuse_module_forward_impl.1} parent=430 // loop_footer
                %s1751 = sadd.s32 1, %s1747
              $region437: #{_fuse_module_forward_impl.1} parent=430 // loop_footer_branch
                %1746 = sbr.rel target = $region433
              $region438: #{_fuse_module_forward_impl.1} parent=430 // loop_exit
                _
            $region431: #{_fuse_module_forward_impl.1} parent=415 // pred_fallthru
              _
          $region416: #{_fuse_module_forward_impl.1} parent=411 // pred_fallthru
            _
          // Predicated region
          $region417: #{_fuse_module_forward_impl.1} parent=411 // pred_check
            %p1721 = pneg %p1717
          $region418: #{_fuse_module_forward_impl.1} parent=411 // pred_check_branch
            %1723 = sbr.rel (%p1721) target = $region420
          $region419: #{_fuse_module_forward_impl.1} parent=411 // pred_region
            %s1724 = sshllo.u32 0, 1
            loop: start=0, step=1, limit=1
            $region421: #{_fuse_module_forward_impl.1} parent=419 // loop_pre_header
              _
            $region422: #{_fuse_module_forward_impl.1} parent=419 // loop_header
              %s1726 = sphi 0, %s1730
              %p1727 = scmp.ge.s32.totalorder %s1726, 1
              %s1731 = sphi %s1713, %s1713
              %s1732 = sphi %s1714, %s1714
            $region423: #{_fuse_module_forward_impl.1} parent=419 // loop_header_branch
              %1729 = sbr.rel (%p1727) target = $region427
            $region424: #{_fuse_module_forward_impl.1} parent=419 // loop_body
              %v1733 = vld [vmem:[%s1731] sm:%s1724]
              %1734 = vst [vmem:[%s1732] sm:%s1724] %v1733
            $region425: #{_fuse_module_forward_impl.1} parent=419 // loop_footer
              %s1730 = sadd.s32 1, %s1726
            $region426: #{_fuse_module_forward_impl.1} parent=419 // loop_footer_branch
              %1725 = sbr.rel target = $region422
            $region427: #{_fuse_module_forward_impl.1} parent=419 // loop_exit
              _
          $region420: #{_fuse_module_forward_impl.1} parent=411 // pred_fallthru
            _
          // Predicated region
          $region439: #{_fuse_module_forward_impl.1} parent=411 // pred_check
            _
          $region440: #{_fuse_module_forward_impl.1} parent=411 // pred_check_branch
            %1758 = sbr.rel (0) target = $region442
          $region441: #{_fuse_module_forward_impl.1} parent=411 // pred_region
            %1759 = vsyncadd %s1715, 16
          $region442: #{_fuse_module_forward_impl.1} parent=411 // pred_fallthru
            _
        $region412: #{_fuse_module_forward_impl.1} parent=95 // pred_fallthru
          _
        // Predicated region
        $region443: #{_fuse_module_forward_impl.1} parent=95 // pred_check
          %p1760 = pneg %p1607
        $region444: #{_fuse_module_forward_impl.1} parent=95 // pred_check_branch
          %1762 = sbr.rel (%p1760) target = $region446
        $region445: #{_fuse_module_forward_impl.1} parent=95 // pred_region
          %s1763 = scalar_lea.vmem [#allocation3], 3
          %s1764 = scalar_lea.vmem %s20, %s463
          %s1765 = scalar_lea.sflag [#allocation5], 3
          %p1767 = scmp.lt.u32.totalorder 1, 8
          %p1768 = pneg %p1767
          // Predicated region
          $region447: #{_fuse_module_forward_impl.1} parent=445 // pred_check
            _
          $region448: #{_fuse_module_forward_impl.1} parent=445 // pred_check_branch
            %1770 = sbr.rel (%p1767) target = $region450
          $region449: #{_fuse_module_forward_impl.1} parent=445 // pred_region
            %s1785 = sand.u32 1, 7
            %p1786 = scmp.eq.s32.totalorder %s1785, 0
            %p1787 = pneg %p1786
            // Predicated region
            $region462: #{_fuse_module_forward_impl.1} parent=449 // pred_check
              _
            $region463: #{_fuse_module_forward_impl.1} parent=449 // pred_check_branch
              %1789 = sbr.rel (%p1786) target = $region465
            $region464: #{_fuse_module_forward_impl.1} parent=449 // pred_region
              %s1790 = sand.u32 1, 7
              %s1791 = ssub.s32 1, %s1790
              %s1792 = scalar_lea.vmem %s1763, %s1791 [#allocation3]
              %s1793 = ssub.s32 1, %s1790
              %s1794 = scalar_lea.vmem %s1764, %s1793
              %s1795 = sshllo.u32 0, %s1790
              loop: start=0, step=1, limit=1
              $region466: #{_fuse_module_forward_impl.1} parent=464 // loop_pre_header
                _
              $region467: #{_fuse_module_forward_impl.1} parent=464 // loop_header
                %s1797 = sphi 0, %s1801
                %p1798 = scmp.ge.s32.totalorder %s1797, 1
                %s1802 = sphi %s1792, %s1792
                %s1803 = sphi %s1794, %s1794
              $region468: #{_fuse_module_forward_impl.1} parent=464 // loop_header_branch
                %1800 = sbr.rel (%p1798) target = $region472
              $region469: #{_fuse_module_forward_impl.1} parent=464 // loop_body
                %v1804 = vld [vmem:[%s1802] sm:%s1795]
                %1805 = vst [vmem:[%s1803] sm:%s1795] %v1804
              $region470: #{_fuse_module_forward_impl.1} parent=464 // loop_footer
                %s1801 = sadd.s32 1, %s1797
              $region471: #{_fuse_module_forward_impl.1} parent=464 // loop_footer_branch
                %1796 = sbr.rel target = $region467
              $region472: #{_fuse_module_forward_impl.1} parent=464 // loop_exit
                _
            $region465: #{_fuse_module_forward_impl.1} parent=449 // pred_fallthru
              _
          $region450: #{_fuse_module_forward_impl.1} parent=445 // pred_fallthru
            _
          // Predicated region
          $region451: #{_fuse_module_forward_impl.1} parent=445 // pred_check
            %p1771 = pneg %p1767
          $region452: #{_fuse_module_forward_impl.1} parent=445 // pred_check_branch
            %1773 = sbr.rel (%p1771) target = $region454
          $region453: #{_fuse_module_forward_impl.1} parent=445 // pred_region
            %s1774 = sshllo.u32 0, 1
            loop: start=0, step=1, limit=1
            $region455: #{_fuse_module_forward_impl.1} parent=453 // loop_pre_header
              _
            $region456: #{_fuse_module_forward_impl.1} parent=453 // loop_header
              %s1776 = sphi 0, %s1780
              %p1777 = scmp.ge.s32.totalorder %s1776, 1
              %s1781 = sphi %s1763, %s1763
              %s1782 = sphi %s1764, %s1764
            $region457: #{_fuse_module_forward_impl.1} parent=453 // loop_header_branch
              %1779 = sbr.rel (%p1777) target = $region461
            $region458: #{_fuse_module_forward_impl.1} parent=453 // loop_body
              %v1783 = vld [vmem:[%s1781] sm:%s1774]
              %1784 = vst [vmem:[%s1782] sm:%s1774] %v1783
            $region459: #{_fuse_module_forward_impl.1} parent=453 // loop_footer
              %s1780 = sadd.s32 1, %s1776
            $region460: #{_fuse_module_forward_impl.1} parent=453 // loop_footer_branch
              %1775 = sbr.rel target = $region456
            $region461: #{_fuse_module_forward_impl.1} parent=453 // loop_exit
              _
          $region454: #{_fuse_module_forward_impl.1} parent=445 // pred_fallthru
            _
          // Predicated region
          $region473: #{_fuse_module_forward_impl.1} parent=445 // pred_check
            _
          $region474: #{_fuse_module_forward_impl.1} parent=445 // pred_check_branch
            %1808 = sbr.rel (0) target = $region476
          $region475: #{_fuse_module_forward_impl.1} parent=445 // pred_region
            %1809 = vsyncadd %s1765, 16
          $region476: #{_fuse_module_forward_impl.1} parent=445 // pred_fallthru
            _
        $region446: #{_fuse_module_forward_impl.1} parent=95 // pred_fallthru
          _
        // Predicated region
        $region477: #{_fuse_module_forward_impl.1} parent=95 // pred_check
          %p1810 = pneg %p1608
        $region478: #{_fuse_module_forward_impl.1} parent=95 // pred_check_branch
          %1812 = sbr.rel (%p1810) target = $region480
        $region479: #{_fuse_module_forward_impl.1} parent=95 // pred_region
          %s1813 = scalar_lea.vmem [#allocation3], 4
          %s1814 = scalar_lea.vmem %s20, %s465
          %s1815 = scalar_lea.sflag [#allocation5], 4
          %p1817 = scmp.lt.u32.totalorder 1, 8
          %p1818 = pneg %p1817
          // Predicated region
          $region481: #{_fuse_module_forward_impl.1} parent=479 // pred_check
            _
          $region482: #{_fuse_module_forward_impl.1} parent=479 // pred_check_branch
            %1820 = sbr.rel (%p1817) target = $region484
          $region483: #{_fuse_module_forward_impl.1} parent=479 // pred_region
            %s1835 = sand.u32 1, 7
            %p1836 = scmp.eq.s32.totalorder %s1835, 0
            %p1837 = pneg %p1836
            // Predicated region
            $region496: #{_fuse_module_forward_impl.1} parent=483 // pred_check
              _
            $region497: #{_fuse_module_forward_impl.1} parent=483 // pred_check_branch
              %1839 = sbr.rel (%p1836) target = $region499
            $region498: #{_fuse_module_forward_impl.1} parent=483 // pred_region
              %s1840 = sand.u32 1, 7
              %s1841 = ssub.s32 1, %s1840
              %s1842 = scalar_lea.vmem %s1813, %s1841 [#allocation3]
              %s1843 = ssub.s32 1, %s1840
              %s1844 = scalar_lea.vmem %s1814, %s1843
              %s1845 = sshllo.u32 0, %s1840
              loop: start=0, step=1, limit=1
              $region500: #{_fuse_module_forward_impl.1} parent=498 // loop_pre_header
                _
              $region501: #{_fuse_module_forward_impl.1} parent=498 // loop_header
                %s1847 = sphi 0, %s1851
                %p1848 = scmp.ge.s32.totalorder %s1847, 1
                %s1852 = sphi %s1842, %s1842
                %s1853 = sphi %s1844, %s1844
              $region502: #{_fuse_module_forward_impl.1} parent=498 // loop_header_branch
                %1850 = sbr.rel (%p1848) target = $region506
              $region503: #{_fuse_module_forward_impl.1} parent=498 // loop_body
                %v1854 = vld [vmem:[%s1852] sm:%s1845]
                %1855 = vst [vmem:[%s1853] sm:%s1845] %v1854
              $region504: #{_fuse_module_forward_impl.1} parent=498 // loop_footer
                %s1851 = sadd.s32 1, %s1847
              $region505: #{_fuse_module_forward_impl.1} parent=498 // loop_footer_branch
                %1846 = sbr.rel target = $region501
              $region506: #{_fuse_module_forward_impl.1} parent=498 // loop_exit
                _
            $region499: #{_fuse_module_forward_impl.1} parent=483 // pred_fallthru
              _
          $region484: #{_fuse_module_forward_impl.1} parent=479 // pred_fallthru
            _
          // Predicated region
          $region485: #{_fuse_module_forward_impl.1} parent=479 // pred_check
            %p1821 = pneg %p1817
          $region486: #{_fuse_module_forward_impl.1} parent=479 // pred_check_branch
            %1823 = sbr.rel (%p1821) target = $region488
          $region487: #{_fuse_module_forward_impl.1} parent=479 // pred_region
            %s1824 = sshllo.u32 0, 1
            loop: start=0, step=1, limit=1
            $region489: #{_fuse_module_forward_impl.1} parent=487 // loop_pre_header
              _
            $region490: #{_fuse_module_forward_impl.1} parent=487 // loop_header
              %s1826 = sphi 0, %s1830
              %p1827 = scmp.ge.s32.totalorder %s1826, 1
              %s1831 = sphi %s1813, %s1813
              %s1832 = sphi %s1814, %s1814
            $region491: #{_fuse_module_forward_impl.1} parent=487 // loop_header_branch
              %1829 = sbr.rel (%p1827) target = $region495
            $region492: #{_fuse_module_forward_impl.1} parent=487 // loop_body
              %v1833 = vld [vmem:[%s1831] sm:%s1824]
              %1834 = vst [vmem:[%s1832] sm:%s1824] %v1833
            $region493: #{_fuse_module_forward_impl.1} parent=487 // loop_footer
              %s1830 = sadd.s32 1, %s1826
            $region494: #{_fuse_module_forward_impl.1} parent=487 // loop_footer_branch
              %1825 = sbr.rel target = $region490
            $region495: #{_fuse_module_forward_impl.1} parent=487 // loop_exit
              _
          $region488: #{_fuse_module_forward_impl.1} parent=479 // pred_fallthru
            _
          // Predicated region
          $region507: #{_fuse_module_forward_impl.1} parent=479 // pred_check
            _
          $region508: #{_fuse_module_forward_impl.1} parent=479 // pred_check_branch
            %1858 = sbr.rel (0) target = $region510
          $region509: #{_fuse_module_forward_impl.1} parent=479 // pred_region
            %1859 = vsyncadd %s1815, 16
          $region510: #{_fuse_module_forward_impl.1} parent=479 // pred_fallthru
            _
        $region480: #{_fuse_module_forward_impl.1} parent=95 // pred_fallthru
          _
        // Predicated region
        $region511: #{_fuse_module_forward_impl.1} parent=95 // pred_check
          %p1860 = pneg %p1609
        $region512: #{_fuse_module_forward_impl.1} parent=95 // pred_check_branch
          %1862 = sbr.rel (%p1860) target = $region514
        $region513: #{_fuse_module_forward_impl.1} parent=95 // pred_region
          %s1863 = scalar_lea.vmem [#allocation3], 5
          %s1864 = scalar_lea.vmem %s20, %s467
          %s1865 = scalar_lea.sflag [#allocation5], 5
          %p1867 = scmp.lt.u32.totalorder 1, 8
          %p1868 = pneg %p1867
          // Predicated region
          $region515: #{_fuse_module_forward_impl.1} parent=513 // pred_check
            _
          $region516: #{_fuse_module_forward_impl.1} parent=513 // pred_check_branch
            %1870 = sbr.rel (%p1867) target = $region518
          $region517: #{_fuse_module_forward_impl.1} parent=513 // pred_region
            %s1885 = sand.u32 1, 7
            %p1886 = scmp.eq.s32.totalorder %s1885, 0
            %p1887 = pneg %p1886
            // Predicated region
            $region530: #{_fuse_module_forward_impl.1} parent=517 // pred_check
              _
            $region531: #{_fuse_module_forward_impl.1} parent=517 // pred_check_branch
              %1889 = sbr.rel (%p1886) target = $region533
            $region532: #{_fuse_module_forward_impl.1} parent=517 // pred_region
              %s1890 = sand.u32 1, 7
              %s1891 = ssub.s32 1, %s1890
              %s1892 = scalar_lea.vmem %s1863, %s1891 [#allocation3]
              %s1893 = ssub.s32 1, %s1890
              %s1894 = scalar_lea.vmem %s1864, %s1893
              %s1895 = sshllo.u32 0, %s1890
              loop: start=0, step=1, limit=1
              $region534: #{_fuse_module_forward_impl.1} parent=532 // loop_pre_header
                _
              $region535: #{_fuse_module_forward_impl.1} parent=532 // loop_header
                %s1897 = sphi 0, %s1901
                %p1898 = scmp.ge.s32.totalorder %s1897, 1
                %s1902 = sphi %s1892, %s1892
                %s1903 = sphi %s1894, %s1894
              $region536: #{_fuse_module_forward_impl.1} parent=532 // loop_header_branch
                %1900 = sbr.rel (%p1898) target = $region540
              $region537: #{_fuse_module_forward_impl.1} parent=532 // loop_body
                %v1904 = vld [vmem:[%s1902] sm:%s1895]
                %1905 = vst [vmem:[%s1903] sm:%s1895] %v1904
              $region538: #{_fuse_module_forward_impl.1} parent=532 // loop_footer
                %s1901 = sadd.s32 1, %s1897
              $region539: #{_fuse_module_forward_impl.1} parent=532 // loop_footer_branch
                %1896 = sbr.rel target = $region535
              $region540: #{_fuse_module_forward_impl.1} parent=532 // loop_exit
                _
            $region533: #{_fuse_module_forward_impl.1} parent=517 // pred_fallthru
              _
          $region518: #{_fuse_module_forward_impl.1} parent=513 // pred_fallthru
            _
          // Predicated region
          $region519: #{_fuse_module_forward_impl.1} parent=513 // pred_check
            %p1871 = pneg %p1867
          $region520: #{_fuse_module_forward_impl.1} parent=513 // pred_check_branch
            %1873 = sbr.rel (%p1871) target = $region522
          $region521: #{_fuse_module_forward_impl.1} parent=513 // pred_region
            %s1874 = sshllo.u32 0, 1
            loop: start=0, step=1, limit=1
            $region523: #{_fuse_module_forward_impl.1} parent=521 // loop_pre_header
              _
            $region524: #{_fuse_module_forward_impl.1} parent=521 // loop_header
              %s1876 = sphi 0, %s1880
              %p1877 = scmp.ge.s32.totalorder %s1876, 1
              %s1881 = sphi %s1863, %s1863
              %s1882 = sphi %s1864, %s1864
            $region525: #{_fuse_module_forward_impl.1} parent=521 // loop_header_branch
              %1879 = sbr.rel (%p1877) target = $region529
            $region526: #{_fuse_module_forward_impl.1} parent=521 // loop_body
              %v1883 = vld [vmem:[%s1881] sm:%s1874]
              %1884 = vst [vmem:[%s1882] sm:%s1874] %v1883
            $region527: #{_fuse_module_forward_impl.1} parent=521 // loop_footer
              %s1880 = sadd.s32 1, %s1876
            $region528: #{_fuse_module_forward_impl.1} parent=521 // loop_footer_branch
              %1875 = sbr.rel target = $region524
            $region529: #{_fuse_module_forward_impl.1} parent=521 // loop_exit
              _
          $region522: #{_fuse_module_forward_impl.1} parent=513 // pred_fallthru
            _
          // Predicated region
          $region541: #{_fuse_module_forward_impl.1} parent=513 // pred_check
            _
          $region542: #{_fuse_module_forward_impl.1} parent=513 // pred_check_branch
            %1908 = sbr.rel (0) target = $region544
          $region543: #{_fuse_module_forward_impl.1} parent=513 // pred_region
            %1909 = vsyncadd %s1865, 16
          $region544: #{_fuse_module_forward_impl.1} parent=513 // pred_fallthru
            _
        $region514: #{_fuse_module_forward_impl.1} parent=95 // pred_fallthru
          _
        // Predicated region
        $region545: #{_fuse_module_forward_impl.1} parent=95 // pred_check
          %p1910 = pneg %p1610
        $region546: #{_fuse_module_forward_impl.1} parent=95 // pred_check_branch
          %1912 = sbr.rel (%p1910) target = $region548
        $region547: #{_fuse_module_forward_impl.1} parent=95 // pred_region
          %s1913 = scalar_lea.vmem [#allocation3], 6
          %s1914 = scalar_lea.vmem %s20, %s469
          %s1915 = scalar_lea.sflag [#allocation5], 6
          %p1917 = scmp.lt.u32.totalorder 1, 8
          %p1918 = pneg %p1917
          // Predicated region
          $region549: #{_fuse_module_forward_impl.1} parent=547 // pred_check
            _
          $region550: #{_fuse_module_forward_impl.1} parent=547 // pred_check_branch
            %1920 = sbr.rel (%p1917) target = $region552
          $region551: #{_fuse_module_forward_impl.1} parent=547 // pred_region
            %s1935 = sand.u32 1, 7
            %p1936 = scmp.eq.s32.totalorder %s1935, 0
            %p1937 = pneg %p1936
            // Predicated region
            $region564: #{_fuse_module_forward_impl.1} parent=551 // pred_check
              _
            $region565: #{_fuse_module_forward_impl.1} parent=551 // pred_check_branch
              %1939 = sbr.rel (%p1936) target = $region567
            $region566: #{_fuse_module_forward_impl.1} parent=551 // pred_region
              %s1940 = sand.u32 1, 7
              %s1941 = ssub.s32 1, %s1940
              %s1942 = scalar_lea.vmem %s1913, %s1941 [#allocation3]
              %s1943 = ssub.s32 1, %s1940
              %s1944 = scalar_lea.vmem %s1914, %s1943
              %s1945 = sshllo.u32 0, %s1940
              loop: start=0, step=1, limit=1
              $region568: #{_fuse_module_forward_impl.1} parent=566 // loop_pre_header
                _
              $region569: #{_fuse_module_forward_impl.1} parent=566 // loop_header
                %s1947 = sphi 0, %s1951
                %p1948 = scmp.ge.s32.totalorder %s1947, 1
                %s1952 = sphi %s1942, %s1942
                %s1953 = sphi %s1944, %s1944
              $region570: #{_fuse_module_forward_impl.1} parent=566 // loop_header_branch
                %1950 = sbr.rel (%p1948) target = $region574
              $region571: #{_fuse_module_forward_impl.1} parent=566 // loop_body
                %v1954 = vld [vmem:[%s1952] sm:%s1945]
                %1955 = vst [vmem:[%s1953] sm:%s1945] %v1954
              $region572: #{_fuse_module_forward_impl.1} parent=566 // loop_footer
                %s1951 = sadd.s32 1, %s1947
              $region573: #{_fuse_module_forward_impl.1} parent=566 // loop_footer_branch
                %1946 = sbr.rel target = $region569
              $region574: #{_fuse_module_forward_impl.1} parent=566 // loop_exit
                _
            $region567: #{_fuse_module_forward_impl.1} parent=551 // pred_fallthru
              _
          $region552: #{_fuse_module_forward_impl.1} parent=547 // pred_fallthru
            _
          // Predicated region
          $region553: #{_fuse_module_forward_impl.1} parent=547 // pred_check
            %p1921 = pneg %p1917
          $region554: #{_fuse_module_forward_impl.1} parent=547 // pred_check_branch
            %1923 = sbr.rel (%p1921) target = $region556
          $region555: #{_fuse_module_forward_impl.1} parent=547 // pred_region
            %s1924 = sshllo.u32 0, 1
            loop: start=0, step=1, limit=1
            $region557: #{_fuse_module_forward_impl.1} parent=555 // loop_pre_header
              _
            $region558: #{_fuse_module_forward_impl.1} parent=555 // loop_header
              %s1926 = sphi 0, %s1930
              %p1927 = scmp.ge.s32.totalorder %s1926, 1
              %s1931 = sphi %s1913, %s1913
              %s1932 = sphi %s1914, %s1914
            $region559: #{_fuse_module_forward_impl.1} parent=555 // loop_header_branch
              %1929 = sbr.rel (%p1927) target = $region563
            $region560: #{_fuse_module_forward_impl.1} parent=555 // loop_body
              %v1933 = vld [vmem:[%s1931] sm:%s1924]
              %1934 = vst [vmem:[%s1932] sm:%s1924] %v1933
            $region561: #{_fuse_module_forward_impl.1} parent=555 // loop_footer
              %s1930 = sadd.s32 1, %s1926
            $region562: #{_fuse_module_forward_impl.1} parent=555 // loop_footer_branch
              %1925 = sbr.rel target = $region558
            $region563: #{_fuse_module_forward_impl.1} parent=555 // loop_exit
              _
          $region556: #{_fuse_module_forward_impl.1} parent=547 // pred_fallthru
            _
          // Predicated region
          $region575: #{_fuse_module_forward_impl.1} parent=547 // pred_check
            _
          $region576: #{_fuse_module_forward_impl.1} parent=547 // pred_check_branch
            %1958 = sbr.rel (0) target = $region578
          $region577: #{_fuse_module_forward_impl.1} parent=547 // pred_region
            %1959 = vsyncadd %s1915, 16
          $region578: #{_fuse_module_forward_impl.1} parent=547 // pred_fallthru
            _
        $region548: #{_fuse_module_forward_impl.1} parent=95 // pred_fallthru
          _
        // Predicated region
        $region579: #{_fuse_module_forward_impl.1} parent=95 // pred_check
          %p1960 = pneg %p1611
        $region580: #{_fuse_module_forward_impl.1} parent=95 // pred_check_branch
          %1962 = sbr.rel (%p1960) target = $region582
        $region581: #{_fuse_module_forward_impl.1} parent=95 // pred_region
          %s1963 = scalar_lea.vmem [#allocation3], 7
          %s1964 = scalar_lea.vmem %s20, %s471
          %s1965 = scalar_lea.sflag [#allocation5], 7
          %p1967 = scmp.lt.u32.totalorder 1, 8
          %p1968 = pneg %p1967
          // Predicated region
          $region583: #{_fuse_module_forward_impl.1} parent=581 // pred_check
            _
          $region584: #{_fuse_module_forward_impl.1} parent=581 // pred_check_branch
            %1970 = sbr.rel (%p1967) target = $region586
          $region585: #{_fuse_module_forward_impl.1} parent=581 // pred_region
            %s1985 = sand.u32 1, 7
            %p1986 = scmp.eq.s32.totalorder %s1985, 0
            %p1987 = pneg %p1986
            // Predicated region
            $region598: #{_fuse_module_forward_impl.1} parent=585 // pred_check
              _
            $region599: #{_fuse_module_forward_impl.1} parent=585 // pred_check_branch
              %1989 = sbr.rel (%p1986) target = $region601
            $region600: #{_fuse_module_forward_impl.1} parent=585 // pred_region
              %s1990 = sand.u32 1, 7
              %s1991 = ssub.s32 1, %s1990
              %s1992 = scalar_lea.vmem %s1963, %s1991 [#allocation3]
              %s1993 = ssub.s32 1, %s1990
              %s1994 = scalar_lea.vmem %s1964, %s1993
              %s1995 = sshllo.u32 0, %s1990
              loop: start=0, step=1, limit=1
              $region602: #{_fuse_module_forward_impl.1} parent=600 // loop_pre_header
                _
              $region603: #{_fuse_module_forward_impl.1} parent=600 // loop_header
                %s1997 = sphi 0, %s2001
                %p1998 = scmp.ge.s32.totalorder %s1997, 1
                %s2002 = sphi %s1992, %s1992
                %s2003 = sphi %s1994, %s1994
              $region604: #{_fuse_module_forward_impl.1} parent=600 // loop_header_branch
                %2000 = sbr.rel (%p1998) target = $region608
              $region605: #{_fuse_module_forward_impl.1} parent=600 // loop_body
                %v2004 = vld [vmem:[%s2002] sm:%s1995]
                %2005 = vst [vmem:[%s2003] sm:%s1995] %v2004
              $region606: #{_fuse_module_forward_impl.1} parent=600 // loop_footer
                %s2001 = sadd.s32 1, %s1997
              $region607: #{_fuse_module_forward_impl.1} parent=600 // loop_footer_branch
                %1996 = sbr.rel target = $region603
              $region608: #{_fuse_module_forward_impl.1} parent=600 // loop_exit
                _
            $region601: #{_fuse_module_forward_impl.1} parent=585 // pred_fallthru
              _
          $region586: #{_fuse_module_forward_impl.1} parent=581 // pred_fallthru
            _
          // Predicated region
          $region587: #{_fuse_module_forward_impl.1} parent=581 // pred_check
            %p1971 = pneg %p1967
          $region588: #{_fuse_module_forward_impl.1} parent=581 // pred_check_branch
            %1973 = sbr.rel (%p1971) target = $region590
          $region589: #{_fuse_module_forward_impl.1} parent=581 // pred_region
            %s1974 = sshllo.u32 0, 1
            loop: start=0, step=1, limit=1
            $region591: #{_fuse_module_forward_impl.1} parent=589 // loop_pre_header
              _
            $region592: #{_fuse_module_forward_impl.1} parent=589 // loop_header
              %s1976 = sphi 0, %s1980
              %p1977 = scmp.ge.s32.totalorder %s1976, 1
              %s1981 = sphi %s1963, %s1963
              %s1982 = sphi %s1964, %s1964
            $region593: #{_fuse_module_forward_impl.1} parent=589 // loop_header_branch
              %1979 = sbr.rel (%p1977) target = $region597
            $region594: #{_fuse_module_forward_impl.1} parent=589 // loop_body
              %v1983 = vld [vmem:[%s1981] sm:%s1974]
              %1984 = vst [vmem:[%s1982] sm:%s1974] %v1983
            $region595: #{_fuse_module_forward_impl.1} parent=589 // loop_footer
              %s1980 = sadd.s32 1, %s1976
            $region596: #{_fuse_module_forward_impl.1} parent=589 // loop_footer_branch
              %1975 = sbr.rel target = $region592
            $region597: #{_fuse_module_forward_impl.1} parent=589 // loop_exit
              _
          $region590: #{_fuse_module_forward_impl.1} parent=581 // pred_fallthru
            _
          // Predicated region
          $region609: #{_fuse_module_forward_impl.1} parent=581 // pred_check
            _
          $region610: #{_fuse_module_forward_impl.1} parent=581 // pred_check_branch
            %2008 = sbr.rel (0) target = $region612
          $region611: #{_fuse_module_forward_impl.1} parent=581 // pred_region
            %2009 = vsyncadd %s1965, 16
          $region612: #{_fuse_module_forward_impl.1} parent=581 // pred_fallthru
            _
        $region582: #{_fuse_module_forward_impl.1} parent=95 // pred_fallthru
          _
        // Predicated region
        $region613: #{_fuse_module_forward_impl.1} parent=95 // pred_check
          %p2010 = pneg %p1604
        $region614: #{_fuse_module_forward_impl.1} parent=95 // pred_check_branch
          %2012 = sbr.rel (%p2010) target = $region616
        $region615: #{_fuse_module_forward_impl.1} parent=95 // pred_region
          %s2013 = sshll.u32 %s846, 4
          %2014 = dma.done [#allocation5], %s2013
        $region616: #{_fuse_module_forward_impl.1} parent=95 // pred_fallthru
          _
        // Predicated region
        $region617: #{_fuse_module_forward_impl.1} parent=95 // pred_check
          %p2015 = pneg %p1605
        $region618: #{_fuse_module_forward_impl.1} parent=95 // pred_check_branch
          %2017 = sbr.rel (%p2015) target = $region620
        $region619: #{_fuse_module_forward_impl.1} parent=95 // pred_region
          %s2018 = scalar_lea.sflag [#allocation5], 1
          %s2019 = sshll.u32 %s846, 4
          %2020 = dma.done %s2018, %s2019
        $region620: #{_fuse_module_forward_impl.1} parent=95 // pred_fallthru
          _
        // Predicated region
        $region621: #{_fuse_module_forward_impl.1} parent=95 // pred_check
          %p2021 = pneg %p1606
        $region622: #{_fuse_module_forward_impl.1} parent=95 // pred_check_branch
          %2023 = sbr.rel (%p2021) target = $region624
        $region623: #{_fuse_module_forward_impl.1} parent=95 // pred_region
          %s2024 = scalar_lea.sflag [#allocation5], 2
          %s2025 = sshll.u32 %s846, 4
          %2026 = dma.done %s2024, %s2025
        $region624: #{_fuse_module_forward_impl.1} parent=95 // pred_fallthru
          _
        // Predicated region
        $region625: #{_fuse_module_forward_impl.1} parent=95 // pred_check
          %p2027 = pneg %p1607
        $region626: #{_fuse_module_forward_impl.1} parent=95 // pred_check_branch
          %2029 = sbr.rel (%p2027) target = $region628
        $region627: #{_fuse_module_forward_impl.1} parent=95 // pred_region
          %s2030 = scalar_lea.sflag [#allocation5], 3
          %s2031 = sshll.u32 %s846, 4
          %2032 = dma.done %s2030, %s2031
        $region628: #{_fuse_module_forward_impl.1} parent=95 // pred_fallthru
          _
        // Predicated region
        $region629: #{_fuse_module_forward_impl.1} parent=95 // pred_check
          %p2033 = pneg %p1608
        $region630: #{_fuse_module_forward_impl.1} parent=95 // pred_check_branch
          %2035 = sbr.rel (%p2033) target = $region632
        $region631: #{_fuse_module_forward_impl.1} parent=95 // pred_region
          %s2036 = scalar_lea.sflag [#allocation5], 4
          %s2037 = sshll.u32 %s846, 4
          %2038 = dma.done %s2036, %s2037
        $region632: #{_fuse_module_forward_impl.1} parent=95 // pred_fallthru
          _
        // Predicated region
        $region633: #{_fuse_module_forward_impl.1} parent=95 // pred_check
          %p2039 = pneg %p1609
        $region634: #{_fuse_module_forward_impl.1} parent=95 // pred_check_branch
          %2041 = sbr.rel (%p2039) target = $region636
        $region635: #{_fuse_module_forward_impl.1} parent=95 // pred_region
          %s2042 = scalar_lea.sflag [#allocation5], 5
          %s2043 = sshll.u32 %s846, 4
          %2044 = dma.done %s2042, %s2043
        $region636: #{_fuse_module_forward_impl.1} parent=95 // pred_fallthru
          _
        // Predicated region
        $region637: #{_fuse_module_forward_impl.1} parent=95 // pred_check
          %p2045 = pneg %p1610
        $region638: #{_fuse_module_forward_impl.1} parent=95 // pred_check_branch
          %2047 = sbr.rel (%p2045) target = $region640
        $region639: #{_fuse_module_forward_impl.1} parent=95 // pred_region
          %s2048 = scalar_lea.sflag [#allocation5], 6
          %s2049 = sshll.u32 %s846, 4
          %2050 = dma.done %s2048, %s2049
        $region640: #{_fuse_module_forward_impl.1} parent=95 // pred_fallthru
          _
        // Predicated region
        $region641: #{_fuse_module_forward_impl.1} parent=95 // pred_check
          %p2051 = pneg %p1611
        $region642: #{_fuse_module_forward_impl.1} parent=95 // pred_check_branch
          %2053 = sbr.rel (%p2051) target = $region644
        $region643: #{_fuse_module_forward_impl.1} parent=95 // pred_region
          %s2054 = scalar_lea.sflag [#allocation5], 7
          %s2055 = sshll.u32 %s846, 4
          %2056 = dma.done %s2054, %s2055
        $region644: #{_fuse_module_forward_impl.1} parent=95 // pred_fallthru
          _
      $region96: #{_fuse_module_forward_impl.1} parent=5 // pred_fallthru
        _
    $region6: #{_fuse_module_forward_impl.1} parent=1 // loop_footer
      %s31 = sadd.s32 1, %s27
    $region7: #{_fuse_module_forward_impl.1} parent=1 // loop_footer_branch
      %26 = sbr.rel target = $region3
    $region8: #{_fuse_module_forward_impl.1} parent=1 // loop_exit
      _
    %2057 = vsyncpa [#allocation7], 1
    %s2058 = scalar_lea.sflag [#allocation7], 1
    %2059 = vsyncpa %s2058, 1
  %2060 = vsyncmov [#allocation4]
  %s2061 = vpop.sfrf %2060
  %p2062 = scmp.eq.s32.totalorder %s2061, 0
  %p2063 = pneg %p2062
  %2065 = shalt.err (%p2063)
  %s2066 = scalar_lea.sflag [#allocation4], 1
  %2067 = vsyncmov %s2066
  %s2068 = vpop.sfrf %2067
  %p2069 = scmp.eq.s32.totalorder %s2068, 0
  %p2070 = pneg %p2069
  %2072 = shalt.err (%p2070)
  %s2073 = scalar_lea.sflag [#allocation4], 2
  %2074 = vsyncmov %s2073
  %s2075 = vpop.sfrf %2074
  %p2076 = scmp.eq.s32.totalorder %s2075, 0
  %p2077 = pneg %p2076
  %2079 = shalt.err (%p2077)
  %s2080 = scalar_lea.sflag [#allocation4], 3
  %2081 = vsyncmov %s2080
  %s2082 = vpop.sfrf %2081
  %p2083 = scmp.eq.s32.totalorder %s2082, 0
  %p2084 = pneg %p2083
  %2086 = shalt.err (%p2084)
  %s2087 = scalar_lea.sflag [#allocation4], 4
  %2088 = vsyncmov %s2087
  %s2089 = vpop.sfrf %2088
  %p2090 = scmp.eq.s32.totalorder %s2089, 0
  %p2091 = pneg %p2090
  %2093 = shalt.err (%p2091)
  %s2094 = scalar_lea.sflag [#allocation4], 5
  %2095 = vsyncmov %s2094
  %s2096 = vpop.sfrf %2095
  %p2097 = scmp.eq.s32.totalorder %s2096, 0
  %p2098 = pneg %p2097
  %2100 = shalt.err (%p2098)
  %s2101 = scalar_lea.sflag [#allocation4], 6
  %2102 = vsyncmov %s2101
  %s2103 = vpop.sfrf %2102
  %p2104 = scmp.eq.s32.totalorder %s2103, 0
  %p2105 = pneg %p2104
  %2107 = shalt.err (%p2105)
  %s2108 = scalar_lea.sflag [#allocation4], 7
  %2109 = vsyncmov %s2108
  %s2110 = vpop.sfrf %2109
  %p2111 = scmp.eq.s32.totalorder %s2110, 0
  %p2112 = pneg %p2111
  %2114 = shalt.err (%p2112)
  %2115 = vsyncmov [#allocation5]
  %s2116 = vpop.sfrf %2115
  %p2117 = scmp.eq.s32.totalorder %s2116, 0
  %p2118 = pneg %p2117
  %2120 = shalt.err (%p2118)
  %s2121 = scalar_lea.sflag [#allocation5], 1
  %2122 = vsyncmov %s2121
  %s2123 = vpop.sfrf %2122
  %p2124 = scmp.eq.s32.totalorder %s2123, 0
  %p2125 = pneg %p2124
  %2127 = shalt.err (%p2125)
  %s2128 = scalar_lea.sflag [#allocation5], 2
  %2129 = vsyncmov %s2128
  %s2130 = vpop.sfrf %2129
  %p2131 = scmp.eq.s32.totalorder %s2130, 0
  %p2132 = pneg %p2131
  %2134 = shalt.err (%p2132)
  %s2135 = scalar_lea.sflag [#allocation5], 3
  %2136 = vsyncmov %s2135
  %s2137 = vpop.sfrf %2136
  %p2138 = scmp.eq.s32.totalorder %s2137, 0
  %p2139 = pneg %p2138
  %2141 = shalt.err (%p2139)
  %s2142 = scalar_lea.sflag [#allocation5], 4
  %2143 = vsyncmov %s2142
  %s2144 = vpop.sfrf %2143
  %p2145 = scmp.eq.s32.totalorder %s2144, 0
  %p2146 = pneg %p2145
  %2148 = shalt.err (%p2146)
  %s2149 = scalar_lea.sflag [#allocation5], 5
  %2150 = vsyncmov %s2149
  %s2151 = vpop.sfrf %2150
  %p2152 = scmp.eq.s32.totalorder %s2151, 0
  %p2153 = pneg %p2152
  %2155 = shalt.err (%p2153)
  %s2156 = scalar_lea.sflag [#allocation5], 6
  %2157 = vsyncmov %s2156
  %s2158 = vpop.sfrf %2157
  %p2159 = scmp.eq.s32.totalorder %s2158, 0
  %p2160 = pneg %p2159
  %2162 = shalt.err (%p2160)
  %s2163 = scalar_lea.sflag [#allocation5], 7
  %2164 = vsyncmov %s2163
  %s2165 = vpop.sfrf %2164
  %p2166 = scmp.eq.s32.totalorder %s2165, 0
  %p2167 = pneg %p2166
  %2169 = shalt.err (%p2167)

// kernel: _fuse_module_forward_impl.1
$region0: #{_fuse_module_forward_impl.1}
  #allocation0 [shape = 'u32[]', space=smem, size = 0x4, offset = 0x4, fixed_abs, tag = 'smem constant byte address 0x4 - core index']
  #allocation1 [shape = 'u32[144,128]{1,0:T(1,128)}', space=vmem, size = 0x12000, scoped, tag = 'internal scratch']
  #allocation2 [shape = 'f32[8,128]{1,0:T(8,128)}', space=vmem, size = 0x1000, scoped, tag = 'scratch operand']
  #allocation3 [shape = 'f32[8,128]{1,0:T(8,128)}', space=vmem, size = 0x1000, scoped, tag = 'scratch operand']
  #allocation4 [shape = 's32[8]{0}', space=sflag, size = 0x20, scoped, tag = 'scratch operand']
  #allocation5 [shape = 's32[8]{0}', space=sflag, size = 0x20, scoped, tag = 'scratch operand']
  #allocation8 [shape = 's32[]', space=sflag, size = 0x4, offset = 0, fixed_abs, tag = 'sflag constant byte address 0x0 - dummy sync flag']
  #allocation9 [shape = 's32[]', space=sflag, size = 0x4, offset = 0, fixed_abs, tag = 'sflag constant byte address 0x0 - dummy sync flag']
  #allocation10 [shape = 's32[]', space=sflag, size = 0x4, offset = 0, fixed_abs, tag = 'sflag constant byte address 0x0 - dummy sync flag']
  #allocation11 [shape = 's32[]', space=sflag, size = 0x4, offset = 0, fixed_abs, tag = 'sflag constant byte address 0x0 - dummy sync flag']
  #allocation12 [shape = 's32[]', space=sflag, size = 0x4, offset = 0, fixed_abs, tag = 'sflag constant byte address 0x0 - dummy sync flag']
  #allocation13 [shape = 's32[]', space=sflag, size = 0x4, offset = 0, fixed_abs, tag = 'sflag constant byte address 0x0 - dummy sync flag']
  #allocation14 [shape = 's32[]', space=sflag, size = 0x4, offset = 0, fixed_abs, tag = 'sflag constant byte address 0x0 - dummy sync flag']
  #allocation15 [shape = 's32[]', space=sflag, size = 0x4, offset = 0, fixed_abs, tag = 'sflag constant byte address 0x0 - dummy sync flag']
  #allocation16 [shape = 's32[]', space=sflag, size = 0x4, offset = 0, fixed_abs, tag = 'sflag constant byte address 0x0 - dummy sync flag']
  #allocation17 [shape = 's32[]', space=sflag, size = 0x4, offset = 0, fixed_abs, tag = 'sflag constant byte address 0x0 - dummy sync flag']
  #allocation18 [shape = 's32[]', space=sflag, size = 0x4, offset = 0, fixed_abs, tag = 'sflag constant byte address 0x0 - dummy sync flag']
  #allocation19 [shape = 's32[]', space=sflag, size = 0x4, offset = 0, fixed_abs, tag = 'sflag constant byte address 0x0 - dummy sync flag']
  #allocation20 [shape = 's32[]', space=sflag, size = 0x4, offset = 0, fixed_abs, tag = 'sflag constant byte address 0x0 - dummy sync flag']
  #allocation21 [shape = 's32[]', space=sflag, size = 0x4, offset = 0, fixed_abs, tag = 'sflag constant byte address 0x0 - dummy sync flag']
  #allocation22 [shape = 's32[]', space=sflag, size = 0x4, offset = 0, fixed_abs, tag = 'sflag constant byte address 0x0 - dummy sync flag']
  #allocation23 [shape = 's32[]', space=sflag, size = 0x4, offset = 0, fixed_abs, tag = 'sflag constant byte address 0x0 - dummy sync flag']
  %s0 = inlined_call_operand.vmem [shape: s32[16], index: 0, kind: input, shape index: {}]
  %s1 = inlined_call_operand.vmem [shape: f32[32,128], index: 1, kind: input, shape index: {}, may-alias: {1,20}]
  %s2 = inlined_call_operand.vmem [shape: f32[16,128], index: 2, kind: input, shape index: {}]
  %s3 = inlined_call_operand.vmem [shape: f32[1,128], index: 3, kind: input, shape index: {}]
  %s4 = inlined_call_operand.vmem [shape: f32[1,128], index: 4, kind: input, shape index: {}]
  %s5 = inlined_call_operand.vmem [shape: f32[1,128], index: 5, kind: input, shape index: {}]
  %s6 = inlined_call_operand.vmem [shape: f32[1,128], index: 6, kind: input, shape index: {}]
  %s7 = inlined_call_operand.vmem [shape: bf16[128,128], index: 7, kind: input, shape index: {}]
  %s8 = inlined_call_operand.vmem [shape: bf16[128,128], index: 8, kind: input, shape index: {}]
  %s9 = inlined_call_operand.vmem [shape: f32[1,128], index: 9, kind: input, shape index: {}]
  %s10 = inlined_call_operand.vmem [shape: bf16[128,128], index: 10, kind: input, shape index: {}]
  %s11 = inlined_call_operand.vmem [shape: f32[1,128], index: 11, kind: input, shape index: {}]
  %s12 = inlined_call_operand.vmem [shape: f32[1,128], index: 12, kind: input, shape index: {}]
  %s13 = inlined_call_operand.vmem [shape: f32[1,128], index: 13, kind: input, shape index: {}]
  %s14 = inlined_call_operand.vmem [shape: bf16[128,128], index: 14, kind: input, shape index: {}]
  %s15 = inlined_call_operand.vmem [shape: f32[1,128], index: 15, kind: input, shape index: {}]
  %s16 = inlined_call_operand.vmem [shape: bf16[128,128], index: 16, kind: input, shape index: {}]
  %s17 = inlined_call_operand.vmem [shape: f32[1,128], index: 17, kind: input, shape index: {}]
  %s18 = inlined_call_operand.vmem [shape: f32[1,128], index: 18, kind: input, shape index: {}]
  %s19 = inlined_call_operand.vmem [shape: f32[1,128], index: 19, kind: input, shape index: {}]
  %s20 = inlined_call_operand.vmem [shape: f32[32,128], index: 20, kind: output, shape index: {}, may-alias: {1,20}]
  %s21 = sld [smem:[#allocation0]]
  $region645: #{_fuse_module_forward_impl.1} parent=0
    _
  %s23 = ssub.s32 1, %s21
  %s24 = scalar_select 0, %s23, %s21
  $region1: #{_fuse_module_forward_impl.1} parent=0
    #allocation6 [shape = 'u8[512]{0}', space=smem, size = 0x200, scoped, tag = 'input window, operand 0, single buffered']
    #allocation7 [shape = 's32[2]{0}', space=sflag, size = 0x8, scoped, tag = 'scoped memory for _fuse_module_forward_impl.1']
    %25 = vsyncpa [#allocation7], 0
    loop: start=0, step=1, limit=3
    $region2: #{_fuse_module_forward_impl.1} parent=1 // loop_pre_header
      _
    $region3: #{_fuse_module_forward_impl.1} parent=1 // loop_header
      %s27 = sphi 0, %s31
      %p28 = scmp.ge.s32.totalorder %s27, 3
      %s34 = sphi 0, %s34
      %s36 = sphi 0, %s34
      %s44 = sphi 0, %s36
      %s50 = sphi 0, %s52
      %s53 = sphi 0, %s50
      %s63 = sphi 0, %s53
      %s67 = sphi 0, %s67
      %s69 = sphi 0, %s67
      %s77 = sphi 0, %s69
      %s81 = sphi 0, %s81
      %s83 = sphi 0, %s81
      %s91 = sphi 0, %s83
      %s95 = sphi 0, %s95
      %s97 = sphi 0, %s95
      %s105 = sphi 0, %s97
      %s109 = sphi 0, %s109
      %s111 = sphi 0, %s109
      %s119 = sphi 0, %s111
      %s123 = sphi 0, %s123
      %s125 = sphi 0, %s123
      %s133 = sphi 0, %s125
      %s137 = sphi 0, %s137
      %s139 = sphi 0, %s137
      %s147 = sphi 0, %s139
      %s151 = sphi 0, %s151
      %s153 = sphi 0, %s151
      %s161 = sphi 0, %s153
      %s165 = sphi 0, %s165
      %s167 = sphi 0, %s165
      %s175 = sphi 0, %s167
      %s179 = sphi 0, %s179
      %s181 = sphi 0, %s179
      %s189 = sphi 0, %s181
      %s193 = sphi 0, %s193
      %s195 = sphi 0, %s193
      %s203 = sphi 0, %s195
      %s207 = sphi 0, %s207
      %s209 = sphi 0, %s207
      %s217 = sphi 0, %s209
      %s221 = sphi 0, %s221
      %s223 = sphi 0, %s221
      %s231 = sphi 0, %s223
      %s235 = sphi 0, %s235
      %s237 = sphi 0, %s235
      %s245 = sphi 0, %s237
      %s249 = sphi 0, %s249
      %s251 = sphi 0, %s249
      %s259 = sphi 0, %s251
      %s263 = sphi 0, %s263
      %s265 = sphi 0, %s263
      %s273 = sphi 0, %s265
      %s277 = sphi 0, %s277
      %s279 = sphi 0, %s277
      %s287 = sphi 0, %s279
      %s291 = sphi 0, %s291
      %s293 = sphi 0, %s291
      %s301 = sphi 0, %s293
    $region4: #{_fuse_module_forward_impl.1} parent=1 // loop_header_branch
      %30 = sbr.rel (%p28) target = $region8
    $region5: #{_fuse_module_forward_impl.1} parent=1 // loop_body
      %s32 = ssub.s32 %s27, 1
      %s33 = sadd.s32 %s27, 1
      %s35 = sadd.s32 %s34, 1
      %p37 = scmp.eq.s32.totalorder %s27, 1
      %p38 = scmp.ne.s32.totalorder %s34, %s36
      %p39 = scmp.eq.s32.totalorder %s27, 0
      %p40 = por %p38, %p39
      %p41 = scmp.ne.s32.totalorder %s34, %s36
      %p42 = scmp.eq.s32.totalorder %s32, 1
      %p43 = por %p41, %p42
      %p45 = scmp.ne.s32.totalorder %s36, %s44
      %p46 = scmp.eq.s32.totalorder %s32, 0
      %p47 = por %p45, %p46
      %s48 = ssub.s32 %s27, %s33
      %p49 = scmp.eq.s32.totalorder %s48, 0
      %s51 = sadd.s32 %s50, 1
      %s52 = scalar_select %p49, %s50, %s51
      %p54 = pneg %p49
      %p55 = scmp.eq.s32.totalorder %s27, 1
      %p56 = por %p54, %p55
      %p57 = scmp.ne.s32.totalorder %s50, %s53
      %p58 = scmp.eq.s32.totalorder %s27, 0
      %p59 = por %p57, %p58
      %p60 = scmp.ne.s32.totalorder %s50, %s53
      %p61 = scmp.eq.s32.totalorder %s32, 1
      %p62 = por %p60, %p61
      %p64 = scmp.ne.s32.totalorder %s53, %s63
      %p65 = scmp.eq.s32.totalorder %s32, 0
      %p66 = por %p64, %p65
      %s68 = sadd.s32 %s67, 1
      %p70 = scmp.eq.s32.totalorder %s27, 1
      %p71 = scmp.ne.s32.totalorder %s67, %s69
      %p72 = scmp.eq.s32.totalorder %s27, 0
      %p73 = por %p71, %p72
      %p74 = scmp.ne.s32.totalorder %s67, %s69
      %p75 = scmp.eq.s32.totalorder %s32, 1
      %p76 = por %p74, %p75
      %p78 = scmp.ne.s32.totalorder %s69, %s77
      %p79 = scmp.eq.s32.totalorder %s32, 0
      %p80 = por %p78, %p79
      %s82 = sadd.s32 %s81, 1
      %p84 = scmp.eq.s32.totalorder %s27, 1
      %p85 = scmp.ne.s32.totalorder %s81, %s83
      %p86 = scmp.eq.s32.totalorder %s27, 0
      %p87 = por %p85, %p86
      %p88 = scmp.ne.s32.totalorder %s81, %s83
      %p89 = scmp.eq.s32.totalorder %s32, 1
      %p90 = por %p88, %p89
      %p92 = scmp.ne.s32.totalorder %s83, %s91
      %p93 = scmp.eq.s32.totalorder %s32, 0
      %p94 = por %p92, %p93
      %s96 = sadd.s32 %s95, 1
      %p98 = scmp.eq.s32.totalorder %s27, 1
      %p99 = scmp.ne.s32.totalorder %s95, %s97
      %p100 = scmp.eq.s32.totalorder %s27, 0
      %p101 = por %p99, %p100
      %p102 = scmp.ne.s32.totalorder %s95, %s97
      %p103 = scmp.eq.s32.totalorder %s32, 1
      %p104 = por %p102, %p103
      %p106 = scmp.ne.s32.totalorder %s97, %s105
      %p107 = scmp.eq.s32.totalorder %s32, 0
      %p108 = por %p106, %p107
      %s110 = sadd.s32 %s109, 1
      %p112 = scmp.eq.s32.totalorder %s27, 1
      %p113 = scmp.ne.s32.totalorder %s109, %s111
      %p114 = scmp.eq.s32.totalorder %s27, 0
      %p115 = por %p113, %p114
      %p116 = scmp.ne.s32.totalorder %s109, %s111
      %p117 = scmp.eq.s32.totalorder %s32, 1
      %p118 = por %p116, %p117
      %p120 = scmp.ne.s32.totalorder %s111, %s119
      %p121 = scmp.eq.s32.totalorder %s32, 0
      %p122 = por %p120, %p121
      %s124 = sadd.s32 %s123, 1
      %p126 = scmp.eq.s32.totalorder %s27, 1
      %p127 = scmp.ne.s32.totalorder %s123, %s125
      %p128 = scmp.eq.s32.totalorder %s27, 0
      %p129 = por %p127, %p128
      %p130 = scmp.ne.s32.totalorder %s123, %s125
      %p131 = scmp.eq.s32.totalorder %s32, 1
      %p132 = por %p130, %p131
      %p134 = scmp.ne.s32.totalorder %s125, %s133
      %p135 = scmp.eq.s32.totalorder %s32, 0
      %p136 = por %p134, %p135
      %s138 = sadd.s32 %s137, 1
      %p140 = scmp.eq.s32.totalorder %s27, 1
      %p141 = scmp.ne.s32.totalorder %s137, %s139
      %p142 = scmp.eq.s32.totalorder %s27, 0
      %p143 = por %p141, %p142
      %p144 = scmp.ne.s32.totalorder %s137, %s139
      %p145 = scmp.eq.s32.totalorder %s32, 1
      %p146 = por %p144, %p145
      %p148 = scmp.ne.s32.totalorder %s139, %s147
      %p149 = scmp.eq.s32.totalorder %s32, 0
      %p150 = por %p148, %p149
      %s152 = sadd.s32 %s151, 1
      %p154 = scmp.eq.s32.totalorder %s27, 1
      %p155 = scmp.ne.s32.totalorder %s151, %s153
      %p156 = scmp.eq.s32.totalorder %s27, 0
      %p157 = por %p155, %p156
      %p158 = scmp.ne.s32.totalorder %s151, %s153
      %p159 = scmp.eq.s32.totalorder %s32, 1
      %p160 = por %p158, %p159
      %p162 = scmp.ne.s32.totalorder %s153, %s161
      %p163 = scmp.eq.s32.totalorder %s32, 0
      %p164 = por %p162, %p163
      %s166 = sadd.s32 %s165, 1
      %p168 = scmp.eq.s32.totalorder %s27, 1
      %p169 = scmp.ne.s32.totalorder %s165, %s167
      %p170 = scmp.eq.s32.totalorder %s27, 0
      %p171 = por %p169, %p170
      %p172 = scmp.ne.s32.totalorder %s165, %s167
      %p173 = scmp.eq.s32.totalorder %s32, 1
      %p174 = por %p172, %p173
      %p176 = scmp.ne.s32.totalorder %s167, %s175
      %p177 = scmp.eq.s32.totalorder %s32, 0
      %p178 = por %p176, %p177
      %s180 = sadd.s32 %s179, 1
      %p182 = scmp.eq.s32.totalorder %s27, 1
      %p183 = scmp.ne.s32.totalorder %s179, %s181
      %p184 = scmp.eq.s32.totalorder %s27, 0
      %p185 = por %p183, %p184
      %p186 = scmp.ne.s32.totalorder %s179, %s181
      %p187 = scmp.eq.s32.totalorder %s32, 1
      %p188 = por %p186, %p187
      %p190 = scmp.ne.s32.totalorder %s181, %s189
      %p191 = scmp.eq.s32.totalorder %s32, 0
      %p192 = por %p190, %p191
      %s194 = sadd.s32 %s193, 1
      %p196 = scmp.eq.s32.totalorder %s27, 1
      %p197 = scmp.ne.s32.totalorder %s193, %s195
      %p198 = scmp.eq.s32.totalorder %s27, 0
      %p199 = por %p197, %p198
      %p200 = scmp.ne.s32.totalorder %s193, %s195
      %p201 = scmp.eq.s32.totalorder %s32, 1
      %p202 = por %p200, %p201
      %p204 = scmp.ne.s32.totalorder %s195, %s203
      %p205 = scmp.eq.s32.totalorder %s32, 0
      %p206 = por %p204, %p205
      %s208 = sadd.s32 %s207, 1
      %p210 = scmp.eq.s32.totalorder %s27, 1
      %p211 = scmp.ne.s32.totalorder %s207, %s209
      %p212 = scmp.eq.s32.totalorder %s27, 0
      %p213 = por %p211, %p212
      %p214 = scmp.ne.s32.totalorder %s207, %s209
      %p215 = scmp.eq.s32.totalorder %s32, 1
      %p216 = por %p214, %p215
      %p218 = scmp.ne.s32.totalorder %s209, %s217
      %p219 = scmp.eq.s32.totalorder %s32, 0
      %p220 = por %p218, %p219
      %s222 = sadd.s32 %s221, 1
      %p224 = scmp.eq.s32.totalorder %s27, 1
      %p225 = scmp.ne.s32.totalorder %s221, %s223
      %p226 = scmp.eq.s32.totalorder %s27, 0
      %p227 = por %p225, %p226
      %p228 = scmp.ne.s32.totalorder %s221, %s223
      %p229 = scmp.eq.s32.totalorder %s32, 1
      %p230 = por %p228, %p229
      %p232 = scmp.ne.s32.totalorder %s223, %s231
      %p233 = scmp.eq.s32.totalorder %s32, 0
      %p234 = por %p232, %p233
      %s236 = sadd.s32 %s235, 1
      %p238 = scmp.eq.s32.totalorder %s27, 1
      %p239 = scmp.ne.s32.totalorder %s235, %s237
      %p240 = scmp.eq.s32.totalorder %s27, 0
      %p241 = por %p239, %p240
      %p242 = scmp.ne.s32.totalorder %s235, %s237
      %p243 = scmp.eq.s32.totalorder %s32, 1
      %p244 = por %p242, %p243
      %p246 = scmp.ne.s32.totalorder %s237, %s245
      %p247 = scmp.eq.s32.totalorder %s32, 0
      %p248 = por %p246, %p247
      %s250 = sadd.s32 %s249, 1
      %p252 = scmp.eq.s32.totalorder %s27, 1
      %p253 = scmp.ne.s32.totalorder %s249, %s251
      %p254 = scmp.eq.s32.totalorder %s27, 0
      %p255 = por %p253, %p254
      %p256 = scmp.ne.s32.totalorder %s249, %s251
      %p257 = scmp.eq.s32.totalorder %s32, 1
      %p258 = por %p256, %p257
      %p260 = scmp.ne.s32.totalorder %s251, %s259
      %p261 = scmp.eq.s32.totalorder %s32, 0
      %p262 = por %p260, %p261
      %s264 = sadd.s32 %s263, 1
      %p266 = scmp.eq.s32.totalorder %s27, 1
      %p267 = scmp.ne.s32.totalorder %s263, %s265
      %p268 = scmp.eq.s32.totalorder %s27, 0
      %p269 = por %p267, %p268
      %p270 = scmp.ne.s32.totalorder %s263, %s265
      %p271 = scmp.eq.s32.totalorder %s32, 1
      %p272 = por %p270, %p271
      %p274 = scmp.ne.s32.totalorder %s265, %s273
      %p275 = scmp.eq.s32.totalorder %s32, 0
      %p276 = por %p274, %p275
      %s278 = sadd.s32 %s277, 1
      %p280 = scmp.eq.s32.totalorder %s27, 1
      %p281 = scmp.ne.s32.totalorder %s277, %s279
      %p282 = scmp.eq.s32.totalorder %s27, 0
      %p283 = por %p281, %p282
      %p284 = scmp.ne.s32.totalorder %s277, %s279
      %p285 = scmp.eq.s32.totalorder %s32, 1
      %p286 = por %p284, %p285
      %p288 = scmp.ne.s32.totalorder %s279, %s287
      %p289 = scmp.eq.s32.totalorder %s32, 0
      %p290 = por %p288, %p289
      %s292 = sadd.s32 %s291, 1
      %p294 = scmp.eq.s32.totalorder %s27, 1
      %p295 = scmp.ne.s32.totalorder %s291, %s293
      %p296 = scmp.eq.s32.totalorder %s27, 0
      %p297 = por %p295, %p296
      %p298 = scmp.ne.s32.totalorder %s291, %s293
      %p299 = scmp.eq.s32.totalorder %s32, 1
      %p300 = por %p298, %p299
      %p302 = scmp.ne.s32.totalorder %s293, %s301
      %p303 = scmp.eq.s32.totalorder %s32, 0
      %p304 = por %p302, %p303
      %p305 = scmp.le.s32.totalorder 1, %s27
      // Predicated region
      $region9: #{_fuse_module_forward_impl.1} parent=5 // pred_check
        %p306 = pneg %p305
      $region10: #{_fuse_module_forward_impl.1} parent=5 // pred_check_branch
        %308 = sbr.rel (%p306) target = $region12
      $region11: #{_fuse_module_forward_impl.1} parent=5 // pred_region
        %s309 = ssub.s32 %s27, 1
        // Predicated region
        $region13: #{_fuse_module_forward_impl.1} parent=11 // pred_check
          %p310 = pneg %p47
        $region14: #{_fuse_module_forward_impl.1} parent=11 // pred_check_branch
          %312 = sbr.rel (%p310) target = $region16
        $region15: #{_fuse_module_forward_impl.1} parent=11 // pred_region
          %s314 = ssub.s32 16, 16
          %315 = vsyncadd [#allocation7], %s314
          %s317 = sshll.u32 %s0, 4
          %s318 = int_to_ptr.vmem [resolvable:$true] %s317
          %320 = dma.vmem_to_smem %s318, 16, [#allocation6], [#allocation7]
        $region16: #{_fuse_module_forward_impl.1} parent=11 // pred_fallthru
          _
        // Predicated region
        $region17: #{_fuse_module_forward_impl.1} parent=11 // pred_check
          %p321 = pneg %p80
        $region18: #{_fuse_module_forward_impl.1} parent=11 // pred_check_branch
          %323 = sbr.rel (%p321) target = $region20
        $region19: #{_fuse_module_forward_impl.1} parent=11 // pred_region
          _
        $region20: #{_fuse_module_forward_impl.1} parent=11 // pred_fallthru
          _
        // Predicated region
        $region21: #{_fuse_module_forward_impl.1} parent=11 // pred_check
          %p324 = pneg %p94
        $region22: #{_fuse_module_forward_impl.1} parent=11 // pred_check_branch
          %326 = sbr.rel (%p324) target = $region24
        $region23: #{_fuse_module_forward_impl.1} parent=11 // pred_region
          _
        $region24: #{_fuse_module_forward_impl.1} parent=11 // pred_fallthru
          _
        // Predicated region
        $region25: #{_fuse_module_forward_impl.1} parent=11 // pred_check
          %p327 = pneg %p108
        $region26: #{_fuse_module_forward_impl.1} parent=11 // pred_check_branch
          %329 = sbr.rel (%p327) target = $region28
        $region27: #{_fuse_module_forward_impl.1} parent=11 // pred_region
          _
        $region28: #{_fuse_module_forward_impl.1} parent=11 // pred_fallthru
          _
        // Predicated region
        $region29: #{_fuse_module_forward_impl.1} parent=11 // pred_check
          %p330 = pneg %p122
        $region30: #{_fuse_module_forward_impl.1} parent=11 // pred_check_branch
          %332 = sbr.rel (%p330) target = $region32
        $region31: #{_fuse_module_forward_impl.1} parent=11 // pred_region
          _
        $region32: #{_fuse_module_forward_impl.1} parent=11 // pred_fallthru
          _
        // Predicated region
        $region33: #{_fuse_module_forward_impl.1} parent=11 // pred_check
          %p333 = pneg %p136
        $region34: #{_fuse_module_forward_impl.1} parent=11 // pred_check_branch
          %335 = sbr.rel (%p333) target = $region36
        $region35: #{_fuse_module_forward_impl.1} parent=11 // pred_region
          _
        $region36: #{_fuse_module_forward_impl.1} parent=11 // pred_fallthru
          _
        // Predicated region
        $region37: #{_fuse_module_forward_impl.1} parent=11 // pred_check
          %p336 = pneg %p150
        $region38: #{_fuse_module_forward_impl.1} parent=11 // pred_check_branch
          %338 = sbr.rel (%p336) target = $region40
        $region39: #{_fuse_module_forward_impl.1} parent=11 // pred_region
          _
        $region40: #{_fuse_module_forward_impl.1} parent=11 // pred_fallthru
          _
        // Predicated region
        $region41: #{_fuse_module_forward_impl.1} parent=11 // pred_check
          %p339 = pneg %p164
        $region42: #{_fuse_module_forward_impl.1} parent=11 // pred_check_branch
          %341 = sbr.rel (%p339) target = $region44
        $region43: #{_fuse_module_forward_impl.1} parent=11 // pred_region
          _
        $region44: #{_fuse_module_forward_impl.1} parent=11 // pred_fallthru
          _
        // Predicated region
        $region45: #{_fuse_module_forward_impl.1} parent=11 // pred_check
          %p342 = pneg %p178
        $region46: #{_fuse_module_forward_impl.1} parent=11 // pred_check_branch
          %344 = sbr.rel (%p342) target = $region48
        $region47: #{_fuse_module_forward_impl.1} parent=11 // pred_region
          _
        $region48: #{_fuse_module_forward_impl.1} parent=11 // pred_fallthru
          _
        // Predicated region
        $region49: #{_fuse_module_forward_impl.1} parent=11 // pred_check
          %p345 = pneg %p192
        $region50: #{_fuse_module_forward_impl.1} parent=11 // pred_check_branch
          %347 = sbr.rel (%p345) target = $region52
        $region51: #{_fuse_module_forward_impl.1} parent=11 // pred_region
          _
        $region52: #{_fuse_module_forward_impl.1} parent=11 // pred_fallthru
          _
        // Predicated region
        $region53: #{_fuse_module_forward_impl.1} parent=11 // pred_check
          %p348 = pneg %p206
        $region54: #{_fuse_module_forward_impl.1} parent=11 // pred_check_branch
          %350 = sbr.rel (%p348) target = $region56
        $region55: #{_fuse_module_forward_impl.1} parent=11 // pred_region
          _
        $region56: #{_fuse_module_forward_impl.1} parent=11 // pred_fallthru
          _
        // Predicated region
        $region57: #{_fuse_module_forward_impl.1} parent=11 // pred_check
          %p351 = pneg %p220
        $region58: #{_fuse_module_forward_impl.1} parent=11 // pred_check_branch
          %353 = sbr.rel (%p351) target = $region60
        $region59: #{_fuse_module_forward_impl.1} parent=11 // pred_region
          _
        $region60: #{_fuse_module_forward_impl.1} parent=11 // pred_fallthru
          _
        // Predicated region
        $region61: #{_fuse_module_forward_impl.1} parent=11 // pred_check
          %p354 = pneg %p234
        $region62: #{_fuse_module_forward_impl.1} parent=11 // pred_check_branch
          %356 = sbr.rel (%p354) target = $region64
        $region63: #{_fuse_module_forward_impl.1} parent=11 // pred_region
          _
        $region64: #{_fuse_module_forward_impl.1} parent=11 // pred_fallthru
          _
        // Predicated region
        $region65: #{_fuse_module_forward_impl.1} parent=11 // pred_check
          %p357 = pneg %p248
        $region66: #{_fuse_module_forward_impl.1} parent=11 // pred_check_branch
          %359 = sbr.rel (%p357) target = $region68
        $region67: #{_fuse_module_forward_impl.1} parent=11 // pred_region
          _
        $region68: #{_fuse_module_forward_impl.1} parent=11 // pred_fallthru
          _
        // Predicated region
        $region69: #{_fuse_module_forward_impl.1} parent=11 // pred_check
          %p360 = pneg %p262
        $region70: #{_fuse_module_forward_impl.1} parent=11 // pred_check_branch
          %362 = sbr.rel (%p360) target = $region72
        $region71: #{_fuse_module_forward_impl.1} parent=11 // pred_region
          _
        $region72: #{_fuse_module_forward_impl.1} parent=11 // pred_fallthru
          _
        // Predicated region
        $region73: #{_fuse_module_forward_impl.1} parent=11 // pred_check
          %p363 = pneg %p276
        $region74: #{_fuse_module_forward_impl.1} parent=11 // pred_check_branch
          %365 = sbr.rel (%p363) target = $region76
        $region75: #{_fuse_module_forward_impl.1} parent=11 // pred_region
          _
        $region76: #{_fuse_module_forward_impl.1} parent=11 // pred_fallthru
          _
        // Predicated region
        $region77: #{_fuse_module_forward_impl.1} parent=11 // pred_check
          %p366 = pneg %p290
        $region78: #{_fuse_module_forward_impl.1} parent=11 // pred_check_branch
          %368 = sbr.rel (%p366) target = $region80
        $region79: #{_fuse_module_forward_impl.1} parent=11 // pred_region
          _
        $region80: #{_fuse_module_forward_impl.1} parent=11 // pred_fallthru
          _
        // Predicated region
        $region81: #{_fuse_module_forward_impl.1} parent=11 // pred_check
          %p369 = pneg %p304
        $region82: #{_fuse_module_forward_impl.1} parent=11 // pred_check_branch
          %371 = sbr.rel (%p369) target = $region84
        $region83: #{_fuse_module_forward_impl.1} parent=11 // pred_region
          _
        $region84: #{_fuse_module_forward_impl.1} parent=11 // pred_fallthru
          _
      $region12: #{_fuse_module_forward_impl.1} parent=5 // pred_fallthru
        _
      %p372 = scmp.lt.s32.totalorder %s27, 2
      // Predicated region
      $region85: #{_fuse_module_forward_impl.1} parent=5 // pred_check
        %p373 = pneg %p372
      $region86: #{_fuse_module_forward_impl.1} parent=5 // pred_check_branch
        %375 = sbr.rel (%p373) target = $region88
      $region87: #{_fuse_module_forward_impl.1} parent=5 // pred_region
        // Predicated region
        $region89: #{_fuse_module_forward_impl.1} parent=87 // pred_check
          %p376 = pneg %p59
        $region90: #{_fuse_module_forward_impl.1} parent=87 // pred_check_branch
          %378 = sbr.rel (%p376) target = $region92
        $region91: #{_fuse_module_forward_impl.1} parent=87 // pred_region
          %p379 = scmp.lt.s32.totalorder %s27, 1
          %s380 = scalar_select %p379, %s27, 1
          %s381 = smul.addr %s380, 8
          %s382 = scalar_lea.vmem %s2, %s381
        $region92: #{_fuse_module_forward_impl.1} parent=87 // pred_fallthru
          _
      $region88: #{_fuse_module_forward_impl.1} parent=5 // pred_fallthru
        _
      %p383 = scmp.le.s32.totalorder 1, %s27
      // Predicated region
      $region93: #{_fuse_module_forward_impl.1} parent=5 // pred_check
        %p384 = pneg %p383
      $region94: #{_fuse_module_forward_impl.1} parent=5 // pred_check_branch
        %386 = sbr.rel (%p384) target = $region96
      $region95: #{_fuse_module_forward_impl.1} parent=5 // pred_region
        %s387 = ssub.s32 %s27, 1
        // Predicated region
        $region97: #{_fuse_module_forward_impl.1} parent=95 // pred_check
          %p388 = pneg %p47
        $region98: #{_fuse_module_forward_impl.1} parent=95 // pred_check_branch
          %390 = sbr.rel (%p388) target = $region100
        $region99: #{_fuse_module_forward_impl.1} parent=95 // pred_region
          %391 = dma.done [#allocation7], 16
        $region100: #{_fuse_module_forward_impl.1} parent=95 // pred_fallthru
          _
        %392 = sfence
        %p393 = pneg %p47
        %p394 = pneg %p43
        %p395 = scmp.lt.s32.totalorder %s32, 1
        %s396 = scalar_select %p395, %s32, 1
        %s397 = smul.addr %s396, 8
        %s398 = scalar_lea.vmem %s2, %s397
        %p399 = pneg %p66
        %p400 = pneg %p62
        %p401 = pneg %p80
        %p402 = pneg %p76
        %p403 = pneg %p94
        %p404 = pneg %p90
        %p405 = pneg %p108
        %p406 = pneg %p104
        %p407 = pneg %p122
        %p408 = pneg %p118
        %p409 = pneg %p136
        %p410 = pneg %p132
        %p411 = pneg %p150
        %p412 = pneg %p146
        %p413 = pneg %p164
        %p414 = pneg %p160
        %p415 = pneg %p178
        %p416 = pneg %p174
        %p417 = pneg %p192
        %p418 = pneg %p188
        %p419 = pneg %p206
        %p420 = pneg %p202
        %p421 = pneg %p220
        %p422 = pneg %p216
        %p423 = pneg %p234
        %p424 = pneg %p230
        %p425 = pneg %p248
        %p426 = pneg %p244
        %p427 = pneg %p262
        %p428 = pneg %p258
        %p429 = pneg %p276
        %p430 = pneg %p272
        %p431 = pneg %p290
        %p432 = pneg %p286
        %p433 = pneg %p304
        %p434 = pneg %p300
        %p435 = scmp.lt.s32.totalorder %s32, 1
        %s436 = scalar_select %p435, %s32, 1
        %s437 = smul.addr %s436, 8
        %s438 = scalar_lea.vmem %s2, %s437
        %s440 = smul.u32 %s32, 8
        %s441 = sld [smem:[#allocation6 + %s440]]
        %s442 = sadd.s32 %s440, 1
        %s443 = sld [smem:[#allocation6 + %s442]]
        %s444 = sadd.s32 %s440, 2
        %s445 = sld [smem:[#allocation6 + %s444]]
        %s446 = sadd.s32 %s440, 3
        %s447 = sld [smem:[#allocation6 + %s446]]
        %s448 = sadd.s32 %s440, 4
        %s449 = sld [smem:[#allocation6 + %s448]]
        %s450 = sadd.s32 %s440, 5
        %s451 = sld [smem:[#allocation6 + %s450]]
        %s452 = sadd.s32 %s440, 6
        %s453 = sld [smem:[#allocation6 + %s452]]
        %s454 = sadd.s32 %s440, 7
        %s455 = sld [smem:[#allocation6 + %s454]]
        %p456 = scmp.gt.s32.totalorder %s441, 0
        %s457 = scalar_select %p456, %s441, 0
        %p458 = scmp.gt.s32.totalorder %s443, 0
        %s459 = scalar_select %p458, %s443, 0
        %p460 = scmp.gt.s32.totalorder %s445, 0
        %s461 = scalar_select %p460, %s445, 0
        %p462 = scmp.gt.s32.totalorder %s447, 0
        %s463 = scalar_select %p462, %s447, 0
        %p464 = scmp.gt.s32.totalorder %s449, 0
        %s465 = scalar_select %p464, %s449, 0
        %p466 = scmp.gt.s32.totalorder %s451, 0
        %s467 = scalar_select %p466, %s451, 0
        %p468 = scmp.gt.s32.totalorder %s453, 0
        %s469 = scalar_select %p468, %s453, 0
        %p470 = scmp.gt.s32.totalorder %s455, 0
        %s471 = scalar_select %p470, %s455, 0
        %s472 = scalar_lea.vmem %s1, %s457
        %p474 = scmp.lt.u32.totalorder 1, 8
        %p475 = pneg %p474
        // Predicated region
        $region101: #{_fuse_module_forward_impl.1} parent=95 // pred_check
          _
        $region102: #{_fuse_module_forward_impl.1} parent=95 // pred_check_branch
          %477 = sbr.rel (%p474) target = $region104
        $region103: #{_fuse_module_forward_impl.1} parent=95 // pred_region
          %s492 = sand.u32 1, 7
          %p493 = scmp.eq.s32.totalorder %s492, 0
          %p494 = pneg %p493
          // Predicated region
          $region116: #{_fuse_module_forward_impl.1} parent=103 // pred_check
            _
          $region117: #{_fuse_module_forward_impl.1} parent=103 // pred_check_branch
            %496 = sbr.rel (%p493) target = $region119
          $region118: #{_fuse_module_forward_impl.1} parent=103 // pred_region
            %s497 = sand.u32 1, 7
            %s498 = ssub.s32 1, %s497
            %s499 = scalar_lea.vmem %s472, %s498
            %s500 = ssub.s32 1, %s497
            %s501 = scalar_lea.vmem [#allocation2], %s500
            %s502 = sshllo.u32 0, %s497
            loop: start=0, step=1, limit=1
            $region120: #{_fuse_module_forward_impl.1} parent=118 // loop_pre_header
              _
            $region121: #{_fuse_module_forward_impl.1} parent=118 // loop_header
              %s504 = sphi 0, %s508
              %p505 = scmp.ge.s32.totalorder %s504, 1
              %s509 = sphi %s499, %s499
              %s510 = sphi %s501, %s501
            $region122: #{_fuse_module_forward_impl.1} parent=118 // loop_header_branch
              %507 = sbr.rel (%p505) target = $region126
            $region123: #{_fuse_module_forward_impl.1} parent=118 // loop_body
              %v511 = vld [vmem:[%s509] sm:%s502]
              %512 = vst [vmem:[%s510] sm:%s502] %v511
            $region124: #{_fuse_module_forward_impl.1} parent=118 // loop_footer
              %s508 = sadd.s32 1, %s504
            $region125: #{_fuse_module_forward_impl.1} parent=118 // loop_footer_branch
              %503 = sbr.rel target = $region121
            $region126: #{_fuse_module_forward_impl.1} parent=118 // loop_exit
              _
          $region119: #{_fuse_module_forward_impl.1} parent=103 // pred_fallthru
            _
        $region104: #{_fuse_module_forward_impl.1} parent=95 // pred_fallthru
          _
        // Predicated region
        $region105: #{_fuse_module_forward_impl.1} parent=95 // pred_check
          %p478 = pneg %p474
        $region106: #{_fuse_module_forward_impl.1} parent=95 // pred_check_branch
          %480 = sbr.rel (%p478) target = $region108
        $region107: #{_fuse_module_forward_impl.1} parent=95 // pred_region
          %s481 = sshllo.u32 0, 1
          loop: start=0, step=1, limit=1
          $region109: #{_fuse_module_forward_impl.1} parent=107 // loop_pre_header
            _
          $region110: #{_fuse_module_forward_impl.1} parent=107 // loop_header
            %s483 = sphi 0, %s487
            %p484 = scmp.ge.s32.totalorder %s483, 1
            %s488 = sphi %s472, %s472
            %s489 = sphi [#allocation2], [#allocation2]
          $region111: #{_fuse_module_forward_impl.1} parent=107 // loop_header_branch
            %486 = sbr.rel (%p484) target = $region115
          $region112: #{_fuse_module_forward_impl.1} parent=107 // loop_body
            %v490 = vld [vmem:[%s488] sm:%s481]
            %491 = vst [vmem:[%s489] sm:%s481] %v490
          $region113: #{_fuse_module_forward_impl.1} parent=107 // loop_footer
            %s487 = sadd.s32 1, %s483
          $region114: #{_fuse_module_forward_impl.1} parent=107 // loop_footer_branch
            %482 = sbr.rel target = $region110
          $region115: #{_fuse_module_forward_impl.1} parent=107 // loop_exit
            _
        $region108: #{_fuse_module_forward_impl.1} parent=95 // pred_fallthru
          _
        // Predicated region
        $region127: #{_fuse_module_forward_impl.1} parent=95 // pred_check
          _
        $region128: #{_fuse_module_forward_impl.1} parent=95 // pred_check_branch
          %515 = sbr.rel (0) target = $region130
        $region129: #{_fuse_module_forward_impl.1} parent=95 // pred_region
          %516 = vsyncadd [#allocation4], 16
        $region130: #{_fuse_module_forward_impl.1} parent=95 // pred_fallthru
          _
        %s517 = scalar_lea.vmem %s1, %s459
        %s518 = scalar_lea.vmem [#allocation2], 1
        %s519 = scalar_lea.sflag [#allocation4], 1
        %p521 = scmp.lt.u32.totalorder 1, 8
        %p522 = pneg %p521
        // Predicated region
        $region131: #{_fuse_module_forward_impl.1} parent=95 // pred_check
          _
        $region132: #{_fuse_module_forward_impl.1} parent=95 // pred_check_branch
          %524 = sbr.rel (%p521) target = $region134
        $region133: #{_fuse_module_forward_impl.1} parent=95 // pred_region
          %s539 = sand.u32 1, 7
          %p540 = scmp.eq.s32.totalorder %s539, 0
          %p541 = pneg %p540
          // Predicated region
          $region146: #{_fuse_module_forward_impl.1} parent=133 // pred_check
            _
          $region147: #{_fuse_module_forward_impl.1} parent=133 // pred_check_branch
            %543 = sbr.rel (%p540) target = $region149
          $region148: #{_fuse_module_forward_impl.1} parent=133 // pred_region
            %s544 = sand.u32 1, 7
            %s545 = ssub.s32 1, %s544
            %s546 = scalar_lea.vmem %s517, %s545
            %s547 = ssub.s32 1, %s544
            %s548 = scalar_lea.vmem %s518, %s547 [#allocation2]
            %s549 = sshllo.u32 0, %s544
            loop: start=0, step=1, limit=1
            $region150: #{_fuse_module_forward_impl.1} parent=148 // loop_pre_header
              _
            $region151: #{_fuse_module_forward_impl.1} parent=148 // loop_header
              %s551 = sphi 0, %s555
              %p552 = scmp.ge.s32.totalorder %s551, 1
              %s556 = sphi %s546, %s546
              %s557 = sphi %s548, %s548
            $region152: #{_fuse_module_forward_impl.1} parent=148 // loop_header_branch
              %554 = sbr.rel (%p552) target = $region156
            $region153: #{_fuse_module_forward_impl.1} parent=148 // loop_body
              %v558 = vld [vmem:[%s556] sm:%s549]
              %559 = vst [vmem:[%s557] sm:%s549] %v558
            $region154: #{_fuse_module_forward_impl.1} parent=148 // loop_footer
              %s555 = sadd.s32 1, %s551
            $region155: #{_fuse_module_forward_impl.1} parent=148 // loop_footer_branch
              %550 = sbr.rel target = $region151
            $region156: #{_fuse_module_forward_impl.1} parent=148 // loop_exit
              _
          $region149: #{_fuse_module_forward_impl.1} parent=133 // pred_fallthru
            _
        $region134: #{_fuse_module_forward_impl.1} parent=95 // pred_fallthru
          _
        // Predicated region
        $region135: #{_fuse_module_forward_impl.1} parent=95 // pred_check
          %p525 = pneg %p521
        $region136: #{_fuse_module_forward_impl.1} parent=95 // pred_check_branch
          %527 = sbr.rel (%p525) target = $region138
        $region137: #{_fuse_module_forward_impl.1} parent=95 // pred_region
          %s528 = sshllo.u32 0, 1
          loop: start=0, step=1, limit=1
          $region139: #{_fuse_module_forward_impl.1} parent=137 // loop_pre_header
            _
          $region140: #{_fuse_module_forward_impl.1} parent=137 // loop_header
            %s530 = sphi 0, %s534
            %p531 = scmp.ge.s32.totalorder %s530, 1
            %s535 = sphi %s517, %s517
            %s536 = sphi %s518, %s518
          $region141: #{_fuse_module_forward_impl.1} parent=137 // loop_header_branch
            %533 = sbr.rel (%p531) target = $region145
          $region142: #{_fuse_module_forward_impl.1} parent=137 // loop_body
            %v537 = vld [vmem:[%s535] sm:%s528]
            %538 = vst [vmem:[%s536] sm:%s528] %v537
          $region143: #{_fuse_module_forward_impl.1} parent=137 // loop_footer
            %s534 = sadd.s32 1, %s530
          $region144: #{_fuse_module_forward_impl.1} parent=137 // loop_footer_branch
            %529 = sbr.rel target = $region140
          $region145: #{_fuse_module_forward_impl.1} parent=137 // loop_exit
            _
        $region138: #{_fuse_module_forward_impl.1} parent=95 // pred_fallthru
          _
        // Predicated region
        $region157: #{_fuse_module_forward_impl.1} parent=95 // pred_check
          _
        $region158: #{_fuse_module_forward_impl.1} parent=95 // pred_check_branch
          %562 = sbr.rel (0) target = $region160
        $region159: #{_fuse_module_forward_impl.1} parent=95 // pred_region
          %563 = vsyncadd %s519, 16
        $region160: #{_fuse_module_forward_impl.1} parent=95 // pred_fallthru
          _
        %s564 = scalar_lea.vmem %s1, %s461
        %s565 = scalar_lea.vmem [#allocation2], 2
        %s566 = scalar_lea.sflag [#allocation4], 2
        %p568 = scmp.lt.u32.totalorder 1, 8
        %p569 = pneg %p568
        // Predicated region
        $region161: #{_fuse_module_forward_impl.1} parent=95 // pred_check
          _
        $region162: #{_fuse_module_forward_impl.1} parent=95 // pred_check_branch
          %571 = sbr.rel (%p568) target = $region164
        $region163: #{_fuse_module_forward_impl.1} parent=95 // pred_region
          %s586 = sand.u32 1, 7
          %p587 = scmp.eq.s32.totalorder %s586, 0
          %p588 = pneg %p587
          // Predicated region
          $region176: #{_fuse_module_forward_impl.1} parent=163 // pred_check
            _
          $region177: #{_fuse_module_forward_impl.1} parent=163 // pred_check_branch
            %590 = sbr.rel (%p587) target = $region179
          $region178: #{_fuse_module_forward_impl.1} parent=163 // pred_region
            %s591 = sand.u32 1, 7
            %s592 = ssub.s32 1, %s591
            %s593 = scalar_lea.vmem %s564, %s592
            %s594 = ssub.s32 1, %s591
            %s595 = scalar_lea.vmem %s565, %s594 [#allocation2]
            %s596 = sshllo.u32 0, %s591
            loop: start=0, step=1, limit=1
            $region180: #{_fuse_module_forward_impl.1} parent=178 // loop_pre_header
              _
            $region181: #{_fuse_module_forward_impl.1} parent=178 // loop_header
              %s598 = sphi 0, %s602
              %p599 = scmp.ge.s32.totalorder %s598, 1
              %s603 = sphi %s593, %s593
              %s604 = sphi %s595, %s595
            $region182: #{_fuse_module_forward_impl.1} parent=178 // loop_header_branch
              %601 = sbr.rel (%p599) target = $region186
            $region183: #{_fuse_module_forward_impl.1} parent=178 // loop_body
              %v605 = vld [vmem:[%s603] sm:%s596]
              %606 = vst [vmem:[%s604] sm:%s596] %v605
            $region184: #{_fuse_module_forward_impl.1} parent=178 // loop_footer
              %s602 = sadd.s32 1, %s598
            $region185: #{_fuse_module_forward_impl.1} parent=178 // loop_footer_branch
              %597 = sbr.rel target = $region181
            $region186: #{_fuse_module_forward_impl.1} parent=178 // loop_exit
              _
          $region179: #{_fuse_module_forward_impl.1} parent=163 // pred_fallthru
            _
        $region164: #{_fuse_module_forward_impl.1} parent=95 // pred_fallthru
          _
        // Predicated region
        $region165: #{_fuse_module_forward_impl.1} parent=95 // pred_check
          %p572 = pneg %p568
        $region166: #{_fuse_module_forward_impl.1} parent=95 // pred_check_branch
          %574 = sbr.rel (%p572) target = $region168
        $region167: #{_fuse_module_forward_impl.1} parent=95 // pred_region
          %s575 = sshllo.u32 0, 1
          loop: start=0, step=1, limit=1
          $region169: #{_fuse_module_forward_impl.1} parent=167 // loop_pre_header
            _
          $region170: #{_fuse_module_forward_impl.1} parent=167 // loop_header
            %s577 = sphi 0, %s581
            %p578 = scmp.ge.s32.totalorder %s577, 1
            %s582 = sphi %s564, %s564
            %s583 = sphi %s565, %s565
          $region171: #{_fuse_module_forward_impl.1} parent=167 // loop_header_branch
            %580 = sbr.rel (%p578) target = $region175
          $region172: #{_fuse_module_forward_impl.1} parent=167 // loop_body
            %v584 = vld [vmem:[%s582] sm:%s575]
            %585 = vst [vmem:[%s583] sm:%s575] %v584
          $region173: #{_fuse_module_forward_impl.1} parent=167 // loop_footer
            %s581 = sadd.s32 1, %s577
          $region174: #{_fuse_module_forward_impl.1} parent=167 // loop_footer_branch
            %576 = sbr.rel target = $region170
          $region175: #{_fuse_module_forward_impl.1} parent=167 // loop_exit
            _
        $region168: #{_fuse_module_forward_impl.1} parent=95 // pred_fallthru
          _
        // Predicated region
        $region187: #{_fuse_module_forward_impl.1} parent=95 // pred_check
          _
        $region188: #{_fuse_module_forward_impl.1} parent=95 // pred_check_branch
          %609 = sbr.rel (0) target = $region190
        $region189: #{_fuse_module_forward_impl.1} parent=95 // pred_region
          %610 = vsyncadd %s566, 16
        $region190: #{_fuse_module_forward_impl.1} parent=95 // pred_fallthru
          _
        %s611 = scalar_lea.vmem %s1, %s463
        %s612 = scalar_lea.vmem [#allocation2], 3
        %s613 = scalar_lea.sflag [#allocation4], 3
        %p615 = scmp.lt.u32.totalorder 1, 8
        %p616 = pneg %p615
        // Predicated region
        $region191: #{_fuse_module_forward_impl.1} parent=95 // pred_check
          _
        $region192: #{_fuse_module_forward_impl.1} parent=95 // pred_check_branch
          %618 = sbr.rel (%p615) target = $region194
        $region193: #{_fuse_module_forward_impl.1} parent=95 // pred_region
          %s633 = sand.u32 1, 7
          %p634 = scmp.eq.s32.totalorder %s633, 0
          %p635 = pneg %p634
          // Predicated region
          $region206: #{_fuse_module_forward_impl.1} parent=193 // pred_check
            _
          $region207: #{_fuse_module_forward_impl.1} parent=193 // pred_check_branch
            %637 = sbr.rel (%p634) target = $region209
          $region208: #{_fuse_module_forward_impl.1} parent=193 // pred_region
            %s638 = sand.u32 1, 7
            %s639 = ssub.s32 1, %s638
            %s640 = scalar_lea.vmem %s611, %s639
            %s641 = ssub.s32 1, %s638
            %s642 = scalar_lea.vmem %s612, %s641 [#allocation2]
            %s643 = sshllo.u32 0, %s638
            loop: start=0, step=1, limit=1
            $region210: #{_fuse_module_forward_impl.1} parent=208 // loop_pre_header
              _
            $region211: #{_fuse_module_forward_impl.1} parent=208 // loop_header
              %s645 = sphi 0, %s649
              %p646 = scmp.ge.s32.totalorder %s645, 1
              %s650 = sphi %s640, %s640
              %s651 = sphi %s642, %s642
            $region212: #{_fuse_module_forward_impl.1} parent=208 // loop_header_branch
              %648 = sbr.rel (%p646) target = $region216
            $region213: #{_fuse_module_forward_impl.1} parent=208 // loop_body
              %v652 = vld [vmem:[%s650] sm:%s643]
              %653 = vst [vmem:[%s651] sm:%s643] %v652
            $region214: #{_fuse_module_forward_impl.1} parent=208 // loop_footer
              %s649 = sadd.s32 1, %s645
            $region215: #{_fuse_module_forward_impl.1} parent=208 // loop_footer_branch
              %644 = sbr.rel target = $region211
            $region216: #{_fuse_module_forward_impl.1} parent=208 // loop_exit
              _
          $region209: #{_fuse_module_forward_impl.1} parent=193 // pred_fallthru
            _
        $region194: #{_fuse_module_forward_impl.1} parent=95 // pred_fallthru
          _
        // Predicated region
        $region195: #{_fuse_module_forward_impl.1} parent=95 // pred_check
          %p619 = pneg %p615
        $region196: #{_fuse_module_forward_impl.1} parent=95 // pred_check_branch
          %621 = sbr.rel (%p619) target = $region198
        $region197: #{_fuse_module_forward_impl.1} parent=95 // pred_region
          %s622 = sshllo.u32 0, 1
          loop: start=0, step=1, limit=1
          $region199: #{_fuse_module_forward_impl.1} parent=197 // loop_pre_header
            _
          $region200: #{_fuse_module_forward_impl.1} parent=197 // loop_header
            %s624 = sphi 0, %s628
            %p625 = scmp.ge.s32.totalorder %s624, 1
            %s629 = sphi %s611, %s611
            %s630 = sphi %s612, %s612
          $region201: #{_fuse_module_forward_impl.1} parent=197 // loop_header_branch
            %627 = sbr.rel (%p625) target = $region205
          $region202: #{_fuse_module_forward_impl.1} parent=197 // loop_body
            %v631 = vld [vmem:[%s629] sm:%s622]
            %632 = vst [vmem:[%s630] sm:%s622] %v631
          $region203: #{_fuse_module_forward_impl.1} parent=197 // loop_footer
            %s628 = sadd.s32 1, %s624
          $region204: #{_fuse_module_forward_impl.1} parent=197 // loop_footer_branch
            %623 = sbr.rel target = $region200
          $region205: #{_fuse_module_forward_impl.1} parent=197 // loop_exit
            _
        $region198: #{_fuse_module_forward_impl.1} parent=95 // pred_fallthru
          _
        // Predicated region
        $region217: #{_fuse_module_forward_impl.1} parent=95 // pred_check
          _
        $region218: #{_fuse_module_forward_impl.1} parent=95 // pred_check_branch
          %656 = sbr.rel (0) target = $region220
        $region219: #{_fuse_module_forward_impl.1} parent=95 // pred_region
          %657 = vsyncadd %s613, 16
        $region220: #{_fuse_module_forward_impl.1} parent=95 // pred_fallthru
          _
        %s658 = scalar_lea.vmem %s1, %s465
        %s659 = scalar_lea.vmem [#allocation2], 4
        %s660 = scalar_lea.sflag [#allocation4], 4
        %p662 = scmp.lt.u32.totalorder 1, 8
        %p663 = pneg %p662
        // Predicated region
        $region221: #{_fuse_module_forward_impl.1} parent=95 // pred_check
          _
        $region222: #{_fuse_module_forward_impl.1} parent=95 // pred_check_branch
          %665 = sbr.rel (%p662) target = $region224
        $region223: #{_fuse_module_forward_impl.1} parent=95 // pred_region
          %s680 = sand.u32 1, 7
          %p681 = scmp.eq.s32.totalorder %s680, 0
          %p682 = pneg %p681
          // Predicated region
          $region236: #{_fuse_module_forward_impl.1} parent=223 // pred_check
            _
          $region237: #{_fuse_module_forward_impl.1} parent=223 // pred_check_branch
            %684 = sbr.rel (%p681) target = $region239
          $region238: #{_fuse_module_forward_impl.1} parent=223 // pred_region
            %s685 = sand.u32 1, 7
            %s686 = ssub.s32 1, %s685
            %s687 = scalar_lea.vmem %s658, %s686
            %s688 = ssub.s32 1, %s685
            %s689 = scalar_lea.vmem %s659, %s688 [#allocation2]
            %s690 = sshllo.u32 0, %s685
            loop: start=0, step=1, limit=1
            $region240: #{_fuse_module_forward_impl.1} parent=238 // loop_pre_header
              _
            $region241: #{_fuse_module_forward_impl.1} parent=238 // loop_header
              %s692 = sphi 0, %s696
              %p693 = scmp.ge.s32.totalorder %s692, 1
              %s697 = sphi %s687, %s687
              %s698 = sphi %s689, %s689
            $region242: #{_fuse_module_forward_impl.1} parent=238 // loop_header_branch
              %695 = sbr.rel (%p693) target = $region246
            $region243: #{_fuse_module_forward_impl.1} parent=238 // loop_body
              %v699 = vld [vmem:[%s697] sm:%s690]
              %700 = vst [vmem:[%s698] sm:%s690] %v699
            $region244: #{_fuse_module_forward_impl.1} parent=238 // loop_footer
              %s696 = sadd.s32 1, %s692
            $region245: #{_fuse_module_forward_impl.1} parent=238 // loop_footer_branch
              %691 = sbr.rel target = $region241
            $region246: #{_fuse_module_forward_impl.1} parent=238 // loop_exit
              _
          $region239: #{_fuse_module_forward_impl.1} parent=223 // pred_fallthru
            _
        $region224: #{_fuse_module_forward_impl.1} parent=95 // pred_fallthru
          _
        // Predicated region
        $region225: #{_fuse_module_forward_impl.1} parent=95 // pred_check
          %p666 = pneg %p662
        $region226: #{_fuse_module_forward_impl.1} parent=95 // pred_check_branch
          %668 = sbr.rel (%p666) target = $region228
        $region227: #{_fuse_module_forward_impl.1} parent=95 // pred_region
          %s669 = sshllo.u32 0, 1
          loop: start=0, step=1, limit=1
          $region229: #{_fuse_module_forward_impl.1} parent=227 // loop_pre_header
            _
          $region230: #{_fuse_module_forward_impl.1} parent=227 // loop_header
            %s671 = sphi 0, %s675
            %p672 = scmp.ge.s32.totalorder %s671, 1
            %s676 = sphi %s658, %s658
            %s677 = sphi %s659, %s659
          $region231: #{_fuse_module_forward_impl.1} parent=227 // loop_header_branch
            %674 = sbr.rel (%p672) target = $region235
          $region232: #{_fuse_module_forward_impl.1} parent=227 // loop_body
            %v678 = vld [vmem:[%s676] sm:%s669]
            %679 = vst [vmem:[%s677] sm:%s669] %v678
          $region233: #{_fuse_module_forward_impl.1} parent=227 // loop_footer
            %s675 = sadd.s32 1, %s671
          $region234: #{_fuse_module_forward_impl.1} parent=227 // loop_footer_branch
            %670 = sbr.rel target = $region230
          $region235: #{_fuse_module_forward_impl.1} parent=227 // loop_exit
            _
        $region228: #{_fuse_module_forward_impl.1} parent=95 // pred_fallthru
          _
        // Predicated region
        $region247: #{_fuse_module_forward_impl.1} parent=95 // pred_check
          _
        $region248: #{_fuse_module_forward_impl.1} parent=95 // pred_check_branch
          %703 = sbr.rel (0) target = $region250
        $region249: #{_fuse_module_forward_impl.1} parent=95 // pred_region
          %704 = vsyncadd %s660, 16
        $region250: #{_fuse_module_forward_impl.1} parent=95 // pred_fallthru
          _
        %s705 = scalar_lea.vmem %s1, %s467
        %s706 = scalar_lea.vmem [#allocation2], 5
        %s707 = scalar_lea.sflag [#allocation4], 5
        %p709 = scmp.lt.u32.totalorder 1, 8
        %p710 = pneg %p709
        // Predicated region
        $region251: #{_fuse_module_forward_impl.1} parent=95 // pred_check
          _
        $region252: #{_fuse_module_forward_impl.1} parent=95 // pred_check_branch
          %712 = sbr.rel (%p709) target = $region254
        $region253: #{_fuse_module_forward_impl.1} parent=95 // pred_region
          %s727 = sand.u32 1, 7
          %p728 = scmp.eq.s32.totalorder %s727, 0
          %p729 = pneg %p728
          // Predicated region
          $region266: #{_fuse_module_forward_impl.1} parent=253 // pred_check
            _
          $region267: #{_fuse_module_forward_impl.1} parent=253 // pred_check_branch
            %731 = sbr.rel (%p728) target = $region269
          $region268: #{_fuse_module_forward_impl.1} parent=253 // pred_region
            %s732 = sand.u32 1, 7
            %s733 = ssub.s32 1, %s732
            %s734 = scalar_lea.vmem %s705, %s733
            %s735 = ssub.s32 1, %s732
            %s736 = scalar_lea.vmem %s706, %s735 [#allocation2]
            %s737 = sshllo.u32 0, %s732
            loop: start=0, step=1, limit=1
            $region270: #{_fuse_module_forward_impl.1} parent=268 // loop_pre_header
              _
            $region271: #{_fuse_module_forward_impl.1} parent=268 // loop_header
              %s739 = sphi 0, %s743
              %p740 = scmp.ge.s32.totalorder %s739, 1
              %s744 = sphi %s734, %s734
              %s745 = sphi %s736, %s736
            $region272: #{_fuse_module_forward_impl.1} parent=268 // loop_header_branch
              %742 = sbr.rel (%p740) target = $region276
            $region273: #{_fuse_module_forward_impl.1} parent=268 // loop_body
              %v746 = vld [vmem:[%s744] sm:%s737]
              %747 = vst [vmem:[%s745] sm:%s737] %v746
            $region274: #{_fuse_module_forward_impl.1} parent=268 // loop_footer
              %s743 = sadd.s32 1, %s739
            $region275: #{_fuse_module_forward_impl.1} parent=268 // loop_footer_branch
              %738 = sbr.rel target = $region271
            $region276: #{_fuse_module_forward_impl.1} parent=268 // loop_exit
              _
          $region269: #{_fuse_module_forward_impl.1} parent=253 // pred_fallthru
            _
        $region254: #{_fuse_module_forward_impl.1} parent=95 // pred_fallthru
          _
        // Predicated region
        $region255: #{_fuse_module_forward_impl.1} parent=95 // pred_check
          %p713 = pneg %p709
        $region256: #{_fuse_module_forward_impl.1} parent=95 // pred_check_branch
          %715 = sbr.rel (%p713) target = $region258
        $region257: #{_fuse_module_forward_impl.1} parent=95 // pred_region
          %s716 = sshllo.u32 0, 1
          loop: start=0, step=1, limit=1
          $region259: #{_fuse_module_forward_impl.1} parent=257 // loop_pre_header
            _
          $region260: #{_fuse_module_forward_impl.1} parent=257 // loop_header
            %s718 = sphi 0, %s722
            %p719 = scmp.ge.s32.totalorder %s718, 1
            %s723 = sphi %s705, %s705
            %s724 = sphi %s706, %s706
          $region261: #{_fuse_module_forward_impl.1} parent=257 // loop_header_branch
            %721 = sbr.rel (%p719) target = $region265
          $region262: #{_fuse_module_forward_impl.1} parent=257 // loop_body
            %v725 = vld [vmem:[%s723] sm:%s716]
            %726 = vst [vmem:[%s724] sm:%s716] %v725
          $region263: #{_fuse_module_forward_impl.1} parent=257 // loop_footer
            %s722 = sadd.s32 1, %s718
          $region264: #{_fuse_module_forward_impl.1} parent=257 // loop_footer_branch
            %717 = sbr.rel target = $region260
          $region265: #{_fuse_module_forward_impl.1} parent=257 // loop_exit
            _
        $region258: #{_fuse_module_forward_impl.1} parent=95 // pred_fallthru
          _
        // Predicated region
        $region277: #{_fuse_module_forward_impl.1} parent=95 // pred_check
          _
        $region278: #{_fuse_module_forward_impl.1} parent=95 // pred_check_branch
          %750 = sbr.rel (0) target = $region280
        $region279: #{_fuse_module_forward_impl.1} parent=95 // pred_region
          %751 = vsyncadd %s707, 16
        $region280: #{_fuse_module_forward_impl.1} parent=95 // pred_fallthru
          _
        %s752 = scalar_lea.vmem %s1, %s469
        %s753 = scalar_lea.vmem [#allocation2], 6
        %s754 = scalar_lea.sflag [#allocation4], 6
        %p756 = scmp.lt.u32.totalorder 1, 8
        %p757 = pneg %p756
        // Predicated region
        $region281: #{_fuse_module_forward_impl.1} parent=95 // pred_check
          _
        $region282: #{_fuse_module_forward_impl.1} parent=95 // pred_check_branch
          %759 = sbr.rel (%p756) target = $region284
        $region283: #{_fuse_module_forward_impl.1} parent=95 // pred_region
          %s774 = sand.u32 1, 7
          %p775 = scmp.eq.s32.totalorder %s774, 0
          %p776 = pneg %p775
          // Predicated region
          $region296: #{_fuse_module_forward_impl.1} parent=283 // pred_check
            _
          $region297: #{_fuse_module_forward_impl.1} parent=283 // pred_check_branch
            %778 = sbr.rel (%p775) target = $region299
          $region298: #{_fuse_module_forward_impl.1} parent=283 // pred_region
            %s779 = sand.u32 1, 7
            %s780 = ssub.s32 1, %s779
            %s781 = scalar_lea.vmem %s752, %s780
            %s782 = ssub.s32 1, %s779
            %s783 = scalar_lea.vmem %s753, %s782 [#allocation2]
            %s784 = sshllo.u32 0, %s779
            loop: start=0, step=1, limit=1
            $region300: #{_fuse_module_forward_impl.1} parent=298 // loop_pre_header
              _
            $region301: #{_fuse_module_forward_impl.1} parent=298 // loop_header
              %s786 = sphi 0, %s790
              %p787 = scmp.ge.s32.totalorder %s786, 1
              %s791 = sphi %s781, %s781
              %s792 = sphi %s783, %s783
            $region302: #{_fuse_module_forward_impl.1} parent=298 // loop_header_branch
              %789 = sbr.rel (%p787) target = $region306
            $region303: #{_fuse_module_forward_impl.1} parent=298 // loop_body
              %v793 = vld [vmem:[%s791] sm:%s784]
              %794 = vst [vmem:[%s792] sm:%s784] %v793
            $region304: #{_fuse_module_forward_impl.1} parent=298 // loop_footer
              %s790 = sadd.s32 1, %s786
            $region305: #{_fuse_module_forward_impl.1} parent=298 // loop_footer_branch
              %785 = sbr.rel target = $region301
            $region306: #{_fuse_module_forward_impl.1} parent=298 // loop_exit
              _
          $region299: #{_fuse_module_forward_impl.1} parent=283 // pred_fallthru
            _
        $region284: #{_fuse_module_forward_impl.1} parent=95 // pred_fallthru
          _
        // Predicated region
        $region285: #{_fuse_module_forward_impl.1} parent=95 // pred_check
          %p760 = pneg %p756
        $region286: #{_fuse_module_forward_impl.1} parent=95 // pred_check_branch
          %762 = sbr.rel (%p760) target = $region288
        $region287: #{_fuse_module_forward_impl.1} parent=95 // pred_region
          %s763 = sshllo.u32 0, 1
          loop: start=0, step=1, limit=1
          $region289: #{_fuse_module_forward_impl.1} parent=287 // loop_pre_header
            _
          $region290: #{_fuse_module_forward_impl.1} parent=287 // loop_header
            %s765 = sphi 0, %s769
            %p766 = scmp.ge.s32.totalorder %s765, 1
            %s770 = sphi %s752, %s752
            %s771 = sphi %s753, %s753
          $region291: #{_fuse_module_forward_impl.1} parent=287 // loop_header_branch
            %768 = sbr.rel (%p766) target = $region295
          $region292: #{_fuse_module_forward_impl.1} parent=287 // loop_body
            %v772 = vld [vmem:[%s770] sm:%s763]
            %773 = vst [vmem:[%s771] sm:%s763] %v772
          $region293: #{_fuse_module_forward_impl.1} parent=287 // loop_footer
            %s769 = sadd.s32 1, %s765
          $region294: #{_fuse_module_forward_impl.1} parent=287 // loop_footer_branch
            %764 = sbr.rel target = $region290
          $region295: #{_fuse_module_forward_impl.1} parent=287 // loop_exit
            _
        $region288: #{_fuse_module_forward_impl.1} parent=95 // pred_fallthru
          _
        // Predicated region
        $region307: #{_fuse_module_forward_impl.1} parent=95 // pred_check
          _
        $region308: #{_fuse_module_forward_impl.1} parent=95 // pred_check_branch
          %797 = sbr.rel (0) target = $region310
        $region309: #{_fuse_module_forward_impl.1} parent=95 // pred_region
          %798 = vsyncadd %s754, 16
        $region310: #{_fuse_module_forward_impl.1} parent=95 // pred_fallthru
          _
        %s799 = scalar_lea.vmem %s1, %s471
        %s800 = scalar_lea.vmem [#allocation2], 7
        %s801 = scalar_lea.sflag [#allocation4], 7
        %p803 = scmp.lt.u32.totalorder 1, 8
        %p804 = pneg %p803
        // Predicated region
        $region311: #{_fuse_module_forward_impl.1} parent=95 // pred_check
          _
        $region312: #{_fuse_module_forward_impl.1} parent=95 // pred_check_branch
          %806 = sbr.rel (%p803) target = $region314
        $region313: #{_fuse_module_forward_impl.1} parent=95 // pred_region
          %s821 = sand.u32 1, 7
          %p822 = scmp.eq.s32.totalorder %s821, 0
          %p823 = pneg %p822
          // Predicated region
          $region326: #{_fuse_module_forward_impl.1} parent=313 // pred_check
            _
          $region327: #{_fuse_module_forward_impl.1} parent=313 // pred_check_branch
            %825 = sbr.rel (%p822) target = $region329
          $region328: #{_fuse_module_forward_impl.1} parent=313 // pred_region
            %s826 = sand.u32 1, 7
            %s827 = ssub.s32 1, %s826
            %s828 = scalar_lea.vmem %s799, %s827
            %s829 = ssub.s32 1, %s826
            %s830 = scalar_lea.vmem %s800, %s829 [#allocation2]
            %s831 = sshllo.u32 0, %s826
            loop: start=0, step=1, limit=1
            $region330: #{_fuse_module_forward_impl.1} parent=328 // loop_pre_header
              _
            $region331: #{_fuse_module_forward_impl.1} parent=328 // loop_header
              %s833 = sphi 0, %s837
              %p834 = scmp.ge.s32.totalorder %s833, 1
              %s838 = sphi %s828, %s828
              %s839 = sphi %s830, %s830
            $region332: #{_fuse_module_forward_impl.1} parent=328 // loop_header_branch
              %836 = sbr.rel (%p834) target = $region336
            $region333: #{_fuse_module_forward_impl.1} parent=328 // loop_body
              %v840 = vld [vmem:[%s838] sm:%s831]
              %841 = vst [vmem:[%s839] sm:%s831] %v840
            $region334: #{_fuse_module_forward_impl.1} parent=328 // loop_footer
              %s837 = sadd.s32 1, %s833
            $region335: #{_fuse_module_forward_impl.1} parent=328 // loop_footer_branch
              %832 = sbr.rel target = $region331
            $region336: #{_fuse_module_forward_impl.1} parent=328 // loop_exit
              _
          $region329: #{_fuse_module_forward_impl.1} parent=313 // pred_fallthru
            _
        $region314: #{_fuse_module_forward_impl.1} parent=95 // pred_fallthru
          _
        // Predicated region
        $region315: #{_fuse_module_forward_impl.1} parent=95 // pred_check
          %p807 = pneg %p803
        $region316: #{_fuse_module_forward_impl.1} parent=95 // pred_check_branch
          %809 = sbr.rel (%p807) target = $region318
        $region317: #{_fuse_module_forward_impl.1} parent=95 // pred_region
          %s810 = sshllo.u32 0, 1
          loop: start=0, step=1, limit=1
          $region319: #{_fuse_module_forward_impl.1} parent=317 // loop_pre_header
            _
          $region320: #{_fuse_module_forward_impl.1} parent=317 // loop_header
            %s812 = sphi 0, %s816
            %p813 = scmp.ge.s32.totalorder %s812, 1
            %s817 = sphi %s799, %s799
            %s818 = sphi %s800, %s800
          $region321: #{_fuse_module_forward_impl.1} parent=317 // loop_header_branch
            %815 = sbr.rel (%p813) target = $region325
          $region322: #{_fuse_module_forward_impl.1} parent=317 // loop_body
            %v819 = vld [vmem:[%s817] sm:%s810]
            %820 = vst [vmem:[%s818] sm:%s810] %v819
          $region323: #{_fuse_module_forward_impl.1} parent=317 // loop_footer
            %s816 = sadd.s32 1, %s812
          $region324: #{_fuse_module_forward_impl.1} parent=317 // loop_footer_branch
            %811 = sbr.rel target = $region320
          $region325: #{_fuse_module_forward_impl.1} parent=317 // loop_exit
            _
        $region318: #{_fuse_module_forward_impl.1} parent=95 // pred_fallthru
          _
        // Predicated region
        $region337: #{_fuse_module_forward_impl.1} parent=95 // pred_check
          _
        $region338: #{_fuse_module_forward_impl.1} parent=95 // pred_check_branch
          %844 = sbr.rel (0) target = $region340
        $region339: #{_fuse_module_forward_impl.1} parent=95 // pred_region
          %845 = vsyncadd %s801, 16
        $region340: #{_fuse_module_forward_impl.1} parent=95 // pred_fallthru
          _
        %s846 = smul.u32 1, 1
        %s847 = sshll.u32 %s846, 4
        %848 = dma.done [#allocation4], %s847
        %s849 = sshll.u32 %s846, 4
        %850 = dma.done %s519, %s849
        %s851 = sshll.u32 %s846, 4
        %852 = dma.done %s566, %s851
        %s853 = sshll.u32 %s846, 4
        %854 = dma.done %s613, %s853
        %s855 = sshll.u32 %s846, 4
        %856 = dma.done %s660, %s855
        %s857 = sshll.u32 %s846, 4
        %858 = dma.done %s707, %s857
        %s859 = sshll.u32 %s846, 4
        %860 = dma.done %s754, %s859
        %s861 = sshll.u32 %s846, 4
        %862 = dma.done %s801, %s861
        %v863 = vld [vmem:[#allocation2] sm:$0xff]
        %v864 = vld [vmem:[%s438] sm:$0xff]
        %865 = vadd.xlane.f32.xlu0 %v863
        %v866 = vpop.xlane.xlu0 %865
        %867 = vadd.xlane.f32.xlu0 %v864
        %v868 = vpop.xlane.xlu0 %867
        %v869 = vadd.f32 %v866, %v868
        %v870 = vrcp.pop 256.0
        %v871 = vmul.f32 %v869, %v870
        %v872 = vsub.f32 %v863, %v871
        %v873 = vmul.f32 %v872, %v872
        %874 = vadd.xlane.f32.xlu0 %v873
        %v875 = vpop.xlane.xlu0 %874
        %v876 = vsub.f32 %v864, %v871
        %v877 = vmul.f32 %v876, %v876
        %878 = vadd.xlane.f32.xlu0 %v877
        %v879 = vpop.xlane.xlu0 %878
        %v880 = vadd.f32 %v875, %v879
        %v881 = vmul.f32 %v880, %v870
        %v882 = vadd.f32 %v881, 1e-05
        %v883 = vrsqrt.pop %v882
        %v884 = vmul.f32 %v872, %v883
        %v885 = vld [vmem:[%s3] sm:$0x1]
        %v887 = vlaneseq
        %v888 = vshrl.u32 %v887, 7
        %v889 = vsub.s32 0, %v888
        %v890 = vrot.slane %v885, %v889
        %v892 = vmul.f32 %v884, %v890
        %v893 = vld [vmem:[%s5] sm:$0x1]
        %v895 = vlaneseq
        %v896 = vshrl.u32 %v895, 7
        %v897 = vsub.s32 0, %v896
        %v898 = vrot.slane %v893, %v897
        %v900 = vadd.f32 %v892, %v898
        %v901 = vmul.f32 %v876, %v883
        %v902 = vld [vmem:[%s4] sm:$0x1]
        %v904 = vlaneseq
        %v905 = vshrl.u32 %v904, 7
        %v906 = vsub.s32 0, %v905
        %v907 = vrot.slane %v902, %v906
        %v909 = vmul.f32 %v901, %v907
        %v910 = vld [vmem:[%s6] sm:$0x1]
        %v912 = vlaneseq
        %v913 = vshrl.u32 %v912, 7
        %v914 = vsub.s32 0, %v913
        %v915 = vrot.slane %v910, %v914
        %v917 = vadd.f32 %v909, %v915
        %v918 = vld [vmem:[%s7] sm:$0xf]
        %v919 = vld [vmem:[%s7 + $0x4] sm:$0xf]
        %v920 = vld [vmem:[%s7 + $0x8] sm:$0xf]
        %v921 = vld [vmem:[%s7 + $0xc] sm:$0xf]
        %v922 = vld [vmem:[%s7 + $0x10] sm:$0xf]
        %v923 = vld [vmem:[%s7 + $0x14] sm:$0xf]
        %v924 = vld [vmem:[%s7 + $0x18] sm:$0xf]
        %v925 = vld [vmem:[%s7 + $0x1c] sm:$0xf]
        %v926 = vld [vmem:[%s7 + $0x20] sm:$0xf]
        %v927 = vld [vmem:[%s7 + $0x24] sm:$0xf]
        %v928 = vld [vmem:[%s7 + $0x28] sm:$0xf]
        %v929 = vld [vmem:[%s7 + $0x2c] sm:$0xf]
        %v930 = vld [vmem:[%s7 + $0x30] sm:$0xf]
        %v931 = vld [vmem:[%s7 + $0x34] sm:$0xf]
        %v932 = vld [vmem:[%s7 + $0x38] sm:$0xf]
        %v933 = vld [vmem:[%s7 + $0x3c] sm:$0xf]
        %v934 = vpack.c.bf16 %v900, %v900
        %v935 = vld [vmem:[%s8] sm:$0xf]
        %v936 = vld [vmem:[%s8 + $0x4] sm:$0xf]
        %v937 = vld [vmem:[%s8 + $0x8] sm:$0xf]
        %v938 = vld [vmem:[%s8 + $0xc] sm:$0xf]
        %v939 = vld [vmem:[%s8 + $0x10] sm:$0xf]
        %v940 = vld [vmem:[%s8 + $0x14] sm:$0xf]
        %v941 = vld [vmem:[%s8 + $0x18] sm:$0xf]
        %v942 = vld [vmem:[%s8 + $0x1c] sm:$0xf]
        %v943 = vld [vmem:[%s8 + $0x20] sm:$0xf]
        %v944 = vld [vmem:[%s8 + $0x24] sm:$0xf]
        %v945 = vld [vmem:[%s8 + $0x28] sm:$0xf]
        %v946 = vld [vmem:[%s8 + $0x2c] sm:$0xf]
        %v947 = vld [vmem:[%s8 + $0x30] sm:$0xf]
        %v948 = vld [vmem:[%s8 + $0x34] sm:$0xf]
        %v949 = vld [vmem:[%s8 + $0x38] sm:$0xf]
        %v950 = vld [vmem:[%s8 + $0x3c] sm:$0xf]
        %v951 = vpack.c.bf16 %v917, %v917
        %v968 = vunpack.c.l.b16 %v935
        %v969 = vunpack.c.l.b16 %v936
        %v970 = vunpack.c.l.b16 %v937
        %v971 = vunpack.c.l.b16 %v938
        %v972 = vunpack.c.l.b16 %v939
        %v973 = vunpack.c.l.b16 %v940
        %v974 = vunpack.c.l.b16 %v941
        %v975 = vunpack.c.l.b16 %v942
        %v976 = vunpack.c.l.b16 %v943
        %v977 = vunpack.c.l.b16 %v944
        %v978 = vunpack.c.l.b16 %v945
        %v979 = vunpack.c.l.b16 %v946
        %v980 = vunpack.c.l.b16 %v947
        %v981 = vunpack.c.l.b16 %v948
        %v982 = vunpack.c.l.b16 %v949
        %v983 = vunpack.c.l.b16 %v950
        %v984 = vpack.c.b16 %v969, %v968
        %v985 = vpack.c.b16 %v971, %v970
        %v986 = vpack.c.b16 %v973, %v972
        %v987 = vpack.c.b16 %v975, %v974
        %v988 = vpack.c.b16 %v977, %v976
        %v989 = vpack.c.b16 %v979, %v978
        %v990 = vpack.c.b16 %v981, %v980
        %v991 = vpack.c.b16 %v983, %v982
        %1000 = vmatprep.subr.bf16.mxu0 0
        %1001 = vmatpush1.bf16.msra.mxu0 %v984
        %1002 = vmatprep.subr.bf16.mxu0 0
        %1003 = vmatpush1.bf16.msra.mxu0 %v985
        %1004 = vmatprep.subr.bf16.mxu0 0
        %1005 = vmatpush1.bf16.msra.mxu0 %v986
        %1006 = vmatprep.subr.bf16.mxu0 0
        %1007 = vmatpush1.bf16.msra.mxu0 %v987
        %1008 = vmatprep.subr.bf16.mxu0 0
        %1009 = vmatpush1.bf16.msra.mxu0 %v988
        %1010 = vmatprep.subr.bf16.mxu0 0
        %1011 = vmatpush1.bf16.msra.mxu0 %v989
        %1012 = vmatprep.subr.bf16.mxu0 0
        %1013 = vmatpush1.bf16.msra.mxu0 %v990
        %1014 = vmatprep.subr.bf16.mxu0 0
        %1015 = vmatpush1.bf16.msra.mxu0 %v991
        %1016 = vmatprep.subr.bf16.mxu0 0
        %1017 = vmatpush1.bf16.msra.mxu0 0
        %1018 = vmatprep.subr.bf16.mxu0 0
        %1019 = vmatpush1.bf16.msra.mxu0 0
        %1020 = vmatprep.subr.bf16.mxu0 0
        %1021 = vmatpush1.bf16.msra.mxu0 0
        %1022 = vmatprep.subr.bf16.mxu0 0
        %1023 = vmatpush1.bf16.msra.mxu0 0
        %1024 = vmatprep.subr.bf16.mxu0 0
        %1025 = vmatpush1.bf16.msra.mxu0 0
        %1026 = vmatprep.subr.bf16.mxu0 0
        %1027 = vmatpush1.bf16.msra.mxu0 0
        %1028 = vmatprep.subr.bf16.mxu0 0
        %1029 = vmatpush1.bf16.msra.mxu0 0
        %1030 = vmatprep.subr.bf16.mxu0 0
        %1031 = vmatpush1.bf16.msra.mxu0 0
        %1032 = vmatprep.mubr.bf16.mxu0 0
        %1033 = vmatmul.mubr.bf16.gmra.mrb[0].mxu0 %v951
        %v1034 = vpop.f32.mrb[0].mxu0
        %v1035 = vadd.f32 0.0, %v1034
        %v1036 = vpop.f32.mrb[0].mxu0
        %v1037 = vpop.f32.mrb[0].mxu0
        %v1038 = vpop.f32.mrb[0].mxu0
        %1039 = vdwg.mxu0
        %v1056 = vunpack.c.l.b16 %v918
        %v1057 = vunpack.c.l.b16 %v919
        %v1058 = vunpack.c.l.b16 %v920
        %v1059 = vunpack.c.l.b16 %v921
        %v1060 = vunpack.c.l.b16 %v922
        %v1061 = vunpack.c.l.b16 %v923
        %v1062 = vunpack.c.l.b16 %v924
        %v1063 = vunpack.c.l.b16 %v925
        %v1064 = vunpack.c.l.b16 %v926
        %v1065 = vunpack.c.l.b16 %v927
        %v1066 = vunpack.c.l.b16 %v928
        %v1067 = vunpack.c.l.b16 %v929
        %v1068 = vunpack.c.l.b16 %v930
        %v1069 = vunpack.c.l.b16 %v931
        %v1070 = vunpack.c.l.b16 %v932
        %v1071 = vunpack.c.l.b16 %v933
        %v1072 = vpack.c.b16 %v1057, %v1056
        %v1073 = vpack.c.b16 %v1059, %v1058
        %v1074 = vpack.c.b16 %v1061, %v1060
        %v1075 = vpack.c.b16 %v1063, %v1062
        %v1076 = vpack.c.b16 %v1065, %v1064
        %v1077 = vpack.c.b16 %v1067, %v1066
        %v1078 = vpack.c.b16 %v1069, %v1068
        %v1079 = vpack.c.b16 %v1071, %v1070
        %1088 = vmatprep.subr.bf16.mxu0 0
        %1089 = vmatpush1.bf16.msra.mxu0 %v1072
        %1090 = vmatprep.subr.bf16.mxu0 0
        %1091 = vmatpush1.bf16.msra.mxu0 %v1073
        %1092 = vmatprep.subr.bf16.mxu0 0
        %1093 = vmatpush1.bf16.msra.mxu0 %v1074
        %1094 = vmatprep.subr.bf16.mxu0 0
        %1095 = vmatpush1.bf16.msra.mxu0 %v1075
        %1096 = vmatprep.subr.bf16.mxu0 0
        %1097 = vmatpush1.bf16.msra.mxu0 %v1076
        %1098 = vmatprep.subr.bf16.mxu0 0
        %1099 = vmatpush1.bf16.msra.mxu0 %v1077
        %1100 = vmatprep.subr.bf16.mxu0 0
        %1101 = vmatpush1.bf16.msra.mxu0 %v1078
        %1102 = vmatprep.subr.bf16.mxu0 0
        %1103 = vmatpush1.bf16.msra.mxu0 %v1079
        %1104 = vmatprep.subr.bf16.mxu0 0
        %1105 = vmatpush1.bf16.msra.mxu0 0
        %1106 = vmatprep.subr.bf16.mxu0 0
        %1107 = vmatpush1.bf16.msra.mxu0 0
        %1108 = vmatprep.subr.bf16.mxu0 0
        %1109 = vmatpush1.bf16.msra.mxu0 0
        %1110 = vmatprep.subr.bf16.mxu0 0
        %1111 = vmatpush1.bf16.msra.mxu0 0
        %1112 = vmatprep.subr.bf16.mxu0 0
        %1113 = vmatpush1.bf16.msra.mxu0 0
        %1114 = vmatprep.subr.bf16.mxu0 0
        %1115 = vmatpush1.bf16.msra.mxu0 0
        %1116 = vmatprep.subr.bf16.mxu0 0
        %1117 = vmatpush1.bf16.msra.mxu0 0
        %1118 = vmatprep.subr.bf16.mxu0 0
        %1119 = vmatpush1.bf16.msra.mxu0 0
        %1120 = vmatprep.mubr.bf16.mxu0 0
        %1121 = vmatmul.mubr.bf16.gmra.mrb[0].mxu0 %v934
        %v1122 = vpop.f32.mrb[0].mxu0
        %v1123 = vadd.f32 %v1035, %v1122
        %v1124 = vpop.f32.mrb[0].mxu0
        %v1125 = vpop.f32.mrb[0].mxu0
        %v1126 = vpop.f32.mrb[0].mxu0
        %1127 = vdwg.mxu0
        %v1128 = vld [vmem:[%s9] sm:$0x1]
        %v1130 = vlaneseq
        %v1131 = vshrl.u32 %v1130, 7
        %v1132 = vsub.s32 0, %v1131
        %v1133 = vrot.slane %v1128, %v1132
        %v1135 = vadd.f32 %v1123, %v1133
        %v1136 = vmul.f32 %v1135, 0.5
        %v1137 = vmul.f32 %v1135, 0.70710677
        %v1138 = vand.u32 2147483647, %v1137
        %v1139 = vmul.f32 %v1138, 0.5
        %v1140 = vadd.f32 %v1139, 1.0
        %v1141 = vrcp.pop %v1140
        %v1142 = vmul.f32 1.0, %v1141
        %v1143 = vmul.f32 %v1142, 0.17087276
        %v1144 = vadd.f32 %v1143, -0.82215226
        %v1145 = vmul.f32 %v1142, %v1144
        %v1146 = vadd.f32 %v1145, 1.4885159
        %v1147 = vmul.f32 %v1142, %v1146
        %v1148 = vadd.f32 %v1147, -1.135204
        %v1149 = vmul.f32 %v1142, %v1148
        %v1150 = vadd.f32 %v1149, 0.27886808
        %v1151 = vmul.f32 %v1142, %v1150
        %v1152 = vadd.f32 %v1151, -0.18628806
        %v1153 = vmul.f32 %v1142, %v1152
        %v1154 = vadd.f32 %v1153, 0.09678418
        %v1155 = vmul.f32 %v1142, %v1154
        %v1156 = vadd.f32 %v1155, 0.37409195
        %v1157 = vmul.f32 %v1142, %v1156
        %v1158 = vadd.f32 %v1157, 1.0000237
        %v1159 = vmul.f32 %v1142, %v1158
        %v1160 = vadd.f32 %v1159, -1.2655122
        %v1161 = vsub.f32 0.0, %v1138
        %v1162 = vmul.f32 %v1161, %v1138
        %v1163 = vadd.f32 %v1162, %v1160
        %v1164 = vmul.f32 %v1163, 1.442695
        %v1165 = vpow.pop %v1164
        %v1166 = vmul.f32 %v1142, %v1165
        %vm1167 = vcmp.ge.f32.partialorder %v1137, 0.0
        %v1168 = vsub.f32 1.0, %v1166
        %v1169 = vsub.f32 %v1166, 1.0
        %v1170 = vsel %vm1167, %v1168, %v1169
        %v1171 = vadd.f32 %v1170, 1.0
        %v1172 = vmul.f32 %v1136, %v1171
        %v1173 = vld [vmem:[%s10] sm:$0xf]
        %v1174 = vld [vmem:[%s10 + $0x4] sm:$0xf]
        %v1175 = vld [vmem:[%s10 + $0x8] sm:$0xf]
        %v1176 = vld [vmem:[%s10 + $0xc] sm:$0xf]
        %v1177 = vld [vmem:[%s10 + $0x10] sm:$0xf]
        %v1178 = vld [vmem:[%s10 + $0x14] sm:$0xf]
        %v1179 = vld [vmem:[%s10 + $0x18] sm:$0xf]
        %v1180 = vld [vmem:[%s10 + $0x1c] sm:$0xf]
        %v1181 = vld [vmem:[%s10 + $0x20] sm:$0xf]
        %v1182 = vld [vmem:[%s10 + $0x24] sm:$0xf]
        %v1183 = vld [vmem:[%s10 + $0x28] sm:$0xf]
        %v1184 = vld [vmem:[%s10 + $0x2c] sm:$0xf]
        %v1185 = vld [vmem:[%s10 + $0x30] sm:$0xf]
        %v1186 = vld [vmem:[%s10 + $0x34] sm:$0xf]
        %v1187 = vld [vmem:[%s10 + $0x38] sm:$0xf]
        %v1188 = vld [vmem:[%s10 + $0x3c] sm:$0xf]
        %v1189 = vpack.c.bf16 %v1172, %v1172
        %v1190 = vld [vmem:[%s11] sm:$0x1]
        %v1192 = vlaneseq
        %v1193 = vshrl.u32 %v1192, 7
        %v1194 = vsub.s32 0, %v1193
        %v1195 = vrot.slane %v1190, %v1194
        %v1213 = vunpack.c.l.b16 %v1173
        %v1214 = vunpack.c.l.b16 %v1174
        %v1215 = vunpack.c.l.b16 %v1175
        %v1216 = vunpack.c.l.b16 %v1176
        %v1217 = vunpack.c.l.b16 %v1177
        %v1218 = vunpack.c.l.b16 %v1178
        %v1219 = vunpack.c.l.b16 %v1179
        %v1220 = vunpack.c.l.b16 %v1180
        %v1221 = vunpack.c.l.b16 %v1181
        %v1222 = vunpack.c.l.b16 %v1182
        %v1223 = vunpack.c.l.b16 %v1183
        %v1224 = vunpack.c.l.b16 %v1184
        %v1225 = vunpack.c.l.b16 %v1185
        %v1226 = vunpack.c.l.b16 %v1186
        %v1227 = vunpack.c.l.b16 %v1187
        %v1228 = vunpack.c.l.b16 %v1188
        %v1229 = vpack.c.b16 %v1214, %v1213
        %v1230 = vpack.c.b16 %v1216, %v1215
        %v1231 = vpack.c.b16 %v1218, %v1217
        %v1232 = vpack.c.b16 %v1220, %v1219
        %v1233 = vpack.c.b16 %v1222, %v1221
        %v1234 = vpack.c.b16 %v1224, %v1223
        %v1235 = vpack.c.b16 %v1226, %v1225
        %v1236 = vpack.c.b16 %v1228, %v1227
        %1245 = vmatprep.subr.bf16.mxu0 0
        %1246 = vmatpush1.bf16.msra.mxu0 %v1229
        %1247 = vmatprep.subr.bf16.mxu0 0
        %1248 = vmatpush1.bf16.msra.mxu0 %v1230
        %1249 = vmatprep.subr.bf16.mxu0 0
        %1250 = vmatpush1.bf16.msra.mxu0 %v1231
        %1251 = vmatprep.subr.bf16.mxu0 0
        %1252 = vmatpush1.bf16.msra.mxu0 %v1232
        %1253 = vmatprep.subr.bf16.mxu0 0
        %1254 = vmatpush1.bf16.msra.mxu0 %v1233
        %1255 = vmatprep.subr.bf16.mxu0 0
        %1256 = vmatpush1.bf16.msra.mxu0 %v1234
        %1257 = vmatprep.subr.bf16.mxu0 0
        %1258 = vmatpush1.bf16.msra.mxu0 %v1235
        %1259 = vmatprep.subr.bf16.mxu0 0
        %1260 = vmatpush1.bf16.msra.mxu0 %v1236
        %1261 = vmatprep.subr.bf16.mxu0 0
        %1262 = vmatpush1.bf16.msra.mxu0 0
        %1263 = vmatprep.subr.bf16.mxu0 0
        %1264 = vmatpush1.bf16.msra.mxu0 0
        %1265 = vmatprep.subr.bf16.mxu0 0
        %1266 = vmatpush1.bf16.msra.mxu0 0
        %1267 = vmatprep.subr.bf16.mxu0 0
        %1268 = vmatpush1.bf16.msra.mxu0 0
        %1269 = vmatprep.subr.bf16.mxu0 0
        %1270 = vmatpush1.bf16.msra.mxu0 0
        %1271 = vmatprep.subr.bf16.mxu0 0
        %1272 = vmatpush1.bf16.msra.mxu0 0
        %1273 = vmatprep.subr.bf16.mxu0 0
        %1274 = vmatpush1.bf16.msra.mxu0 0
        %1275 = vmatprep.subr.bf16.mxu0 0
        %1276 = vmatpush1.bf16.msra.mxu0 0
        %1277 = vmatprep.mubr.bf16.mxu0 0
        %1278 = vmatmul.mubr.bf16.gmra.mrb[0].mxu0 %v1189
        %v1279 = vpop.f32.mrb[0].mxu0
        %v1280 = vadd.f32 %v1195, %v1279
        %v1281 = vpop.f32.mrb[0].mxu0
        %v1282 = vpop.f32.mrb[0].mxu0
        %v1283 = vpop.f32.mrb[0].mxu0
        %1284 = vdwg.mxu0
        %v1285 = vadd.f32 %v1280, %v863
        %v1286 = vld [vmem:[%s12] sm:$0x1]
        %v1287 = vld [vmem:[%s13] sm:$0x1]
        %1288 = vadd.xlane.f32.xlu0 %v1285
        %v1289 = vpop.xlane.xlu0 %1288
        %v1290 = vrcp.pop 128.0
        %v1291 = vmul.f32 %v1289, %v1290
        %v1292 = vsub.f32 %v1285, %v1291
        %v1293 = vmul.f32 %v1292, %v1292
        %1294 = vadd.xlane.f32.xlu0 %v1293
        %v1295 = vpop.xlane.xlu0 %1294
        %v1296 = vmul.f32 %v1295, %v1290
        %v1297 = vadd.f32 %v1296, 1e-05
        %v1298 = vrsqrt.pop %v1297
        %v1299 = vmul.f32 %v1292, %v1298
        %v1301 = vlaneseq
        %v1302 = vshrl.u32 %v1301, 7
        %v1303 = vsub.s32 0, %v1302
        %v1304 = vrot.slane %v1286, %v1303
        %v1306 = vmul.f32 %v1299, %v1304
        %v1308 = vlaneseq
        %v1309 = vshrl.u32 %v1308, 7
        %v1310 = vsub.s32 0, %v1309
        %v1311 = vrot.slane %v1287, %v1310
        %v1313 = vadd.f32 %v1306, %v1311
        %v1314 = vld [vmem:[%s14] sm:$0xf]
        %v1315 = vld [vmem:[%s14 + $0x4] sm:$0xf]
        %v1316 = vld [vmem:[%s14 + $0x8] sm:$0xf]
        %v1317 = vld [vmem:[%s14 + $0xc] sm:$0xf]
        %v1318 = vld [vmem:[%s14 + $0x10] sm:$0xf]
        %v1319 = vld [vmem:[%s14 + $0x14] sm:$0xf]
        %v1320 = vld [vmem:[%s14 + $0x18] sm:$0xf]
        %v1321 = vld [vmem:[%s14 + $0x1c] sm:$0xf]
        %v1322 = vld [vmem:[%s14 + $0x20] sm:$0xf]
        %v1323 = vld [vmem:[%s14 + $0x24] sm:$0xf]
        %v1324 = vld [vmem:[%s14 + $0x28] sm:$0xf]
        %v1325 = vld [vmem:[%s14 + $0x2c] sm:$0xf]
        %v1326 = vld [vmem:[%s14 + $0x30] sm:$0xf]
        %v1327 = vld [vmem:[%s14 + $0x34] sm:$0xf]
        %v1328 = vld [vmem:[%s14 + $0x38] sm:$0xf]
        %v1329 = vld [vmem:[%s14 + $0x3c] sm:$0xf]
        %v1330 = vpack.c.bf16 %v1313, %v1313
        %v1331 = vld [vmem:[%s15] sm:$0x1]
        %v1333 = vlaneseq
        %v1334 = vshrl.u32 %v1333, 7
        %v1335 = vsub.s32 0, %v1334
        %v1336 = vrot.slane %v1331, %v1335
        %v1354 = vunpack.c.l.b16 %v1314
        %v1355 = vunpack.c.l.b16 %v1315
        %v1356 = vunpack.c.l.b16 %v1316
        %v1357 = vunpack.c.l.b16 %v1317
        %v1358 = vunpack.c.l.b16 %v1318
        %v1359 = vunpack.c.l.b16 %v1319
        %v1360 = vunpack.c.l.b16 %v1320
        %v1361 = vunpack.c.l.b16 %v1321
        %v1362 = vunpack.c.l.b16 %v1322
        %v1363 = vunpack.c.l.b16 %v1323
        %v1364 = vunpack.c.l.b16 %v1324
        %v1365 = vunpack.c.l.b16 %v1325
        %v1366 = vunpack.c.l.b16 %v1326
        %v1367 = vunpack.c.l.b16 %v1327
        %v1368 = vunpack.c.l.b16 %v1328
        %v1369 = vunpack.c.l.b16 %v1329
        %v1370 = vpack.c.b16 %v1355, %v1354
        %v1371 = vpack.c.b16 %v1357, %v1356
        %v1372 = vpack.c.b16 %v1359, %v1358
        %v1373 = vpack.c.b16 %v1361, %v1360
        %v1374 = vpack.c.b16 %v1363, %v1362
        %v1375 = vpack.c.b16 %v1365, %v1364
        %v1376 = vpack.c.b16 %v1367, %v1366
        %v1377 = vpack.c.b16 %v1369, %v1368
        %1386 = vmatprep.subr.bf16.mxu0 0
        %1387 = vmatpush1.bf16.msra.mxu0 %v1370
        %1388 = vmatprep.subr.bf16.mxu0 0
        %1389 = vmatpush1.bf16.msra.mxu0 %v1371
        %1390 = vmatprep.subr.bf16.mxu0 0
        %1391 = vmatpush1.bf16.msra.mxu0 %v1372
        %1392 = vmatprep.subr.bf16.mxu0 0
        %1393 = vmatpush1.bf16.msra.mxu0 %v1373
        %1394 = vmatprep.subr.bf16.mxu0 0
        %1395 = vmatpush1.bf16.msra.mxu0 %v1374
        %1396 = vmatprep.subr.bf16.mxu0 0
        %1397 = vmatpush1.bf16.msra.mxu0 %v1375
        %1398 = vmatprep.subr.bf16.mxu0 0
        %1399 = vmatpush1.bf16.msra.mxu0 %v1376
        %1400 = vmatprep.subr.bf16.mxu0 0
        %1401 = vmatpush1.bf16.msra.mxu0 %v1377
        %1402 = vmatprep.subr.bf16.mxu0 0
        %1403 = vmatpush1.bf16.msra.mxu0 0
        %1404 = vmatprep.subr.bf16.mxu0 0
        %1405 = vmatpush1.bf16.msra.mxu0 0
        %1406 = vmatprep.subr.bf16.mxu0 0
        %1407 = vmatpush1.bf16.msra.mxu0 0
        %1408 = vmatprep.subr.bf16.mxu0 0
        %1409 = vmatpush1.bf16.msra.mxu0 0
        %1410 = vmatprep.subr.bf16.mxu0 0
        %1411 = vmatpush1.bf16.msra.mxu0 0
        %1412 = vmatprep.subr.bf16.mxu0 0
        %1413 = vmatpush1.bf16.msra.mxu0 0
        %1414 = vmatprep.subr.bf16.mxu0 0
        %1415 = vmatpush1.bf16.msra.mxu0 0
        %1416 = vmatprep.subr.bf16.mxu0 0
        %1417 = vmatpush1.bf16.msra.mxu0 0
        %1418 = vmatprep.mubr.bf16.mxu0 0
        %1419 = vmatmul.mubr.bf16.gmra.mrb[0].mxu0 %v1330
        %v1420 = vpop.f32.mrb[0].mxu0
        %v1421 = vadd.f32 %v1336, %v1420
        %v1422 = vpop.f32.mrb[0].mxu0
        %v1423 = vpop.f32.mrb[0].mxu0
        %v1424 = vpop.f32.mrb[0].mxu0
        %1425 = vdwg.mxu0
        %v1426 = vmul.f32 %v1421, 0.5
        %v1427 = vmul.f32 %v1421, 0.70710677
        %v1428 = vand.u32 2147483647, %v1427
        %v1429 = vmul.f32 %v1428, 0.5
        %v1430 = vadd.f32 %v1429, 1.0
        %v1431 = vrcp.pop %v1430
        %v1432 = vmul.f32 1.0, %v1431
        %v1433 = vmul.f32 %v1432, 0.17087276
        %v1434 = vadd.f32 %v1433, -0.82215226
        %v1435 = vmul.f32 %v1432, %v1434
        %v1436 = vadd.f32 %v1435, 1.4885159
        %v1437 = vmul.f32 %v1432, %v1436
        %v1438 = vadd.f32 %v1437, -1.135204
        %v1439 = vmul.f32 %v1432, %v1438
        %v1440 = vadd.f32 %v1439, 0.27886808
        %v1441 = vmul.f32 %v1432, %v1440
        %v1442 = vadd.f32 %v1441, -0.18628806
        %v1443 = vmul.f32 %v1432, %v1442
        %v1444 = vadd.f32 %v1443, 0.09678418
        %v1445 = vmul.f32 %v1432, %v1444
        %v1446 = vadd.f32 %v1445, 0.37409195
        %v1447 = vmul.f32 %v1432, %v1446
        %v1448 = vadd.f32 %v1447, 1.0000237
        %v1449 = vmul.f32 %v1432, %v1448
        %v1450 = vadd.f32 %v1449, -1.2655122
        %v1451 = vsub.f32 0.0, %v1428
        %v1452 = vmul.f32 %v1451, %v1428
        %v1453 = vadd.f32 %v1452, %v1450
        %v1454 = vmul.f32 %v1453, 1.442695
        %v1455 = vpow.pop %v1454
        %v1456 = vmul.f32 %v1432, %v1455
        %vm1457 = vcmp.ge.f32.partialorder %v1427, 0.0
        %v1458 = vsub.f32 1.0, %v1456
        %v1459 = vsub.f32 %v1456, 1.0
        %v1460 = vsel %vm1457, %v1458, %v1459
        %v1461 = vadd.f32 %v1460, 1.0
        %v1462 = vmul.f32 %v1426, %v1461
        %v1463 = vld [vmem:[%s16] sm:$0xf]
        %v1464 = vld [vmem:[%s16 + $0x4] sm:$0xf]
        %v1465 = vld [vmem:[%s16 + $0x8] sm:$0xf]
        %v1466 = vld [vmem:[%s16 + $0xc] sm:$0xf]
        %v1467 = vld [vmem:[%s16 + $0x10] sm:$0xf]
        %v1468 = vld [vmem:[%s16 + $0x14] sm:$0xf]
        %v1469 = vld [vmem:[%s16 + $0x18] sm:$0xf]
        %v1470 = vld [vmem:[%s16 + $0x1c] sm:$0xf]
        %v1471 = vld [vmem:[%s16 + $0x20] sm:$0xf]
        %v1472 = vld [vmem:[%s16 + $0x24] sm:$0xf]
        %v1473 = vld [vmem:[%s16 + $0x28] sm:$0xf]
        %v1474 = vld [vmem:[%s16 + $0x2c] sm:$0xf]
        %v1475 = vld [vmem:[%s16 + $0x30] sm:$0xf]
        %v1476 = vld [vmem:[%s16 + $0x34] sm:$0xf]
        %v1477 = vld [vmem:[%s16 + $0x38] sm:$0xf]
        %v1478 = vld [vmem:[%s16 + $0x3c] sm:$0xf]
        %v1479 = vpack.c.bf16 %v1462, %v1462
        %v1480 = vld [vmem:[%s17] sm:$0x1]
        %v1482 = vlaneseq
        %v1483 = vshrl.u32 %v1482, 7
        %v1484 = vsub.s32 0, %v1483
        %v1485 = vrot.slane %v1480, %v1484
        %v1503 = vunpack.c.l.b16 %v1463
        %v1504 = vunpack.c.l.b16 %v1464
        %v1505 = vunpack.c.l.b16 %v1465
        %v1506 = vunpack.c.l.b16 %v1466
        %v1507 = vunpack.c.l.b16 %v1467
        %v1508 = vunpack.c.l.b16 %v1468
        %v1509 = vunpack.c.l.b16 %v1469
        %v1510 = vunpack.c.l.b16 %v1470
        %v1511 = vunpack.c.l.b16 %v1471
        %v1512 = vunpack.c.l.b16 %v1472
        %v1513 = vunpack.c.l.b16 %v1473
        %v1514 = vunpack.c.l.b16 %v1474
        %v1515 = vunpack.c.l.b16 %v1475
        %v1516 = vunpack.c.l.b16 %v1476
        %v1517 = vunpack.c.l.b16 %v1477
        %v1518 = vunpack.c.l.b16 %v1478
        %v1519 = vpack.c.b16 %v1504, %v1503
        %v1520 = vpack.c.b16 %v1506, %v1505
        %v1521 = vpack.c.b16 %v1508, %v1507
        %v1522 = vpack.c.b16 %v1510, %v1509
        %v1523 = vpack.c.b16 %v1512, %v1511
        %v1524 = vpack.c.b16 %v1514, %v1513
        %v1525 = vpack.c.b16 %v1516, %v1515
        %v1526 = vpack.c.b16 %v1518, %v1517
        %1535 = vmatprep.subr.bf16.mxu0 0
        %1536 = vmatpush1.bf16.msra.mxu0 %v1519
        %1537 = vmatprep.subr.bf16.mxu0 0
        %1538 = vmatpush1.bf16.msra.mxu0 %v1520
        %1539 = vmatprep.subr.bf16.mxu0 0
        %1540 = vmatpush1.bf16.msra.mxu0 %v1521
        %1541 = vmatprep.subr.bf16.mxu0 0
        %1542 = vmatpush1.bf16.msra.mxu0 %v1522
        %1543 = vmatprep.subr.bf16.mxu0 0
        %1544 = vmatpush1.bf16.msra.mxu0 %v1523
        %1545 = vmatprep.subr.bf16.mxu0 0
        %1546 = vmatpush1.bf16.msra.mxu0 %v1524
        %1547 = vmatprep.subr.bf16.mxu0 0
        %1548 = vmatpush1.bf16.msra.mxu0 %v1525
        %1549 = vmatprep.subr.bf16.mxu0 0
        %1550 = vmatpush1.bf16.msra.mxu0 %v1526
        %1551 = vmatprep.subr.bf16.mxu0 0
        %1552 = vmatpush1.bf16.msra.mxu0 0
        %1553 = vmatprep.subr.bf16.mxu0 0
        %1554 = vmatpush1.bf16.msra.mxu0 0
        %1555 = vmatprep.subr.bf16.mxu0 0
        %1556 = vmatpush1.bf16.msra.mxu0 0
        %1557 = vmatprep.subr.bf16.mxu0 0
        %1558 = vmatpush1.bf16.msra.mxu0 0
        %1559 = vmatprep.subr.bf16.mxu0 0
        %1560 = vmatpush1.bf16.msra.mxu0 0
        %1561 = vmatprep.subr.bf16.mxu0 0
        %1562 = vmatpush1.bf16.msra.mxu0 0
        %1563 = vmatprep.subr.bf16.mxu0 0
        %1564 = vmatpush1.bf16.msra.mxu0 0
        %1565 = vmatprep.subr.bf16.mxu0 0
        %1566 = vmatpush1.bf16.msra.mxu0 0
        %1567 = vmatprep.mubr.bf16.mxu0 0
        %1568 = vmatmul.mubr.bf16.gmra.mrb[0].mxu0 %v1479
        %v1569 = vpop.f32.mrb[0].mxu0
        %v1570 = vadd.f32 %v1485, %v1569
        %v1571 = vpop.f32.mrb[0].mxu0
        %v1572 = vpop.f32.mrb[0].mxu0
        %v1573 = vpop.f32.mrb[0].mxu0
        %1574 = vdwg.mxu0
        %v1575 = vadd.f32 %v1570, %v1285
        %v1576 = vld [vmem:[%s18] sm:$0x1]
        %v1577 = vld [vmem:[%s19] sm:$0x1]
        %1578 = vadd.xlane.f32.xlu0 %v1575
        %v1579 = vpop.xlane.xlu0 %1578
        %v1580 = vmul.f32 %v1579, %v1290
        %v1581 = vsub.f32 %v1575, %v1580
        %v1582 = vmul.f32 %v1581, %v1581
        %1583 = vadd.xlane.f32.xlu0 %v1582
        %v1584 = vpop.xlane.xlu0 %1583
        %v1585 = vmul.f32 %v1584, %v1290
        %v1586 = vadd.f32 %v1585, 1e-05
        %v1587 = vrsqrt.pop %v1586
        %v1588 = vmul.f32 %v1581, %v1587
        %v1590 = vlaneseq
        %v1591 = vshrl.u32 %v1590, 7
        %v1592 = vsub.s32 0, %v1591
        %v1593 = vrot.slane %v1576, %v1592
        %v1595 = vmul.f32 %v1588, %v1593
        %v1597 = vlaneseq
        %v1598 = vshrl.u32 %v1597, 7
        %v1599 = vsub.s32 0, %v1598
        %v1600 = vrot.slane %v1577, %v1599
        %v1602 = vadd.f32 %v1595, %v1600
        %1603 = vst [vmem:[#allocation3] sm:$0xff] %v1602
        %p1604 = scmp.ge.s32.totalorder %s441, 0
        %p1605 = scmp.ge.s32.totalorder %s443, 0
        %p1606 = scmp.ge.s32.totalorder %s445, 0
        %p1607 = scmp.ge.s32.totalorder %s447, 0
        %p1608 = scmp.ge.s32.totalorder %s449, 0
        %p1609 = scmp.ge.s32.totalorder %s451, 0
        %p1610 = scmp.ge.s32.totalorder %s453, 0
        %p1611 = scmp.ge.s32.totalorder %s455, 0
        // Predicated region
        $region341: #{_fuse_module_forward_impl.1} parent=95 // pred_check
          %p1612 = pneg %p1604
        $region342: #{_fuse_module_forward_impl.1} parent=95 // pred_check_branch
          %1614 = sbr.rel (%p1612) target = $region344
        $region343: #{_fuse_module_forward_impl.1} parent=95 // pred_region
          %s1615 = scalar_lea.vmem %s20, %s457
          %p1617 = scmp.lt.u32.totalorder 1, 8
          %p1618 = pneg %p1617
          // Predicated region
          $region345: #{_fuse_module_forward_impl.1} parent=343 // pred_check
            _
          $region346: #{_fuse_module_forward_impl.1} parent=343 // pred_check_branch
            %1620 = sbr.rel (%p1617) target = $region348
          $region347: #{_fuse_module_forward_impl.1} parent=343 // pred_region
            %s1635 = sand.u32 1, 7
            %p1636 = scmp.eq.s32.totalorder %s1635, 0
            %p1637 = pneg %p1636
            // Predicated region
            $region360: #{_fuse_module_forward_impl.1} parent=347 // pred_check
              _
            $region361: #{_fuse_module_forward_impl.1} parent=347 // pred_check_branch
              %1639 = sbr.rel (%p1636) target = $region363
            $region362: #{_fuse_module_forward_impl.1} parent=347 // pred_region
              %s1640 = sand.u32 1, 7
              %s1641 = ssub.s32 1, %s1640
              %s1642 = scalar_lea.vmem [#allocation3], %s1641
              %s1643 = ssub.s32 1, %s1640
              %s1644 = scalar_lea.vmem %s1615, %s1643
              %s1645 = sshllo.u32 0, %s1640
              loop: start=0, step=1, limit=1
              $region364: #{_fuse_module_forward_impl.1} parent=362 // loop_pre_header
                _
              $region365: #{_fuse_module_forward_impl.1} parent=362 // loop_header
                %s1647 = sphi 0, %s1651
                %p1648 = scmp.ge.s32.totalorder %s1647, 1
                %s1652 = sphi %s1642, %s1642
                %s1653 = sphi %s1644, %s1644
              $region366: #{_fuse_module_forward_impl.1} parent=362 // loop_header_branch
                %1650 = sbr.rel (%p1648) target = $region370
              $region367: #{_fuse_module_forward_impl.1} parent=362 // loop_body
                %v1654 = vld [vmem:[%s1652] sm:%s1645]
                %1655 = vst [vmem:[%s1653] sm:%s1645] %v1654
              $region368: #{_fuse_module_forward_impl.1} parent=362 // loop_footer
                %s1651 = sadd.s32 1, %s1647
              $region369: #{_fuse_module_forward_impl.1} parent=362 // loop_footer_branch
                %1646 = sbr.rel target = $region365
              $region370: #{_fuse_module_forward_impl.1} parent=362 // loop_exit
                _
            $region363: #{_fuse_module_forward_impl.1} parent=347 // pred_fallthru
              _
          $region348: #{_fuse_module_forward_impl.1} parent=343 // pred_fallthru
            _
          // Predicated region
          $region349: #{_fuse_module_forward_impl.1} parent=343 // pred_check
            %p1621 = pneg %p1617
          $region350: #{_fuse_module_forward_impl.1} parent=343 // pred_check_branch
            %1623 = sbr.rel (%p1621) target = $region352
          $region351: #{_fuse_module_forward_impl.1} parent=343 // pred_region
            %s1624 = sshllo.u32 0, 1
            loop: start=0, step=1, limit=1
            $region353: #{_fuse_module_forward_impl.1} parent=351 // loop_pre_header
              _
            $region354: #{_fuse_module_forward_impl.1} parent=351 // loop_header
              %s1626 = sphi 0, %s1630
              %p1627 = scmp.ge.s32.totalorder %s1626, 1
              %s1631 = sphi [#allocation3], [#allocation3]
              %s1632 = sphi %s1615, %s1615
            $region355: #{_fuse_module_forward_impl.1} parent=351 // loop_header_branch
              %1629 = sbr.rel (%p1627) target = $region359
            $region356: #{_fuse_module_forward_impl.1} parent=351 // loop_body
              %v1633 = vld [vmem:[%s1631] sm:%s1624]
              %1634 = vst [vmem:[%s1632] sm:%s1624] %v1633
            $region357: #{_fuse_module_forward_impl.1} parent=351 // loop_footer
              %s1630 = sadd.s32 1, %s1626
            $region358: #{_fuse_module_forward_impl.1} parent=351 // loop_footer_branch
              %1625 = sbr.rel target = $region354
            $region359: #{_fuse_module_forward_impl.1} parent=351 // loop_exit
              _
          $region352: #{_fuse_module_forward_impl.1} parent=343 // pred_fallthru
            _
          // Predicated region
          $region371: #{_fuse_module_forward_impl.1} parent=343 // pred_check
            _
          $region372: #{_fuse_module_forward_impl.1} parent=343 // pred_check_branch
            %1658 = sbr.rel (0) target = $region374
          $region373: #{_fuse_module_forward_impl.1} parent=343 // pred_region
            %1659 = vsyncadd [#allocation5], 16
          $region374: #{_fuse_module_forward_impl.1} parent=343 // pred_fallthru
            _
        $region344: #{_fuse_module_forward_impl.1} parent=95 // pred_fallthru
          _
        // Predicated region
        $region375: #{_fuse_module_forward_impl.1} parent=95 // pred_check
          %p1660 = pneg %p1605
        $region376: #{_fuse_module_forward_impl.1} parent=95 // pred_check_branch
          %1662 = sbr.rel (%p1660) target = $region378
        $region377: #{_fuse_module_forward_impl.1} parent=95 // pred_region
          %s1663 = scalar_lea.vmem [#allocation3], 1
          %s1664 = scalar_lea.vmem %s20, %s459
          %s1665 = scalar_lea.sflag [#allocation5], 1
          %p1667 = scmp.lt.u32.totalorder 1, 8
          %p1668 = pneg %p1667
          // Predicated region
          $region379: #{_fuse_module_forward_impl.1} parent=377 // pred_check
            _
          $region380: #{_fuse_module_forward_impl.1} parent=377 // pred_check_branch
            %1670 = sbr.rel (%p1667) target = $region382
          $region381: #{_fuse_module_forward_impl.1} parent=377 // pred_region
            %s1685 = sand.u32 1, 7
            %p1686 = scmp.eq.s32.totalorder %s1685, 0
            %p1687 = pneg %p1686
            // Predicated region
            $region394: #{_fuse_module_forward_impl.1} parent=381 // pred_check
              _
            $region395: #{_fuse_module_forward_impl.1} parent=381 // pred_check_branch
              %1689 = sbr.rel (%p1686) target = $region397
            $region396: #{_fuse_module_forward_impl.1} parent=381 // pred_region
              %s1690 = sand.u32 1, 7
              %s1691 = ssub.s32 1, %s1690
              %s1692 = scalar_lea.vmem %s1663, %s1691 [#allocation3]
              %s1693 = ssub.s32 1, %s1690
              %s1694 = scalar_lea.vmem %s1664, %s1693
              %s1695 = sshllo.u32 0, %s1690
              loop: start=0, step=1, limit=1
              $region398: #{_fuse_module_forward_impl.1} parent=396 // loop_pre_header
                _
              $region399: #{_fuse_module_forward_impl.1} parent=396 // loop_header
                %s1697 = sphi 0, %s1701
                %p1698 = scmp.ge.s32.totalorder %s1697, 1
                %s1702 = sphi %s1692, %s1692
                %s1703 = sphi %s1694, %s1694
              $region400: #{_fuse_module_forward_impl.1} parent=396 // loop_header_branch
                %1700 = sbr.rel (%p1698) target = $region404
              $region401: #{_fuse_module_forward_impl.1} parent=396 // loop_body
                %v1704 = vld [vmem:[%s1702] sm:%s1695]
                %1705 = vst [vmem:[%s1703] sm:%s1695] %v1704
              $region402: #{_fuse_module_forward_impl.1} parent=396 // loop_footer
                %s1701 = sadd.s32 1, %s1697
              $region403: #{_fuse_module_forward_impl.1} parent=396 // loop_footer_branch
                %1696 = sbr.rel target = $region399
              $region404: #{_fuse_module_forward_impl.1} parent=396 // loop_exit
                _
            $region397: #{_fuse_module_forward_impl.1} parent=381 // pred_fallthru
              _
          $region382: #{_fuse_module_forward_impl.1} parent=377 // pred_fallthru
            _
          // Predicated region
          $region383: #{_fuse_module_forward_impl.1} parent=377 // pred_check
            %p1671 = pneg %p1667
          $region384: #{_fuse_module_forward_impl.1} parent=377 // pred_check_branch
            %1673 = sbr.rel (%p1671) target = $region386
          $region385: #{_fuse_module_forward_impl.1} parent=377 // pred_region
            %s1674 = sshllo.u32 0, 1
            loop: start=0, step=1, limit=1
            $region387: #{_fuse_module_forward_impl.1} parent=385 // loop_pre_header
              _
            $region388: #{_fuse_module_forward_impl.1} parent=385 // loop_header
              %s1676 = sphi 0, %s1680
              %p1677 = scmp.ge.s32.totalorder %s1676, 1
              %s1681 = sphi %s1663, %s1663
              %s1682 = sphi %s1664, %s1664
            $region389: #{_fuse_module_forward_impl.1} parent=385 // loop_header_branch
              %1679 = sbr.rel (%p1677) target = $region393
            $region390: #{_fuse_module_forward_impl.1} parent=385 // loop_body
              %v1683 = vld [vmem:[%s1681] sm:%s1674]
              %1684 = vst [vmem:[%s1682] sm:%s1674] %v1683
            $region391: #{_fuse_module_forward_impl.1} parent=385 // loop_footer
              %s1680 = sadd.s32 1, %s1676
            $region392: #{_fuse_module_forward_impl.1} parent=385 // loop_footer_branch
              %1675 = sbr.rel target = $region388
            $region393: #{_fuse_module_forward_impl.1} parent=385 // loop_exit
              _
          $region386: #{_fuse_module_forward_impl.1} parent=377 // pred_fallthru
            _
          // Predicated region
          $region405: #{_fuse_module_forward_impl.1} parent=377 // pred_check
            _
          $region406: #{_fuse_module_forward_impl.1} parent=377 // pred_check_branch
            %1708 = sbr.rel (0) target = $region408
          $region407: #{_fuse_module_forward_impl.1} parent=377 // pred_region
            %1709 = vsyncadd %s1665, 16
          $region408: #{_fuse_module_forward_impl.1} parent=377 // pred_fallthru
            _
        $region378: #{_fuse_module_forward_impl.1} parent=95 // pred_fallthru
          _
        // Predicated region
        $region409: #{_fuse_module_forward_impl.1} parent=95 // pred_check
          %p1710 = pneg %p1606
        $region410: #{_fuse_module_forward_impl.1} parent=95 // pred_check_branch
          %1712 = sbr.rel (%p1710) target = $region412
        $region411: #{_fuse_module_forward_impl.1} parent=95 // pred_region
          %s1713 = scalar_lea.vmem [#allocation3], 2
          %s1714 = scalar_lea.vmem %s20, %s461
          %s1715 = scalar_lea.sflag [#allocation5], 2
          %p1717 = scmp.lt.u32.totalorder 1, 8
          %p1718 = pneg %p1717
          // Predicated region
          $region413: #{_fuse_module_forward_impl.1} parent=411 // pred_check
            _
          $region414: #{_fuse_module_forward_impl.1} parent=411 // pred_check_branch
            %1720 = sbr.rel (%p1717) target = $region416
          $region415: #{_fuse_module_forward_impl.1} parent=411 // pred_region
            %s1735 = sand.u32 1, 7
            %p1736 = scmp.eq.s32.totalorder %s1735, 0
            %p1737 = pneg %p1736
            // Predicated region
            $region428: #{_fuse_module_forward_impl.1} parent=415 // pred_check
              _
            $region429: #{_fuse_module_forward_impl.1} parent=415 // pred_check_branch
              %1739 = sbr.rel (%p1736) target = $region431
            $region430: #{_fuse_module_forward_impl.1} parent=415 // pred_region
              %s1740 = sand.u32 1, 7
              %s1741 = ssub.s32 1, %s1740
              %s1742 = scalar_lea.vmem %s1713, %s1741 [#allocation3]
              %s1743 = ssub.s32 1, %s1740
              %s1744 = scalar_lea.vmem %s1714, %s1743
              %s1745 = sshllo.u32 0, %s1740
              loop: start=0, step=1, limit=1
              $region432: #{_fuse_module_forward_impl.1} parent=430 // loop_pre_header
                _
              $region433: #{_fuse_module_forward_impl.1} parent=430 // loop_header
                %s1747 = sphi 0, %s1751
                %p1748 = scmp.ge.s32.totalorder %s1747, 1
                %s1752 = sphi %s1742, %s1742
                %s1753 = sphi %s1744, %s1744
              $region434: #{_fuse_module_forward_impl.1} parent=430 // loop_header_branch
                %1750 = sbr.rel (%p1748) target = $region438
              $region435: #{_fuse_module_forward_impl.1} parent=430 // loop_body
                %v1754 = vld [vmem:[%s1752] sm:%s1745]
                %1755 = vst [vmem:[%s1753] sm:%s1745] %v1754
              $region436: #{_fuse_module_forward_impl.1} parent=430 // loop_footer
                %s1751 = sadd.s32 1, %s1747
              $region437: #{_fuse_module_forward_impl.1} parent=430 // loop_footer_branch
                %1746 = sbr.rel target = $region433
              $region438: #{_fuse_module_forward_impl.1} parent=430 // loop_exit
                _
            $region431: #{_fuse_module_forward_impl.1} parent=415 // pred_fallthru
              _
          $region416: #{_fuse_module_forward_impl.1} parent=411 // pred_fallthru
            _
          // Predicated region
          $region417: #{_fuse_module_forward_impl.1} parent=411 // pred_check
            %p1721 = pneg %p1717
          $region418: #{_fuse_module_forward_impl.1} parent=411 // pred_check_branch
            %1723 = sbr.rel (%p1721) target = $region420
          $region419: #{_fuse_module_forward_impl.1} parent=411 // pred_region
            %s1724 = sshllo.u32 0, 1
            loop: start=0, step=1, limit=1
            $region421: #{_fuse_module_forward_impl.1} parent=419 // loop_pre_header
              _
            $region422: #{_fuse_module_forward_impl.1} parent=419 // loop_header
              %s1726 = sphi 0, %s1730
              %p1727 = scmp.ge.s32.totalorder %s1726, 1
              %s1731 = sphi %s1713, %s1713
              %s1732 = sphi %s1714, %s1714
            $region423: #{_fuse_module_forward_impl.1} parent=419 // loop_header_branch
              %1729 = sbr.rel (%p1727) target = $region427
            $region424: #{_fuse_module_forward_impl.1} parent=419 // loop_body
              %v1733 = vld [vmem:[%s1731] sm:%s1724]
              %1734 = vst [vmem:[%s1732] sm:%s1724] %v1733
            $region425: #{_fuse_module_forward_impl.1} parent=419 // loop_footer
              %s1730 = sadd.s32 1, %s1726
            $region426: #{_fuse_module_forward_impl.1} parent=419 // loop_footer_branch
              %1725 = sbr.rel target = $region422
            $region427: #{_fuse_module_forward_impl.1} parent=419 // loop_exit
              _
          $region420: #{_fuse_module_forward_impl.1} parent=411 // pred_fallthru
            _
          // Predicated region
          $region439: #{_fuse_module_forward_impl.1} parent=411 // pred_check
            _
          $region440: #{_fuse_module_forward_impl.1} parent=411 // pred_check_branch
            %1758 = sbr.rel (0) target = $region442
          $region441: #{_fuse_module_forward_impl.1} parent=411 // pred_region
            %1759 = vsyncadd %s1715, 16
          $region442: #{_fuse_module_forward_impl.1} parent=411 // pred_fallthru
            _
        $region412: #{_fuse_module_forward_impl.1} parent=95 // pred_fallthru
          _
        // Predicated region
        $region443: #{_fuse_module_forward_impl.1} parent=95 // pred_check
          %p1760 = pneg %p1607
        $region444: #{_fuse_module_forward_impl.1} parent=95 // pred_check_branch
          %1762 = sbr.rel (%p1760) target = $region446
        $region445: #{_fuse_module_forward_impl.1} parent=95 // pred_region
          %s1763 = scalar_lea.vmem [#allocation3], 3
          %s1764 = scalar_lea.vmem %s20, %s463
          %s1765 = scalar_lea.sflag [#allocation5], 3
          %p1767 = scmp.lt.u32.totalorder 1, 8
          %p1768 = pneg %p1767
          // Predicated region
          $region447: #{_fuse_module_forward_impl.1} parent=445 // pred_check
            _
          $region448: #{_fuse_module_forward_impl.1} parent=445 // pred_check_branch
            %1770 = sbr.rel (%p1767) target = $region450
          $region449: #{_fuse_module_forward_impl.1} parent=445 // pred_region
            %s1785 = sand.u32 1, 7
            %p1786 = scmp.eq.s32.totalorder %s1785, 0
            %p1787 = pneg %p1786
            // Predicated region
            $region462: #{_fuse_module_forward_impl.1} parent=449 // pred_check
              _
            $region463: #{_fuse_module_forward_impl.1} parent=449 // pred_check_branch
              %1789 = sbr.rel (%p1786) target = $region465
            $region464: #{_fuse_module_forward_impl.1} parent=449 // pred_region
              %s1790 = sand.u32 1, 7
              %s1791 = ssub.s32 1, %s1790
              %s1792 = scalar_lea.vmem %s1763, %s1791 [#allocation3]
              %s1793 = ssub.s32 1, %s1790
              %s1794 = scalar_lea.vmem %s1764, %s1793
              %s1795 = sshllo.u32 0, %s1790
              loop: start=0, step=1, limit=1
              $region466: #{_fuse_module_forward_impl.1} parent=464 // loop_pre_header
                _
              $region467: #{_fuse_module_forward_impl.1} parent=464 // loop_header
                %s1797 = sphi 0, %s1801
                %p1798 = scmp.ge.s32.totalorder %s1797, 1
                %s1802 = sphi %s1792, %s1792
                %s1803 = sphi %s1794, %s1794
              $region468: #{_fuse_module_forward_impl.1} parent=464 // loop_header_branch
                %1800 = sbr.rel (%p1798) target = $region472
              $region469: #{_fuse_module_forward_impl.1} parent=464 // loop_body
                %v1804 = vld [vmem:[%s1802] sm:%s1795]
                %1805 = vst [vmem:[%s1803] sm:%s1795] %v1804
              $region470: #{_fuse_module_forward_impl.1} parent=464 // loop_footer
                %s1801 = sadd.s32 1, %s1797
              $region471: #{_fuse_module_forward_impl.1} parent=464 // loop_footer_branch
                %1796 = sbr.rel target = $region467
              $region472: #{_fuse_module_forward_impl.1} parent=464 // loop_exit
                _
            $region465: #{_fuse_module_forward_impl.1} parent=449 // pred_fallthru
              _
          $region450: #{_fuse_module_forward_impl.1} parent=445 // pred_fallthru
            _
          // Predicated region
          $region451: #{_fuse_module_forward_impl.1} parent=445 // pred_check
            %p1771 = pneg %p1767
          $region452: #{_fuse_module_forward_impl.1} parent=445 // pred_check_branch
            %1773 = sbr.rel (%p1771) target = $region454
          $region453: #{_fuse_module_forward_impl.1} parent=445 // pred_region
            %s1774 = sshllo.u32 0, 1
            loop: start=0, step=1, limit=1
            $region455: #{_fuse_module_forward_impl.1} parent=453 // loop_pre_header
              _
            $region456: #{_fuse_module_forward_impl.1} parent=453 // loop_header
              %s1776 = sphi 0, %s1780
              %p1777 = scmp.ge.s32.totalorder %s1776, 1
              %s1781 = sphi %s1763, %s1763
              %s1782 = sphi %s1764, %s1764
            $region457: #{_fuse_module_forward_impl.1} parent=453 // loop_header_branch
              %1779 = sbr.rel (%p1777) target = $region461
            $region458: #{_fuse_module_forward_impl.1} parent=453 // loop_body
              %v1783 = vld [vmem:[%s1781] sm:%s1774]
              %1784 = vst [vmem:[%s1782] sm:%s1774] %v1783
            $region459: #{_fuse_module_forward_impl.1} parent=453 // loop_footer
              %s1780 = sadd.s32 1, %s1776
            $region460: #{_fuse_module_forward_impl.1} parent=453 // loop_footer_branch
              %1775 = sbr.rel target = $region456
            $region461: #{_fuse_module_forward_impl.1} parent=453 // loop_exit
              _
          $region454: #{_fuse_module_forward_impl.1} parent=445 // pred_fallthru
            _
          // Predicated region
          $region473: #{_fuse_module_forward_impl.1} parent=445 // pred_check
            _
          $region474: #{_fuse_module_forward_impl.1} parent=445 // pred_check_branch
            %1808 = sbr.rel (0) target = $region476
          $region475: #{_fuse_module_forward_impl.1} parent=445 // pred_region
            %1809 = vsyncadd %s1765, 16
          $region476: #{_fuse_module_forward_impl.1} parent=445 // pred_fallthru
            _
        $region446: #{_fuse_module_forward_impl.1} parent=95 // pred_fallthru
          _
        // Predicated region
        $region477: #{_fuse_module_forward_impl.1} parent=95 // pred_check
          %p1810 = pneg %p1608
        $region478: #{_fuse_module_forward_impl.1} parent=95 // pred_check_branch
          %1812 = sbr.rel (%p1810) target = $region480
        $region479: #{_fuse_module_forward_impl.1} parent=95 // pred_region
          %s1813 = scalar_lea.vmem [#allocation3], 4
          %s1814 = scalar_lea.vmem %s20, %s465
          %s1815 = scalar_lea.sflag [#allocation5], 4
          %p1817 = scmp.lt.u32.totalorder 1, 8
          %p1818 = pneg %p1817
          // Predicated region
          $region481: #{_fuse_module_forward_impl.1} parent=479 // pred_check
            _
          $region482: #{_fuse_module_forward_impl.1} parent=479 // pred_check_branch
            %1820 = sbr.rel (%p1817) target = $region484
          $region483: #{_fuse_module_forward_impl.1} parent=479 // pred_region
            %s1835 = sand.u32 1, 7
            %p1836 = scmp.eq.s32.totalorder %s1835, 0
            %p1837 = pneg %p1836
            // Predicated region
            $region496: #{_fuse_module_forward_impl.1} parent=483 // pred_check
              _
            $region497: #{_fuse_module_forward_impl.1} parent=483 // pred_check_branch
              %1839 = sbr.rel (%p1836) target = $region499
            $region498: #{_fuse_module_forward_impl.1} parent=483 // pred_region
              %s1840 = sand.u32 1, 7
              %s1841 = ssub.s32 1, %s1840
              %s1842 = scalar_lea.vmem %s1813, %s1841 [#allocation3]
              %s1843 = ssub.s32 1, %s1840
              %s1844 = scalar_lea.vmem %s1814, %s1843
              %s1845 = sshllo.u32 0, %s1840
              loop: start=0, step=1, limit=1
              $region500: #{_fuse_module_forward_impl.1} parent=498 // loop_pre_header
                _
              $region501: #{_fuse_module_forward_impl.1} parent=498 // loop_header
                %s1847 = sphi 0, %s1851
                %p1848 = scmp.ge.s32.totalorder %s1847, 1
                %s1852 = sphi %s1842, %s1842
                %s1853 = sphi %s1844, %s1844
              $region502: #{_fuse_module_forward_impl.1} parent=498 // loop_header_branch
                %1850 = sbr.rel (%p1848) target = $region506
              $region503: #{_fuse_module_forward_impl.1} parent=498 // loop_body
                %v1854 = vld [vmem:[%s1852] sm:%s1845]
                %1855 = vst [vmem:[%s1853] sm:%s1845] %v1854
              $region504: #{_fuse_module_forward_impl.1} parent=498 // loop_footer
                %s1851 = sadd.s32 1, %s1847
              $region505: #{_fuse_module_forward_impl.1} parent=498 // loop_footer_branch
                %1846 = sbr.rel target = $region501
              $region506: #{_fuse_module_forward_impl.1} parent=498 // loop_exit
                _
            $region499: #{_fuse_module_forward_impl.1} parent=483 // pred_fallthru
              _
          $region484: #{_fuse_module_forward_impl.1} parent=479 // pred_fallthru
            _
          // Predicated region
          $region485: #{_fuse_module_forward_impl.1} parent=479 // pred_check
            %p1821 = pneg %p1817
          $region486: #{_fuse_module_forward_impl.1} parent=479 // pred_check_branch
            %1823 = sbr.rel (%p1821) target = $region488
          $region487: #{_fuse_module_forward_impl.1} parent=479 // pred_region
            %s1824 = sshllo.u32 0, 1
            loop: start=0, step=1, limit=1
            $region489: #{_fuse_module_forward_impl.1} parent=487 // loop_pre_header
              _
            $region490: #{_fuse_module_forward_impl.1} parent=487 // loop_header
              %s1826 = sphi 0, %s1830
              %p1827 = scmp.ge.s32.totalorder %s1826, 1
              %s1831 = sphi %s1813, %s1813
              %s1832 = sphi %s1814, %s1814
            $region491: #{_fuse_module_forward_impl.1} parent=487 // loop_header_branch
              %1829 = sbr.rel (%p1827) target = $region495
            $region492: #{_fuse_module_forward_impl.1} parent=487 // loop_body
              %v1833 = vld [vmem:[%s1831] sm:%s1824]
              %1834 = vst [vmem:[%s1832] sm:%s1824] %v1833
            $region493: #{_fuse_module_forward_impl.1} parent=487 // loop_footer
              %s1830 = sadd.s32 1, %s1826
            $region494: #{_fuse_module_forward_impl.1} parent=487 // loop_footer_branch
              %1825 = sbr.rel target = $region490
            $region495: #{_fuse_module_forward_impl.1} parent=487 // loop_exit
              _
          $region488: #{_fuse_module_forward_impl.1} parent=479 // pred_fallthru
            _
          // Predicated region
          $region507: #{_fuse_module_forward_impl.1} parent=479 // pred_check
            _
          $region508: #{_fuse_module_forward_impl.1} parent=479 // pred_check_branch
            %1858 = sbr.rel (0) target = $region510
          $region509: #{_fuse_module_forward_impl.1} parent=479 // pred_region
            %1859 = vsyncadd %s1815, 16
          $region510: #{_fuse_module_forward_impl.1} parent=479 // pred_fallthru
            _
        $region480: #{_fuse_module_forward_impl.1} parent=95 // pred_fallthru
          _
        // Predicated region
        $region511: #{_fuse_module_forward_impl.1} parent=95 // pred_check
          %p1860 = pneg %p1609
        $region512: #{_fuse_module_forward_impl.1} parent=95 // pred_check_branch
          %1862 = sbr.rel (%p1860) target = $region514
        $region513: #{_fuse_module_forward_impl.1} parent=95 // pred_region
          %s1863 = scalar_lea.vmem [#allocation3], 5
          %s1864 = scalar_lea.vmem %s20, %s467
          %s1865 = scalar_lea.sflag [#allocation5], 5
          %p1867 = scmp.lt.u32.totalorder 1, 8
          %p1868 = pneg %p1867
          // Predicated region
          $region515: #{_fuse_module_forward_impl.1} parent=513 // pred_check
            _
          $region516: #{_fuse_module_forward_impl.1} parent=513 // pred_check_branch
            %1870 = sbr.rel (%p1867) target = $region518
          $region517: #{_fuse_module_forward_impl.1} parent=513 // pred_region
            %s1885 = sand.u32 1, 7
            %p1886 = scmp.eq.s32.totalorder %s1885, 0
            %p1887 = pneg %p1886
            // Predicated region
            $region530: #{_fuse_module_forward_impl.1} parent=517 // pred_check
              _
            $region531: #{_fuse_module_forward_impl.1} parent=517 // pred_check_branch
              %1889 = sbr.rel (%p1886) target = $region533
            $region532: #{_fuse_module_forward_impl.1} parent=517 // pred_region
              %s1890 = sand.u32 1, 7
              %s1891 = ssub.s32 1, %s1890
              %s1892 = scalar_lea.vmem %s1863, %s1891 [#allocation3]
              %s1893 = ssub.s32 1, %s1890
              %s1894 = scalar_lea.vmem %s1864, %s1893
              %s1895 = sshllo.u32 0, %s1890
              loop: start=0, step=1, limit=1
              $region534: #{_fuse_module_forward_impl.1} parent=532 // loop_pre_header
                _
              $region535: #{_fuse_module_forward_impl.1} parent=532 // loop_header
                %s1897 = sphi 0, %s1901
                %p1898 = scmp.ge.s32.totalorder %s1897, 1
                %s1902 = sphi %s1892, %s1892
                %s1903 = sphi %s1894, %s1894
              $region536: #{_fuse_module_forward_impl.1} parent=532 // loop_header_branch
                %1900 = sbr.rel (%p1898) target = $region540
              $region537: #{_fuse_module_forward_impl.1} parent=532 // loop_body
                %v1904 = vld [vmem:[%s1902] sm:%s1895]
                %1905 = vst [vmem:[%s1903] sm:%s1895] %v1904
              $region538: #{_fuse_module_forward_impl.1} parent=532 // loop_footer
                %s1901 = sadd.s32 1, %s1897
              $region539: #{_fuse_module_forward_impl.1} parent=532 // loop_footer_branch
                %1896 = sbr.rel target = $region535
              $region540: #{_fuse_module_forward_impl.1} parent=532 // loop_exit
                _
            $region533: #{_fuse_module_forward_impl.1} parent=517 // pred_fallthru
              _
          $region518: #{_fuse_module_forward_impl.1} parent=513 // pred_fallthru
            _
          // Predicated region
          $region519: #{_fuse_module_forward_impl.1} parent=513 // pred_check
            %p1871 = pneg %p1867
          $region520: #{_fuse_module_forward_impl.1} parent=513 // pred_check_branch
            %1873 = sbr.rel (%p1871) target = $region522
          $region521: #{_fuse_module_forward_impl.1} parent=513 // pred_region
            %s1874 = sshllo.u32 0, 1
            loop: start=0, step=1, limit=1
            $region523: #{_fuse_module_forward_impl.1} parent=521 // loop_pre_header
              _
            $region524: #{_fuse_module_forward_impl.1} parent=521 // loop_header
              %s1876 = sphi 0, %s1880
              %p1877 = scmp.ge.s32.totalorder %s1876, 1
              %s1881 = sphi %s1863, %s1863
              %s1882 = sphi %s1864, %s1864
            $region525: #{_fuse_module_forward_impl.1} parent=521 // loop_header_branch
              %1879 = sbr.rel (%p1877) target = $region529
            $region526: #{_fuse_module_forward_impl.1} parent=521 // loop_body
              %v1883 = vld [vmem:[%s1881] sm:%s1874]
              %1884 = vst [vmem:[%s1882] sm:%s1874] %v1883
            $region527: #{_fuse_module_forward_impl.1} parent=521 // loop_footer
              %s1880 = sadd.s32 1, %s1876
            $region528: #{_fuse_module_forward_impl.1} parent=521 // loop_footer_branch
              %1875 = sbr.rel target = $region524
            $region529: #{_fuse_module_forward_impl.1} parent=521 // loop_exit
              _
          $region522: #{_fuse_module_forward_impl.1} parent=513 // pred_fallthru
            _
          // Predicated region
          $region541: #{_fuse_module_forward_impl.1} parent=513 // pred_check
            _
          $region542: #{_fuse_module_forward_impl.1} parent=513 // pred_check_branch
            %1908 = sbr.rel (0) target = $region544
          $region543: #{_fuse_module_forward_impl.1} parent=513 // pred_region
            %1909 = vsyncadd %s1865, 16
          $region544: #{_fuse_module_forward_impl.1} parent=513 // pred_fallthru
            _
        $region514: #{_fuse_module_forward_impl.1} parent=95 // pred_fallthru
          _
        // Predicated region
        $region545: #{_fuse_module_forward_impl.1} parent=95 // pred_check
          %p1910 = pneg %p1610
        $region546: #{_fuse_module_forward_impl.1} parent=95 // pred_check_branch
          %1912 = sbr.rel (%p1910) target = $region548
        $region547: #{_fuse_module_forward_impl.1} parent=95 // pred_region
          %s1913 = scalar_lea.vmem [#allocation3], 6
          %s1914 = scalar_lea.vmem %s20, %s469
          %s1915 = scalar_lea.sflag [#allocation5], 6
          %p1917 = scmp.lt.u32.totalorder 1, 8
          %p1918 = pneg %p1917
          // Predicated region
          $region549: #{_fuse_module_forward_impl.1} parent=547 // pred_check
            _
          $region550: #{_fuse_module_forward_impl.1} parent=547 // pred_check_branch
            %1920 = sbr.rel (%p1917) target = $region552
          $region551: #{_fuse_module_forward_impl.1} parent=547 // pred_region
            %s1935 = sand.u32 1, 7
            %p1936 = scmp.eq.s32.totalorder %s1935, 0
            %p1937 = pneg %p1936
            // Predicated region
            $region564: #{_fuse_module_forward_impl.1} parent=551 // pred_check
              _
            $region565: #{_fuse_module_forward_impl.1} parent=551 // pred_check_branch
              %1939 = sbr.rel (%p1936) target = $region567
            $region566: #{_fuse_module_forward_impl.1} parent=551 // pred_region
              %s1940 = sand.u32 1, 7
              %s1941 = ssub.s32 1, %s1940
              %s1942 = scalar_lea.vmem %s1913, %s1941 [#allocation3]
              %s1943 = ssub.s32 1, %s1940
              %s1944 = scalar_lea.vmem %s1914, %s1943
              %s1945 = sshllo.u32 0, %s1940
              loop: start=0, step=1, limit=1
              $region568: #{_fuse_module_forward_impl.1} parent=566 // loop_pre_header
                _
              $region569: #{_fuse_module_forward_impl.1} parent=566 // loop_header
                %s1947 = sphi 0, %s1951
                %p1948 = scmp.ge.s32.totalorder %s1947, 1
                %s1952 = sphi %s1942, %s1942
                %s1953 = sphi %s1944, %s1944
              $region570: #{_fuse_module_forward_impl.1} parent=566 // loop_header_branch
                %1950 = sbr.rel (%p1948) target = $region574
              $region571: #{_fuse_module_forward_impl.1} parent=566 // loop_body
                %v1954 = vld [vmem:[%s1952] sm:%s1945]
                %1955 = vst [vmem:[%s1953] sm:%s1945] %v1954
              $region572: #{_fuse_module_forward_impl.1} parent=566 // loop_footer
                %s1951 = sadd.s32 1, %s1947
              $region573: #{_fuse_module_forward_impl.1} parent=566 // loop_footer_branch
                %1946 = sbr.rel target = $region569
              $region574: #{_fuse_module_forward_impl.1} parent=566 // loop_exit
                _
            $region567: #{_fuse_module_forward_impl.1} parent=551 // pred_fallthru
              _
          $region552: #{_fuse_module_forward_impl.1} parent=547 // pred_fallthru
            _
          // Predicated region
          $region553: #{_fuse_module_forward_impl.1} parent=547 // pred_check
            %p1921 = pneg %p1917
          $region554: #{_fuse_module_forward_impl.1} parent=547 // pred_check_branch
            %1923 = sbr.rel (%p1921) target = $region556
          $region555: #{_fuse_module_forward_impl.1} parent=547 // pred_region
            %s1924 = sshllo.u32 0, 1
            loop: start=0, step=1, limit=1
            $region557: #{_fuse_module_forward_impl.1} parent=555 // loop_pre_header
              _
            $region558: #{_fuse_module_forward_impl.1} parent=555 // loop_header
              %s1926 = sphi 0, %s1930
              %p1927 = scmp.ge.s32.totalorder %s1926, 1
              %s1931 = sphi %s1913, %s1913
              %s1932 = sphi %s1914, %s1914
            $region559: #{_fuse_module_forward_impl.1} parent=555 // loop_header_branch
              %1929 = sbr.rel (%p1927) target = $region563
            $region560: #{_fuse_module_forward_impl.1} parent=555 // loop_body
              %v1933 = vld [vmem:[%s1931] sm:%s1924]
              %1934 = vst [vmem:[%s1932] sm:%s1924] %v1933
            $region561: #{_fuse_module_forward_impl.1} parent=555 // loop_footer
              %s1930 = sadd.s32 1, %s1926
            $region562: #{_fuse_module_forward_impl.1} parent=555 // loop_footer_branch
              %1925 = sbr.rel target = $region558
            $region563: #{_fuse_module_forward_impl.1} parent=555 // loop_exit
              _
          $region556: #{_fuse_module_forward_impl.1} parent=547 // pred_fallthru
            _
          // Predicated region
          $region575: #{_fuse_module_forward_impl.1} parent=547 // pred_check
            _
          $region576: #{_fuse_module_forward_impl.1} parent=547 // pred_check_branch
            %1958 = sbr.rel (0) target = $region578
          $region577: #{_fuse_module_forward_impl.1} parent=547 // pred_region
            %1959 = vsyncadd %s1915, 16
          $region578: #{_fuse_module_forward_impl.1} parent=547 // pred_fallthru
            _
        $region548: #{_fuse_module_forward_impl.1} parent=95 // pred_fallthru
          _
        // Predicated region
        $region579: #{_fuse_module_forward_impl.1} parent=95 // pred_check
          %p1960 = pneg %p1611
        $region580: #{_fuse_module_forward_impl.1} parent=95 // pred_check_branch
          %1962 = sbr.rel (%p1960) target = $region582
        $region581: #{_fuse_module_forward_impl.1} parent=95 // pred_region
          %s1963 = scalar_lea.vmem [#allocation3], 7
          %s1964 = scalar_lea.vmem %s20, %s471
          %s1965 = scalar_lea.sflag [#allocation5], 7
          %p1967 = scmp.lt.u32.totalorder 1, 8
          %p1968 = pneg %p1967
          // Predicated region
          $region583: #{_fuse_module_forward_impl.1} parent=581 // pred_check
            _
          $region584: #{_fuse_module_forward_impl.1} parent=581 // pred_check_branch
            %1970 = sbr.rel (%p1967) target = $region586
          $region585: #{_fuse_module_forward_impl.1} parent=581 // pred_region
            %s1985 = sand.u32 1, 7
            %p1986 = scmp.eq.s32.totalorder %s1985, 0
            %p1987 = pneg %p1986
            // Predicated region
            $region598: #{_fuse_module_forward_impl.1} parent=585 // pred_check
              _
            $region599: #{_fuse_module_forward_impl.1} parent=585 // pred_check_branch
              %1989 = sbr.rel (%p1986) target = $region601
            $region600: #{_fuse_module_forward_impl.1} parent=585 // pred_region
              %s1990 = sand.u32 1, 7
              %s1991 = ssub.s32 1, %s1990
              %s1992 = scalar_lea.vmem %s1963, %s1991 [#allocation3]
              %s1993 = ssub.s32 1, %s1990
              %s1994 = scalar_lea.vmem %s1964, %s1993
              %s1995 = sshllo.u32 0, %s1990
              loop: start=0, step=1, limit=1
              $region602: #{_fuse_module_forward_impl.1} parent=600 // loop_pre_header
                _
              $region603: #{_fuse_module_forward_impl.1} parent=600 // loop_header
                %s1997 = sphi 0, %s2001
                %p1998 = scmp.ge.s32.totalorder %s1997, 1
                %s2002 = sphi %s1992, %s1992
                %s2003 = sphi %s1994, %s1994
              $region604: #{_fuse_module_forward_impl.1} parent=600 // loop_header_branch
                %2000 = sbr.rel (%p1998) target = $region608
              $region605: #{_fuse_module_forward_impl.1} parent=600 // loop_body
                %v2004 = vld [vmem:[%s2002] sm:%s1995]
                %2005 = vst [vmem:[%s2003] sm:%s1995] %v2004
              $region606: #{_fuse_module_forward_impl.1} parent=600 // loop_footer
                %s2001 = sadd.s32 1, %s1997
              $region607: #{_fuse_module_forward_impl.1} parent=600 // loop_footer_branch
                %1996 = sbr.rel target = $region603
              $region608: #{_fuse_module_forward_impl.1} parent=600 // loop_exit
                _
            $region601: #{_fuse_module_forward_impl.1} parent=585 // pred_fallthru
              _
          $region586: #{_fuse_module_forward_impl.1} parent=581 // pred_fallthru
            _
          // Predicated region
          $region587: #{_fuse_module_forward_impl.1} parent=581 // pred_check
            %p1971 = pneg %p1967
          $region588: #{_fuse_module_forward_impl.1} parent=581 // pred_check_branch
            %1973 = sbr.rel (%p1971) target = $region590
          $region589: #{_fuse_module_forward_impl.1} parent=581 // pred_region
            %s1974 = sshllo.u32 0, 1
            loop: start=0, step=1, limit=1
            $region591: #{_fuse_module_forward_impl.1} parent=589 // loop_pre_header
              _
            $region592: #{_fuse_module_forward_impl.1} parent=589 // loop_header
              %s1976 = sphi 0, %s1980
              %p1977 = scmp.ge.s32.totalorder %s1976, 1
              %s1981 = sphi %s1963, %s1963
              %s1982 = sphi %s1964, %s1964
            $region593: #{_fuse_module_forward_impl.1} parent=589 // loop_header_branch
              %1979 = sbr.rel (%p1977) target = $region597
            $region594: #{_fuse_module_forward_impl.1} parent=589 // loop_body
              %v1983 = vld [vmem:[%s1981] sm:%s1974]
              %1984 = vst [vmem:[%s1982] sm:%s1974] %v1983
            $region595: #{_fuse_module_forward_impl.1} parent=589 // loop_footer
              %s1980 = sadd.s32 1, %s1976
            $region596: #{_fuse_module_forward_impl.1} parent=589 // loop_footer_branch
              %1975 = sbr.rel target = $region592
            $region597: #{_fuse_module_forward_impl.1} parent=589 // loop_exit
              _
          $region590: #{_fuse_module_forward_impl.1} parent=581 // pred_fallthru
            _
          // Predicated region
          $region609: #{_fuse_module_forward_impl.1} parent=581 // pred_check
            _
          $region610: #{_fuse_module_forward_impl.1} parent=581 // pred_check_branch
            %2008 = sbr.rel (0) target = $region612
          $region611: #{_fuse_module_forward_impl.1} parent=581 // pred_region
            %2009 = vsyncadd %s1965, 16
          $region612: #{_fuse_module_forward_impl.1} parent=581 // pred_fallthru
            _
        $region582: #{_fuse_module_forward_impl.1} parent=95 // pred_fallthru
          _
        // Predicated region
        $region613: #{_fuse_module_forward_impl.1} parent=95 // pred_check
          %p2010 = pneg %p1604
        $region614: #{_fuse_module_forward_impl.1} parent=95 // pred_check_branch
          %2012 = sbr.rel (%p2010) target = $region616
        $region615: #{_fuse_module_forward_impl.1} parent=95 // pred_region
          %s2013 = sshll.u32 %s846, 4
          %2014 = dma.done [#allocation5], %s2013
        $region616: #{_fuse_module_forward_impl.1} parent=95 // pred_fallthru
          _
        // Predicated region
        $region617: #{_fuse_module_forward_impl.1} parent=95 // pred_check
          %p2015 = pneg %p1605
        $region618: #{_fuse_module_forward_impl.1} parent=95 // pred_check_branch
          %2017 = sbr.rel (%p2015) target = $region620
        $region619: #{_fuse_module_forward_impl.1} parent=95 // pred_region
          %s2018 = scalar_lea.sflag [#allocation5], 1
          %s2019 = sshll.u32 %s846, 4
          %2020 = dma.done %s2018, %s2019
        $region620: #{_fuse_module_forward_impl.1} parent=95 // pred_fallthru
          _
        // Predicated region
        $region621: #{_fuse_module_forward_impl.1} parent=95 // pred_check
          %p2021 = pneg %p1606
        $region622: #{_fuse_module_forward_impl.1} parent=95 // pred_check_branch
          %2023 = sbr.rel (%p2021) target = $region624
        $region623: #{_fuse_module_forward_impl.1} parent=95 // pred_region
          %s2024 = scalar_lea.sflag [#allocation5], 2
          %s2025 = sshll.u32 %s846, 4
          %2026 = dma.done %s2024, %s2025
        $region624: #{_fuse_module_forward_impl.1} parent=95 // pred_fallthru
          _
        // Predicated region
        $region625: #{_fuse_module_forward_impl.1} parent=95 // pred_check
          %p2027 = pneg %p1607
        $region626: #{_fuse_module_forward_impl.1} parent=95 // pred_check_branch
          %2029 = sbr.rel (%p2027) target = $region628
        $region627: #{_fuse_module_forward_impl.1} parent=95 // pred_region
          %s2030 = scalar_lea.sflag [#allocation5], 3
          %s2031 = sshll.u32 %s846, 4
          %2032 = dma.done %s2030, %s2031
        $region628: #{_fuse_module_forward_impl.1} parent=95 // pred_fallthru
          _
        // Predicated region
        $region629: #{_fuse_module_forward_impl.1} parent=95 // pred_check
          %p2033 = pneg %p1608
        $region630: #{_fuse_module_forward_impl.1} parent=95 // pred_check_branch
          %2035 = sbr.rel (%p2033) target = $region632
        $region631: #{_fuse_module_forward_impl.1} parent=95 // pred_region
          %s2036 = scalar_lea.sflag [#allocation5], 4
          %s2037 = sshll.u32 %s846, 4
          %2038 = dma.done %s2036, %s2037
        $region632: #{_fuse_module_forward_impl.1} parent=95 // pred_fallthru
          _
        // Predicated region
        $region633: #{_fuse_module_forward_impl.1} parent=95 // pred_check
          %p2039 = pneg %p1609
        $region634: #{_fuse_module_forward_impl.1} parent=95 // pred_check_branch
          %2041 = sbr.rel (%p2039) target = $region636
        $region635: #{_fuse_module_forward_impl.1} parent=95 // pred_region
          %s2042 = scalar_lea.sflag [#allocation5], 5
          %s2043 = sshll.u32 %s846, 4
          %2044 = dma.done %s2042, %s2043
        $region636: #{_fuse_module_forward_impl.1} parent=95 // pred_fallthru
          _
        // Predicated region
        $region637: #{_fuse_module_forward_impl.1} parent=95 // pred_check
          %p2045 = pneg %p1610
        $region638: #{_fuse_module_forward_impl.1} parent=95 // pred_check_branch
          %2047 = sbr.rel (%p2045) target = $region640
        $region639: #{_fuse_module_forward_impl.1} parent=95 // pred_region
          %s2048 = scalar_lea.sflag [#allocation5], 6
          %s2049 = sshll.u32 %s846, 4
          %2050 = dma.done %s2048, %s2049
        $region640: #{_fuse_module_forward_impl.1} parent=95 // pred_fallthru
          _
        // Predicated region
        $region641: #{_fuse_module_forward_impl.1} parent=95 // pred_check
          %p2051 = pneg %p1611
        $region642: #{_fuse_module_forward_impl.1} parent=95 // pred_check_branch
          %2053 = sbr.rel (%p2051) target = $region644
        $region643: #{_fuse_module_forward_impl.1} parent=95 // pred_region
          %s2054 = scalar_lea.sflag [#allocation5], 7
          %s2055 = sshll.u32 %s846, 4
          %2056 = dma.done %s2054, %s2055
        $region644: #{_fuse_module_forward_impl.1} parent=95 // pred_fallthru
          _
      $region96: #{_fuse_module_forward_impl.1} parent=5 // pred_fallthru
        _
    $region6: #{_fuse_module_forward_impl.1} parent=1 // loop_footer
      %s31 = sadd.s32 1, %s27
    $region7: #{_fuse_module_forward_impl.1} parent=1 // loop_footer_branch
      %26 = sbr.rel target = $region3
    $region8: #{_fuse_module_forward_impl.1} parent=1 // loop_exit
      _
    %2057 = vsyncpa [#allocation7], 1
    %s2058 = scalar_lea.sflag [#allocation7], 1
    %2059 = vsyncpa %s2058, 1
  %2060 = vsyncmov [#allocation4]
  %s2061 = vpop.sfrf %2060
  %p2062 = scmp.eq.s32.totalorder %s2061, 0
  %p2063 = pneg %p2062
  %2065 = shalt.err (%p2063)
  %s2066 = scalar_lea.sflag [#allocation4], 1
  %2067 = vsyncmov %s2066
  %s2068 = vpop.sfrf %2067
  %p2069 = scmp.eq.s32.totalorder %s2068, 0
  %p2070 = pneg %p2069
  %2072 = shalt.err (%p2070)
  %s2073 = scalar_lea.sflag [#allocation4], 2
  %2074 = vsyncmov %s2073
  %s2075 = vpop.sfrf %2074
  %p2076 = scmp.eq.s32.totalorder %s2075, 0
  %p2077 = pneg %p2076
  %2079 = shalt.err (%p2077)
  %s2080 = scalar_lea.sflag [#allocation4], 3
  %2081 = vsyncmov %s2080
  %s2082 = vpop.sfrf %2081
  %p2083 = scmp.eq.s32.totalorder %s2082, 0
  %p2084 = pneg %p2083
  %2086 = shalt.err (%p2084)
  %s2087 = scalar_lea.sflag [#allocation4], 4
  %2088 = vsyncmov %s2087
  %s2089 = vpop.sfrf %2088
  %p2090 = scmp.eq.s32.totalorder %s2089, 0
  %p2091 = pneg %p2090
  %2093 = shalt.err (%p2091)
  %s2094 = scalar_lea.sflag [#allocation4], 5
  %2095 = vsyncmov %s2094
  %s2096 = vpop.sfrf %2095
  %p2097 = scmp.eq.s32.totalorder %s2096, 0
  %p2098 = pneg %p2097
  %2100 = shalt.err (%p2098)
  %s2101 = scalar_lea.sflag [#allocation4], 6
  %2102 = vsyncmov %s2101
  %s2103 = vpop.sfrf %2102
  %p2104 = scmp.eq.s32.totalorder %s2103, 0
  %p2105 = pneg %p2104
  %2107 = shalt.err (%p2105)
  %s2108 = scalar_lea.sflag [#allocation4], 7
  %2109 = vsyncmov %s2108
  %s2110 = vpop.sfrf %2109
  %p2111 = scmp.eq.s32.totalorder %s2110, 0
  %p2112 = pneg %p2111
  %2114 = shalt.err (%p2112)
  %2115 = vsyncmov [#allocation5]
  %s2116 = vpop.sfrf %2115
  %p2117 = scmp.eq.s32.totalorder %s2116, 0
  %p2118 = pneg %p2117
  %2120 = shalt.err (%p2118)
  %s2121 = scalar_lea.sflag [#allocation5], 1
  %2122 = vsyncmov %s2121
  %s2123 = vpop.sfrf %2122
  %p2124 = scmp.eq.s32.totalorder %s2123, 0
  %p2125 = pneg %p2124
  %2127 = shalt.err (%p2125)
  %s2128 = scalar_lea.sflag [#allocation5], 2
  %2129 = vsyncmov %s2128
  %s2130 = vpop.sfrf %2129
  %p2131 = scmp.eq.s32.totalorder %s2130, 0
  %p2132 = pneg %p2131
  %2134 = shalt.err (%p2132)
  %s2135 = scalar_lea.sflag [#allocation5], 3
  %2136 = vsyncmov %s2135
  %s2137 = vpop.sfrf %2136
  %p2138 = scmp.eq.s32.totalorder %s2137, 0
  %p2139 = pneg %p2138
  %2141 = shalt.err (%p2139)
  %s2142 = scalar_lea.sflag [#allocation5], 4
  %2143 = vsyncmov %s2142
  %s2144 = vpop.sfrf %2143
  %p2145 = scmp.eq.s32.totalorder %s2144, 0
  %p2146 = pneg %p2145
  %2148 = shalt.err (%p2146)
  %s2149 = scalar_lea.sflag [#allocation5], 5
  %2150 = vsyncmov %s2149
  %s2151 = vpop.sfrf %2150
  %p2152 = scmp.eq.s32.totalorder %s2151, 0
  %p2153 = pneg %p2152
  %2155 = shalt.err (%p2153)
  %s2156 = scalar_lea.sflag [#allocation5], 6
  %2157 = vsyncmov %s2156
  %s2158 = vpop.sfrf %2157
  %p2159 = scmp.eq.s32.totalorder %s2158, 0
  %p2160 = pneg %p2159
  %2162 = shalt.err (%p2160)
  %s2163 = scalar_lea.sflag [#allocation5], 7
  %2164 = vsyncmov %s2163
  %s2165 = vpop.sfrf %2164
  %p2166 = scmp.eq.s32.totalorder %s2165, 0
  %p2167 = pneg %p2166
  %2169 = shalt.err (%p2167)

</llo_original>
